<compile_context>
chip_gen: v6e
topology: v6e:2x2x1
jax: 0.10.0
libtpu: 0.0.40
codegen_flags: <defaults>
</compile_context>

<pallas_src>
import functools

import numpy as np

import jax
import jax.numpy as jnp
from jax.experimental import pallas as pl
from jax.experimental.pallas import tpu as pltpu


# ----------------------------------------------------------------------------
# Static gather indices for conv1's patches (built once with numpy).
#
# P[qw, t=8*i+j, 10*h + ww] = x[4*h + i, 8*ww + 4*qw + j]
# i.e. the im2col row for conv1 output position (h, w=2*ww+qw), tap (i, j),
# stored with a per-row width of 10 and padded to 256 lanes per image.
# Unused lanes point at a zero column appended to x (sentinel index 84).
# ----------------------------------------------------------------------------
_STRIDE = 256          # per-image lane stride used by every in-kernel tensor

_IDX = np.full((2, 64, _STRIDE), 84, dtype=np.int32)   # 84 -> padded zero col
_hh, _ww = np.meshgrid(np.arange(20), np.arange(10), indexing="ij")
_f1 = (10 * _hh + _ww).reshape(-1)
for _qw in range(2):
    for _i in range(8):
        for _j in range(8):
            _rows = 4 * _hh + _i
            _cols = 8 * _ww + 4 * _qw + _j
            _IDX[_qw, 8 * _i + _j, _f1] = (_rows * 85 + _cols).reshape(-1)
_IDX_FLAT = jnp.asarray(_IDX.reshape(-1))


def _build_conv1_patches(x3):
    """x3: (N, 84, 84) f32 -> conv1 patch matrix (2, 64, N*256) bf16."""
    n = x3.shape[0]
    x_pad = jnp.pad(x3, ((0, 0), (0, 0), (0, 1)))          # zero column at 84
    x_flat = x_pad.reshape(n, 84 * 85)
    p = jnp.take(x_flat, _IDX_FLAT, axis=1)                 # (N, 2*64*256)
    p = p.reshape(n, 2, 64, _STRIDE).transpose(1, 2, 0, 3)  # (2, 64, N, 256)
    p = p.reshape(2, 64, n * _STRIDE)
    return p.astype(jnp.bfloat16)


# ----------------------------------------------------------------------------
# The fused kernel (one grid step = one chunk of `bc` images).
# ----------------------------------------------------------------------------
def _convnet1_kernel(p_ref, w1_ref, b1_ref, w2_ref, b2_ref, w3_ref, b3_ref,
                     w4_ref, b4_ref, w5_ref, b5_ref, o_ref, a1_ref, a2_ref,
                     *, bc):
    f32 = jnp.float32
    bf16 = jnp.bfloat16
    w2acc = (bc - 1) * _STRIDE + 192     # lanes needed for conv2 output / a2
    w3acc = (bc - 1) * _STRIDE + 128     # lanes needed for conv3 output / a3

    # ---- conv1 (8x8, stride 4): one matmul per output-column parity --------
    for qw in range(2):
        acc1 = jnp.dot(w1_ref[...], p_ref[qw], preferred_element_type=f32)
        a1_ref[qw] = jnp.maximum(acc1 + b1_ref[...], 0.0).astype(bf16)

    # ---- conv2 (4x4, stride 2): 16 taps, implicit im2col via lane shifts ---
    acc2 = None
    for i in range(4):
        for j in range(4):
            pj, qj = j // 2, j % 2
            start = 10 * i + pj
            slab = a1_ref[qj, :, start:start + w2acc]          # (32, w2acc)
            d = jnp.dot(w2_ref[4 * i + j], slab, preferred_element_type=f32)
            acc2 = d if acc2 is None else acc2 + d
    a2_ref[...] = jnp.maximum(acc2 + b2_ref[...], 0.0).astype(bf16)

    # ---- conv3 (3x3, stride 1): 9 taps --------------------------------------
    acc3 = None
    for i in range(3):
        for j in range(3):
            start = 20 * i + j
            slab = a2_ref[:, start:start + w3acc]              # (64, w3acc)
            d = jnp.dot(w3_ref[3 * i + j], slab, preferred_element_type=f32)
            acc3 = d if acc3 is None else acc3 + d
    a3 = jnp.maximum(acc3 + b3_ref[...], 0.0).astype(bf16)     # (64, w3acc)

    # ---- flatten to PyTorch (C, H, W) order, per image ----------------------
    per_img = []
    for b in range(bc):
        base = b * _STRIDE
        cols = [a3[:, base + 20 * r: base + 20 * r + 7] for r in range(7)]
        per_img.append(jnp.concatenate(cols, axis=-1))         # (64, 49)
    a3s = jnp.stack(per_img, axis=0)                           # (bc, 64, 49)
    lhs = jnp.concatenate([a3s[:, c, :] for c in range(64)], axis=-1)  # (bc, 3136)

    # ---- fc1 + relu, fc2 (lane-dense: n_actions padded to 128) --------------
    h1 = jnp.dot(lhs, w4_ref[...], preferred_element_type=f32) + b4_ref[...]
    h1 = jnp.maximum(h1, 0.0).astype(bf16)
    out = jnp.dot(h1, w5_ref[...], preferred_element_type=f32) + b5_ref[...]
    o_ref[...] = out.astype(o_ref.dtype)


def _convnet1_pallas(prepared, patches, n, bc):
    n_actions = prepared["w5"].shape[1]
    a_pad = max(128, ((n_actions + 127) // 128) * 128)   # lane-dense fc2 / store
    w5, b5 = prepared["w5"], prepared["b5"]
    if a_pad != n_actions:
        w5 = jnp.pad(w5, ((0, 0), (0, a_pad - n_actions)))
        b5 = jnp.pad(b5, ((0, 0), (0, a_pad - n_actions)))
    w2acc = (bc - 1) * _STRIDE + 192

    kernel = functools.partial(_convnet1_kernel, bc=bc)
    out = pl.pallas_call(
        kernel,
        out_shape=jax.ShapeDtypeStruct((n, a_pad), jnp.float32),
        grid_spec=pltpu.PrefetchScalarGridSpec(
            num_scalar_prefetch=0,
            grid=(n // bc,),
            in_specs=[
                pl.BlockSpec((2, 64, bc * _STRIDE), lambda i: (0, 0, i)),  # P
                pl.BlockSpec((32, 64), lambda i: (0, 0)),                  # w1
                pl.BlockSpec((32, 1), lambda i: (0, 0)),                   # b1
                pl.BlockSpec((16, 64, 32), lambda i: (0, 0, 0)),           # w2
                pl.BlockSpec((64, 1), lambda i: (0, 0)),                   # b2
                pl.BlockSpec((9, 64, 64), lambda i: (0, 0, 0)),            # w3
                pl.BlockSpec((64, 1), lambda i: (0, 0)),                   # b3
                pl.BlockSpec((3136, 512), lambda i: (0, 0)),               # w4
                pl.BlockSpec((1, 512), lambda i: (0, 0)),                  # b4
                pl.BlockSpec((512, a_pad), lambda i: (0, 0)),              # w5 (pad)
                pl.BlockSpec((1, a_pad), lambda i: (0, 0)),                # b5 (pad)
            ],
            out_specs=pl.BlockSpec((bc, a_pad), lambda i: (i, 0)),
            scratch_shapes=[
                pltpu.VMEM((2, 32, bc * _STRIDE), jnp.bfloat16),  # a1 (relu'd)
                pltpu.VMEM((64, w2acc), jnp.bfloat16),            # a2 (relu'd)
            ],
        ),
        compiler_params=pltpu.CompilerParams(
            dimension_semantics=("parallel",),
            vmem_limit_bytes=32 * 1024 * 1024,
        ),
    )(patches, prepared["w1"], prepared["b1"], prepared["w2"], prepared["b2"],
      prepared["w3"], prepared["b3"], prepared["w4"], prepared["b4"], w5, b5)

    if a_pad != n_actions:
        out = out[:, :n_actions]
    return out


# ----------------------------------------------------------------------------
# Parameters: PyTorch-layout init + one-time repack into kernel layout.
# ----------------------------------------------------------------------------
def init_params(key, n_actions):
    def u(key, shape, fan_in):
        bound = 1.0 / np.sqrt(float(fan_in))
        return jax.random.uniform(key, shape, jnp.float32, -bound, bound)

    keys = jax.random.split(key, 10)
    return {
        "conv1_w": u(keys[0], (32, 1, 8, 8), 1 * 8 * 8),
        "conv1_b": u(keys[1], (32,), 1 * 8 * 8),
        "conv2_w": u(keys[2], (64, 32, 4, 4), 32 * 4 * 4),
        "conv2_b": u(keys[3], (64,), 32 * 4 * 4),
        "conv3_w": u(keys[4], (64, 64, 3, 3), 64 * 3 * 3),
        "conv3_b": u(keys[5], (64,), 64 * 3 * 3),
        "fc1_w": u(keys[6], (512, 64 * 7 * 7), 64 * 7 * 7),
        "fc1_b": u(keys[7], (512,), 64 * 7 * 7),
        "fc2_w": u(keys[8], (n_actions, 512), 512),
        "fc2_b": u(keys[9], (n_actions,), 512),
    }


def prepare_params(params):
    """One-time repack of PyTorch-layout weights into the kernel layout (bf16)."""
    bf16, f32 = jnp.bfloat16, jnp.float32
    return {
        "w1": params["conv1_w"].reshape(32, 64).astype(bf16),          # (Cout, 8*i+j)
        "b1": params["conv1_b"].reshape(32, 1).astype(f32),
        "w2": params["conv2_w"].transpose(2, 3, 0, 1).reshape(16, 64, 32).astype(bf16),
        "b2": params["conv2_b"].reshape(64, 1).astype(f32),
        "w3": params["conv3_w"].transpose(2, 3, 0, 1).reshape(9, 64, 64).astype(bf16),
        "b3": params["conv3_b"].reshape(64, 1).astype(f32),
        "w4": params["fc1_w"].T.astype(bf16),                          # (3136, 512)
        "b4": params["fc1_b"].reshape(1, 512).astype(f32),
        "w5": params["fc2_w"].T.astype(bf16),                          # (512, A)
        "b5": params["fc2_b"].reshape(1, -1).astype(f32),
    }


# ----------------------------------------------------------------------------
# Forward pass matching ConvNet1.forward.
# ----------------------------------------------------------------------------
def convnet1_forward(prepared, x):
    if x.size == 84 * 84:          # same static branch logic as the PyTorch code
        n = 1
    else:
        n = 32
    x3 = x.reshape(n, 84, 84)
    patches = _build_conv1_patches(x3)     # one XLA gather on the raw input
    bc = 1 if n == 1 else 16               # 16 images / grid step at batch 32
    return _convnet1_pallas(prepared, patches, n, bc)


# ----------------------------------------------------------------------------
# Pure-JAX f32 reference (tolerance check against the bf16 kernel).
# ----------------------------------------------------------------------------
def reference_forward(params, x):
    n = 1 if x.size == 84 * 84 else 32
    z = x.reshape(n, 1, 84, 84)

    def conv(z, w, b, s):
        y = jax.lax.conv_general_dilated(
            z, w, (s, s), "VALID",
            dimension_numbers=("NCHW", "OIHW", "NCHW"))
        return jax.nn.relu(y + b.reshape(1, -1, 1, 1))

    z = conv(z, params["conv1_w"], params["conv1_b"], 4)
    z = conv(z, params["conv2_w"], params["conv2_b"], 2)
    z = conv(z, params["conv3_w"], params["conv3_b"], 1)
    z = z.reshape(n, -1)
    z = jax.nn.relu(z @ params["fc1_w"].T + params["fc1_b"])
    return z @ params["fc2_w"].T + params["fc2_b"]


if __name__ == "__main__":
    n_actions = 6
    key = jax.random.PRNGKey(0)
    pkey, xkey1, xkey2 = jax.random.split(key, 3)
    params = init_params(pkey, n_actions)
    prepared = prepare_params(params)          # weight repack done once

    fwd = jax.jit(convnet1_forward)

    # Batch-1 path (numel == 84*84).
    x1 = jax.random.uniform(xkey1, (84, 84), jnp.float32)
    out1 = jax.block_until_ready(fwd(prepared, x1))
    assert out1.shape == (1, n_actions), out1.shape
    assert bool(jnp.all(jnp.isfinite(out1)))
    ref1 = reference_forward(params, x1)
    assert float(jnp.max(jnp.abs(out1 - ref1))) < 3e-2

    # Batch-32 path.
    x32 = jax.random.uniform(xkey2, (32, 1, 84, 84), jnp.float32)
    out32 = jax.block_until_ready(fwd(prepared, x32))
    assert out32.shape == (32, n_actions), out32.shape
    assert bool(jnp.all(jnp.isfinite(out32)))
    ref32 = reference_forward(params, x32)
    assert float(jnp.max(jnp.abs(out32 - ref32))) < 3e-2

    print("KERNEL_OK")
</pallas_src>

<mosaic_0001>
module attributes {stable_mosaic.version = 11 : i64} {
  func.func @_convnet1_kernel(%arg0: i32, %arg1: memref<2x64x256xbf16, #tpu.memory_space<vmem>>, %arg2: memref<32x64xbf16, #tpu.memory_space<vmem>>, %arg3: memref<32x1xf32, #tpu.memory_space<vmem>>, %arg4: memref<16x64x32xbf16, #tpu.memory_space<vmem>>, %arg5: memref<64x1xf32, #tpu.memory_space<vmem>>, %arg6: memref<9x64x64xbf16, #tpu.memory_space<vmem>>, %arg7: memref<64x1xf32, #tpu.memory_space<vmem>>, %arg8: memref<3136x512xbf16, #tpu.memory_space<vmem>>, %arg9: memref<1x512xf32, #tpu.memory_space<vmem>>, %arg10: memref<512x128xbf16, #tpu.memory_space<vmem>>, %arg11: memref<1x128xf32, #tpu.memory_space<vmem>>, %arg12: memref<1x128xf32, #tpu.memory_space<vmem>>, %arg13: memref<2x32x256xbf16, #tpu.memory_space<vmem>>, %arg14: memref<64x192xbf16, #tpu.memory_space<vmem>>) attributes {dimension_semantics = [#tpu.dimension_semantics<parallel>], iteration_bounds = array<i64: 1>, scalar_prefetch = 0 : i64, scratch_operands = 2 : i64, tpu.core_type = #tpu.core_type<tc>, window_params = [{transform_indices = @transform_0, window_bounds = array<i64: 2, 64, 256>}, {pipeline_mode = #tpu.pipeline_mode<synchronous>, transform_indices = @transform_1, window_bounds = array<i64: 32, 64>}, {pipeline_mode = #tpu.pipeline_mode<synchronous>, transform_indices = @transform_2, window_bounds = array<i64: 32, 1>}, {pipeline_mode = #tpu.pipeline_mode<synchronous>, transform_indices = @transform_3, window_bounds = array<i64: 16, 64, 32>}, {pipeline_mode = #tpu.pipeline_mode<synchronous>, transform_indices = @transform_4, window_bounds = array<i64: 64, 1>}, {pipeline_mode = #tpu.pipeline_mode<synchronous>, transform_indices = @transform_5, window_bounds = array<i64: 9, 64, 64>}, {pipeline_mode = #tpu.pipeline_mode<synchronous>, transform_indices = @transform_6, window_bounds = array<i64: 64, 1>}, {pipeline_mode = #tpu.pipeline_mode<synchronous>, transform_indices = @transform_7, window_bounds = array<i64: 3136, 512>}, {pipeline_mode = #tpu.pipeline_mode<synchronous>, transform_indices = @transform_8, window_bounds = array<i64: 1, 512>}, {pipeline_mode = #tpu.pipeline_mode<synchronous>, transform_indices = @transform_9, window_bounds = array<i64: 512, 128>}, {pipeline_mode = #tpu.pipeline_mode<synchronous>, transform_indices = @transform_10, window_bounds = array<i64: 1, 128>}, {transform_indices = @transform_11, window_bounds = array<i64: 1, 128>}]} {
    %c0 = arith.constant 0 : index
    %c0_0 = arith.constant 0 : index
    %0 = vector.load %arg2[%c0, %c0_0] : memref<32x64xbf16, #tpu.memory_space<vmem>>, vector<32x64xbf16>
    %c0_1 = arith.constant 0 : index
    %c0_2 = arith.constant 0 : index
    %c0_3 = arith.constant 0 : index
    %1 = vector.load %arg1[%c0_1, %c0_2, %c0_3] : memref<2x64x256xbf16, #tpu.memory_space<vmem>>, vector<1x64x256xbf16>
    %2 = vector.shape_cast %1 : vector<1x64x256xbf16> to vector<64x256xbf16>
    %cst = arith.constant dense<0.000000e+00> : vector<32x256xf32>
    %3 = tpu.matmul %0, %2, %cst {dimension_numbers = #tpu.dot_dimension_numbers<[1], [0], [0], [1], [0, 0, 1, 1], [], []>} : vector<32x64xbf16>, vector<64x256xbf16>, vector<32x256xf32> -> vector<32x256xf32>
    %c0_4 = arith.constant 0 : index
    %c0_5 = arith.constant 0 : index
    %4 = vector.load %arg3[%c0_4, %c0_5] : memref<32x1xf32, #tpu.memory_space<vmem>>, vector<32x1xf32>
    %5 = vector.broadcast %4 : vector<32x1xf32> to vector<32x256xf32>
    %6 = arith.addf %3, %5 : vector<32x256xf32>
    %cst_6 = arith.constant 0.000000e+00 : f32
    %7 = vector.broadcast %cst_6 : f32 to vector<32x256xf32>
    %8 = arith.maximumf %6, %7 : vector<32x256xf32>
    %9 = arith.truncf %8 : vector<32x256xf32> to vector<32x256xbf16>
    %c0_7 = arith.constant 0 : index
    %c0_8 = arith.constant 0 : index
    %c0_9 = arith.constant 0 : index
    %10 = vector.load %arg13[%c0_7, %c0_8, %c0_9] : memref<2x32x256xbf16, #tpu.memory_space<vmem>>, vector<1x32x256xbf16>
    %11 = vector.shape_cast %10 : vector<1x32x256xbf16> to vector<32x256xbf16>
    %12 = vector.shape_cast %9 : vector<32x256xbf16> to vector<1x32x256xbf16>
    tpu.vector_store %arg13[%c0_7, %c0_8, %c0_9], %12 {strides = array<i32>} : memref<2x32x256xbf16, #tpu.memory_space<vmem>>, vector<1x32x256xbf16>,
    %c0_10 = arith.constant 0 : index
    %c0_11 = arith.constant 0 : index
    %13 = vector.load %arg2[%c0_10, %c0_11] : memref<32x64xbf16, #tpu.memory_space<vmem>>, vector<32x64xbf16>
    %c1 = arith.constant 1 : index
    %c0_12 = arith.constant 0 : index
    %c0_13 = arith.constant 0 : index
    %14 = vector.load %arg1[%c1, %c0_12, %c0_13] : memref<2x64x256xbf16, #tpu.memory_space<vmem>>, vector<1x64x256xbf16>
    %15 = vector.shape_cast %14 : vector<1x64x256xbf16> to vector<64x256xbf16>
    %cst_14 = arith.constant dense<0.000000e+00> : vector<32x256xf32>
    %16 = tpu.matmul %13, %15, %cst_14 {dimension_numbers = #tpu.dot_dimension_numbers<[1], [0], [0], [1], [0, 0, 1, 1], [], []>} : vector<32x64xbf16>, vector<64x256xbf16>, vector<32x256xf32> -> vector<32x256xf32>
    %c0_15 = arith.constant 0 : index
    %c0_16 = arith.constant 0 : index
    %17 = vector.load %arg3[%c0_15, %c0_16] : memref<32x1xf32, #tpu.memory_space<vmem>>, vector<32x1xf32>
    %18 = vector.broadcast %17 : vector<32x1xf32> to vector<32x256xf32>
    %19 = arith.addf %16, %18 : vector<32x256xf32>
    %cst_17 = arith.constant 0.000000e+00 : f32
    %20 = vector.broadcast %cst_17 : f32 to vector<32x256xf32>
    %21 = arith.maximumf %19, %20 : vector<32x256xf32>
    %22 = arith.truncf %21 : vector<32x256xf32> to vector<32x256xbf16>
    %c1_18 = arith.constant 1 : index
    %c0_19 = arith.constant 0 : index
    %c0_20 = arith.constant 0 : index
    %23 = vector.load %arg13[%c1_18, %c0_19, %c0_20] : memref<2x32x256xbf16, #tpu.memory_space<vmem>>, vector<1x32x256xbf16>
    %24 = vector.shape_cast %23 : vector<1x32x256xbf16> to vector<32x256xbf16>
    %25 = vector.shape_cast %22 : vector<32x256xbf16> to vector<1x32x256xbf16>
    tpu.vector_store %arg13[%c1_18, %c0_19, %c0_20], %25 {strides = array<i32>} : memref<2x32x256xbf16, #tpu.memory_space<vmem>>, vector<1x32x256xbf16>,
    %c0_21 = arith.constant 0 : index
    %c0_22 = arith.constant 0 : index
    %c0_23 = arith.constant 0 : index
    %26 = vector.load %arg13[%c0_21, %c0_22, %c0_23] : memref<2x32x256xbf16, #tpu.memory_space<vmem>>, vector<1x32x192xbf16>
    %27 = vector.shape_cast %26 : vector<1x32x192xbf16> to vector<32x192xbf16>
    %c0_24 = arith.constant 0 : index
    %c0_25 = arith.constant 0 : index
    %c0_26 = arith.constant 0 : index
    %28 = vector.load %arg4[%c0_24, %c0_25, %c0_26] : memref<16x64x32xbf16, #tpu.memory_space<vmem>>, vector<1x64x32xbf16>
    %29 = vector.shape_cast %28 : vector<1x64x32xbf16> to vector<64x32xbf16>
    %cst_27 = arith.constant dense<0.000000e+00> : vector<64x192xf32>
    %30 = tpu.matmul %29, %27, %cst_27 {dimension_numbers = #tpu.dot_dimension_numbers<[1], [0], [0], [1], [0, 0, 1, 1], [], []>} : vector<64x32xbf16>, vector<32x192xbf16>, vector<64x192xf32> -> vector<64x192xf32>
    %c1_28 = arith.constant 1 : index
    %c0_29 = arith.constant 0 : index
    %c0_30 = arith.constant 0 : index
    %31 = vector.load %arg13[%c1_28, %c0_29, %c0_30] : memref<2x32x256xbf16, #tpu.memory_space<vmem>>, vector<1x32x192xbf16>
    %32 = vector.shape_cast %31 : vector<1x32x192xbf16> to vector<32x192xbf16>
    %c1_31 = arith.constant 1 : index
    %c0_32 = arith.constant 0 : index
    %c0_33 = arith.constant 0 : index
    %33 = vector.load %arg4[%c1_31, %c0_32, %c0_33] : memref<16x64x32xbf16, #tpu.memory_space<vmem>>, vector<1x64x32xbf16>
    %34 = vector.shape_cast %33 : vector<1x64x32xbf16> to vector<64x32xbf16>
    %cst_34 = arith.constant dense<0.000000e+00> : vector<64x192xf32>
    %35 = tpu.matmul %34, %32, %cst_34 {dimension_numbers = #tpu.dot_dimension_numbers<[1], [0], [0], [1], [0, 0, 1, 1], [], []>} : vector<64x32xbf16>, vector<32x192xbf16>, vector<64x192xf32> -> vector<64x192xf32>
    %36 = arith.addf %30, %35 : vector<64x192xf32>
    %c0_35 = arith.constant 0 : index
    %c0_36 = arith.constant 0 : index
    %c1_37 = arith.constant 1 : index
    %37 = vector.load %arg13[%c0_35, %c0_36, %c1_37] : memref<2x32x256xbf16, #tpu.memory_space<vmem>>, vector<1x32x192xbf16>
    %38 = vector.shape_cast %37 : vector<1x32x192xbf16> to vector<32x192xbf16>
    %c2 = arith.constant 2 : index
    %c0_38 = arith.constant 0 : index
    %c0_39 = arith.constant 0 : index
    %39 = vector.load %arg4[%c2, %c0_38, %c0_39] : memref<16x64x32xbf16, #tpu.memory_space<vmem>>, vector<1x64x32xbf16>
    %40 = vector.shape_cast %39 : vector<1x64x32xbf16> to vector<64x32xbf16>
    %cst_40 = arith.constant dense<0.000000e+00> : vector<64x192xf32>
    %41 = tpu.matmul %40, %38, %cst_40 {dimension_numbers = #tpu.dot_dimension_numbers<[1], [0], [0], [1], [0, 0, 1, 1], [], []>} : vector<64x32xbf16>, vector<32x192xbf16>, vector<64x192xf32> -> vector<64x192xf32>
    %42 = arith.addf %36, %41 : vector<64x192xf32>
    %c1_41 = arith.constant 1 : index
    %c0_42 = arith.constant 0 : index
    %c1_43 = arith.constant 1 : index
    %43 = vector.load %arg13[%c1_41, %c0_42, %c1_43] : memref<2x32x256xbf16, #tpu.memory_space<vmem>>, vector<1x32x192xbf16>
    %44 = vector.shape_cast %43 : vector<1x32x192xbf16> to vector<32x192xbf16>
    %c3 = arith.constant 3 : index
    %c0_44 = arith.constant 0 : index
    %c0_45 = arith.constant 0 : index
    %45 = vector.load %arg4[%c3, %c0_44, %c0_45] : memref<16x64x32xbf16, #tpu.memory_space<vmem>>, vector<1x64x32xbf16>
    %46 = vector.shape_cast %45 : vector<1x64x32xbf16> to vector<64x32xbf16>
    %cst_46 = arith.constant dense<0.000000e+00> : vector<64x192xf32>
    %47 = tpu.matmul %46, %44, %cst_46 {dimension_numbers = #tpu.dot_dimension_numbers<[1], [0], [0], [1], [0, 0, 1, 1], [], []>} : vector<64x32xbf16>, vector<32x192xbf16>, vector<64x192xf32> -> vector<64x192xf32>
    %48 = arith.addf %42, %47 : vector<64x192xf32>
    %c0_47 = arith.constant 0 : index
    %c0_48 = arith.constant 0 : index
    %c10 = arith.constant 10 : index
    %49 = vector.load %arg13[%c0_47, %c0_48, %c10] : memref<2x32x256xbf16, #tpu.memory_space<vmem>>, vector<1x32x192xbf16>
    %50 = vector.shape_cast %49 : vector<1x32x192xbf16> to vector<32x192xbf16>
    %c4 = arith.constant 4 : index
    %c0_49 = arith.constant 0 : index
    %c0_50 = arith.constant 0 : index
    %51 = vector.load %arg4[%c4, %c0_49, %c0_50] : memref<16x64x32xbf16, #tpu.memory_space<vmem>>, vector<1x64x32xbf16>
    %52 = vector.shape_cast %51 : vector<1x64x32xbf16> to vector<64x32xbf16>
    %cst_51 = arith.constant dense<0.000000e+00> : vector<64x192xf32>
    %53 = tpu.matmul %52, %50, %cst_51 {dimension_numbers = #tpu.dot_dimension_numbers<[1], [0], [0], [1], [0, 0, 1, 1], [], []>} : vector<64x32xbf16>, vector<32x192xbf16>, vector<64x192xf32> -> vector<64x192xf32>
    %54 = arith.addf %48, %53 : vector<64x192xf32>
    %c1_52 = arith.constant 1 : index
    %c0_53 = arith.constant 0 : index
    %c10_54 = arith.constant 10 : index
    %55 = vector.load %arg13[%c1_52, %c0_53, %c10_54] : memref<2x32x256xbf16, #tpu.memory_space<vmem>>, vector<1x32x192xbf16>
    %56 = vector.shape_cast %55 : vector<1x32x192xbf16> to vector<32x192xbf16>
    %c5 = arith.constant 5 : index
    %c0_55 = arith.constant 0 : index
    %c0_56 = arith.constant 0 : index
    %57 = vector.load %arg4[%c5, %c0_55, %c0_56] : memref<16x64x32xbf16, #tpu.memory_space<vmem>>, vector<1x64x32xbf16>
    %58 = vector.shape_cast %57 : vector<1x64x32xbf16> to vector<64x32xbf16>
    %cst_57 = arith.constant dense<0.000000e+00> : vector<64x192xf32>
    %59 = tpu.matmul %58, %56, %cst_57 {dimension_numbers = #tpu.dot_dimension_numbers<[1], [0], [0], [1], [0, 0, 1, 1], [], []>} : vector<64x32xbf16>, vector<32x192xbf16>, vector<64x192xf32> -> vector<64x192xf32>
    %60 = arith.addf %54, %59 : vector<64x192xf32>
    %c0_58 = arith.constant 0 : index
    %c0_59 = arith.constant 0 : index
    %c11 = arith.constant 11 : index
    %61 = vector.load %arg13[%c0_58, %c0_59, %c11] : memref<2x32x256xbf16, #tpu.memory_space<vmem>>, vector<1x32x192xbf16>
    %62 = vector.shape_cast %61 : vector<1x32x192xbf16> to vector<32x192xbf16>
    %c6 = arith.constant 6 : index
    %c0_60 = arith.constant 0 : index
    %c0_61 = arith.constant 0 : index
    %63 = vector.load %arg4[%c6, %c0_60, %c0_61] : memref<16x64x32xbf16, #tpu.memory_space<vmem>>, vector<1x64x32xbf16>
    %64 = vector.shape_cast %63 : vector<1x64x32xbf16> to vector<64x32xbf16>
    %cst_62 = arith.constant dense<0.000000e+00> : vector<64x192xf32>
    %65 = tpu.matmul %64, %62, %cst_62 {dimension_numbers = #tpu.dot_dimension_numbers<[1], [0], [0], [1], [0, 0, 1, 1], [], []>} : vector<64x32xbf16>, vector<32x192xbf16>, vector<64x192xf32> -> vector<64x192xf32>
    %66 = arith.addf %60, %65 : vector<64x192xf32>
    %c1_63 = arith.constant 1 : index
    %c0_64 = arith.constant 0 : index
    %c11_65 = arith.constant 11 : index
    %67 = vector.load %arg13[%c1_63, %c0_64, %c11_65] : memref<2x32x256xbf16, #tpu.memory_space<vmem>>, vector<1x32x192xbf16>
    %68 = vector.shape_cast %67 : vector<1x32x192xbf16> to vector<32x192xbf16>
    %c7 = arith.constant 7 : index
    %c0_66 = arith.constant 0 : index
    %c0_67 = arith.constant 0 : index
    %69 = vector.load %arg4[%c7, %c0_66, %c0_67] : memref<16x64x32xbf16, #tpu.memory_space<vmem>>, vector<1x64x32xbf16>
    %70 = vector.shape_cast %69 : vector<1x64x32xbf16> to vector<64x32xbf16>
    %cst_68 = arith.constant dense<0.000000e+00> : vector<64x192xf32>
    %71 = tpu.matmul %70, %68, %cst_68 {dimension_numbers = #tpu.dot_dimension_numbers<[1], [0], [0], [1], [0, 0, 1, 1], [], []>} : vector<64x32xbf16>, vector<32x192xbf16>, vector<64x192xf32> -> vector<64x192xf32>
    %72 = arith.addf %66, %71 : vector<64x192xf32>
    %c0_69 = arith.constant 0 : index
    %c0_70 = arith.constant 0 : index
    %c20 = arith.constant 20 : index
    %73 = vector.load %arg13[%c0_69, %c0_70, %c20] : memref<2x32x256xbf16, #tpu.memory_space<vmem>>, vector<1x32x192xbf16>
    %74 = vector.shape_cast %73 : vector<1x32x192xbf16> to vector<32x192xbf16>
    %c8 = arith.constant 8 : index
    %c0_71 = arith.constant 0 : index
    %c0_72 = arith.constant 0 : index
    %75 = vector.load %arg4[%c8, %c0_71, %c0_72] : memref<16x64x32xbf16, #tpu.memory_space<vmem>>, vector<1x64x32xbf16>
    %76 = vector.shape_cast %75 : vector<1x64x32xbf16> to vector<64x32xbf16>
    %cst_73 = arith.constant dense<0.000000e+00> : vector<64x192xf32>
    %77 = tpu.matmul %76, %74, %cst_73 {dimension_numbers = #tpu.dot_dimension_numbers<[1], [0], [0], [1], [0, 0, 1, 1], [], []>} : vector<64x32xbf16>, vector<32x192xbf16>, vector<64x192xf32> -> vector<64x192xf32>
    %78 = arith.addf %72, %77 : vector<64x192xf32>
    %c1_74 = arith.constant 1 : index
    %c0_75 = arith.constant 0 : index
    %c20_76 = arith.constant 20 : index
    %79 = vector.load %arg13[%c1_74, %c0_75, %c20_76] : memref<2x32x256xbf16, #tpu.memory_space<vmem>>, vector<1x32x192xbf16>
    %80 = vector.shape_cast %79 : vector<1x32x192xbf16> to vector<32x192xbf16>
    %c9 = arith.constant 9 : index
    %c0_77 = arith.constant 0 : index
    %c0_78 = arith.constant 0 : index
    %81 = vector.load %arg4[%c9, %c0_77, %c0_78] : memref<16x64x32xbf16, #tpu.memory_space<vmem>>, vector<1x64x32xbf16>
    %82 = vector.shape_cast %81 : vector<1x64x32xbf16> to vector<64x32xbf16>
    %cst_79 = arith.constant dense<0.000000e+00> : vector<64x192xf32>
    %83 = tpu.matmul %82, %80, %cst_79 {dimension_numbers = #tpu.dot_dimension_numbers<[1], [0], [0], [1], [0, 0, 1, 1], [], []>} : vector<64x32xbf16>, vector<32x192xbf16>, vector<64x192xf32> -> vector<64x192xf32>
    %84 = arith.addf %78, %83 : vector<64x192xf32>
    %c0_80 = arith.constant 0 : index
    %c0_81 = arith.constant 0 : index
    %c21 = arith.constant 21 : index
    %85 = vector.load %arg13[%c0_80, %c0_81, %c21] : memref<2x32x256xbf16, #tpu.memory_space<vmem>>, vector<1x32x192xbf16>
    %86 = vector.shape_cast %85 : vector<1x32x192xbf16> to vector<32x192xbf16>
    %c10_82 = arith.constant 10 : index
    %c0_83 = arith.constant 0 : index
    %c0_84 = arith.constant 0 : index
    %87 = vector.load %arg4[%c10_82, %c0_83, %c0_84] : memref<16x64x32xbf16, #tpu.memory_space<vmem>>, vector<1x64x32xbf16>
    %88 = vector.shape_cast %87 : vector<1x64x32xbf16> to vector<64x32xbf16>
    %cst_85 = arith.constant dense<0.000000e+00> : vector<64x192xf32>
    %89 = tpu.matmul %88, %86, %cst_85 {dimension_numbers = #tpu.dot_dimension_numbers<[1], [0], [0], [1], [0, 0, 1, 1], [], []>} : vector<64x32xbf16>, vector<32x192xbf16>, vector<64x192xf32> -> vector<64x192xf32>
    %90 = arith.addf %84, %89 : vector<64x192xf32>
    %c1_86 = arith.constant 1 : index
    %c0_87 = arith.constant 0 : index
    %c21_88 = arith.constant 21 : index
    %91 = vector.load %arg13[%c1_86, %c0_87, %c21_88] : memref<2x32x256xbf16, #tpu.memory_space<vmem>>, vector<1x32x192xbf16>
    %92 = vector.shape_cast %91 : vector<1x32x192xbf16> to vector<32x192xbf16>
    %c11_89 = arith.constant 11 : index
    %c0_90 = arith.constant 0 : index
    %c0_91 = arith.constant 0 : index
    %93 = vector.load %arg4[%c11_89, %c0_90, %c0_91] : memref<16x64x32xbf16, #tpu.memory_space<vmem>>, vector<1x64x32xbf16>
    %94 = vector.shape_cast %93 : vector<1x64x32xbf16> to vector<64x32xbf16>
    %cst_92 = arith.constant dense<0.000000e+00> : vector<64x192xf32>
    %95 = tpu.matmul %94, %92, %cst_92 {dimension_numbers = #tpu.dot_dimension_numbers<[1], [0], [0], [1], [0, 0, 1, 1], [], []>} : vector<64x32xbf16>, vector<32x192xbf16>, vector<64x192xf32> -> vector<64x192xf32>
    %96 = arith.addf %90, %95 : vector<64x192xf32>
    %c0_93 = arith.constant 0 : index
    %c0_94 = arith.constant 0 : index
    %c30 = arith.constant 30 : index
    %97 = vector.load %arg13[%c0_93, %c0_94, %c30] : memref<2x32x256xbf16, #tpu.memory_space<vmem>>, vector<1x32x192xbf16>
    %98 = vector.shape_cast %97 : vector<1x32x192xbf16> to vector<32x192xbf16>
    %c12 = arith.constant 12 : index
    %c0_95 = arith.constant 0 : index
    %c0_96 = arith.constant 0 : index
    %99 = vector.load %arg4[%c12, %c0_95, %c0_96] : memref<16x64x32xbf16, #tpu.memory_space<vmem>>, vector<1x64x32xbf16>
    %100 = vector.shape_cast %99 : vector<1x64x32xbf16> to vector<64x32xbf16>
    %cst_97 = arith.constant dense<0.000000e+00> : vector<64x192xf32>
    %101 = tpu.matmul %100, %98, %cst_97 {dimension_numbers = #tpu.dot_dimension_numbers<[1], [0], [0], [1], [0, 0, 1, 1], [], []>} : vector<64x32xbf16>, vector<32x192xbf16>, vector<64x192xf32> -> vector<64x192xf32>
    %102 = arith.addf %96, %101 : vector<64x192xf32>
    %c1_98 = arith.constant 1 : index
    %c0_99 = arith.constant 0 : index
    %c30_100 = arith.constant 30 : index
    %103 = vector.load %arg13[%c1_98, %c0_99, %c30_100] : memref<2x32x256xbf16, #tpu.memory_space<vmem>>, vector<1x32x192xbf16>
    %104 = vector.shape_cast %103 : vector<1x32x192xbf16> to vector<32x192xbf16>
    %c13 = arith.constant 13 : index
    %c0_101 = arith.constant 0 : index
    %c0_102 = arith.constant 0 : index
    %105 = vector.load %arg4[%c13, %c0_101, %c0_102] : memref<16x64x32xbf16, #tpu.memory_space<vmem>>, vector<1x64x32xbf16>
    %106 = vector.shape_cast %105 : vector<1x64x32xbf16> to vector<64x32xbf16>
    %cst_103 = arith.constant dense<0.000000e+00> : vector<64x192xf32>
    %107 = tpu.matmul %106, %104, %cst_103 {dimension_numbers = #tpu.dot_dimension_numbers<[1], [0], [0], [1], [0, 0, 1, 1], [], []>} : vector<64x32xbf16>, vector<32x192xbf16>, vector<64x192xf32> -> vector<64x192xf32>
    %108 = arith.addf %102, %107 : vector<64x192xf32>
    %c0_104 = arith.constant 0 : index
    %c0_105 = arith.constant 0 : index
    %c31 = arith.constant 31 : index
    %109 = vector.load %arg13[%c0_104, %c0_105, %c31] : memref<2x32x256xbf16, #tpu.memory_space<vmem>>, vector<1x32x192xbf16>
    %110 = vector.shape_cast %109 : vector<1x32x192xbf16> to vector<32x192xbf16>
    %c14 = arith.constant 14 : index
    %c0_106 = arith.constant 0 : index
    %c0_107 = arith.constant 0 : index
    %111 = vector.load %arg4[%c14, %c0_106, %c0_107] : memref<16x64x32xbf16, #tpu.memory_space<vmem>>, vector<1x64x32xbf16>
    %112 = vector.shape_cast %111 : vector<1x64x32xbf16> to vector<64x32xbf16>
    %cst_108 = arith.constant dense<0.000000e+00> : vector<64x192xf32>
    %113 = tpu.matmul %112, %110, %cst_108 {dimension_numbers = #tpu.dot_dimension_numbers<[1], [0], [0], [1], [0, 0, 1, 1], [], []>} : vector<64x32xbf16>, vector<32x192xbf16>, vector<64x192xf32> -> vector<64x192xf32>
    %114 = arith.addf %108, %113 : vector<64x192xf32>
    %c1_109 = arith.constant 1 : index
    %c0_110 = arith.constant 0 : index
    %c31_111 = arith.constant 31 : index
    %115 = vector.load %arg13[%c1_109, %c0_110, %c31_111] : memref<2x32x256xbf16, #tpu.memory_space<vmem>>, vector<1x32x192xbf16>
    %116 = vector.shape_cast %115 : vector<1x32x192xbf16> to vector<32x192xbf16>
    %c15 = arith.constant 15 : index
    %c0_112 = arith.constant 0 : index
    %c0_113 = arith.constant 0 : index
    %117 = vector.load %arg4[%c15, %c0_112, %c0_113] : memref<16x64x32xbf16, #tpu.memory_space<vmem>>, vector<1x64x32xbf16>
    %118 = vector.shape_cast %117 : vector<1x64x32xbf16> to vector<64x32xbf16>
    %cst_114 = arith.constant dense<0.000000e+00> : vector<64x192xf32>
    %119 = tpu.matmul %118, %116, %cst_114 {dimension_numbers = #tpu.dot_dimension_numbers<[1], [0], [0], [1], [0, 0, 1, 1], [], []>} : vector<64x32xbf16>, vector<32x192xbf16>, vector<64x192xf32> -> vector<64x192xf32>
    %120 = arith.addf %114, %119 : vector<64x192xf32>
    %c0_115 = arith.constant 0 : index
    %c0_116 = arith.constant 0 : index
    %121 = vector.load %arg5[%c0_115, %c0_116] : memref<64x1xf32, #tpu.memory_space<vmem>>, vector<64x1xf32>
    %122 = vector.broadcast %121 : vector<64x1xf32> to vector<64x192xf32>
    %123 = arith.addf %120, %122 : vector<64x192xf32>
    %cst_117 = arith.constant 0.000000e+00 : f32
    %124 = vector.broadcast %cst_117 : f32 to vector<64x192xf32>
    %125 = arith.maximumf %123, %124 : vector<64x192xf32>
    %126 = arith.truncf %125 : vector<64x192xf32> to vector<64x192xbf16>
    %c0_118 = arith.constant 0 : index
    %c0_119 = arith.constant 0 : index
    %127 = vector.load %arg14[%c0_118, %c0_119] : memref<64x192xbf16, #tpu.memory_space<vmem>>, vector<64x192xbf16>
    tpu.vector_store %arg14[%c0_118, %c0_119], %126 {strides = array<i32>} : memref<64x192xbf16, #tpu.memory_space<vmem>>, vector<64x192xbf16>,
    %c0_120 = arith.constant 0 : index
    %c0_121 = arith.constant 0 : index
    %128 = vector.load %arg14[%c0_120, %c0_121] : memref<64x192xbf16, #tpu.memory_space<vmem>>, vector<64x128xbf16>
    %c0_122 = arith.constant 0 : index
    %c0_123 = arith.constant 0 : index
    %c0_124 = arith.constant 0 : index
    %129 = vector.load %arg6[%c0_122, %c0_123, %c0_124] : memref<9x64x64xbf16, #tpu.memory_space<vmem>>, vector<1x64x64xbf16>
    %130 = vector.shape_cast %129 : vector<1x64x64xbf16> to vector<64x64xbf16>
    %cst_125 = arith.constant dense<0.000000e+00> : vector<64x128xf32>
    %131 = tpu.matmul %130, %128, %cst_125 {dimension_numbers = #tpu.dot_dimension_numbers<[1], [0], [0], [1], [0, 0, 1, 1], [], []>} : vector<64x64xbf16>, vector<64x128xbf16>, vector<64x128xf32> -> vector<64x128xf32>
    %c0_126 = arith.constant 0 : index
    %c1_127 = arith.constant 1 : index
    %132 = vector.load %arg14[%c0_126, %c1_127] : memref<64x192xbf16, #tpu.memory_space<vmem>>, vector<64x128xbf16>
    %c1_128 = arith.constant 1 : index
    %c0_129 = arith.constant 0 : index
    %c0_130 = arith.constant 0 : index
    %133 = vector.load %arg6[%c1_128, %c0_129, %c0_130] : memref<9x64x64xbf16, #tpu.memory_space<vmem>>, vector<1x64x64xbf16>
    %134 = vector.shape_cast %133 : vector<1x64x64xbf16> to vector<64x64xbf16>
    %cst_131 = arith.constant dense<0.000000e+00> : vector<64x128xf32>
    %135 = tpu.matmul %134, %132, %cst_131 {dimension_numbers = #tpu.dot_dimension_numbers<[1], [0], [0], [1], [0, 0, 1, 1], [], []>} : vector<64x64xbf16>, vector<64x128xbf16>, vector<64x128xf32> -> vector<64x128xf32>
    %136 = arith.addf %131, %135 : vector<64x128xf32>
    %c0_132 = arith.constant 0 : index
    %c2_133 = arith.constant 2 : index
    %137 = vector.load %arg14[%c0_132, %c2_133] : memref<64x192xbf16, #tpu.memory_space<vmem>>, vector<64x128xbf16>
    %c2_134 = arith.constant 2 : index
    %c0_135 = arith.constant 0 : index
    %c0_136 = arith.constant 0 : index
    %138 = vector.load %arg6[%c2_134, %c0_135, %c0_136] : memref<9x64x64xbf16, #tpu.memory_space<vmem>>, vector<1x64x64xbf16>
    %139 = vector.shape_cast %138 : vector<1x64x64xbf16> to vector<64x64xbf16>
    %cst_137 = arith.constant dense<0.000000e+00> : vector<64x128xf32>
    %140 = tpu.matmul %139, %137, %cst_137 {dimension_numbers = #tpu.dot_dimension_numbers<[1], [0], [0], [1], [0, 0, 1, 1], [], []>} : vector<64x64xbf16>, vector<64x128xbf16>, vector<64x128xf32> -> vector<64x128xf32>
    %141 = arith.addf %136, %140 : vector<64x128xf32>
    %c0_138 = arith.constant 0 : index
    %c20_139 = arith.constant 20 : index
    %142 = vector.load %arg14[%c0_138, %c20_139] : memref<64x192xbf16, #tpu.memory_space<vmem>>, vector<64x128xbf16>
    %c3_140 = arith.constant 3 : index
    %c0_141 = arith.constant 0 : index
    %c0_142 = arith.constant 0 : index
    %143 = vector.load %arg6[%c3_140, %c0_141, %c0_142] : memref<9x64x64xbf16, #tpu.memory_space<vmem>>, vector<1x64x64xbf16>
    %144 = vector.shape_cast %143 : vector<1x64x64xbf16> to vector<64x64xbf16>
    %cst_143 = arith.constant dense<0.000000e+00> : vector<64x128xf32>
    %145 = tpu.matmul %144, %142, %cst_143 {dimension_numbers = #tpu.dot_dimension_numbers<[1], [0], [0], [1], [0, 0, 1, 1], [], []>} : vector<64x64xbf16>, vector<64x128xbf16>, vector<64x128xf32> -> vector<64x128xf32>
    %146 = arith.addf %141, %145 : vector<64x128xf32>
    %c0_144 = arith.constant 0 : index
    %c21_145 = arith.constant 21 : index
    %147 = vector.load %arg14[%c0_144, %c21_145] : memref<64x192xbf16, #tpu.memory_space<vmem>>, vector<64x128xbf16>
    %c4_146 = arith.constant 4 : index
    %c0_147 = arith.constant 0 : index
    %c0_148 = arith.constant 0 : index
    %148 = vector.load %arg6[%c4_146, %c0_147, %c0_148] : memref<9x64x64xbf16, #tpu.memory_space<vmem>>, vector<1x64x64xbf16>
    %149 = vector.shape_cast %148 : vector<1x64x64xbf16> to vector<64x64xbf16>
    %cst_149 = arith.constant dense<0.000000e+00> : vector<64x128xf32>
    %150 = tpu.matmul %149, %147, %cst_149 {dimension_numbers = #tpu.dot_dimension_numbers<[1], [0], [0], [1], [0, 0, 1, 1], [], []>} : vector<64x64xbf16>, vector<64x128xbf16>, vector<64x128xf32> -> vector<64x128xf32>
    %151 = arith.addf %146, %150 : vector<64x128xf32>
    %c0_150 = arith.constant 0 : index
    %c22 = arith.constant 22 : index
    %152 = vector.load %arg14[%c0_150, %c22] : memref<64x192xbf16, #tpu.memory_space<vmem>>, vector<64x128xbf16>
    %c5_151 = arith.constant 5 : index
    %c0_152 = arith.constant 0 : index
    %c0_153 = arith.constant 0 : index
    %153 = vector.load %arg6[%c5_151, %c0_152, %c0_153] : memref<9x64x64xbf16, #tpu.memory_space<vmem>>, vector<1x64x64xbf16>
    %154 = vector.shape_cast %153 : vector<1x64x64xbf16> to vector<64x64xbf16>
    %cst_154 = arith.constant dense<0.000000e+00> : vector<64x128xf32>
    %155 = tpu.matmul %154, %152, %cst_154 {dimension_numbers = #tpu.dot_dimension_numbers<[1], [0], [0], [1], [0, 0, 1, 1], [], []>} : vector<64x64xbf16>, vector<64x128xbf16>, vector<64x128xf32> -> vector<64x128xf32>
    %156 = arith.addf %151, %155 : vector<64x128xf32>
    %c0_155 = arith.constant 0 : index
    %c40 = arith.constant 40 : index
    %157 = vector.load %arg14[%c0_155, %c40] : memref<64x192xbf16, #tpu.memory_space<vmem>>, vector<64x128xbf16>
    %c6_156 = arith.constant 6 : index
    %c0_157 = arith.constant 0 : index
    %c0_158 = arith.constant 0 : index
    %158 = vector.load %arg6[%c6_156, %c0_157, %c0_158] : memref<9x64x64xbf16, #tpu.memory_space<vmem>>, vector<1x64x64xbf16>
    %159 = vector.shape_cast %158 : vector<1x64x64xbf16> to vector<64x64xbf16>
    %cst_159 = arith.constant dense<0.000000e+00> : vector<64x128xf32>
    %160 = tpu.matmul %159, %157, %cst_159 {dimension_numbers = #tpu.dot_dimension_numbers<[1], [0], [0], [1], [0, 0, 1, 1], [], []>} : vector<64x64xbf16>, vector<64x128xbf16>, vector<64x128xf32> -> vector<64x128xf32>
    %161 = arith.addf %156, %160 : vector<64x128xf32>
    %c0_160 = arith.constant 0 : index
    %c41 = arith.constant 41 : index
    %162 = vector.load %arg14[%c0_160, %c41] : memref<64x192xbf16, #tpu.memory_space<vmem>>, vector<64x128xbf16>
    %c7_161 = arith.constant 7 : index
    %c0_162 = arith.constant 0 : index
    %c0_163 = arith.constant 0 : index
    %163 = vector.load %arg6[%c7_161, %c0_162, %c0_163] : memref<9x64x64xbf16, #tpu.memory_space<vmem>>, vector<1x64x64xbf16>
    %164 = vector.shape_cast %163 : vector<1x64x64xbf16> to vector<64x64xbf16>
    %cst_164 = arith.constant dense<0.000000e+00> : vector<64x128xf32>
    %165 = tpu.matmul %164, %162, %cst_164 {dimension_numbers = #tpu.dot_dimension_numbers<[1], [0], [0], [1], [0, 0, 1, 1], [], []>} : vector<64x64xbf16>, vector<64x128xbf16>, vector<64x128xf32> -> vector<64x128xf32>
    %166 = arith.addf %161, %165 : vector<64x128xf32>
    %c0_165 = arith.constant 0 : index
    %c42 = arith.constant 42 : index
    %167 = vector.load %arg14[%c0_165, %c42] : memref<64x192xbf16, #tpu.memory_space<vmem>>, vector<64x128xbf16>
    %c8_166 = arith.constant 8 : index
    %c0_167 = arith.constant 0 : index
    %c0_168 = arith.constant 0 : index
    %168 = vector.load %arg6[%c8_166, %c0_167, %c0_168] : memref<9x64x64xbf16, #tpu.memory_space<vmem>>, vector<1x64x64xbf16>
    %169 = vector.shape_cast %168 : vector<1x64x64xbf16> to vector<64x64xbf16>
    %cst_169 = arith.constant dense<0.000000e+00> : vector<64x128xf32>
    %170 = tpu.matmul %169, %167, %cst_169 {dimension_numbers = #tpu.dot_dimension_numbers<[1], [0], [0], [1], [0, 0, 1, 1], [], []>} : vector<64x64xbf16>, vector<64x128xbf16>, vector<64x128xf32> -> vector<64x128xf32>
    %171 = arith.addf %166, %170 : vector<64x128xf32>
    %c0_170 = arith.constant 0 : index
    %c0_171 = arith.constant 0 : index
    %172 = vector.load %arg7[%c0_170, %c0_171] : memref<64x1xf32, #tpu.memory_space<vmem>>, vector<64x1xf32>
    %173 = vector.broadcast %172 : vector<64x1xf32> to vector<64x128xf32>
    %174 = arith.addf %171, %173 : vector<64x128xf32>
    %cst_172 = arith.constant 0.000000e+00 : f32
    %175 = vector.broadcast %cst_172 : f32 to vector<64x128xf32>
    %176 = arith.maximumf %174, %175 : vector<64x128xf32>
    %177 = arith.truncf %176 : vector<64x128xf32> to vector<64x128xbf16>
    %178 = vector.extract_strided_slice %177 {offsets = [0, 0], sizes = [64, 7], strides = [1, 1]} : vector<64x128xbf16> to vector<64x7xbf16>
    %179 = vector.extract_strided_slice %177 {offsets = [0, 20], sizes = [64, 7], strides = [1, 1]} : vector<64x128xbf16> to vector<64x7xbf16>
    %180 = vector.extract_strided_slice %177 {offsets = [0, 40], sizes = [64, 7], strides = [1, 1]} : vector<64x128xbf16> to vector<64x7xbf16>
    %181 = vector.extract_strided_slice %177 {offsets = [0, 60], sizes = [64, 7], strides = [1, 1]} : vector<64x128xbf16> to vector<64x7xbf16>
    %182 = vector.extract_strided_slice %177 {offsets = [0, 80], sizes = [64, 7], strides = [1, 1]} : vector<64x128xbf16> to vector<64x7xbf16>
    %183 = vector.extract_strided_slice %177 {offsets = [0, 100], sizes = [64, 7], strides = [1, 1]} : vector<64x128xbf16> to vector<64x7xbf16>
    %184 = vector.extract_strided_slice %177 {offsets = [0, 120], sizes = [64, 7], strides = [1, 1]} : vector<64x128xbf16> to vector<64x7xbf16>
    %185 = tpu.concatenate %178, %179, %180, %181, %182, %183, %184 in 1 : vector<64x7xbf16>, vector<64x7xbf16>, vector<64x7xbf16>, vector<64x7xbf16>, vector<64x7xbf16>, vector<64x7xbf16>, vector<64x7xbf16> -> vector<64x49xbf16>
    %186 = vector.shape_cast %185 : vector<64x49xbf16> to vector<1x64x49xbf16>
    %187 = vector.extract_strided_slice %186 {offsets = [0, 0, 0], sizes = [1, 1, 49], strides = [1, 1, 1]} : vector<1x64x49xbf16> to vector<1x1x49xbf16>
    %188 = vector.shape_cast %187 : vector<1x1x49xbf16> to vector<1x49xbf16>
    %189 = vector.extract_strided_slice %186 {offsets = [0, 1, 0], sizes = [1, 1, 49], strides = [1, 1, 1]} : vector<1x64x49xbf16> to vector<1x1x49xbf16>
    %190 = vector.shape_cast %189 : vector<1x1x49xbf16> to vector<1x49xbf16>
    %191 = vector.extract_strided_slice %186 {offsets = [0, 2, 0], sizes = [1, 1, 49], strides = [1, 1, 1]} : vector<1x64x49xbf16> to vector<1x1x49xbf16>
    %192 = vector.shape_cast %191 : vector<1x1x49xbf16> to vector<1x49xbf16>
    %193 = vector.extract_strided_slice %186 {offsets = [0, 3, 0], sizes = [1, 1, 49], strides = [1, 1, 1]} : vector<1x64x49xbf16> to vector<1x1x49xbf16>
    %194 = vector.shape_cast %193 : vector<1x1x49xbf16> to vector<1x49xbf16>
    %195 = vector.extract_strided_slice %186 {offsets = [0, 4, 0], sizes = [1, 1, 49], strides = [1, 1, 1]} : vector<1x64x49xbf16> to vector<1x1x49xbf16>
    %196 = vector.shape_cast %195 : vector<1x1x49xbf16> to vector<1x49xbf16>
    %197 = vector.extract_strided_slice %186 {offsets = [0, 5, 0], sizes = [1, 1, 49], strides = [1, 1, 1]} : vector<1x64x49xbf16> to vector<1x1x49xbf16>
    %198 = vector.shape_cast %197 : vector<1x1x49xbf16> to vector<1x49xbf16>
    %199 = vector.extract_strided_slice %186 {offsets = [0, 6, 0], sizes = [1, 1, 49], strides = [1, 1, 1]} : vector<1x64x49xbf16> to vector<1x1x49xbf16>
    %200 = vector.shape_cast %199 : vector<1x1x49xbf16> to vector<1x49xbf16>
    %201 = vector.extract_strided_slice %186 {offsets = [0, 7, 0], sizes = [1, 1, 49], strides = [1, 1, 1]} : vector<1x64x49xbf16> to vector<1x1x49xbf16>
    %202 = vector.shape_cast %201 : vector<1x1x49xbf16> to vector<1x49xbf16>
    %203 = vector.extract_strided_slice %186 {offsets = [0, 8, 0], sizes = [1, 1, 49], strides = [1, 1, 1]} : vector<1x64x49xbf16> to vector<1x1x49xbf16>
    %204 = vector.shape_cast %203 : vector<1x1x49xbf16> to vector<1x49xbf16>
    %205 = vector.extract_strided_slice %186 {offsets = [0, 9, 0], sizes = [1, 1, 49], strides = [1, 1, 1]} : vector<1x64x49xbf16> to vector<1x1x49xbf16>
    %206 = vector.shape_cast %205 : vector<1x1x49xbf16> to vector<1x49xbf16>
    %207 = vector.extract_strided_slice %186 {offsets = [0, 10, 0], sizes = [1, 1, 49], strides = [1, 1, 1]} : vector<1x64x49xbf16> to vector<1x1x49xbf16>
    %208 = vector.shape_cast %207 : vector<1x1x49xbf16> to vector<1x49xbf16>
    %209 = vector.extract_strided_slice %186 {offsets = [0, 11, 0], sizes = [1, 1, 49], strides = [1, 1, 1]} : vector<1x64x49xbf16> to vector<1x1x49xbf16>
    %210 = vector.shape_cast %209 : vector<1x1x49xbf16> to vector<1x49xbf16>
    %211 = vector.extract_strided_slice %186 {offsets = [0, 12, 0], sizes = [1, 1, 49], strides = [1, 1, 1]} : vector<1x64x49xbf16> to vector<1x1x49xbf16>
    %212 = vector.shape_cast %211 : vector<1x1x49xbf16> to vector<1x49xbf16>
    %213 = vector.extract_strided_slice %186 {offsets = [0, 13, 0], sizes = [1, 1, 49], strides = [1, 1, 1]} : vector<1x64x49xbf16> to vector<1x1x49xbf16>
    %214 = vector.shape_cast %213 : vector<1x1x49xbf16> to vector<1x49xbf16>
    %215 = vector.extract_strided_slice %186 {offsets = [0, 14, 0], sizes = [1, 1, 49], strides = [1, 1, 1]} : vector<1x64x49xbf16> to vector<1x1x49xbf16>
    %216 = vector.shape_cast %215 : vector<1x1x49xbf16> to vector<1x49xbf16>
    %217 = vector.extract_strided_slice %186 {offsets = [0, 15, 0], sizes = [1, 1, 49], strides = [1, 1, 1]} : vector<1x64x49xbf16> to vector<1x1x49xbf16>
    %218 = vector.shape_cast %217 : vector<1x1x49xbf16> to vector<1x49xbf16>
    %219 = vector.extract_strided_slice %186 {offsets = [0, 16, 0], sizes = [1, 1, 49], strides = [1, 1, 1]} : vector<1x64x49xbf16> to vector<1x1x49xbf16>
    %220 = vector.shape_cast %219 : vector<1x1x49xbf16> to vector<1x49xbf16>
    %221 = vector.extract_strided_slice %186 {offsets = [0, 17, 0], sizes = [1, 1, 49], strides = [1, 1, 1]} : vector<1x64x49xbf16> to vector<1x1x49xbf16>
    %222 = vector.shape_cast %221 : vector<1x1x49xbf16> to vector<1x49xbf16>
    %223 = vector.extract_strided_slice %186 {offsets = [0, 18, 0], sizes = [1, 1, 49], strides = [1, 1, 1]} : vector<1x64x49xbf16> to vector<1x1x49xbf16>
    %224 = vector.shape_cast %223 : vector<1x1x49xbf16> to vector<1x49xbf16>
    %225 = vector.extract_strided_slice %186 {offsets = [0, 19, 0], sizes = [1, 1, 49], strides = [1, 1, 1]} : vector<1x64x49xbf16> to vector<1x1x49xbf16>
    %226 = vector.shape_cast %225 : vector<1x1x49xbf16> to vector<1x49xbf16>
    %227 = vector.extract_strided_slice %186 {offsets = [0, 20, 0], sizes = [1, 1, 49], strides = [1, 1, 1]} : vector<1x64x49xbf16> to vector<1x1x49xbf16>
    %228 = vector.shape_cast %227 : vector<1x1x49xbf16> to vector<1x49xbf16>
    %229 = vector.extract_strided_slice %186 {offsets = [0, 21, 0], sizes = [1, 1, 49], strides = [1, 1, 1]} : vector<1x64x49xbf16> to vector<1x1x49xbf16>
    %230 = vector.shape_cast %229 : vector<1x1x49xbf16> to vector<1x49xbf16>
    %231 = vector.extract_strided_slice %186 {offsets = [0, 22, 0], sizes = [1, 1, 49], strides = [1, 1, 1]} : vector<1x64x49xbf16> to vector<1x1x49xbf16>
    %232 = vector.shape_cast %231 : vector<1x1x49xbf16> to vector<1x49xbf16>
    %233 = vector.extract_strided_slice %186 {offsets = [0, 23, 0], sizes = [1, 1, 49], strides = [1, 1, 1]} : vector<1x64x49xbf16> to vector<1x1x49xbf16>
    %234 = vector.shape_cast %233 : vector<1x1x49xbf16> to vector<1x49xbf16>
    %235 = vector.extract_strided_slice %186 {offsets = [0, 24, 0], sizes = [1, 1, 49], strides = [1, 1, 1]} : vector<1x64x49xbf16> to vector<1x1x49xbf16>
    %236 = vector.shape_cast %235 : vector<1x1x49xbf16> to vector<1x49xbf16>
    %237 = vector.extract_strided_slice %186 {offsets = [0, 25, 0], sizes = [1, 1, 49], strides = [1, 1, 1]} : vector<1x64x49xbf16> to vector<1x1x49xbf16>
    %238 = vector.shape_cast %237 : vector<1x1x49xbf16> to vector<1x49xbf16>
    %239 = vector.extract_strided_slice %186 {offsets = [0, 26, 0], sizes = [1, 1, 49], strides = [1, 1, 1]} : vector<1x64x49xbf16> to vector<1x1x49xbf16>
    %240 = vector.shape_cast %239 : vector<1x1x49xbf16> to vector<1x49xbf16>
    %241 = vector.extract_strided_slice %186 {offsets = [0, 27, 0], sizes = [1, 1, 49], strides = [1, 1, 1]} : vector<1x64x49xbf16> to vector<1x1x49xbf16>
    %242 = vector.shape_cast %241 : vector<1x1x49xbf16> to vector<1x49xbf16>
    %243 = vector.extract_strided_slice %186 {offsets = [0, 28, 0], sizes = [1, 1, 49], strides = [1, 1, 1]} : vector<1x64x49xbf16> to vector<1x1x49xbf16>
    %244 = vector.shape_cast %243 : vector<1x1x49xbf16> to vector<1x49xbf16>
    %245 = vector.extract_strided_slice %186 {offsets = [0, 29, 0], sizes = [1, 1, 49], strides = [1, 1, 1]} : vector<1x64x49xbf16> to vector<1x1x49xbf16>
    %246 = vector.shape_cast %245 : vector<1x1x49xbf16> to vector<1x49xbf16>
    %247 = vector.extract_strided_slice %186 {offsets = [0, 30, 0], sizes = [1, 1, 49], strides = [1, 1, 1]} : vector<1x64x49xbf16> to vector<1x1x49xbf16>
    %248 = vector.shape_cast %247 : vector<1x1x49xbf16> to vector<1x49xbf16>
    %249 = vector.extract_strided_slice %186 {offsets = [0, 31, 0], sizes = [1, 1, 49], strides = [1, 1, 1]} : vector<1x64x49xbf16> to vector<1x1x49xbf16>
    %250 = vector.shape_cast %249 : vector<1x1x49xbf16> to vector<1x49xbf16>
    %251 = vector.extract_strided_slice %186 {offsets = [0, 32, 0], sizes = [1, 1, 49], strides = [1, 1, 1]} : vector<1x64x49xbf16> to vector<1x1x49xbf16>
    %252 = vector.shape_cast %251 : vector<1x1x49xbf16> to vector<1x49xbf16>
    %253 = vector.extract_strided_slice %186 {offsets = [0, 33, 0], sizes = [1, 1, 49], strides = [1, 1, 1]} : vector<1x64x49xbf16> to vector<1x1x49xbf16>
    %254 = vector.shape_cast %253 : vector<1x1x49xbf16> to vector<1x49xbf16>
    %255 = vector.extract_strided_slice %186 {offsets = [0, 34, 0], sizes = [1, 1, 49], strides = [1, 1, 1]} : vector<1x64x49xbf16> to vector<1x1x49xbf16>
    %256 = vector.shape_cast %255 : vector<1x1x49xbf16> to vector<1x49xbf16>
    %257 = vector.extract_strided_slice %186 {offsets = [0, 35, 0], sizes = [1, 1, 49], strides = [1, 1, 1]} : vector<1x64x49xbf16> to vector<1x1x49xbf16>
    %258 = vector.shape_cast %257 : vector<1x1x49xbf16> to vector<1x49xbf16>
    %259 = vector.extract_strided_slice %186 {offsets = [0, 36, 0], sizes = [1, 1, 49], strides = [1, 1, 1]} : vector<1x64x49xbf16> to vector<1x1x49xbf16>
    %260 = vector.shape_cast %259 : vector<1x1x49xbf16> to vector<1x49xbf16>
    %261 = vector.extract_strided_slice %186 {offsets = [0, 37, 0], sizes = [1, 1, 49], strides = [1, 1, 1]} : vector<1x64x49xbf16> to vector<1x1x49xbf16>
    %262 = vector.shape_cast %261 : vector<1x1x49xbf16> to vector<1x49xbf16>
    %263 = vector.extract_strided_slice %186 {offsets = [0, 38, 0], sizes = [1, 1, 49], strides = [1, 1, 1]} : vector<1x64x49xbf16> to vector<1x1x49xbf16>
    %264 = vector.shape_cast %263 : vector<1x1x49xbf16> to vector<1x49xbf16>
    %265 = vector.extract_strided_slice %186 {offsets = [0, 39, 0], sizes = [1, 1, 49], strides = [1, 1, 1]} : vector<1x64x49xbf16> to vector<1x1x49xbf16>
    %266 = vector.shape_cast %265 : vector<1x1x49xbf16> to vector<1x49xbf16>
    %267 = vector.extract_strided_slice %186 {offsets = [0, 40, 0], sizes = [1, 1, 49], strides = [1, 1, 1]} : vector<1x64x49xbf16> to vector<1x1x49xbf16>
    %268 = vector.shape_cast %267 : vector<1x1x49xbf16> to vector<1x49xbf16>
    %269 = vector.extract_strided_slice %186 {offsets = [0, 41, 0], sizes = [1, 1, 49], strides = [1, 1, 1]} : vector<1x64x49xbf16> to vector<1x1x49xbf16>
    %270 = vector.shape_cast %269 : vector<1x1x49xbf16> to vector<1x49xbf16>
    %271 = vector.extract_strided_slice %186 {offsets = [0, 42, 0], sizes = [1, 1, 49], strides = [1, 1, 1]} : vector<1x64x49xbf16> to vector<1x1x49xbf16>
    %272 = vector.shape_cast %271 : vector<1x1x49xbf16> to vector<1x49xbf16>
    %273 = vector.extract_strided_slice %186 {offsets = [0, 43, 0], sizes = [1, 1, 49], strides = [1, 1, 1]} : vector<1x64x49xbf16> to vector<1x1x49xbf16>
    %274 = vector.shape_cast %273 : vector<1x1x49xbf16> to vector<1x49xbf16>
    %275 = vector.extract_strided_slice %186 {offsets = [0, 44, 0], sizes = [1, 1, 49], strides = [1, 1, 1]} : vector<1x64x49xbf16> to vector<1x1x49xbf16>
    %276 = vector.shape_cast %275 : vector<1x1x49xbf16> to vector<1x49xbf16>
    %277 = vector.extract_strided_slice %186 {offsets = [0, 45, 0], sizes = [1, 1, 49], strides = [1, 1, 1]} : vector<1x64x49xbf16> to vector<1x1x49xbf16>
    %278 = vector.shape_cast %277 : vector<1x1x49xbf16> to vector<1x49xbf16>
    %279 = vector.extract_strided_slice %186 {offsets = [0, 46, 0], sizes = [1, 1, 49], strides = [1, 1, 1]} : vector<1x64x49xbf16> to vector<1x1x49xbf16>
    %280 = vector.shape_cast %279 : vector<1x1x49xbf16> to vector<1x49xbf16>
    %281 = vector.extract_strided_slice %186 {offsets = [0, 47, 0], sizes = [1, 1, 49], strides = [1, 1, 1]} : vector<1x64x49xbf16> to vector<1x1x49xbf16>
    %282 = vector.shape_cast %281 : vector<1x1x49xbf16> to vector<1x49xbf16>
    %283 = vector.extract_strided_slice %186 {offsets = [0, 48, 0], sizes = [1, 1, 49], strides = [1, 1, 1]} : vector<1x64x49xbf16> to vector<1x1x49xbf16>
    %284 = vector.shape_cast %283 : vector<1x1x49xbf16> to vector<1x49xbf16>
    %285 = vector.extract_strided_slice %186 {offsets = [0, 49, 0], sizes = [1, 1, 49], strides = [1, 1, 1]} : vector<1x64x49xbf16> to vector<1x1x49xbf16>
    %286 = vector.shape_cast %285 : vector<1x1x49xbf16> to vector<1x49xbf16>
    %287 = vector.extract_strided_slice %186 {offsets = [0, 50, 0], sizes = [1, 1, 49], strides = [1, 1, 1]} : vector<1x64x49xbf16> to vector<1x1x49xbf16>
    %288 = vector.shape_cast %287 : vector<1x1x49xbf16> to vector<1x49xbf16>
    %289 = vector.extract_strided_slice %186 {offsets = [0, 51, 0], sizes = [1, 1, 49], strides = [1, 1, 1]} : vector<1x64x49xbf16> to vector<1x1x49xbf16>
    %290 = vector.shape_cast %289 : vector<1x1x49xbf16> to vector<1x49xbf16>
    %291 = vector.extract_strided_slice %186 {offsets = [0, 52, 0], sizes = [1, 1, 49], strides = [1, 1, 1]} : vector<1x64x49xbf16> to vector<1x1x49xbf16>
    %292 = vector.shape_cast %291 : vector<1x1x49xbf16> to vector<1x49xbf16>
    %293 = vector.extract_strided_slice %186 {offsets = [0, 53, 0], sizes = [1, 1, 49], strides = [1, 1, 1]} : vector<1x64x49xbf16> to vector<1x1x49xbf16>
    %294 = vector.shape_cast %293 : vector<1x1x49xbf16> to vector<1x49xbf16>
    %295 = vector.extract_strided_slice %186 {offsets = [0, 54, 0], sizes = [1, 1, 49], strides = [1, 1, 1]} : vector<1x64x49xbf16> to vector<1x1x49xbf16>
    %296 = vector.shape_cast %295 : vector<1x1x49xbf16> to vector<1x49xbf16>
    %297 = vector.extract_strided_slice %186 {offsets = [0, 55, 0], sizes = [1, 1, 49], strides = [1, 1, 1]} : vector<1x64x49xbf16> to vector<1x1x49xbf16>
    %298 = vector.shape_cast %297 : vector<1x1x49xbf16> to vector<1x49xbf16>
    %299 = vector.extract_strided_slice %186 {offsets = [0, 56, 0], sizes = [1, 1, 49], strides = [1, 1, 1]} : vector<1x64x49xbf16> to vector<1x1x49xbf16>
    %300 = vector.shape_cast %299 : vector<1x1x49xbf16> to vector<1x49xbf16>
    %301 = vector.extract_strided_slice %186 {offsets = [0, 57, 0], sizes = [1, 1, 49], strides = [1, 1, 1]} : vector<1x64x49xbf16> to vector<1x1x49xbf16>
    %302 = vector.shape_cast %301 : vector<1x1x49xbf16> to vector<1x49xbf16>
    %303 = vector.extract_strided_slice %186 {offsets = [0, 58, 0], sizes = [1, 1, 49], strides = [1, 1, 1]} : vector<1x64x49xbf16> to vector<1x1x49xbf16>
    %304 = vector.shape_cast %303 : vector<1x1x49xbf16> to vector<1x49xbf16>
    %305 = vector.extract_strided_slice %186 {offsets = [0, 59, 0], sizes = [1, 1, 49], strides = [1, 1, 1]} : vector<1x64x49xbf16> to vector<1x1x49xbf16>
    %306 = vector.shape_cast %305 : vector<1x1x49xbf16> to vector<1x49xbf16>
    %307 = vector.extract_strided_slice %186 {offsets = [0, 60, 0], sizes = [1, 1, 49], strides = [1, 1, 1]} : vector<1x64x49xbf16> to vector<1x1x49xbf16>
    %308 = vector.shape_cast %307 : vector<1x1x49xbf16> to vector<1x49xbf16>
    %309 = vector.extract_strided_slice %186 {offsets = [0, 61, 0], sizes = [1, 1, 49], strides = [1, 1, 1]} : vector<1x64x49xbf16> to vector<1x1x49xbf16>
    %310 = vector.shape_cast %309 : vector<1x1x49xbf16> to vector<1x49xbf16>
    %311 = vector.extract_strided_slice %186 {offsets = [0, 62, 0], sizes = [1, 1, 49], strides = [1, 1, 1]} : vector<1x64x49xbf16> to vector<1x1x49xbf16>
    %312 = vector.shape_cast %311 : vector<1x1x49xbf16> to vector<1x49xbf16>
    %313 = vector.extract_strided_slice %186 {offsets = [0, 63, 0], sizes = [1, 1, 49], strides = [1, 1, 1]} : vector<1x64x49xbf16> to vector<1x1x49xbf16>
    %314 = vector.shape_cast %313 : vector<1x1x49xbf16> to vector<1x49xbf16>
    %315 = tpu.concatenate %188, %190, %192, %194, %196, %198, %200, %202, %204, %206, %208, %210, %212, %214, %216, %218 in 1 : vector<1x49xbf16>, vector<1x49xbf16>, vector<1x49xbf16>, vector<1x49xbf16>, vector<1x49xbf16>, vector<1x49xbf16>, vector<1x49xbf16>, vector<1x49xbf16>, vector<1x49xbf16>, vector<1x49xbf16>, vector<1x49xbf16>, vector<1x49xbf16>, vector<1x49xbf16>, vector<1x49xbf16>, vector<1x49xbf16>, vector<1x49xbf16> -> vector<1x784xbf16>
    %316 = tpu.concatenate %220, %222, %224, %226, %228, %230, %232, %234, %236, %238, %240, %242, %244, %246, %248, %250 in 1 : vector<1x49xbf16>, vector<1x49xbf16>, vector<1x49xbf16>, vector<1x49xbf16>, vector<1x49xbf16>, vector<1x49xbf16>, vector<1x49xbf16>, vector<1x49xbf16>, vector<1x49xbf16>, vector<1x49xbf16>, vector<1x49xbf16>, vector<1x49xbf16>, vector<1x49xbf16>, vector<1x49xbf16>, vector<1x49xbf16>, vector<1x49xbf16> -> vector<1x784xbf16>
    %317 = tpu.concatenate %252, %254, %256, %258, %260, %262, %264, %266, %268, %270, %272, %274, %276, %278, %280, %282 in 1 : vector<1x49xbf16>, vector<1x49xbf16>, vector<1x49xbf16>, vector<1x49xbf16>, vector<1x49xbf16>, vector<1x49xbf16>, vector<1x49xbf16>, vector<1x49xbf16>, vector<1x49xbf16>, vector<1x49xbf16>, vector<1x49xbf16>, vector<1x49xbf16>, vector<1x49xbf16>, vector<1x49xbf16>, vector<1x49xbf16>, vector<1x49xbf16> -> vector<1x784xbf16>
    %318 = tpu.concatenate %284, %286, %288, %290, %292, %294, %296, %298, %300, %302, %304, %306, %308, %310, %312, %314 in 1 : vector<1x49xbf16>, vector<1x49xbf16>, vector<1x49xbf16>, vector<1x49xbf16>, vector<1x49xbf16>, vector<1x49xbf16>, vector<1x49xbf16>, vector<1x49xbf16>, vector<1x49xbf16>, vector<1x49xbf16>, vector<1x49xbf16>, vector<1x49xbf16>, vector<1x49xbf16>, vector<1x49xbf16>, vector<1x49xbf16>, vector<1x49xbf16> -> vector<1x784xbf16>
    %319 = tpu.concatenate %315, %316, %317, %318 in 1 : vector<1x784xbf16>, vector<1x784xbf16>, vector<1x784xbf16>, vector<1x784xbf16> -> vector<1x3136xbf16>
    %c0_173 = arith.constant 0 : index
    %c0_174 = arith.constant 0 : index
    %320 = vector.load %arg8[%c0_173, %c0_174] : memref<3136x512xbf16, #tpu.memory_space<vmem>>, vector<3136x512xbf16>
    %cst_175 = arith.constant dense<0.000000e+00> : vector<1x512xf32>
    %321 = tpu.matmul %319, %320, %cst_175 {dimension_numbers = #tpu.dot_dimension_numbers<[1], [0], [0], [1], [0, 0, 1, 1], [], []>} : vector<1x3136xbf16>, vector<3136x512xbf16>, vector<1x512xf32> -> vector<1x512xf32>
    %c0_176 = arith.constant 0 : index
    %c0_177 = arith.constant 0 : index
    %322 = vector.load %arg9[%c0_176, %c0_177] : memref<1x512xf32, #tpu.memory_space<vmem>>, vector<1x512xf32>
    %323 = arith.addf %321, %322 : vector<1x512xf32>
    %cst_178 = arith.constant 0.000000e+00 : f32
    %324 = vector.broadcast %cst_178 : f32 to vector<1x512xf32>
    %325 = arith.maximumf %323, %324 : vector<1x512xf32>
    %326 = arith.truncf %325 : vector<1x512xf32> to vector<1x512xbf16>
    %c0_179 = arith.constant 0 : index
    %c0_180 = arith.constant 0 : index
    %327 = vector.load %arg10[%c0_179, %c0_180] : memref<512x128xbf16, #tpu.memory_space<vmem>>, vector<512x128xbf16>
    %cst_181 = arith.constant dense<0.000000e+00> : vector<1x128xf32>
    %328 = tpu.matmul %326, %327, %cst_181 {dimension_numbers = #tpu.dot_dimension_numbers<[1], [0], [0], [1], [0, 0, 1, 1], [], []>} : vector<1x512xbf16>, vector<512x128xbf16>, vector<1x128xf32> -> vector<1x128xf32>
    %c0_182 = arith.constant 0 : index
    %c0_183 = arith.constant 0 : index
    %329 = vector.load %arg11[%c0_182, %c0_183] : memref<1x128xf32, #tpu.memory_space<vmem>>, vector<1x128xf32>
    %330 = arith.addf %328, %329 : vector<1x128xf32>
    %c0_184 = arith.constant 0 : index
    %c0_185 = arith.constant 0 : index
    %331 = vector.load %arg12[%c0_184, %c0_185] : memref<1x128xf32, #tpu.memory_space<vmem>>, vector<1x128xf32>
    tpu.vector_store %arg12[%c0_184, %c0_185], %330 {strides = array<i32>} : memref<1x128xf32, #tpu.memory_space<vmem>>, vector<1x128xf32>,
    return
  }
  func.func @transform_0(%arg0: i32) -> (i32, i32, i32) {
    %c0_i32 = arith.constant 0 : i32
    %c0_i32_0 = arith.constant 0 : i32
    %c0_i32_1 = arith.constant 0 : i32
    return %c0_i32, %c0_i32_0, %arg0 : i32, i32, i32
  }
  func.func @transform_1(%arg0: i32) -> (i32, i32) {
    %c0_i32 = arith.constant 0 : i32
    %c0_i32_0 = arith.constant 0 : i32
    %c0_i32_1 = arith.constant 0 : i32
    return %c0_i32, %c0_i32_0 : i32, i32
  }
  func.func @transform_2(%arg0: i32) -> (i32, i32) {
    %c0_i32 = arith.constant 0 : i32
    %c0_i32_0 = arith.constant 0 : i32
    %c0_i32_1 = arith.constant 0 : i32
    return %c0_i32, %c0_i32_0 : i32, i32
  }
  func.func @transform_3(%arg0: i32) -> (i32, i32, i32) {
    %c0_i32 = arith.constant 0 : i32
    %c0_i32_0 = arith.constant 0 : i32
    %c0_i32_1 = arith.constant 0 : i32
    %c0_i32_2 = arith.constant 0 : i32
    return %c0_i32, %c0_i32_0, %c0_i32_1 : i32, i32, i32
  }
  func.func @transform_4(%arg0: i32) -> (i32, i32) {
    %c0_i32 = arith.constant 0 : i32
    %c0_i32_0 = arith.constant 0 : i32
    %c0_i32_1 = arith.constant 0 : i32
    return %c0_i32, %c0_i32_0 : i32, i32
  }
  func.func @transform_5(%arg0: i32) -> (i32, i32, i32) {
    %c0_i32 = arith.constant 0 : i32
    %c0_i32_0 = arith.constant 0 : i32
    %c0_i32_1 = arith.constant 0 : i32
    %c0_i32_2 = arith.constant 0 : i32
    return %c0_i32, %c0_i32_0, %c0_i32_1 : i32, i32, i32
  }
  func.func @transform_6(%arg0: i32) -> (i32, i32) {
    %c0_i32 = arith.constant 0 : i32
    %c0_i32_0 = arith.constant 0 : i32
    %c0_i32_1 = arith.constant 0 : i32
    return %c0_i32, %c0_i32_0 : i32, i32
  }
  func.func @transform_7(%arg0: i32) -> (i32, i32) {
    %c0_i32 = arith.constant 0 : i32
    %c0_i32_0 = arith.constant 0 : i32
    %c0_i32_1 = arith.constant 0 : i32
    return %c0_i32, %c0_i32_0 : i32, i32
  }
  func.func @transform_8(%arg0: i32) -> (i32, i32) {
    %c0_i32 = arith.constant 0 : i32
    %c0_i32_0 = arith.constant 0 : i32
    %c0_i32_1 = arith.constant 0 : i32
    return %c0_i32, %c0_i32_0 : i32, i32
  }
  func.func @transform_9(%arg0: i32) -> (i32, i32) {
    %c0_i32 = arith.constant 0 : i32
    %c0_i32_0 = arith.constant 0 : i32
    %c0_i32_1 = arith.constant 0 : i32
    return %c0_i32, %c0_i32_0 : i32, i32
  }
  func.func @transform_10(%arg0: i32) -> (i32, i32) {
    %c0_i32 = arith.constant 0 : i32
    %c0_i32_0 = arith.constant 0 : i32
    %c0_i32_1 = arith.constant 0 : i32
    return %c0_i32, %c0_i32_0 : i32, i32
  }
  func.func @transform_11(%arg0: i32) -> (i32, i32) {
    %c0_i32 = arith.constant 0 : i32
    %c0_i32_0 = arith.constant 0 : i32
    return %arg0, %c0_i32 : i32, i32
  }
}

</mosaic_0001>

<llo_original>
// kernel: convnet1_forward.1
$region0: #{convnet1_forward.1}
  #allocation0 [shape = 'u32[]', space=smem, size = 0x4, offset = 0x4, fixed_abs, tag = 'smem constant byte address 0x4 - core index']
  #allocation1 [shape = 'u32[144,128]{1,0:T(1,128)}', space=vmem, size = 0x12000, scoped, tag = 'internal scratch']
  #allocation2 [shape = 'bf16[2,32,256]{2,1,0:T(8,128)(2,1)}', space=vmem, size = 0x8000, scoped, tag = 'scratch operand']
  #allocation3 [shape = 'bf16[64,192]{1,0:T(8,128)(2,1)}', space=vmem, size = 0x8000, scoped, tag = 'scratch operand']
  %s0 = inlined_call_operand.vmem [shape: bf16[2,64,256], index: 0, kind: input, shape index: {}]
  %s1 = inlined_call_operand.vmem [shape: bf16[32,64], index: 1, kind: input, shape index: {}]
  %s2 = inlined_call_operand.vmem [shape: f32[32,1], index: 2, kind: input, shape index: {}]
  %s3 = inlined_call_operand.vmem [shape: bf16[16,64,32], index: 3, kind: input, shape index: {}]
  %s4 = inlined_call_operand.vmem [shape: f32[64,1], index: 4, kind: input, shape index: {}]
  %s5 = inlined_call_operand.vmem [shape: bf16[9,64,64], index: 5, kind: input, shape index: {}]
  %s6 = inlined_call_operand.vmem [shape: f32[64,1], index: 6, kind: input, shape index: {}]
  %s7 = inlined_call_operand.vmem [shape: bf16[3136,512], index: 7, kind: input, shape index: {}]
  %s8 = inlined_call_operand.vmem [shape: f32[1,512], index: 8, kind: input, shape index: {}]
  %s9 = inlined_call_operand.vmem [shape: bf16[512,128], index: 9, kind: input, shape index: {}]
  %s10 = inlined_call_operand.vmem [shape: f32[1,128], index: 10, kind: input, shape index: {}]
  %s11 = inlined_call_operand.hbm [shape: f32[1,128], index: 11, kind: output, shape index: {}]
  %s12 = sld [smem:[#allocation0]]
  $region54: #{convnet1_forward.1} parent=0
    _
  %s14 = ssub.s32 1, %s12
  %s15 = scalar_select 0, %s14, %s12
  $region1: #{convnet1_forward.1} parent=0
    #allocation4 [shape = 'u8[512]{0}', space=vmem, size = 0x400, scoped, tag = 'output window, operand 0, single buffered']
    #allocation5 [shape = 's32[1]{0}', space=sflag, size = 0x4, scoped, tag = 'scoped memory for convnet1_forward.1']
    %16 = vsyncpa [#allocation5], 0
    // Predicated region
    $region2: #{convnet1_forward.1} parent=1 // pred_check
      _
    $region3: #{convnet1_forward.1} parent=1 // pred_check_branch
      %18 = sbr.rel (0) target = $region5
    $region4: #{convnet1_forward.1} parent=1 // pred_region
      _
    $region5: #{convnet1_forward.1} parent=1 // pred_fallthru
      _
    // Predicated region
    $region6: #{convnet1_forward.1} parent=1 // pred_check
      _
    $region7: #{convnet1_forward.1} parent=1 // pred_check_branch
      %20 = sbr.rel (0) target = $region9
    $region8: #{convnet1_forward.1} parent=1 // pred_region
      _
    $region9: #{convnet1_forward.1} parent=1 // pred_fallthru
      _
    // Predicated region
    $region10: #{convnet1_forward.1} parent=1 // pred_check
      _
    $region11: #{convnet1_forward.1} parent=1 // pred_check_branch
      %22 = sbr.rel (0) target = $region13
    $region12: #{convnet1_forward.1} parent=1 // pred_region
      _
    $region13: #{convnet1_forward.1} parent=1 // pred_fallthru
      _
    // Predicated region
    $region14: #{convnet1_forward.1} parent=1 // pred_check
      _
    $region15: #{convnet1_forward.1} parent=1 // pred_check_branch
      %24 = sbr.rel (0) target = $region17
    $region16: #{convnet1_forward.1} parent=1 // pred_region
      _
    $region17: #{convnet1_forward.1} parent=1 // pred_fallthru
      _
    // Predicated region
    $region18: #{convnet1_forward.1} parent=1 // pred_check
      _
    $region19: #{convnet1_forward.1} parent=1 // pred_check_branch
      %26 = sbr.rel (0) target = $region21
    $region20: #{convnet1_forward.1} parent=1 // pred_region
      _
    $region21: #{convnet1_forward.1} parent=1 // pred_fallthru
      _
    // Predicated region
    $region22: #{convnet1_forward.1} parent=1 // pred_check
      _
    $region23: #{convnet1_forward.1} parent=1 // pred_check_branch
      %28 = sbr.rel (0) target = $region25
    $region24: #{convnet1_forward.1} parent=1 // pred_region
      _
    $region25: #{convnet1_forward.1} parent=1 // pred_fallthru
      _
    // Predicated region
    $region26: #{convnet1_forward.1} parent=1 // pred_check
      _
    $region27: #{convnet1_forward.1} parent=1 // pred_check_branch
      %30 = sbr.rel (0) target = $region29
    $region28: #{convnet1_forward.1} parent=1 // pred_region
      _
    $region29: #{convnet1_forward.1} parent=1 // pred_fallthru
      _
    // Predicated region
    $region30: #{convnet1_forward.1} parent=1 // pred_check
      _
    $region31: #{convnet1_forward.1} parent=1 // pred_check_branch
      %32 = sbr.rel (0) target = $region33
    $region32: #{convnet1_forward.1} parent=1 // pred_region
      _
    $region33: #{convnet1_forward.1} parent=1 // pred_fallthru
      _
    // Predicated region
    $region34: #{convnet1_forward.1} parent=1 // pred_check
      _
    $region35: #{convnet1_forward.1} parent=1 // pred_check_branch
      %34 = sbr.rel (0) target = $region37
    $region36: #{convnet1_forward.1} parent=1 // pred_region
      _
    $region37: #{convnet1_forward.1} parent=1 // pred_fallthru
      _
    // Predicated region
    $region38: #{convnet1_forward.1} parent=1 // pred_check
      _
    $region39: #{convnet1_forward.1} parent=1 // pred_check_branch
      %36 = sbr.rel (0) target = $region41
    $region40: #{convnet1_forward.1} parent=1 // pred_region
      _
    $region41: #{convnet1_forward.1} parent=1 // pred_fallthru
      _
    // Predicated region
    $region42: #{convnet1_forward.1} parent=1 // pred_check
      _
    $region43: #{convnet1_forward.1} parent=1 // pred_check_branch
      %38 = sbr.rel (0) target = $region45
    $region44: #{convnet1_forward.1} parent=1 // pred_region
      _
    $region45: #{convnet1_forward.1} parent=1 // pred_fallthru
      _
    %v40 = vld [vmem:[%s1] sm:$0xf]
    %v41 = vld [vmem:[%s1 + $0x4] sm:$0xf]
    %v42 = vld [vmem:[%s1 + $0x8] sm:$0xf]
    %v43 = vld [vmem:[%s1 + $0xc] sm:$0xf]
    %v44 = vld [vmem:[%s0] sm:$0xff]
    %v45 = vld [vmem:[%s0 + $0x8] sm:$0xff]
    %v46 = vld [vmem:[%s0 + $0x10] sm:$0xff]
    %v47 = vld [vmem:[%s0 + $0x18] sm:$0xff]
    %v48 = vld [vmem:[%s0 + $0x20] sm:$0xff]
    %v49 = vld [vmem:[%s0 + $0x28] sm:$0xff]
    %v50 = vld [vmem:[%s0 + $0x30] sm:$0xff]
    %v51 = vld [vmem:[%s0 + $0x38] sm:$0xff]
    %v52 = vld [vmem:[%s2] sm:$0xff]
    %v53 = vld [vmem:[%s2 + $0x8] sm:$0xff]
    %v54 = vld [vmem:[%s2 + $0x10] sm:$0xff]
    %v55 = vld [vmem:[%s2 + $0x18] sm:$0xff]
    %57 = vset.pattern.permute.xlu0 0
    %58 = vperm.xlu0 %57, %v52
    %v59 = vpop.permute.xlu0 %58
    %62 = vset.pattern.permute.xlu0 0
    %63 = vperm.xlu0 %62, %v53
    %v64 = vpop.permute.xlu0 %63
    %67 = vset.pattern.permute.xlu0 0
    %68 = vperm.xlu0 %67, %v54
    %v69 = vpop.permute.xlu0 %68
    %72 = vset.pattern.permute.xlu0 0
    %73 = vperm.xlu0 %72, %v55
    %v74 = vpop.permute.xlu0 %73
    %v80 = vunpack.c.l.b16 %v40
    %v81 = vunpack.c.l.b16 %v41
    %v82 = vunpack.c.l.b16 %v42
    %v83 = vunpack.c.l.b16 %v43
    %v84 = vpack.c.b16 %v81, %v80
    %v85 = vpack.c.b16 %v83, %v82
    %v94 = vunpack.c.l.b16 %v44
    %v95 = vunpack.c.h.b16 %v44
    %v96 = vunpack.c.l.b16 %v45
    %v97 = vunpack.c.h.b16 %v45
    %v98 = vunpack.c.l.b16 %v46
    %v99 = vunpack.c.h.b16 %v46
    %v100 = vunpack.c.l.b16 %v47
    %v101 = vunpack.c.h.b16 %v47
    %v102 = vunpack.c.l.b16 %v48
    %v103 = vunpack.c.h.b16 %v48
    %v104 = vunpack.c.l.b16 %v49
    %v105 = vunpack.c.h.b16 %v49
    %v106 = vunpack.c.l.b16 %v50
    %v107 = vunpack.c.h.b16 %v50
    %v108 = vunpack.c.l.b16 %v51
    %v109 = vunpack.c.h.b16 %v51
    %v110 = vpack.c.b16 %v96, %v94
    %v111 = vpack.c.b16 %v97, %v95
    %v112 = vpack.c.b16 %v100, %v98
    %v113 = vpack.c.b16 %v101, %v99
    %v114 = vpack.c.b16 %v104, %v102
    %v115 = vpack.c.b16 %v105, %v103
    %v116 = vpack.c.b16 %v108, %v106
    %v117 = vpack.c.b16 %v109, %v107
    %vm126 = vcmask 523264
    %v128 = vsel %vm126, %v84, 0
    %v131 = vsel %vm126, %v85, 0
    %133 = vmatprep.subr.bf16.mxu0 0
    %134 = vmatpush1.bf16.msra.mxu0 0
    %135 = vmatprep.subr.bf16.mxu0 0
    %136 = vmatpush1.bf16.msra.mxu0 0
    %137 = vmatprep.subr.bf16.mxu0 0
    %138 = vmatpush1.bf16.msra.mxu0 0
    %139 = vmatprep.subr.bf16.mxu0 0
    %140 = vmatpush1.bf16.msra.mxu0 0
    %141 = vmatprep.subr.bf16.mxu0 %v117
    %142 = vmatpush1.bf16.msra.mxu0 %v116
    %143 = vmatprep.subr.bf16.mxu0 %v115
    %144 = vmatpush1.bf16.msra.mxu0 %v114
    %145 = vmatprep.subr.bf16.mxu0 %v113
    %146 = vmatpush1.bf16.msra.mxu0 %v112
    %147 = vmatprep.subr.bf16.mxu0 %v111
    %148 = vmatpush1.bf16.msra.mxu0 %v110
    %149 = vmatprep.subr.bf16.mxu0 0
    %150 = vmatpush2.bf16.msra.mxu0 0
    %151 = vmatprep.subr.bf16.mxu0 0
    %152 = vmatpush2.bf16.msra.mxu0 0
    %153 = vmatprep.subr.bf16.mxu0 0
    %154 = vmatpush2.bf16.msra.mxu0 0
    %155 = vmatprep.subr.bf16.mxu0 0
    %156 = vmatpush2.bf16.msra.mxu0 0
    %157 = vmatprep.subr.bf16.mxu0 0
    %158 = vmatpush2.bf16.msra.mxu0 0
    %159 = vmatprep.subr.bf16.mxu0 0
    %160 = vmatpush2.bf16.msra.mxu0 0
    %161 = vmatprep.subr.bf16.mxu0 0
    %162 = vmatpush2.bf16.msra.mxu0 0
    %163 = vmatprep.subr.bf16.mxu0 0
    %164 = vmatpush2.bf16.msra.mxu0 0
    %165 = vmatprep.mubr.bf16.mxu0 0
    %166 = vmatmul.mubr.bf16.gmra.mxu0 %v128
    %v167 = vpop.f32.mrf.mxu0
    %v168 = vadd.f32 %v59, %v167
    %v169 = vpop.f32.mrf.mxu0
    %v170 = vadd.f32 %v59, %v169
    %v171 = vpop.f32.mrf.mxu0
    %v172 = vadd.f32 %v64, %v171
    %v173 = vpop.f32.mrf.mxu0
    %v174 = vadd.f32 %v64, %v173
    %175 = vmatprep.mubr.bf16.mxu0 0
    %176 = vmatmul.mubr.bf16.gmra.mxu0 %v131
    %v177 = vpop.f32.mrf.mxu0
    %v178 = vadd.f32 %v69, %v177
    %v179 = vpop.f32.mrf.mxu0
    %v180 = vadd.f32 %v69, %v179
    %v181 = vpop.f32.mrf.mxu0
    %v182 = vadd.f32 %v74, %v181
    %v183 = vpop.f32.mrf.mxu0
    %v184 = vadd.f32 %v74, %v183
    %185 = vdwg.mxu0
    %v186 = vmax.f32 %v168, 0.0
    %v187 = vmax.f32 %v170, 0.0
    %v188 = vmax.f32 %v172, 0.0
    %v189 = vmax.f32 %v174, 0.0
    %v190 = vmax.f32 %v178, 0.0
    %v191 = vmax.f32 %v180, 0.0
    %v192 = vmax.f32 %v182, 0.0
    %v193 = vmax.f32 %v184, 0.0
    %v194 = vpack.c.bf16 %v188, %v186
    %v195 = vpack.c.bf16 %v189, %v187
    %v196 = vpack.c.bf16 %v192, %v190
    %v197 = vpack.c.bf16 %v193, %v191
    %v202 = vunpack.c.l.b16 %v194
    %v203 = vunpack.c.l.b16 %v195
    %v204 = vunpack.c.h.b16 %v194
    %v205 = vunpack.c.h.b16 %v195
    %v206 = vunpack.c.l.b16 %v196
    %v207 = vunpack.c.l.b16 %v197
    %v208 = vunpack.c.h.b16 %v196
    %v209 = vunpack.c.h.b16 %v197
    %v210 = vpack.c.b16 %v203, %v202
    %v211 = vpack.c.b16 %v205, %v204
    %v212 = vpack.c.b16 %v207, %v206
    %v213 = vpack.c.b16 %v209, %v208
    %218 = vst [vmem:[#allocation2] sm:$0xff] %v210
    %219 = vst [vmem:[#allocation2 + $0x8] sm:$0xff] %v211
    %220 = vst [vmem:[#allocation2 + $0x10] sm:$0xff] %v212
    %221 = vst [vmem:[#allocation2 + $0x18] sm:$0xff] %v213
    %v222 = vld [vmem:[%s1] sm:$0xf]
    %v223 = vld [vmem:[%s1 + $0x4] sm:$0xf]
    %v224 = vld [vmem:[%s1 + $0x8] sm:$0xf]
    %v225 = vld [vmem:[%s1 + $0xc] sm:$0xf]
    %s226 = scalar_lea.vmem %s0, 64
    %v227 = vld [vmem:[%s226] sm:$0xff]
    %v228 = vld [vmem:[%s226 + $0x8] sm:$0xff]
    %v229 = vld [vmem:[%s226 + $0x10] sm:$0xff]
    %v230 = vld [vmem:[%s226 + $0x18] sm:$0xff]
    %v231 = vld [vmem:[%s226 + $0x20] sm:$0xff]
    %v232 = vld [vmem:[%s226 + $0x28] sm:$0xff]
    %v233 = vld [vmem:[%s226 + $0x30] sm:$0xff]
    %v234 = vld [vmem:[%s226 + $0x38] sm:$0xff]
    %v235 = vld [vmem:[%s2] sm:$0xff]
    %v236 = vld [vmem:[%s2 + $0x8] sm:$0xff]
    %v237 = vld [vmem:[%s2 + $0x10] sm:$0xff]
    %v238 = vld [vmem:[%s2 + $0x18] sm:$0xff]
    %240 = vset.pattern.permute.xlu0 0
    %241 = vperm.xlu0 %240, %v235
    %v242 = vpop.permute.xlu0 %241
    %245 = vset.pattern.permute.xlu0 0
    %246 = vperm.xlu0 %245, %v236
    %v247 = vpop.permute.xlu0 %246
    %250 = vset.pattern.permute.xlu0 0
    %251 = vperm.xlu0 %250, %v237
    %v252 = vpop.permute.xlu0 %251
    %255 = vset.pattern.permute.xlu0 0
    %256 = vperm.xlu0 %255, %v238
    %v257 = vpop.permute.xlu0 %256
    %v263 = vunpack.c.l.b16 %v222
    %v264 = vunpack.c.l.b16 %v223
    %v265 = vunpack.c.l.b16 %v224
    %v266 = vunpack.c.l.b16 %v225
    %v267 = vpack.c.b16 %v264, %v263
    %v268 = vpack.c.b16 %v266, %v265
    %v277 = vunpack.c.l.b16 %v227
    %v278 = vunpack.c.h.b16 %v227
    %v279 = vunpack.c.l.b16 %v228
    %v280 = vunpack.c.h.b16 %v228
    %v281 = vunpack.c.l.b16 %v229
    %v282 = vunpack.c.h.b16 %v229
    %v283 = vunpack.c.l.b16 %v230
    %v284 = vunpack.c.h.b16 %v230
    %v285 = vunpack.c.l.b16 %v231
    %v286 = vunpack.c.h.b16 %v231
    %v287 = vunpack.c.l.b16 %v232
    %v288 = vunpack.c.h.b16 %v232
    %v289 = vunpack.c.l.b16 %v233
    %v290 = vunpack.c.h.b16 %v233
    %v291 = vunpack.c.l.b16 %v234
    %v292 = vunpack.c.h.b16 %v234
    %v293 = vpack.c.b16 %v279, %v277
    %v294 = vpack.c.b16 %v280, %v278
    %v295 = vpack.c.b16 %v283, %v281
    %v296 = vpack.c.b16 %v284, %v282
    %v297 = vpack.c.b16 %v287, %v285
    %v298 = vpack.c.b16 %v288, %v286
    %v299 = vpack.c.b16 %v291, %v289
    %v300 = vpack.c.b16 %v292, %v290
    %v310 = vsel %vm126, %v267, 0
    %v313 = vsel %vm126, %v268, 0
    %315 = vmatprep.subr.bf16.mxu0 0
    %316 = vmatpush1.bf16.msra.mxu0 0
    %317 = vmatprep.subr.bf16.mxu0 0
    %318 = vmatpush1.bf16.msra.mxu0 0
    %319 = vmatprep.subr.bf16.mxu0 0
    %320 = vmatpush1.bf16.msra.mxu0 0
    %321 = vmatprep.subr.bf16.mxu0 0
    %322 = vmatpush1.bf16.msra.mxu0 0
    %323 = vmatprep.subr.bf16.mxu0 %v300
    %324 = vmatpush1.bf16.msra.mxu0 %v299
    %325 = vmatprep.subr.bf16.mxu0 %v298
    %326 = vmatpush1.bf16.msra.mxu0 %v297
    %327 = vmatprep.subr.bf16.mxu0 %v296
    %328 = vmatpush1.bf16.msra.mxu0 %v295
    %329 = vmatprep.subr.bf16.mxu0 %v294
    %330 = vmatpush1.bf16.msra.mxu0 %v293
    %331 = vmatprep.subr.bf16.mxu0 0
    %332 = vmatpush2.bf16.msra.mxu0 0
    %333 = vmatprep.subr.bf16.mxu0 0
    %334 = vmatpush2.bf16.msra.mxu0 0
    %335 = vmatprep.subr.bf16.mxu0 0
    %336 = vmatpush2.bf16.msra.mxu0 0
    %337 = vmatprep.subr.bf16.mxu0 0
    %338 = vmatpush2.bf16.msra.mxu0 0
    %339 = vmatprep.subr.bf16.mxu0 0
    %340 = vmatpush2.bf16.msra.mxu0 0
    %341 = vmatprep.subr.bf16.mxu0 0
    %342 = vmatpush2.bf16.msra.mxu0 0
    %343 = vmatprep.subr.bf16.mxu0 0
    %344 = vmatpush2.bf16.msra.mxu0 0
    %345 = vmatprep.subr.bf16.mxu0 0
    %346 = vmatpush2.bf16.msra.mxu0 0
    %347 = vmatprep.mubr.bf16.mxu0 0
    %348 = vmatmul.mubr.bf16.gmra.mxu0 %v310
    %v349 = vpop.f32.mrf.mxu0
    %v350 = vadd.f32 %v242, %v349
    %v351 = vpop.f32.mrf.mxu0
    %v352 = vadd.f32 %v242, %v351
    %v353 = vpop.f32.mrf.mxu0
    %v354 = vadd.f32 %v247, %v353
    %v355 = vpop.f32.mrf.mxu0
    %v356 = vadd.f32 %v247, %v355
    %357 = vmatprep.mubr.bf16.mxu0 0
    %358 = vmatmul.mubr.bf16.gmra.mxu0 %v313
    %v359 = vpop.f32.mrf.mxu0
    %v360 = vadd.f32 %v252, %v359
    %v361 = vpop.f32.mrf.mxu0
    %v362 = vadd.f32 %v252, %v361
    %v363 = vpop.f32.mrf.mxu0
    %v364 = vadd.f32 %v257, %v363
    %v365 = vpop.f32.mrf.mxu0
    %v366 = vadd.f32 %v257, %v365
    %367 = vdwg.mxu0
    %v368 = vmax.f32 %v350, 0.0
    %v369 = vmax.f32 %v352, 0.0
    %v370 = vmax.f32 %v354, 0.0
    %v371 = vmax.f32 %v356, 0.0
    %v372 = vmax.f32 %v360, 0.0
    %v373 = vmax.f32 %v362, 0.0
    %v374 = vmax.f32 %v364, 0.0
    %v375 = vmax.f32 %v366, 0.0
    %v376 = vpack.c.bf16 %v370, %v368
    %v377 = vpack.c.bf16 %v371, %v369
    %v378 = vpack.c.bf16 %v374, %v372
    %v379 = vpack.c.bf16 %v375, %v373
    %v384 = vunpack.c.l.b16 %v376
    %v385 = vunpack.c.l.b16 %v377
    %v386 = vunpack.c.h.b16 %v376
    %v387 = vunpack.c.h.b16 %v377
    %v388 = vunpack.c.l.b16 %v378
    %v389 = vunpack.c.l.b16 %v379
    %v390 = vunpack.c.h.b16 %v378
    %v391 = vunpack.c.h.b16 %v379
    %v392 = vpack.c.b16 %v385, %v384
    %v393 = vpack.c.b16 %v387, %v386
    %v394 = vpack.c.b16 %v389, %v388
    %v395 = vpack.c.b16 %v391, %v390
    %s400 = scalar_lea.vmem [#allocation2], 32
    %401 = vst [vmem:[%s400] sm:$0xff] %v392
    %402 = vst [vmem:[%s400 + $0x8] sm:$0xff] %v393
    %403 = vst [vmem:[%s400 + $0x10] sm:$0xff] %v394
    %404 = vst [vmem:[%s400 + $0x18] sm:$0xff] %v395
    %v405 = vld [vmem:[#allocation2] sm:$0xff]
    %v406 = vld [vmem:[#allocation2 + $0x8] sm:$0xff]
    %v407 = vld [vmem:[#allocation2 + $0x10] sm:$0xff]
    %v408 = vld [vmem:[#allocation2 + $0x18] sm:$0xff]
    %v409 = vld [vmem:[%s3] sm:$0xf]
    %v410 = vld [vmem:[%s3 + $0x4] sm:$0xf]
    %v411 = vld [vmem:[%s3 + $0x8] sm:$0xf]
    %v412 = vld [vmem:[%s3 + $0xc] sm:$0xf]
    %v413 = vld [vmem:[%s3 + $0x10] sm:$0xf]
    %v414 = vld [vmem:[%s3 + $0x14] sm:$0xf]
    %v415 = vld [vmem:[%s3 + $0x18] sm:$0xf]
    %v416 = vld [vmem:[%s3 + $0x1c] sm:$0xf]
    %v417 = vld [vmem:[%s400] sm:$0xff]
    %v418 = vld [vmem:[%s400 + $0x8] sm:$0xff]
    %v419 = vld [vmem:[%s400 + $0x10] sm:$0xff]
    %v420 = vld [vmem:[%s400 + $0x18] sm:$0xff]
    %s421 = scalar_lea.vmem %s3, 32
    %v422 = vld [vmem:[%s421] sm:$0xf]
    %v423 = vld [vmem:[%s421 + $0x4] sm:$0xf]
    %v424 = vld [vmem:[%s421 + $0x8] sm:$0xf]
    %v425 = vld [vmem:[%s421 + $0xc] sm:$0xf]
    %v426 = vld [vmem:[%s421 + $0x10] sm:$0xf]
    %v427 = vld [vmem:[%s421 + $0x14] sm:$0xf]
    %v428 = vld [vmem:[%s421 + $0x18] sm:$0xf]
    %v429 = vld [vmem:[%s421 + $0x1c] sm:$0xf]
    %v438 = vunpack.c.l.b16 %v422
    %v439 = vunpack.c.l.b16 %v423
    %v440 = vunpack.c.l.b16 %v424
    %v441 = vunpack.c.l.b16 %v425
    %v442 = vunpack.c.l.b16 %v426
    %v443 = vunpack.c.l.b16 %v427
    %v444 = vunpack.c.l.b16 %v428
    %v445 = vunpack.c.l.b16 %v429
    %v446 = vpack.c.b16 %v439, %v438
    %v447 = vpack.c.b16 %v441, %v440
    %v448 = vpack.c.b16 %v443, %v442
    %v449 = vpack.c.b16 %v445, %v444
    %v454 = vunpack.c.l.b16 %v417
    %v455 = vunpack.c.h.b16 %v417
    %v456 = vunpack.c.l.b16 %v418
    %v457 = vunpack.c.h.b16 %v418
    %v458 = vunpack.c.l.b16 %v419
    %v459 = vunpack.c.h.b16 %v419
    %v460 = vunpack.c.l.b16 %v420
    %v461 = vunpack.c.h.b16 %v420
    %v462 = vpack.c.b16 %v456, %v454
    %v463 = vpack.c.b16 %v457, %v455
    %v464 = vpack.c.b16 %v460, %v458
    %v465 = vpack.c.b16 %v461, %v459
    %vm470 = vcmask 261120
    %v472 = vsel %vm470, %v446, 0
    %v475 = vsel %vm470, %v447, 0
    %v478 = vsel %vm470, %v448, 0
    %v481 = vsel %vm470, %v449, 0
    %483 = vmatprep.subr.bf16.mxu0 0
    %484 = vmatpush1.bf16.msra.mxu0 0
    %485 = vmatprep.subr.bf16.mxu0 0
    %486 = vmatpush1.bf16.msra.mxu0 0
    %487 = vmatprep.subr.bf16.mxu0 0
    %488 = vmatpush1.bf16.msra.mxu0 0
    %489 = vmatprep.subr.bf16.mxu0 0
    %490 = vmatpush1.bf16.msra.mxu0 0
    %491 = vmatprep.subr.bf16.mxu0 0
    %492 = vmatpush1.bf16.msra.mxu0 0
    %493 = vmatprep.subr.bf16.mxu0 0
    %494 = vmatpush1.bf16.msra.mxu0 0
    %495 = vmatprep.subr.bf16.mxu0 %v465
    %496 = vmatpush1.bf16.msra.mxu0 %v464
    %497 = vmatprep.subr.bf16.mxu0 %v463
    %498 = vmatpush1.bf16.msra.mxu0 %v462
    %499 = vmatprep.subr.bf16.mxu0 0
    %500 = vmatpush2.bf16.msra.mxu0 0
    %501 = vmatprep.subr.bf16.mxu0 0
    %502 = vmatpush2.bf16.msra.mxu0 0
    %503 = vmatprep.subr.bf16.mxu0 0
    %504 = vmatpush2.bf16.msra.mxu0 0
    %505 = vmatprep.subr.bf16.mxu0 0
    %506 = vmatpush2.bf16.msra.mxu0 0
    %507 = vmatprep.subr.bf16.mxu0 0
    %508 = vmatpush2.bf16.msra.mxu0 0
    %509 = vmatprep.subr.bf16.mxu0 0
    %510 = vmatpush2.bf16.msra.mxu0 0
    %511 = vmatprep.subr.bf16.mxu0 0
    %512 = vmatpush2.bf16.msra.mxu0 0
    %513 = vmatprep.subr.bf16.mxu0 0
    %514 = vmatpush2.bf16.msra.mxu0 0
    %515 = vmatprep.mubr.bf16.mxu0 0
    %516 = vmatmul.mubr.bf16.gmra.mxu0 %v472
    %v517 = vpop.f32.mrf.mxu0
    %v518 = vadd.f32 0.0, %v517
    %v519 = vpop.f32.mrf.mxu0
    %v520 = vadd.f32 0.0, %v519
    %v521 = vpop.f32.mrf.mxu0
    %v522 = vadd.f32 0.0, %v521
    %v523 = vpop.f32.mrf.mxu0
    %v524 = vadd.f32 0.0, %v523
    %525 = vmatprep.mubr.bf16.mxu0 0
    %526 = vmatmul.mubr.bf16.gmra.mxu0 %v475
    %v527 = vpop.f32.mrf.mxu0
    %v528 = vadd.f32 0.0, %v527
    %v529 = vpop.f32.mrf.mxu0
    %v530 = vadd.f32 0.0, %v529
    %v531 = vpop.f32.mrf.mxu0
    %v532 = vadd.f32 0.0, %v531
    %v533 = vpop.f32.mrf.mxu0
    %v534 = vadd.f32 0.0, %v533
    %535 = vmatprep.mubr.bf16.mxu0 0
    %536 = vmatmul.mubr.bf16.gmra.mxu0 %v478
    %v537 = vpop.f32.mrf.mxu0
    %v538 = vadd.f32 0.0, %v537
    %v539 = vpop.f32.mrf.mxu0
    %v540 = vadd.f32 0.0, %v539
    %v541 = vpop.f32.mrf.mxu0
    %v542 = vadd.f32 0.0, %v541
    %v543 = vpop.f32.mrf.mxu0
    %v544 = vadd.f32 0.0, %v543
    %545 = vmatprep.mubr.bf16.mxu0 0
    %546 = vmatmul.mubr.bf16.gmra.mxu0 %v481
    %v547 = vpop.f32.mrf.mxu0
    %v548 = vadd.f32 0.0, %v547
    %v549 = vpop.f32.mrf.mxu0
    %v550 = vadd.f32 0.0, %v549
    %v551 = vpop.f32.mrf.mxu0
    %v552 = vadd.f32 0.0, %v551
    %v553 = vpop.f32.mrf.mxu0
    %v554 = vadd.f32 0.0, %v553
    %555 = vdwg.mxu0
    %v564 = vunpack.c.l.b16 %v409
    %v565 = vunpack.c.l.b16 %v410
    %v566 = vunpack.c.l.b16 %v411
    %v567 = vunpack.c.l.b16 %v412
    %v568 = vunpack.c.l.b16 %v413
    %v569 = vunpack.c.l.b16 %v414
    %v570 = vunpack.c.l.b16 %v415
    %v571 = vunpack.c.l.b16 %v416
    %v572 = vpack.c.b16 %v565, %v564
    %v573 = vpack.c.b16 %v567, %v566
    %v574 = vpack.c.b16 %v569, %v568
    %v575 = vpack.c.b16 %v571, %v570
    %v580 = vunpack.c.l.b16 %v405
    %v581 = vunpack.c.h.b16 %v405
    %v582 = vunpack.c.l.b16 %v406
    %v583 = vunpack.c.h.b16 %v406
    %v584 = vunpack.c.l.b16 %v407
    %v585 = vunpack.c.h.b16 %v407
    %v586 = vunpack.c.l.b16 %v408
    %v587 = vunpack.c.h.b16 %v408
    %v588 = vpack.c.b16 %v582, %v580
    %v589 = vpack.c.b16 %v583, %v581
    %v590 = vpack.c.b16 %v586, %v584
    %v591 = vpack.c.b16 %v587, %v585
    %v597 = vsel %vm470, %v572, 0
    %v600 = vsel %vm470, %v573, 0
    %v603 = vsel %vm470, %v574, 0
    %v606 = vsel %vm470, %v575, 0
    %608 = vmatprep.subr.bf16.mxu0 0
    %609 = vmatpush1.bf16.msra.mxu0 0
    %610 = vmatprep.subr.bf16.mxu0 0
    %611 = vmatpush1.bf16.msra.mxu0 0
    %612 = vmatprep.subr.bf16.mxu0 0
    %613 = vmatpush1.bf16.msra.mxu0 0
    %614 = vmatprep.subr.bf16.mxu0 0
    %615 = vmatpush1.bf16.msra.mxu0 0
    %616 = vmatprep.subr.bf16.mxu0 0
    %617 = vmatpush1.bf16.msra.mxu0 0
    %618 = vmatprep.subr.bf16.mxu0 0
    %619 = vmatpush1.bf16.msra.mxu0 0
    %620 = vmatprep.subr.bf16.mxu0 %v591
    %621 = vmatpush1.bf16.msra.mxu0 %v590
    %622 = vmatprep.subr.bf16.mxu0 %v589
    %623 = vmatpush1.bf16.msra.mxu0 %v588
    %624 = vmatprep.subr.bf16.mxu0 0
    %625 = vmatpush2.bf16.msra.mxu0 0
    %626 = vmatprep.subr.bf16.mxu0 0
    %627 = vmatpush2.bf16.msra.mxu0 0
    %628 = vmatprep.subr.bf16.mxu0 0
    %629 = vmatpush2.bf16.msra.mxu0 0
    %630 = vmatprep.subr.bf16.mxu0 0
    %631 = vmatpush2.bf16.msra.mxu0 0
    %632 = vmatprep.subr.bf16.mxu0 0
    %633 = vmatpush2.bf16.msra.mxu0 0
    %634 = vmatprep.subr.bf16.mxu0 0
    %635 = vmatpush2.bf16.msra.mxu0 0
    %636 = vmatprep.subr.bf16.mxu0 0
    %637 = vmatpush2.bf16.msra.mxu0 0
    %638 = vmatprep.subr.bf16.mxu0 0
    %639 = vmatpush2.bf16.msra.mxu0 0
    %640 = vmatprep.mubr.bf16.mxu0 0
    %641 = vmatmul.mubr.bf16.gmra.mxu0 %v597
    %v642 = vpop.f32.mrf.mxu0
    %v643 = vadd.f32 %v518, %v642
    %v644 = vpop.f32.mrf.mxu0
    %v645 = vadd.f32 %v520, %v644
    %v646 = vpop.f32.mrf.mxu0
    %v647 = vadd.f32 %v522, %v646
    %v648 = vpop.f32.mrf.mxu0
    %v649 = vadd.f32 %v524, %v648
    %650 = vmatprep.mubr.bf16.mxu0 0
    %651 = vmatmul.mubr.bf16.gmra.mxu0 %v600
    %v652 = vpop.f32.mrf.mxu0
    %v653 = vadd.f32 %v528, %v652
    %v654 = vpop.f32.mrf.mxu0
    %v655 = vadd.f32 %v530, %v654
    %v656 = vpop.f32.mrf.mxu0
    %v657 = vadd.f32 %v532, %v656
    %v658 = vpop.f32.mrf.mxu0
    %v659 = vadd.f32 %v534, %v658
    %660 = vmatprep.mubr.bf16.mxu0 0
    %661 = vmatmul.mubr.bf16.gmra.mxu0 %v603
    %v662 = vpop.f32.mrf.mxu0
    %v663 = vadd.f32 %v538, %v662
    %v664 = vpop.f32.mrf.mxu0
    %v665 = vadd.f32 %v540, %v664
    %v666 = vpop.f32.mrf.mxu0
    %v667 = vadd.f32 %v542, %v666
    %v668 = vpop.f32.mrf.mxu0
    %v669 = vadd.f32 %v544, %v668
    %670 = vmatprep.mubr.bf16.mxu0 0
    %671 = vmatmul.mubr.bf16.gmra.mxu0 %v606
    %v672 = vpop.f32.mrf.mxu0
    %v673 = vadd.f32 %v548, %v672
    %v674 = vpop.f32.mrf.mxu0
    %v675 = vadd.f32 %v550, %v674
    %v676 = vpop.f32.mrf.mxu0
    %v677 = vadd.f32 %v552, %v676
    %v678 = vpop.f32.mrf.mxu0
    %v679 = vadd.f32 %v554, %v678
    %680 = vdwg.mxu0
    %s681 = scalar_lea.vmem %s3, 64
    %v682 = vld [vmem:[%s681] sm:$0xf]
    %v683 = vld [vmem:[%s681 + $0x4] sm:$0xf]
    %v684 = vld [vmem:[%s681 + $0x8] sm:$0xf]
    %v685 = vld [vmem:[%s681 + $0xc] sm:$0xf]
    %v686 = vld [vmem:[%s681 + $0x10] sm:$0xf]
    %v687 = vld [vmem:[%s681 + $0x14] sm:$0xf]
    %v688 = vld [vmem:[%s681 + $0x18] sm:$0xf]
    %v689 = vld [vmem:[%s681 + $0x1c] sm:$0xf]
    %v698 = vunpack.c.l.b16 %v682
    %v699 = vunpack.c.l.b16 %v683
    %v700 = vunpack.c.l.b16 %v684
    %v701 = vunpack.c.l.b16 %v685
    %v702 = vunpack.c.l.b16 %v686
    %v703 = vunpack.c.l.b16 %v687
    %v704 = vunpack.c.l.b16 %v688
    %v705 = vunpack.c.l.b16 %v689
    %v706 = vpack.c.b16 %v699, %v698
    %v707 = vpack.c.b16 %v701, %v700
    %v708 = vpack.c.b16 %v703, %v702
    %v709 = vpack.c.b16 %v705, %v704
    %710 = vrot.lane.b32.xlu0 %v588, 127
    %v711 = vpop.permute.xlu0 %710
    %712 = vrot.lane.b32.xlu0 %v589, 127
    %v713 = vpop.permute.xlu0 %712
    %714 = vrot.lane.b32.xlu0 %v590, 127
    %v715 = vpop.permute.xlu0 %714
    %716 = vrot.lane.b32.xlu0 %v591, 127
    %v717 = vpop.permute.xlu0 %716
    %vm718 = vcmask 1039360
    %v719 = vsel %vm718, %v711, %v713
    %v720 = vsel %vm718, %v715, %v717
    %v726 = vsel %vm470, %v706, 0
    %v729 = vsel %vm470, %v707, 0
    %v732 = vsel %vm470, %v708, 0
    %v735 = vsel %vm470, %v709, 0
    %737 = vmatprep.subr.bf16.mxu0 0
    %738 = vmatpush1.bf16.msra.mxu0 0
    %739 = vmatprep.subr.bf16.mxu0 0
    %740 = vmatpush1.bf16.msra.mxu0 0
    %741 = vmatprep.subr.bf16.mxu0 0
    %742 = vmatpush1.bf16.msra.mxu0 0
    %743 = vmatprep.subr.bf16.mxu0 0
    %744 = vmatpush1.bf16.msra.mxu0 0
    %745 = vmatprep.subr.bf16.mxu0 0
    %746 = vmatpush1.bf16.msra.mxu0 0
    %747 = vmatprep.subr.bf16.mxu0 0
    %748 = vmatpush1.bf16.msra.mxu0 0
    %749 = vmatprep.subr.bf16.mxu0 %v717
    %750 = vmatpush1.bf16.msra.mxu0 %v720
    %751 = vmatprep.subr.bf16.mxu0 %v713
    %752 = vmatpush1.bf16.msra.mxu0 %v719
    %753 = vmatprep.subr.bf16.mxu0 0
    %754 = vmatpush2.bf16.msra.mxu0 0
    %755 = vmatprep.subr.bf16.mxu0 0
    %756 = vmatpush2.bf16.msra.mxu0 0
    %757 = vmatprep.subr.bf16.mxu0 0
    %758 = vmatpush2.bf16.msra.mxu0 0
    %759 = vmatprep.subr.bf16.mxu0 0
    %760 = vmatpush2.bf16.msra.mxu0 0
    %761 = vmatprep.subr.bf16.mxu0 0
    %762 = vmatpush2.bf16.msra.mxu0 0
    %763 = vmatprep.subr.bf16.mxu0 0
    %764 = vmatpush2.bf16.msra.mxu0 0
    %765 = vmatprep.subr.bf16.mxu0 0
    %766 = vmatpush2.bf16.msra.mxu0 0
    %767 = vmatprep.subr.bf16.mxu0 0
    %768 = vmatpush2.bf16.msra.mxu0 0
    %769 = vmatprep.mubr.bf16.mxu0 0
    %770 = vmatmul.mubr.bf16.gmra.mxu0 %v726
    %v771 = vpop.f32.mrf.mxu0
    %v772 = vadd.f32 0.0, %v771
    %v773 = vpop.f32.mrf.mxu0
    %v774 = vadd.f32 0.0, %v773
    %v775 = vpop.f32.mrf.mxu0
    %v776 = vadd.f32 0.0, %v775
    %v777 = vpop.f32.mrf.mxu0
    %v778 = vadd.f32 0.0, %v777
    %779 = vmatprep.mubr.bf16.mxu0 0
    %780 = vmatmul.mubr.bf16.gmra.mxu0 %v729
    %v781 = vpop.f32.mrf.mxu0
    %v782 = vadd.f32 0.0, %v781
    %v783 = vpop.f32.mrf.mxu0
    %v784 = vadd.f32 0.0, %v783
    %v785 = vpop.f32.mrf.mxu0
    %v786 = vadd.f32 0.0, %v785
    %v787 = vpop.f32.mrf.mxu0
    %v788 = vadd.f32 0.0, %v787
    %789 = vmatprep.mubr.bf16.mxu0 0
    %790 = vmatmul.mubr.bf16.gmra.mxu0 %v732
    %v791 = vpop.f32.mrf.mxu0
    %v792 = vadd.f32 0.0, %v791
    %v793 = vpop.f32.mrf.mxu0
    %v794 = vadd.f32 0.0, %v793
    %v795 = vpop.f32.mrf.mxu0
    %v796 = vadd.f32 0.0, %v795
    %v797 = vpop.f32.mrf.mxu0
    %v798 = vadd.f32 0.0, %v797
    %799 = vmatprep.mubr.bf16.mxu0 0
    %800 = vmatmul.mubr.bf16.gmra.mxu0 %v735
    %v801 = vpop.f32.mrf.mxu0
    %v802 = vadd.f32 0.0, %v801
    %v803 = vpop.f32.mrf.mxu0
    %v804 = vadd.f32 0.0, %v803
    %v805 = vpop.f32.mrf.mxu0
    %v806 = vadd.f32 0.0, %v805
    %v807 = vpop.f32.mrf.mxu0
    %v808 = vadd.f32 0.0, %v807
    %809 = vdwg.mxu0
    %v810 = vadd.f32 %v643, %v772
    %v811 = vadd.f32 %v645, %v774
    %v812 = vadd.f32 %v647, %v776
    %v813 = vadd.f32 %v649, %v778
    %v814 = vadd.f32 %v653, %v782
    %v815 = vadd.f32 %v655, %v784
    %v816 = vadd.f32 %v657, %v786
    %v817 = vadd.f32 %v659, %v788
    %v818 = vadd.f32 %v663, %v792
    %v819 = vadd.f32 %v665, %v794
    %v820 = vadd.f32 %v667, %v796
    %v821 = vadd.f32 %v669, %v798
    %v822 = vadd.f32 %v673, %v802
    %v823 = vadd.f32 %v675, %v804
    %v824 = vadd.f32 %v677, %v806
    %v825 = vadd.f32 %v679, %v808
    %s826 = scalar_lea.vmem %s3, 96
    %v827 = vld [vmem:[%s826] sm:$0xf]
    %v828 = vld [vmem:[%s826 + $0x4] sm:$0xf]
    %v829 = vld [vmem:[%s826 + $0x8] sm:$0xf]
    %v830 = vld [vmem:[%s826 + $0xc] sm:$0xf]
    %v831 = vld [vmem:[%s826 + $0x10] sm:$0xf]
    %v832 = vld [vmem:[%s826 + $0x14] sm:$0xf]
    %v833 = vld [vmem:[%s826 + $0x18] sm:$0xf]
    %v834 = vld [vmem:[%s826 + $0x1c] sm:$0xf]
    %v843 = vunpack.c.l.b16 %v827
    %v844 = vunpack.c.l.b16 %v828
    %v845 = vunpack.c.l.b16 %v829
    %v846 = vunpack.c.l.b16 %v830
    %v847 = vunpack.c.l.b16 %v831
    %v848 = vunpack.c.l.b16 %v832
    %v849 = vunpack.c.l.b16 %v833
    %v850 = vunpack.c.l.b16 %v834
    %v851 = vpack.c.b16 %v844, %v843
    %v852 = vpack.c.b16 %v846, %v845
    %v853 = vpack.c.b16 %v848, %v847
    %v854 = vpack.c.b16 %v850, %v849
    %855 = vrot.lane.b32.xlu0 %v462, 127
    %v856 = vpop.permute.xlu0 %855
    %857 = vrot.lane.b32.xlu0 %v463, 127
    %v858 = vpop.permute.xlu0 %857
    %859 = vrot.lane.b32.xlu0 %v464, 127
    %v860 = vpop.permute.xlu0 %859
    %861 = vrot.lane.b32.xlu0 %v465, 127
    %v862 = vpop.permute.xlu0 %861
    %v863 = vsel %vm718, %v856, %v858
    %v864 = vsel %vm718, %v860, %v862
    %v870 = vsel %vm470, %v851, 0
    %v873 = vsel %vm470, %v852, 0
    %v876 = vsel %vm470, %v853, 0
    %v879 = vsel %vm470, %v854, 0
    %881 = vmatprep.subr.bf16.mxu0 0
    %882 = vmatpush1.bf16.msra.mxu0 0
    %883 = vmatprep.subr.bf16.mxu0 0
    %884 = vmatpush1.bf16.msra.mxu0 0
    %885 = vmatprep.subr.bf16.mxu0 0
    %886 = vmatpush1.bf16.msra.mxu0 0
    %887 = vmatprep.subr.bf16.mxu0 0
    %888 = vmatpush1.bf16.msra.mxu0 0
    %889 = vmatprep.subr.bf16.mxu0 0
    %890 = vmatpush1.bf16.msra.mxu0 0
    %891 = vmatprep.subr.bf16.mxu0 0
    %892 = vmatpush1.bf16.msra.mxu0 0
    %893 = vmatprep.subr.bf16.mxu0 %v862
    %894 = vmatpush1.bf16.msra.mxu0 %v864
    %895 = vmatprep.subr.bf16.mxu0 %v858
    %896 = vmatpush1.bf16.msra.mxu0 %v863
    %897 = vmatprep.subr.bf16.mxu0 0
    %898 = vmatpush2.bf16.msra.mxu0 0
    %899 = vmatprep.subr.bf16.mxu0 0
    %900 = vmatpush2.bf16.msra.mxu0 0
    %901 = vmatprep.subr.bf16.mxu0 0
    %902 = vmatpush2.bf16.msra.mxu0 0
    %903 = vmatprep.subr.bf16.mxu0 0
    %904 = vmatpush2.bf16.msra.mxu0 0
    %905 = vmatprep.subr.bf16.mxu0 0
    %906 = vmatpush2.bf16.msra.mxu0 0
    %907 = vmatprep.subr.bf16.mxu0 0
    %908 = vmatpush2.bf16.msra.mxu0 0
    %909 = vmatprep.subr.bf16.mxu0 0
    %910 = vmatpush2.bf16.msra.mxu0 0
    %911 = vmatprep.subr.bf16.mxu0 0
    %912 = vmatpush2.bf16.msra.mxu0 0
    %913 = vmatprep.mubr.bf16.mxu0 0
    %914 = vmatmul.mubr.bf16.gmra.mxu0 %v870
    %v915 = vpop.f32.mrf.mxu0
    %v916 = vadd.f32 0.0, %v915
    %v917 = vpop.f32.mrf.mxu0
    %v918 = vadd.f32 0.0, %v917
    %v919 = vpop.f32.mrf.mxu0
    %v920 = vadd.f32 0.0, %v919
    %v921 = vpop.f32.mrf.mxu0
    %v922 = vadd.f32 0.0, %v921
    %923 = vmatprep.mubr.bf16.mxu0 0
    %924 = vmatmul.mubr.bf16.gmra.mxu0 %v873
    %v925 = vpop.f32.mrf.mxu0
    %v926 = vadd.f32 0.0, %v925
    %v927 = vpop.f32.mrf.mxu0
    %v928 = vadd.f32 0.0, %v927
    %v929 = vpop.f32.mrf.mxu0
    %v930 = vadd.f32 0.0, %v929
    %v931 = vpop.f32.mrf.mxu0
    %v932 = vadd.f32 0.0, %v931
    %933 = vmatprep.mubr.bf16.mxu0 0
    %934 = vmatmul.mubr.bf16.gmra.mxu0 %v876
    %v935 = vpop.f32.mrf.mxu0
    %v936 = vadd.f32 0.0, %v935
    %v937 = vpop.f32.mrf.mxu0
    %v938 = vadd.f32 0.0, %v937
    %v939 = vpop.f32.mrf.mxu0
    %v940 = vadd.f32 0.0, %v939
    %v941 = vpop.f32.mrf.mxu0
    %v942 = vadd.f32 0.0, %v941
    %943 = vmatprep.mubr.bf16.mxu0 0
    %944 = vmatmul.mubr.bf16.gmra.mxu0 %v879
    %v945 = vpop.f32.mrf.mxu0
    %v946 = vadd.f32 0.0, %v945
    %v947 = vpop.f32.mrf.mxu0
    %v948 = vadd.f32 0.0, %v947
    %v949 = vpop.f32.mrf.mxu0
    %v950 = vadd.f32 0.0, %v949
    %v951 = vpop.f32.mrf.mxu0
    %v952 = vadd.f32 0.0, %v951
    %953 = vdwg.mxu0
    %v954 = vadd.f32 %v810, %v916
    %v955 = vadd.f32 %v811, %v918
    %v956 = vadd.f32 %v812, %v920
    %v957 = vadd.f32 %v813, %v922
    %v958 = vadd.f32 %v814, %v926
    %v959 = vadd.f32 %v815, %v928
    %v960 = vadd.f32 %v816, %v930
    %v961 = vadd.f32 %v817, %v932
    %v962 = vadd.f32 %v818, %v936
    %v963 = vadd.f32 %v819, %v938
    %v964 = vadd.f32 %v820, %v940
    %v965 = vadd.f32 %v821, %v942
    %v966 = vadd.f32 %v822, %v946
    %v967 = vadd.f32 %v823, %v948
    %v968 = vadd.f32 %v824, %v950
    %v969 = vadd.f32 %v825, %v952
    %s970 = scalar_lea.vmem %s3, 128
    %v971 = vld [vmem:[%s970] sm:$0xf]
    %v972 = vld [vmem:[%s970 + $0x4] sm:$0xf]
    %v973 = vld [vmem:[%s970 + $0x8] sm:$0xf]
    %v974 = vld [vmem:[%s970 + $0xc] sm:$0xf]
    %v975 = vld [vmem:[%s970 + $0x10] sm:$0xf]
    %v976 = vld [vmem:[%s970 + $0x14] sm:$0xf]
    %v977 = vld [vmem:[%s970 + $0x18] sm:$0xf]
    %v978 = vld [vmem:[%s970 + $0x1c] sm:$0xf]
    %v987 = vunpack.c.l.b16 %v971
    %v988 = vunpack.c.l.b16 %v972
    %v989 = vunpack.c.l.b16 %v973
    %v990 = vunpack.c.l.b16 %v974
    %v991 = vunpack.c.l.b16 %v975
    %v992 = vunpack.c.l.b16 %v976
    %v993 = vunpack.c.l.b16 %v977
    %v994 = vunpack.c.l.b16 %v978
    %v995 = vpack.c.b16 %v988, %v987
    %v996 = vpack.c.b16 %v990, %v989
    %v997 = vpack.c.b16 %v992, %v991
    %v998 = vpack.c.b16 %v994, %v993
    %999 = vrot.lane.b32.xlu0 %v588, 118
    %v1000 = vpop.permute.xlu0 %999
    %1001 = vrot.lane.b32.xlu0 %v589, 118
    %v1002 = vpop.permute.xlu0 %1001
    %1003 = vrot.lane.b32.xlu0 %v590, 118
    %v1004 = vpop.permute.xlu0 %1003
    %1005 = vrot.lane.b32.xlu0 %v591, 118
    %v1006 = vpop.permute.xlu0 %1005
    %vm1007 = vcmask 965632
    %v1008 = vsel %vm1007, %v1000, %v1002
    %v1009 = vsel %vm1007, %v1004, %v1006
    %v1015 = vsel %vm470, %v995, 0
    %v1018 = vsel %vm470, %v996, 0
    %v1021 = vsel %vm470, %v997, 0
    %v1024 = vsel %vm470, %v998, 0
    %1026 = vmatprep.subr.bf16.mxu0 0
    %1027 = vmatpush1.bf16.msra.mxu0 0
    %1028 = vmatprep.subr.bf16.mxu0 0
    %1029 = vmatpush1.bf16.msra.mxu0 0
    %1030 = vmatprep.subr.bf16.mxu0 0
    %1031 = vmatpush1.bf16.msra.mxu0 0
    %1032 = vmatprep.subr.bf16.mxu0 0
    %1033 = vmatpush1.bf16.msra.mxu0 0
    %1034 = vmatprep.subr.bf16.mxu0 0
    %1035 = vmatpush1.bf16.msra.mxu0 0
    %1036 = vmatprep.subr.bf16.mxu0 0
    %1037 = vmatpush1.bf16.msra.mxu0 0
    %1038 = vmatprep.subr.bf16.mxu0 %v1006
    %1039 = vmatpush1.bf16.msra.mxu0 %v1009
    %1040 = vmatprep.subr.bf16.mxu0 %v1002
    %1041 = vmatpush1.bf16.msra.mxu0 %v1008
    %1042 = vmatprep.subr.bf16.mxu0 0
    %1043 = vmatpush2.bf16.msra.mxu0 0
    %1044 = vmatprep.subr.bf16.mxu0 0
    %1045 = vmatpush2.bf16.msra.mxu0 0
    %1046 = vmatprep.subr.bf16.mxu0 0
    %1047 = vmatpush2.bf16.msra.mxu0 0
    %1048 = vmatprep.subr.bf16.mxu0 0
    %1049 = vmatpush2.bf16.msra.mxu0 0
    %1050 = vmatprep.subr.bf16.mxu0 0
    %1051 = vmatpush2.bf16.msra.mxu0 0
    %1052 = vmatprep.subr.bf16.mxu0 0
    %1053 = vmatpush2.bf16.msra.mxu0 0
    %1054 = vmatprep.subr.bf16.mxu0 0
    %1055 = vmatpush2.bf16.msra.mxu0 0
    %1056 = vmatprep.subr.bf16.mxu0 0
    %1057 = vmatpush2.bf16.msra.mxu0 0
    %1058 = vmatprep.mubr.bf16.mxu0 0
    %1059 = vmatmul.mubr.bf16.gmra.mxu0 %v1015
    %v1060 = vpop.f32.mrf.mxu0
    %v1061 = vadd.f32 0.0, %v1060
    %v1062 = vpop.f32.mrf.mxu0
    %v1063 = vadd.f32 0.0, %v1062
    %v1064 = vpop.f32.mrf.mxu0
    %v1065 = vadd.f32 0.0, %v1064
    %v1066 = vpop.f32.mrf.mxu0
    %v1067 = vadd.f32 0.0, %v1066
    %1068 = vmatprep.mubr.bf16.mxu0 0
    %1069 = vmatmul.mubr.bf16.gmra.mxu0 %v1018
    %v1070 = vpop.f32.mrf.mxu0
    %v1071 = vadd.f32 0.0, %v1070
    %v1072 = vpop.f32.mrf.mxu0
    %v1073 = vadd.f32 0.0, %v1072
    %v1074 = vpop.f32.mrf.mxu0
    %v1075 = vadd.f32 0.0, %v1074
    %v1076 = vpop.f32.mrf.mxu0
    %v1077 = vadd.f32 0.0, %v1076
    %1078 = vmatprep.mubr.bf16.mxu0 0
    %1079 = vmatmul.mubr.bf16.gmra.mxu0 %v1021
    %v1080 = vpop.f32.mrf.mxu0
    %v1081 = vadd.f32 0.0, %v1080
    %v1082 = vpop.f32.mrf.mxu0
    %v1083 = vadd.f32 0.0, %v1082
    %v1084 = vpop.f32.mrf.mxu0
    %v1085 = vadd.f32 0.0, %v1084
    %v1086 = vpop.f32.mrf.mxu0
    %v1087 = vadd.f32 0.0, %v1086
    %1088 = vmatprep.mubr.bf16.mxu0 0
    %1089 = vmatmul.mubr.bf16.gmra.mxu0 %v1024
    %v1090 = vpop.f32.mrf.mxu0
    %v1091 = vadd.f32 0.0, %v1090
    %v1092 = vpop.f32.mrf.mxu0
    %v1093 = vadd.f32 0.0, %v1092
    %v1094 = vpop.f32.mrf.mxu0
    %v1095 = vadd.f32 0.0, %v1094
    %v1096 = vpop.f32.mrf.mxu0
    %v1097 = vadd.f32 0.0, %v1096
    %1098 = vdwg.mxu0
    %v1099 = vadd.f32 %v954, %v1061
    %v1100 = vadd.f32 %v955, %v1063
    %v1101 = vadd.f32 %v956, %v1065
    %v1102 = vadd.f32 %v957, %v1067
    %v1103 = vadd.f32 %v958, %v1071
    %v1104 = vadd.f32 %v959, %v1073
    %v1105 = vadd.f32 %v960, %v1075
    %v1106 = vadd.f32 %v961, %v1077
    %v1107 = vadd.f32 %v962, %v1081
    %v1108 = vadd.f32 %v963, %v1083
    %v1109 = vadd.f32 %v964, %v1085
    %v1110 = vadd.f32 %v965, %v1087
    %v1111 = vadd.f32 %v966, %v1091
    %v1112 = vadd.f32 %v967, %v1093
    %v1113 = vadd.f32 %v968, %v1095
    %v1114 = vadd.f32 %v969, %v1097
    %s1115 = scalar_lea.vmem %s3, 160
    %v1116 = vld [vmem:[%s1115] sm:$0xf]
    %v1117 = vld [vmem:[%s1115 + $0x4] sm:$0xf]
    %v1118 = vld [vmem:[%s1115 + $0x8] sm:$0xf]
    %v1119 = vld [vmem:[%s1115 + $0xc] sm:$0xf]
    %v1120 = vld [vmem:[%s1115 + $0x10] sm:$0xf]
    %v1121 = vld [vmem:[%s1115 + $0x14] sm:$0xf]
    %v1122 = vld [vmem:[%s1115 + $0x18] sm:$0xf]
    %v1123 = vld [vmem:[%s1115 + $0x1c] sm:$0xf]
    %v1132 = vunpack.c.l.b16 %v1116
    %v1133 = vunpack.c.l.b16 %v1117
    %v1134 = vunpack.c.l.b16 %v1118
    %v1135 = vunpack.c.l.b16 %v1119
    %v1136 = vunpack.c.l.b16 %v1120
    %v1137 = vunpack.c.l.b16 %v1121
    %v1138 = vunpack.c.l.b16 %v1122
    %v1139 = vunpack.c.l.b16 %v1123
    %v1140 = vpack.c.b16 %v1133, %v1132
    %v1141 = vpack.c.b16 %v1135, %v1134
    %v1142 = vpack.c.b16 %v1137, %v1136
    %v1143 = vpack.c.b16 %v1139, %v1138
    %1144 = vrot.lane.b32.xlu0 %v462, 118
    %v1145 = vpop.permute.xlu0 %1144
    %1146 = vrot.lane.b32.xlu0 %v463, 118
    %v1147 = vpop.permute.xlu0 %1146
    %1148 = vrot.lane.b32.xlu0 %v464, 118
    %v1149 = vpop.permute.xlu0 %1148
    %1150 = vrot.lane.b32.xlu0 %v465, 118
    %v1151 = vpop.permute.xlu0 %1150
    %v1152 = vsel %vm1007, %v1145, %v1147
    %v1153 = vsel %vm1007, %v1149, %v1151
    %v1159 = vsel %vm470, %v1140, 0
    %v1162 = vsel %vm470, %v1141, 0
    %v1165 = vsel %vm470, %v1142, 0
    %v1168 = vsel %vm470, %v1143, 0
    %1170 = vmatprep.subr.bf16.mxu0 0
    %1171 = vmatpush1.bf16.msra.mxu0 0
    %1172 = vmatprep.subr.bf16.mxu0 0
    %1173 = vmatpush1.bf16.msra.mxu0 0
    %1174 = vmatprep.subr.bf16.mxu0 0
    %1175 = vmatpush1.bf16.msra.mxu0 0
    %1176 = vmatprep.subr.bf16.mxu0 0
    %1177 = vmatpush1.bf16.msra.mxu0 0
    %1178 = vmatprep.subr.bf16.mxu0 0
    %1179 = vmatpush1.bf16.msra.mxu0 0
    %1180 = vmatprep.subr.bf16.mxu0 0
    %1181 = vmatpush1.bf16.msra.mxu0 0
    %1182 = vmatprep.subr.bf16.mxu0 %v1151
    %1183 = vmatpush1.bf16.msra.mxu0 %v1153
    %1184 = vmatprep.subr.bf16.mxu0 %v1147
    %1185 = vmatpush1.bf16.msra.mxu0 %v1152
    %1186 = vmatprep.subr.bf16.mxu0 0
    %1187 = vmatpush2.bf16.msra.mxu0 0
    %1188 = vmatprep.subr.bf16.mxu0 0
    %1189 = vmatpush2.bf16.msra.mxu0 0
    %1190 = vmatprep.subr.bf16.mxu0 0
    %1191 = vmatpush2.bf16.msra.mxu0 0
    %1192 = vmatprep.subr.bf16.mxu0 0
    %1193 = vmatpush2.bf16.msra.mxu0 0
    %1194 = vmatprep.subr.bf16.mxu0 0
    %1195 = vmatpush2.bf16.msra.mxu0 0
    %1196 = vmatprep.subr.bf16.mxu0 0
    %1197 = vmatpush2.bf16.msra.mxu0 0
    %1198 = vmatprep.subr.bf16.mxu0 0
    %1199 = vmatpush2.bf16.msra.mxu0 0
    %1200 = vmatprep.subr.bf16.mxu0 0
    %1201 = vmatpush2.bf16.msra.mxu0 0
    %1202 = vmatprep.mubr.bf16.mxu0 0
    %1203 = vmatmul.mubr.bf16.gmra.mxu0 %v1159
    %v1204 = vpop.f32.mrf.mxu0
    %v1205 = vadd.f32 0.0, %v1204
    %v1206 = vpop.f32.mrf.mxu0
    %v1207 = vadd.f32 0.0, %v1206
    %v1208 = vpop.f32.mrf.mxu0
    %v1209 = vadd.f32 0.0, %v1208
    %v1210 = vpop.f32.mrf.mxu0
    %v1211 = vadd.f32 0.0, %v1210
    %1212 = vmatprep.mubr.bf16.mxu0 0
    %1213 = vmatmul.mubr.bf16.gmra.mxu0 %v1162
    %v1214 = vpop.f32.mrf.mxu0
    %v1215 = vadd.f32 0.0, %v1214
    %v1216 = vpop.f32.mrf.mxu0
    %v1217 = vadd.f32 0.0, %v1216
    %v1218 = vpop.f32.mrf.mxu0
    %v1219 = vadd.f32 0.0, %v1218
    %v1220 = vpop.f32.mrf.mxu0
    %v1221 = vadd.f32 0.0, %v1220
    %1222 = vmatprep.mubr.bf16.mxu0 0
    %1223 = vmatmul.mubr.bf16.gmra.mxu0 %v1165
    %v1224 = vpop.f32.mrf.mxu0
    %v1225 = vadd.f32 0.0, %v1224
    %v1226 = vpop.f32.mrf.mxu0
    %v1227 = vadd.f32 0.0, %v1226
    %v1228 = vpop.f32.mrf.mxu0
    %v1229 = vadd.f32 0.0, %v1228
    %v1230 = vpop.f32.mrf.mxu0
    %v1231 = vadd.f32 0.0, %v1230
    %1232 = vmatprep.mubr.bf16.mxu0 0
    %1233 = vmatmul.mubr.bf16.gmra.mxu0 %v1168
    %v1234 = vpop.f32.mrf.mxu0
    %v1235 = vadd.f32 0.0, %v1234
    %v1236 = vpop.f32.mrf.mxu0
    %v1237 = vadd.f32 0.0, %v1236
    %v1238 = vpop.f32.mrf.mxu0
    %v1239 = vadd.f32 0.0, %v1238
    %v1240 = vpop.f32.mrf.mxu0
    %v1241 = vadd.f32 0.0, %v1240
    %1242 = vdwg.mxu0
    %v1243 = vadd.f32 %v1099, %v1205
    %v1244 = vadd.f32 %v1100, %v1207
    %v1245 = vadd.f32 %v1101, %v1209
    %v1246 = vadd.f32 %v1102, %v1211
    %v1247 = vadd.f32 %v1103, %v1215
    %v1248 = vadd.f32 %v1104, %v1217
    %v1249 = vadd.f32 %v1105, %v1219
    %v1250 = vadd.f32 %v1106, %v1221
    %v1251 = vadd.f32 %v1107, %v1225
    %v1252 = vadd.f32 %v1108, %v1227
    %v1253 = vadd.f32 %v1109, %v1229
    %v1254 = vadd.f32 %v1110, %v1231
    %v1255 = vadd.f32 %v1111, %v1235
    %v1256 = vadd.f32 %v1112, %v1237
    %v1257 = vadd.f32 %v1113, %v1239
    %v1258 = vadd.f32 %v1114, %v1241
    %s1259 = scalar_lea.vmem %s3, 192
    %v1260 = vld [vmem:[%s1259] sm:$0xf]
    %v1261 = vld [vmem:[%s1259 + $0x4] sm:$0xf]
    %v1262 = vld [vmem:[%s1259 + $0x8] sm:$0xf]
    %v1263 = vld [vmem:[%s1259 + $0xc] sm:$0xf]
    %v1264 = vld [vmem:[%s1259 + $0x10] sm:$0xf]
    %v1265 = vld [vmem:[%s1259 + $0x14] sm:$0xf]
    %v1266 = vld [vmem:[%s1259 + $0x18] sm:$0xf]
    %v1267 = vld [vmem:[%s1259 + $0x1c] sm:$0xf]
    %v1276 = vunpack.c.l.b16 %v1260
    %v1277 = vunpack.c.l.b16 %v1261
    %v1278 = vunpack.c.l.b16 %v1262
    %v1279 = vunpack.c.l.b16 %v1263
    %v1280 = vunpack.c.l.b16 %v1264
    %v1281 = vunpack.c.l.b16 %v1265
    %v1282 = vunpack.c.l.b16 %v1266
    %v1283 = vunpack.c.l.b16 %v1267
    %v1284 = vpack.c.b16 %v1277, %v1276
    %v1285 = vpack.c.b16 %v1279, %v1278
    %v1286 = vpack.c.b16 %v1281, %v1280
    %v1287 = vpack.c.b16 %v1283, %v1282
    %1288 = vrot.lane.b32.xlu0 %v588, 117
    %v1289 = vpop.permute.xlu0 %1288
    %1290 = vrot.lane.b32.xlu0 %v589, 117
    %v1291 = vpop.permute.xlu0 %1290
    %1292 = vrot.lane.b32.xlu0 %v590, 117
    %v1293 = vpop.permute.xlu0 %1292
    %1294 = vrot.lane.b32.xlu0 %v591, 117
    %v1295 = vpop.permute.xlu0 %1294
    %vm1296 = vcmask 957440
    %v1297 = vsel %vm1296, %v1289, %v1291
    %v1298 = vsel %vm1296, %v1293, %v1295
    %v1304 = vsel %vm470, %v1284, 0
    %v1307 = vsel %vm470, %v1285, 0
    %v1310 = vsel %vm470, %v1286, 0
    %v1313 = vsel %vm470, %v1287, 0
    %1315 = vmatprep.subr.bf16.mxu0 0
    %1316 = vmatpush1.bf16.msra.mxu0 0
    %1317 = vmatprep.subr.bf16.mxu0 0
    %1318 = vmatpush1.bf16.msra.mxu0 0
    %1319 = vmatprep.subr.bf16.mxu0 0
    %1320 = vmatpush1.bf16.msra.mxu0 0
    %1321 = vmatprep.subr.bf16.mxu0 0
    %1322 = vmatpush1.bf16.msra.mxu0 0
    %1323 = vmatprep.subr.bf16.mxu0 0
    %1324 = vmatpush1.bf16.msra.mxu0 0
    %1325 = vmatprep.subr.bf16.mxu0 0
    %1326 = vmatpush1.bf16.msra.mxu0 0
    %1327 = vmatprep.subr.bf16.mxu0 %v1295
    %1328 = vmatpush1.bf16.msra.mxu0 %v1298
    %1329 = vmatprep.subr.bf16.mxu0 %v1291
    %1330 = vmatpush1.bf16.msra.mxu0 %v1297
    %1331 = vmatprep.subr.bf16.mxu0 0
    %1332 = vmatpush2.bf16.msra.mxu0 0
    %1333 = vmatprep.subr.bf16.mxu0 0
    %1334 = vmatpush2.bf16.msra.mxu0 0
    %1335 = vmatprep.subr.bf16.mxu0 0
    %1336 = vmatpush2.bf16.msra.mxu0 0
    %1337 = vmatprep.subr.bf16.mxu0 0
    %1338 = vmatpush2.bf16.msra.mxu0 0
    %1339 = vmatprep.subr.bf16.mxu0 0
    %1340 = vmatpush2.bf16.msra.mxu0 0
    %1341 = vmatprep.subr.bf16.mxu0 0
    %1342 = vmatpush2.bf16.msra.mxu0 0
    %1343 = vmatprep.subr.bf16.mxu0 0
    %1344 = vmatpush2.bf16.msra.mxu0 0
    %1345 = vmatprep.subr.bf16.mxu0 0
    %1346 = vmatpush2.bf16.msra.mxu0 0
    %1347 = vmatprep.mubr.bf16.mxu0 0
    %1348 = vmatmul.mubr.bf16.gmra.mxu0 %v1304
    %v1349 = vpop.f32.mrf.mxu0
    %v1350 = vadd.f32 0.0, %v1349
    %v1351 = vpop.f32.mrf.mxu0
    %v1352 = vadd.f32 0.0, %v1351
    %v1353 = vpop.f32.mrf.mxu0
    %v1354 = vadd.f32 0.0, %v1353
    %v1355 = vpop.f32.mrf.mxu0
    %v1356 = vadd.f32 0.0, %v1355
    %1357 = vmatprep.mubr.bf16.mxu0 0
    %1358 = vmatmul.mubr.bf16.gmra.mxu0 %v1307
    %v1359 = vpop.f32.mrf.mxu0
    %v1360 = vadd.f32 0.0, %v1359
    %v1361 = vpop.f32.mrf.mxu0
    %v1362 = vadd.f32 0.0, %v1361
    %v1363 = vpop.f32.mrf.mxu0
    %v1364 = vadd.f32 0.0, %v1363
    %v1365 = vpop.f32.mrf.mxu0
    %v1366 = vadd.f32 0.0, %v1365
    %1367 = vmatprep.mubr.bf16.mxu0 0
    %1368 = vmatmul.mubr.bf16.gmra.mxu0 %v1310
    %v1369 = vpop.f32.mrf.mxu0
    %v1370 = vadd.f32 0.0, %v1369
    %v1371 = vpop.f32.mrf.mxu0
    %v1372 = vadd.f32 0.0, %v1371
    %v1373 = vpop.f32.mrf.mxu0
    %v1374 = vadd.f32 0.0, %v1373
    %v1375 = vpop.f32.mrf.mxu0
    %v1376 = vadd.f32 0.0, %v1375
    %1377 = vmatprep.mubr.bf16.mxu0 0
    %1378 = vmatmul.mubr.bf16.gmra.mxu0 %v1313
    %v1379 = vpop.f32.mrf.mxu0
    %v1380 = vadd.f32 0.0, %v1379
    %v1381 = vpop.f32.mrf.mxu0
    %v1382 = vadd.f32 0.0, %v1381
    %v1383 = vpop.f32.mrf.mxu0
    %v1384 = vadd.f32 0.0, %v1383
    %v1385 = vpop.f32.mrf.mxu0
    %v1386 = vadd.f32 0.0, %v1385
    %1387 = vdwg.mxu0
    %v1388 = vadd.f32 %v1243, %v1350
    %v1389 = vadd.f32 %v1244, %v1352
    %v1390 = vadd.f32 %v1245, %v1354
    %v1391 = vadd.f32 %v1246, %v1356
    %v1392 = vadd.f32 %v1247, %v1360
    %v1393 = vadd.f32 %v1248, %v1362
    %v1394 = vadd.f32 %v1249, %v1364
    %v1395 = vadd.f32 %v1250, %v1366
    %v1396 = vadd.f32 %v1251, %v1370
    %v1397 = vadd.f32 %v1252, %v1372
    %v1398 = vadd.f32 %v1253, %v1374
    %v1399 = vadd.f32 %v1254, %v1376
    %v1400 = vadd.f32 %v1255, %v1380
    %v1401 = vadd.f32 %v1256, %v1382
    %v1402 = vadd.f32 %v1257, %v1384
    %v1403 = vadd.f32 %v1258, %v1386
    %s1404 = scalar_lea.vmem %s3, 224
    %v1405 = vld [vmem:[%s1404] sm:$0xf]
    %v1406 = vld [vmem:[%s1404 + $0x4] sm:$0xf]
    %v1407 = vld [vmem:[%s1404 + $0x8] sm:$0xf]
    %v1408 = vld [vmem:[%s1404 + $0xc] sm:$0xf]
    %v1409 = vld [vmem:[%s1404 + $0x10] sm:$0xf]
    %v1410 = vld [vmem:[%s1404 + $0x14] sm:$0xf]
    %v1411 = vld [vmem:[%s1404 + $0x18] sm:$0xf]
    %v1412 = vld [vmem:[%s1404 + $0x1c] sm:$0xf]
    %v1421 = vunpack.c.l.b16 %v1405
    %v1422 = vunpack.c.l.b16 %v1406
    %v1423 = vunpack.c.l.b16 %v1407
    %v1424 = vunpack.c.l.b16 %v1408
    %v1425 = vunpack.c.l.b16 %v1409
    %v1426 = vunpack.c.l.b16 %v1410
    %v1427 = vunpack.c.l.b16 %v1411
    %v1428 = vunpack.c.l.b16 %v1412
    %v1429 = vpack.c.b16 %v1422, %v1421
    %v1430 = vpack.c.b16 %v1424, %v1423
    %v1431 = vpack.c.b16 %v1426, %v1425
    %v1432 = vpack.c.b16 %v1428, %v1427
    %1433 = vrot.lane.b32.xlu0 %v462, 117
    %v1434 = vpop.permute.xlu0 %1433
    %1435 = vrot.lane.b32.xlu0 %v463, 117
    %v1436 = vpop.permute.xlu0 %1435
    %1437 = vrot.lane.b32.xlu0 %v464, 117
    %v1438 = vpop.permute.xlu0 %1437
    %1439 = vrot.lane.b32.xlu0 %v465, 117
    %v1440 = vpop.permute.xlu0 %1439
    %v1441 = vsel %vm1296, %v1434, %v1436
    %v1442 = vsel %vm1296, %v1438, %v1440
    %v1448 = vsel %vm470, %v1429, 0
    %v1451 = vsel %vm470, %v1430, 0
    %v1454 = vsel %vm470, %v1431, 0
    %v1457 = vsel %vm470, %v1432, 0
    %1459 = vmatprep.subr.bf16.mxu0 0
    %1460 = vmatpush1.bf16.msra.mxu0 0
    %1461 = vmatprep.subr.bf16.mxu0 0
    %1462 = vmatpush1.bf16.msra.mxu0 0
    %1463 = vmatprep.subr.bf16.mxu0 0
    %1464 = vmatpush1.bf16.msra.mxu0 0
    %1465 = vmatprep.subr.bf16.mxu0 0
    %1466 = vmatpush1.bf16.msra.mxu0 0
    %1467 = vmatprep.subr.bf16.mxu0 0
    %1468 = vmatpush1.bf16.msra.mxu0 0
    %1469 = vmatprep.subr.bf16.mxu0 0
    %1470 = vmatpush1.bf16.msra.mxu0 0
    %1471 = vmatprep.subr.bf16.mxu0 %v1440
    %1472 = vmatpush1.bf16.msra.mxu0 %v1442
    %1473 = vmatprep.subr.bf16.mxu0 %v1436
    %1474 = vmatpush1.bf16.msra.mxu0 %v1441
    %1475 = vmatprep.subr.bf16.mxu0 0
    %1476 = vmatpush2.bf16.msra.mxu0 0
    %1477 = vmatprep.subr.bf16.mxu0 0
    %1478 = vmatpush2.bf16.msra.mxu0 0
    %1479 = vmatprep.subr.bf16.mxu0 0
    %1480 = vmatpush2.bf16.msra.mxu0 0
    %1481 = vmatprep.subr.bf16.mxu0 0
    %1482 = vmatpush2.bf16.msra.mxu0 0
    %1483 = vmatprep.subr.bf16.mxu0 0
    %1484 = vmatpush2.bf16.msra.mxu0 0
    %1485 = vmatprep.subr.bf16.mxu0 0
    %1486 = vmatpush2.bf16.msra.mxu0 0
    %1487 = vmatprep.subr.bf16.mxu0 0
    %1488 = vmatpush2.bf16.msra.mxu0 0
    %1489 = vmatprep.subr.bf16.mxu0 0
    %1490 = vmatpush2.bf16.msra.mxu0 0
    %1491 = vmatprep.mubr.bf16.mxu0 0
    %1492 = vmatmul.mubr.bf16.gmra.mxu0 %v1448
    %v1493 = vpop.f32.mrf.mxu0
    %v1494 = vadd.f32 0.0, %v1493
    %v1495 = vpop.f32.mrf.mxu0
    %v1496 = vadd.f32 0.0, %v1495
    %v1497 = vpop.f32.mrf.mxu0
    %v1498 = vadd.f32 0.0, %v1497
    %v1499 = vpop.f32.mrf.mxu0
    %v1500 = vadd.f32 0.0, %v1499
    %1501 = vmatprep.mubr.bf16.mxu0 0
    %1502 = vmatmul.mubr.bf16.gmra.mxu0 %v1451
    %v1503 = vpop.f32.mrf.mxu0
    %v1504 = vadd.f32 0.0, %v1503
    %v1505 = vpop.f32.mrf.mxu0
    %v1506 = vadd.f32 0.0, %v1505
    %v1507 = vpop.f32.mrf.mxu0
    %v1508 = vadd.f32 0.0, %v1507
    %v1509 = vpop.f32.mrf.mxu0
    %v1510 = vadd.f32 0.0, %v1509
    %1511 = vmatprep.mubr.bf16.mxu0 0
    %1512 = vmatmul.mubr.bf16.gmra.mxu0 %v1454
    %v1513 = vpop.f32.mrf.mxu0
    %v1514 = vadd.f32 0.0, %v1513
    %v1515 = vpop.f32.mrf.mxu0
    %v1516 = vadd.f32 0.0, %v1515
    %v1517 = vpop.f32.mrf.mxu0
    %v1518 = vadd.f32 0.0, %v1517
    %v1519 = vpop.f32.mrf.mxu0
    %v1520 = vadd.f32 0.0, %v1519
    %1521 = vmatprep.mubr.bf16.mxu0 0
    %1522 = vmatmul.mubr.bf16.gmra.mxu0 %v1457
    %v1523 = vpop.f32.mrf.mxu0
    %v1524 = vadd.f32 0.0, %v1523
    %v1525 = vpop.f32.mrf.mxu0
    %v1526 = vadd.f32 0.0, %v1525
    %v1527 = vpop.f32.mrf.mxu0
    %v1528 = vadd.f32 0.0, %v1527
    %v1529 = vpop.f32.mrf.mxu0
    %v1530 = vadd.f32 0.0, %v1529
    %1531 = vdwg.mxu0
    %v1532 = vadd.f32 %v1388, %v1494
    %v1533 = vadd.f32 %v1389, %v1496
    %v1534 = vadd.f32 %v1390, %v1498
    %v1535 = vadd.f32 %v1391, %v1500
    %v1536 = vadd.f32 %v1392, %v1504
    %v1537 = vadd.f32 %v1393, %v1506
    %v1538 = vadd.f32 %v1394, %v1508
    %v1539 = vadd.f32 %v1395, %v1510
    %v1540 = vadd.f32 %v1396, %v1514
    %v1541 = vadd.f32 %v1397, %v1516
    %v1542 = vadd.f32 %v1398, %v1518
    %v1543 = vadd.f32 %v1399, %v1520
    %v1544 = vadd.f32 %v1400, %v1524
    %v1545 = vadd.f32 %v1401, %v1526
    %v1546 = vadd.f32 %v1402, %v1528
    %v1547 = vadd.f32 %v1403, %v1530
    %s1548 = scalar_lea.vmem %s3, 256
    %v1549 = vld [vmem:[%s1548] sm:$0xf]
    %v1550 = vld [vmem:[%s1548 + $0x4] sm:$0xf]
    %v1551 = vld [vmem:[%s1548 + $0x8] sm:$0xf]
    %v1552 = vld [vmem:[%s1548 + $0xc] sm:$0xf]
    %v1553 = vld [vmem:[%s1548 + $0x10] sm:$0xf]
    %v1554 = vld [vmem:[%s1548 + $0x14] sm:$0xf]
    %v1555 = vld [vmem:[%s1548 + $0x18] sm:$0xf]
    %v1556 = vld [vmem:[%s1548 + $0x1c] sm:$0xf]
    %v1565 = vunpack.c.l.b16 %v1549
    %v1566 = vunpack.c.l.b16 %v1550
    %v1567 = vunpack.c.l.b16 %v1551
    %v1568 = vunpack.c.l.b16 %v1552
    %v1569 = vunpack.c.l.b16 %v1553
    %v1570 = vunpack.c.l.b16 %v1554
    %v1571 = vunpack.c.l.b16 %v1555
    %v1572 = vunpack.c.l.b16 %v1556
    %v1573 = vpack.c.b16 %v1566, %v1565
    %v1574 = vpack.c.b16 %v1568, %v1567
    %v1575 = vpack.c.b16 %v1570, %v1569
    %v1576 = vpack.c.b16 %v1572, %v1571
    %1577 = vrot.lane.b32.xlu0 %v588, 108
    %v1578 = vpop.permute.xlu0 %1577
    %1579 = vrot.lane.b32.xlu0 %v589, 108
    %v1580 = vpop.permute.xlu0 %1579
    %1581 = vrot.lane.b32.xlu0 %v590, 108
    %v1582 = vpop.permute.xlu0 %1581
    %1583 = vrot.lane.b32.xlu0 %v591, 108
    %v1584 = vpop.permute.xlu0 %1583
    %vm1585 = vcmask 883712
    %v1586 = vsel %vm1585, %v1578, %v1580
    %v1587 = vsel %vm1585, %v1582, %v1584
    %v1593 = vsel %vm470, %v1573, 0
    %v1596 = vsel %vm470, %v1574, 0
    %v1599 = vsel %vm470, %v1575, 0
    %v1602 = vsel %vm470, %v1576, 0
    %1604 = vmatprep.subr.bf16.mxu0 0
    %1605 = vmatpush1.bf16.msra.mxu0 0
    %1606 = vmatprep.subr.bf16.mxu0 0
    %1607 = vmatpush1.bf16.msra.mxu0 0
    %1608 = vmatprep.subr.bf16.mxu0 0
    %1609 = vmatpush1.bf16.msra.mxu0 0
    %1610 = vmatprep.subr.bf16.mxu0 0
    %1611 = vmatpush1.bf16.msra.mxu0 0
    %1612 = vmatprep.subr.bf16.mxu0 0
    %1613 = vmatpush1.bf16.msra.mxu0 0
    %1614 = vmatprep.subr.bf16.mxu0 0
    %1615 = vmatpush1.bf16.msra.mxu0 0
    %1616 = vmatprep.subr.bf16.mxu0 %v1584
    %1617 = vmatpush1.bf16.msra.mxu0 %v1587
    %1618 = vmatprep.subr.bf16.mxu0 %v1580
    %1619 = vmatpush1.bf16.msra.mxu0 %v1586
    %1620 = vmatprep.subr.bf16.mxu0 0
    %1621 = vmatpush2.bf16.msra.mxu0 0
    %1622 = vmatprep.subr.bf16.mxu0 0
    %1623 = vmatpush2.bf16.msra.mxu0 0
    %1624 = vmatprep.subr.bf16.mxu0 0
    %1625 = vmatpush2.bf16.msra.mxu0 0
    %1626 = vmatprep.subr.bf16.mxu0 0
    %1627 = vmatpush2.bf16.msra.mxu0 0
    %1628 = vmatprep.subr.bf16.mxu0 0
    %1629 = vmatpush2.bf16.msra.mxu0 0
    %1630 = vmatprep.subr.bf16.mxu0 0
    %1631 = vmatpush2.bf16.msra.mxu0 0
    %1632 = vmatprep.subr.bf16.mxu0 0
    %1633 = vmatpush2.bf16.msra.mxu0 0
    %1634 = vmatprep.subr.bf16.mxu0 0
    %1635 = vmatpush2.bf16.msra.mxu0 0
    %1636 = vmatprep.mubr.bf16.mxu0 0
    %1637 = vmatmul.mubr.bf16.gmra.mxu0 %v1593
    %v1638 = vpop.f32.mrf.mxu0
    %v1639 = vadd.f32 0.0, %v1638
    %v1640 = vpop.f32.mrf.mxu0
    %v1641 = vadd.f32 0.0, %v1640
    %v1642 = vpop.f32.mrf.mxu0
    %v1643 = vadd.f32 0.0, %v1642
    %v1644 = vpop.f32.mrf.mxu0
    %v1645 = vadd.f32 0.0, %v1644
    %1646 = vmatprep.mubr.bf16.mxu0 0
    %1647 = vmatmul.mubr.bf16.gmra.mxu0 %v1596
    %v1648 = vpop.f32.mrf.mxu0
    %v1649 = vadd.f32 0.0, %v1648
    %v1650 = vpop.f32.mrf.mxu0
    %v1651 = vadd.f32 0.0, %v1650
    %v1652 = vpop.f32.mrf.mxu0
    %v1653 = vadd.f32 0.0, %v1652
    %v1654 = vpop.f32.mrf.mxu0
    %v1655 = vadd.f32 0.0, %v1654
    %1656 = vmatprep.mubr.bf16.mxu0 0
    %1657 = vmatmul.mubr.bf16.gmra.mxu0 %v1599
    %v1658 = vpop.f32.mrf.mxu0
    %v1659 = vadd.f32 0.0, %v1658
    %v1660 = vpop.f32.mrf.mxu0
    %v1661 = vadd.f32 0.0, %v1660
    %v1662 = vpop.f32.mrf.mxu0
    %v1663 = vadd.f32 0.0, %v1662
    %v1664 = vpop.f32.mrf.mxu0
    %v1665 = vadd.f32 0.0, %v1664
    %1666 = vmatprep.mubr.bf16.mxu0 0
    %1667 = vmatmul.mubr.bf16.gmra.mxu0 %v1602
    %v1668 = vpop.f32.mrf.mxu0
    %v1669 = vadd.f32 0.0, %v1668
    %v1670 = vpop.f32.mrf.mxu0
    %v1671 = vadd.f32 0.0, %v1670
    %v1672 = vpop.f32.mrf.mxu0
    %v1673 = vadd.f32 0.0, %v1672
    %v1674 = vpop.f32.mrf.mxu0
    %v1675 = vadd.f32 0.0, %v1674
    %1676 = vdwg.mxu0
    %v1677 = vadd.f32 %v1532, %v1639
    %v1678 = vadd.f32 %v1533, %v1641
    %v1679 = vadd.f32 %v1534, %v1643
    %v1680 = vadd.f32 %v1535, %v1645
    %v1681 = vadd.f32 %v1536, %v1649
    %v1682 = vadd.f32 %v1537, %v1651
    %v1683 = vadd.f32 %v1538, %v1653
    %v1684 = vadd.f32 %v1539, %v1655
    %v1685 = vadd.f32 %v1540, %v1659
    %v1686 = vadd.f32 %v1541, %v1661
    %v1687 = vadd.f32 %v1542, %v1663
    %v1688 = vadd.f32 %v1543, %v1665
    %v1689 = vadd.f32 %v1544, %v1669
    %v1690 = vadd.f32 %v1545, %v1671
    %v1691 = vadd.f32 %v1546, %v1673
    %v1692 = vadd.f32 %v1547, %v1675
    %s1693 = scalar_lea.vmem %s3, 288
    %v1694 = vld [vmem:[%s1693] sm:$0xf]
    %v1695 = vld [vmem:[%s1693 + $0x4] sm:$0xf]
    %v1696 = vld [vmem:[%s1693 + $0x8] sm:$0xf]
    %v1697 = vld [vmem:[%s1693 + $0xc] sm:$0xf]
    %v1698 = vld [vmem:[%s1693 + $0x10] sm:$0xf]
    %v1699 = vld [vmem:[%s1693 + $0x14] sm:$0xf]
    %v1700 = vld [vmem:[%s1693 + $0x18] sm:$0xf]
    %v1701 = vld [vmem:[%s1693 + $0x1c] sm:$0xf]
    %v1710 = vunpack.c.l.b16 %v1694
    %v1711 = vunpack.c.l.b16 %v1695
    %v1712 = vunpack.c.l.b16 %v1696
    %v1713 = vunpack.c.l.b16 %v1697
    %v1714 = vunpack.c.l.b16 %v1698
    %v1715 = vunpack.c.l.b16 %v1699
    %v1716 = vunpack.c.l.b16 %v1700
    %v1717 = vunpack.c.l.b16 %v1701
    %v1718 = vpack.c.b16 %v1711, %v1710
    %v1719 = vpack.c.b16 %v1713, %v1712
    %v1720 = vpack.c.b16 %v1715, %v1714
    %v1721 = vpack.c.b16 %v1717, %v1716
    %1722 = vrot.lane.b32.xlu0 %v462, 108
    %v1723 = vpop.permute.xlu0 %1722
    %1724 = vrot.lane.b32.xlu0 %v463, 108
    %v1725 = vpop.permute.xlu0 %1724
    %1726 = vrot.lane.b32.xlu0 %v464, 108
    %v1727 = vpop.permute.xlu0 %1726
    %1728 = vrot.lane.b32.xlu0 %v465, 108
    %v1729 = vpop.permute.xlu0 %1728
    %v1730 = vsel %vm1585, %v1723, %v1725
    %v1731 = vsel %vm1585, %v1727, %v1729
    %v1737 = vsel %vm470, %v1718, 0
    %v1740 = vsel %vm470, %v1719, 0
    %v1743 = vsel %vm470, %v1720, 0
    %v1746 = vsel %vm470, %v1721, 0
    %1748 = vmatprep.subr.bf16.mxu0 0
    %1749 = vmatpush1.bf16.msra.mxu0 0
    %1750 = vmatprep.subr.bf16.mxu0 0
    %1751 = vmatpush1.bf16.msra.mxu0 0
    %1752 = vmatprep.subr.bf16.mxu0 0
    %1753 = vmatpush1.bf16.msra.mxu0 0
    %1754 = vmatprep.subr.bf16.mxu0 0
    %1755 = vmatpush1.bf16.msra.mxu0 0
    %1756 = vmatprep.subr.bf16.mxu0 0
    %1757 = vmatpush1.bf16.msra.mxu0 0
    %1758 = vmatprep.subr.bf16.mxu0 0
    %1759 = vmatpush1.bf16.msra.mxu0 0
    %1760 = vmatprep.subr.bf16.mxu0 %v1729
    %1761 = vmatpush1.bf16.msra.mxu0 %v1731
    %1762 = vmatprep.subr.bf16.mxu0 %v1725
    %1763 = vmatpush1.bf16.msra.mxu0 %v1730
    %1764 = vmatprep.subr.bf16.mxu0 0
    %1765 = vmatpush2.bf16.msra.mxu0 0
    %1766 = vmatprep.subr.bf16.mxu0 0
    %1767 = vmatpush2.bf16.msra.mxu0 0
    %1768 = vmatprep.subr.bf16.mxu0 0
    %1769 = vmatpush2.bf16.msra.mxu0 0
    %1770 = vmatprep.subr.bf16.mxu0 0
    %1771 = vmatpush2.bf16.msra.mxu0 0
    %1772 = vmatprep.subr.bf16.mxu0 0
    %1773 = vmatpush2.bf16.msra.mxu0 0
    %1774 = vmatprep.subr.bf16.mxu0 0
    %1775 = vmatpush2.bf16.msra.mxu0 0
    %1776 = vmatprep.subr.bf16.mxu0 0
    %1777 = vmatpush2.bf16.msra.mxu0 0
    %1778 = vmatprep.subr.bf16.mxu0 0
    %1779 = vmatpush2.bf16.msra.mxu0 0
    %1780 = vmatprep.mubr.bf16.mxu0 0
    %1781 = vmatmul.mubr.bf16.gmra.mxu0 %v1737
    %v1782 = vpop.f32.mrf.mxu0
    %v1783 = vadd.f32 0.0, %v1782
    %v1784 = vpop.f32.mrf.mxu0
    %v1785 = vadd.f32 0.0, %v1784
    %v1786 = vpop.f32.mrf.mxu0
    %v1787 = vadd.f32 0.0, %v1786
    %v1788 = vpop.f32.mrf.mxu0
    %v1789 = vadd.f32 0.0, %v1788
    %1790 = vmatprep.mubr.bf16.mxu0 0
    %1791 = vmatmul.mubr.bf16.gmra.mxu0 %v1740
    %v1792 = vpop.f32.mrf.mxu0
    %v1793 = vadd.f32 0.0, %v1792
    %v1794 = vpop.f32.mrf.mxu0
    %v1795 = vadd.f32 0.0, %v1794
    %v1796 = vpop.f32.mrf.mxu0
    %v1797 = vadd.f32 0.0, %v1796
    %v1798 = vpop.f32.mrf.mxu0
    %v1799 = vadd.f32 0.0, %v1798
    %1800 = vmatprep.mubr.bf16.mxu0 0
    %1801 = vmatmul.mubr.bf16.gmra.mxu0 %v1743
    %v1802 = vpop.f32.mrf.mxu0
    %v1803 = vadd.f32 0.0, %v1802
    %v1804 = vpop.f32.mrf.mxu0
    %v1805 = vadd.f32 0.0, %v1804
    %v1806 = vpop.f32.mrf.mxu0
    %v1807 = vadd.f32 0.0, %v1806
    %v1808 = vpop.f32.mrf.mxu0
    %v1809 = vadd.f32 0.0, %v1808
    %1810 = vmatprep.mubr.bf16.mxu0 0
    %1811 = vmatmul.mubr.bf16.gmra.mxu0 %v1746
    %v1812 = vpop.f32.mrf.mxu0
    %v1813 = vadd.f32 0.0, %v1812
    %v1814 = vpop.f32.mrf.mxu0
    %v1815 = vadd.f32 0.0, %v1814
    %v1816 = vpop.f32.mrf.mxu0
    %v1817 = vadd.f32 0.0, %v1816
    %v1818 = vpop.f32.mrf.mxu0
    %v1819 = vadd.f32 0.0, %v1818
    %1820 = vdwg.mxu0
    %v1821 = vadd.f32 %v1677, %v1783
    %v1822 = vadd.f32 %v1678, %v1785
    %v1823 = vadd.f32 %v1679, %v1787
    %v1824 = vadd.f32 %v1680, %v1789
    %v1825 = vadd.f32 %v1681, %v1793
    %v1826 = vadd.f32 %v1682, %v1795
    %v1827 = vadd.f32 %v1683, %v1797
    %v1828 = vadd.f32 %v1684, %v1799
    %v1829 = vadd.f32 %v1685, %v1803
    %v1830 = vadd.f32 %v1686, %v1805
    %v1831 = vadd.f32 %v1687, %v1807
    %v1832 = vadd.f32 %v1688, %v1809
    %v1833 = vadd.f32 %v1689, %v1813
    %v1834 = vadd.f32 %v1690, %v1815
    %v1835 = vadd.f32 %v1691, %v1817
    %v1836 = vadd.f32 %v1692, %v1819
    %s1837 = scalar_lea.vmem %s3, 320
    %v1838 = vld [vmem:[%s1837] sm:$0xf]
    %v1839 = vld [vmem:[%s1837 + $0x4] sm:$0xf]
    %v1840 = vld [vmem:[%s1837 + $0x8] sm:$0xf]
    %v1841 = vld [vmem:[%s1837 + $0xc] sm:$0xf]
    %v1842 = vld [vmem:[%s1837 + $0x10] sm:$0xf]
    %v1843 = vld [vmem:[%s1837 + $0x14] sm:$0xf]
    %v1844 = vld [vmem:[%s1837 + $0x18] sm:$0xf]
    %v1845 = vld [vmem:[%s1837 + $0x1c] sm:$0xf]
    %v1854 = vunpack.c.l.b16 %v1838
    %v1855 = vunpack.c.l.b16 %v1839
    %v1856 = vunpack.c.l.b16 %v1840
    %v1857 = vunpack.c.l.b16 %v1841
    %v1858 = vunpack.c.l.b16 %v1842
    %v1859 = vunpack.c.l.b16 %v1843
    %v1860 = vunpack.c.l.b16 %v1844
    %v1861 = vunpack.c.l.b16 %v1845
    %v1862 = vpack.c.b16 %v1855, %v1854
    %v1863 = vpack.c.b16 %v1857, %v1856
    %v1864 = vpack.c.b16 %v1859, %v1858
    %v1865 = vpack.c.b16 %v1861, %v1860
    %1866 = vrot.lane.b32.xlu0 %v588, 107
    %v1867 = vpop.permute.xlu0 %1866
    %1868 = vrot.lane.b32.xlu0 %v589, 107
    %v1869 = vpop.permute.xlu0 %1868
    %1870 = vrot.lane.b32.xlu0 %v590, 107
    %v1871 = vpop.permute.xlu0 %1870
    %1872 = vrot.lane.b32.xlu0 %v591, 107
    %v1873 = vpop.permute.xlu0 %1872
    %vm1874 = vcmask 875520
    %v1875 = vsel %vm1874, %v1867, %v1869
    %v1876 = vsel %vm1874, %v1871, %v1873
    %v1882 = vsel %vm470, %v1862, 0
    %v1885 = vsel %vm470, %v1863, 0
    %v1888 = vsel %vm470, %v1864, 0
    %v1891 = vsel %vm470, %v1865, 0
    %1893 = vmatprep.subr.bf16.mxu0 0
    %1894 = vmatpush1.bf16.msra.mxu0 0
    %1895 = vmatprep.subr.bf16.mxu0 0
    %1896 = vmatpush1.bf16.msra.mxu0 0
    %1897 = vmatprep.subr.bf16.mxu0 0
    %1898 = vmatpush1.bf16.msra.mxu0 0
    %1899 = vmatprep.subr.bf16.mxu0 0
    %1900 = vmatpush1.bf16.msra.mxu0 0
    %1901 = vmatprep.subr.bf16.mxu0 0
    %1902 = vmatpush1.bf16.msra.mxu0 0
    %1903 = vmatprep.subr.bf16.mxu0 0
    %1904 = vmatpush1.bf16.msra.mxu0 0
    %1905 = vmatprep.subr.bf16.mxu0 %v1873
    %1906 = vmatpush1.bf16.msra.mxu0 %v1876
    %1907 = vmatprep.subr.bf16.mxu0 %v1869
    %1908 = vmatpush1.bf16.msra.mxu0 %v1875
    %1909 = vmatprep.subr.bf16.mxu0 0
    %1910 = vmatpush2.bf16.msra.mxu0 0
    %1911 = vmatprep.subr.bf16.mxu0 0
    %1912 = vmatpush2.bf16.msra.mxu0 0
    %1913 = vmatprep.subr.bf16.mxu0 0
    %1914 = vmatpush2.bf16.msra.mxu0 0
    %1915 = vmatprep.subr.bf16.mxu0 0
    %1916 = vmatpush2.bf16.msra.mxu0 0
    %1917 = vmatprep.subr.bf16.mxu0 0
    %1918 = vmatpush2.bf16.msra.mxu0 0
    %1919 = vmatprep.subr.bf16.mxu0 0
    %1920 = vmatpush2.bf16.msra.mxu0 0
    %1921 = vmatprep.subr.bf16.mxu0 0
    %1922 = vmatpush2.bf16.msra.mxu0 0
    %1923 = vmatprep.subr.bf16.mxu0 0
    %1924 = vmatpush2.bf16.msra.mxu0 0
    %1925 = vmatprep.mubr.bf16.mxu0 0
    %1926 = vmatmul.mubr.bf16.gmra.mxu0 %v1882
    %v1927 = vpop.f32.mrf.mxu0
    %v1928 = vadd.f32 0.0, %v1927
    %v1929 = vpop.f32.mrf.mxu0
    %v1930 = vadd.f32 0.0, %v1929
    %v1931 = vpop.f32.mrf.mxu0
    %v1932 = vadd.f32 0.0, %v1931
    %v1933 = vpop.f32.mrf.mxu0
    %v1934 = vadd.f32 0.0, %v1933
    %1935 = vmatprep.mubr.bf16.mxu0 0
    %1936 = vmatmul.mubr.bf16.gmra.mxu0 %v1885
    %v1937 = vpop.f32.mrf.mxu0
    %v1938 = vadd.f32 0.0, %v1937
    %v1939 = vpop.f32.mrf.mxu0
    %v1940 = vadd.f32 0.0, %v1939
    %v1941 = vpop.f32.mrf.mxu0
    %v1942 = vadd.f32 0.0, %v1941
    %v1943 = vpop.f32.mrf.mxu0
    %v1944 = vadd.f32 0.0, %v1943
    %1945 = vmatprep.mubr.bf16.mxu0 0
    %1946 = vmatmul.mubr.bf16.gmra.mxu0 %v1888
    %v1947 = vpop.f32.mrf.mxu0
    %v1948 = vadd.f32 0.0, %v1947
    %v1949 = vpop.f32.mrf.mxu0
    %v1950 = vadd.f32 0.0, %v1949
    %v1951 = vpop.f32.mrf.mxu0
    %v1952 = vadd.f32 0.0, %v1951
    %v1953 = vpop.f32.mrf.mxu0
    %v1954 = vadd.f32 0.0, %v1953
    %1955 = vmatprep.mubr.bf16.mxu0 0
    %1956 = vmatmul.mubr.bf16.gmra.mxu0 %v1891
    %v1957 = vpop.f32.mrf.mxu0
    %v1958 = vadd.f32 0.0, %v1957
    %v1959 = vpop.f32.mrf.mxu0
    %v1960 = vadd.f32 0.0, %v1959
    %v1961 = vpop.f32.mrf.mxu0
    %v1962 = vadd.f32 0.0, %v1961
    %v1963 = vpop.f32.mrf.mxu0
    %v1964 = vadd.f32 0.0, %v1963
    %1965 = vdwg.mxu0
    %v1966 = vadd.f32 %v1821, %v1928
    %v1967 = vadd.f32 %v1822, %v1930
    %v1968 = vadd.f32 %v1823, %v1932
    %v1969 = vadd.f32 %v1824, %v1934
    %v1970 = vadd.f32 %v1825, %v1938
    %v1971 = vadd.f32 %v1826, %v1940
    %v1972 = vadd.f32 %v1827, %v1942
    %v1973 = vadd.f32 %v1828, %v1944
    %v1974 = vadd.f32 %v1829, %v1948
    %v1975 = vadd.f32 %v1830, %v1950
    %v1976 = vadd.f32 %v1831, %v1952
    %v1977 = vadd.f32 %v1832, %v1954
    %v1978 = vadd.f32 %v1833, %v1958
    %v1979 = vadd.f32 %v1834, %v1960
    %v1980 = vadd.f32 %v1835, %v1962
    %v1981 = vadd.f32 %v1836, %v1964
    %s1982 = scalar_lea.vmem %s3, 352
    %v1983 = vld [vmem:[%s1982] sm:$0xf]
    %v1984 = vld [vmem:[%s1982 + $0x4] sm:$0xf]
    %v1985 = vld [vmem:[%s1982 + $0x8] sm:$0xf]
    %v1986 = vld [vmem:[%s1982 + $0xc] sm:$0xf]
    %v1987 = vld [vmem:[%s1982 + $0x10] sm:$0xf]
    %v1988 = vld [vmem:[%s1982 + $0x14] sm:$0xf]
    %v1989 = vld [vmem:[%s1982 + $0x18] sm:$0xf]
    %v1990 = vld [vmem:[%s1982 + $0x1c] sm:$0xf]
    %v1999 = vunpack.c.l.b16 %v1983
    %v2000 = vunpack.c.l.b16 %v1984
    %v2001 = vunpack.c.l.b16 %v1985
    %v2002 = vunpack.c.l.b16 %v1986
    %v2003 = vunpack.c.l.b16 %v1987
    %v2004 = vunpack.c.l.b16 %v1988
    %v2005 = vunpack.c.l.b16 %v1989
    %v2006 = vunpack.c.l.b16 %v1990
    %v2007 = vpack.c.b16 %v2000, %v1999
    %v2008 = vpack.c.b16 %v2002, %v2001
    %v2009 = vpack.c.b16 %v2004, %v2003
    %v2010 = vpack.c.b16 %v2006, %v2005
    %2011 = vrot.lane.b32.xlu0 %v462, 107
    %v2012 = vpop.permute.xlu0 %2011
    %2013 = vrot.lane.b32.xlu0 %v463, 107
    %v2014 = vpop.permute.xlu0 %2013
    %2015 = vrot.lane.b32.xlu0 %v464, 107
    %v2016 = vpop.permute.xlu0 %2015
    %2017 = vrot.lane.b32.xlu0 %v465, 107
    %v2018 = vpop.permute.xlu0 %2017
    %v2019 = vsel %vm1874, %v2012, %v2014
    %v2020 = vsel %vm1874, %v2016, %v2018
    %v2026 = vsel %vm470, %v2007, 0
    %v2029 = vsel %vm470, %v2008, 0
    %v2032 = vsel %vm470, %v2009, 0
    %v2035 = vsel %vm470, %v2010, 0
    %2037 = vmatprep.subr.bf16.mxu0 0
    %2038 = vmatpush1.bf16.msra.mxu0 0
    %2039 = vmatprep.subr.bf16.mxu0 0
    %2040 = vmatpush1.bf16.msra.mxu0 0
    %2041 = vmatprep.subr.bf16.mxu0 0
    %2042 = vmatpush1.bf16.msra.mxu0 0
    %2043 = vmatprep.subr.bf16.mxu0 0
    %2044 = vmatpush1.bf16.msra.mxu0 0
    %2045 = vmatprep.subr.bf16.mxu0 0
    %2046 = vmatpush1.bf16.msra.mxu0 0
    %2047 = vmatprep.subr.bf16.mxu0 0
    %2048 = vmatpush1.bf16.msra.mxu0 0
    %2049 = vmatprep.subr.bf16.mxu0 %v2018
    %2050 = vmatpush1.bf16.msra.mxu0 %v2020
    %2051 = vmatprep.subr.bf16.mxu0 %v2014
    %2052 = vmatpush1.bf16.msra.mxu0 %v2019
    %2053 = vmatprep.subr.bf16.mxu0 0
    %2054 = vmatpush2.bf16.msra.mxu0 0
    %2055 = vmatprep.subr.bf16.mxu0 0
    %2056 = vmatpush2.bf16.msra.mxu0 0
    %2057 = vmatprep.subr.bf16.mxu0 0
    %2058 = vmatpush2.bf16.msra.mxu0 0
    %2059 = vmatprep.subr.bf16.mxu0 0
    %2060 = vmatpush2.bf16.msra.mxu0 0
    %2061 = vmatprep.subr.bf16.mxu0 0
    %2062 = vmatpush2.bf16.msra.mxu0 0
    %2063 = vmatprep.subr.bf16.mxu0 0
    %2064 = vmatpush2.bf16.msra.mxu0 0
    %2065 = vmatprep.subr.bf16.mxu0 0
    %2066 = vmatpush2.bf16.msra.mxu0 0
    %2067 = vmatprep.subr.bf16.mxu0 0
    %2068 = vmatpush2.bf16.msra.mxu0 0
    %2069 = vmatprep.mubr.bf16.mxu0 0
    %2070 = vmatmul.mubr.bf16.gmra.mxu0 %v2026
    %v2071 = vpop.f32.mrf.mxu0
    %v2072 = vadd.f32 0.0, %v2071
    %v2073 = vpop.f32.mrf.mxu0
    %v2074 = vadd.f32 0.0, %v2073
    %v2075 = vpop.f32.mrf.mxu0
    %v2076 = vadd.f32 0.0, %v2075
    %v2077 = vpop.f32.mrf.mxu0
    %v2078 = vadd.f32 0.0, %v2077
    %2079 = vmatprep.mubr.bf16.mxu0 0
    %2080 = vmatmul.mubr.bf16.gmra.mxu0 %v2029
    %v2081 = vpop.f32.mrf.mxu0
    %v2082 = vadd.f32 0.0, %v2081
    %v2083 = vpop.f32.mrf.mxu0
    %v2084 = vadd.f32 0.0, %v2083
    %v2085 = vpop.f32.mrf.mxu0
    %v2086 = vadd.f32 0.0, %v2085
    %v2087 = vpop.f32.mrf.mxu0
    %v2088 = vadd.f32 0.0, %v2087
    %2089 = vmatprep.mubr.bf16.mxu0 0
    %2090 = vmatmul.mubr.bf16.gmra.mxu0 %v2032
    %v2091 = vpop.f32.mrf.mxu0
    %v2092 = vadd.f32 0.0, %v2091
    %v2093 = vpop.f32.mrf.mxu0
    %v2094 = vadd.f32 0.0, %v2093
    %v2095 = vpop.f32.mrf.mxu0
    %v2096 = vadd.f32 0.0, %v2095
    %v2097 = vpop.f32.mrf.mxu0
    %v2098 = vadd.f32 0.0, %v2097
    %2099 = vmatprep.mubr.bf16.mxu0 0
    %2100 = vmatmul.mubr.bf16.gmra.mxu0 %v2035
    %v2101 = vpop.f32.mrf.mxu0
    %v2102 = vadd.f32 0.0, %v2101
    %v2103 = vpop.f32.mrf.mxu0
    %v2104 = vadd.f32 0.0, %v2103
    %v2105 = vpop.f32.mrf.mxu0
    %v2106 = vadd.f32 0.0, %v2105
    %v2107 = vpop.f32.mrf.mxu0
    %v2108 = vadd.f32 0.0, %v2107
    %2109 = vdwg.mxu0
    %v2110 = vadd.f32 %v1966, %v2072
    %v2111 = vadd.f32 %v1967, %v2074
    %v2112 = vadd.f32 %v1968, %v2076
    %v2113 = vadd.f32 %v1969, %v2078
    %v2114 = vadd.f32 %v1970, %v2082
    %v2115 = vadd.f32 %v1971, %v2084
    %v2116 = vadd.f32 %v1972, %v2086
    %v2117 = vadd.f32 %v1973, %v2088
    %v2118 = vadd.f32 %v1974, %v2092
    %v2119 = vadd.f32 %v1975, %v2094
    %v2120 = vadd.f32 %v1976, %v2096
    %v2121 = vadd.f32 %v1977, %v2098
    %v2122 = vadd.f32 %v1978, %v2102
    %v2123 = vadd.f32 %v1979, %v2104
    %v2124 = vadd.f32 %v1980, %v2106
    %v2125 = vadd.f32 %v1981, %v2108
    %s2126 = scalar_lea.vmem %s3, 384
    %v2127 = vld [vmem:[%s2126] sm:$0xf]
    %v2128 = vld [vmem:[%s2126 + $0x4] sm:$0xf]
    %v2129 = vld [vmem:[%s2126 + $0x8] sm:$0xf]
    %v2130 = vld [vmem:[%s2126 + $0xc] sm:$0xf]
    %v2131 = vld [vmem:[%s2126 + $0x10] sm:$0xf]
    %v2132 = vld [vmem:[%s2126 + $0x14] sm:$0xf]
    %v2133 = vld [vmem:[%s2126 + $0x18] sm:$0xf]
    %v2134 = vld [vmem:[%s2126 + $0x1c] sm:$0xf]
    %v2143 = vunpack.c.l.b16 %v2127
    %v2144 = vunpack.c.l.b16 %v2128
    %v2145 = vunpack.c.l.b16 %v2129
    %v2146 = vunpack.c.l.b16 %v2130
    %v2147 = vunpack.c.l.b16 %v2131
    %v2148 = vunpack.c.l.b16 %v2132
    %v2149 = vunpack.c.l.b16 %v2133
    %v2150 = vunpack.c.l.b16 %v2134
    %v2151 = vpack.c.b16 %v2144, %v2143
    %v2152 = vpack.c.b16 %v2146, %v2145
    %v2153 = vpack.c.b16 %v2148, %v2147
    %v2154 = vpack.c.b16 %v2150, %v2149
    %2155 = vrot.lane.b32.xlu0 %v588, 98
    %v2156 = vpop.permute.xlu0 %2155
    %2157 = vrot.lane.b32.xlu0 %v589, 98
    %v2158 = vpop.permute.xlu0 %2157
    %2159 = vrot.lane.b32.xlu0 %v590, 98
    %v2160 = vpop.permute.xlu0 %2159
    %2161 = vrot.lane.b32.xlu0 %v591, 98
    %v2162 = vpop.permute.xlu0 %2161
    %vm2163 = vcmask 801792
    %v2164 = vsel %vm2163, %v2156, %v2158
    %v2165 = vsel %vm2163, %v2160, %v2162
    %v2171 = vsel %vm470, %v2151, 0
    %v2174 = vsel %vm470, %v2152, 0
    %v2177 = vsel %vm470, %v2153, 0
    %v2180 = vsel %vm470, %v2154, 0
    %2182 = vmatprep.subr.bf16.mxu0 0
    %2183 = vmatpush1.bf16.msra.mxu0 0
    %2184 = vmatprep.subr.bf16.mxu0 0
    %2185 = vmatpush1.bf16.msra.mxu0 0
    %2186 = vmatprep.subr.bf16.mxu0 0
    %2187 = vmatpush1.bf16.msra.mxu0 0
    %2188 = vmatprep.subr.bf16.mxu0 0
    %2189 = vmatpush1.bf16.msra.mxu0 0
    %2190 = vmatprep.subr.bf16.mxu0 0
    %2191 = vmatpush1.bf16.msra.mxu0 0
    %2192 = vmatprep.subr.bf16.mxu0 0
    %2193 = vmatpush1.bf16.msra.mxu0 0
    %2194 = vmatprep.subr.bf16.mxu0 %v2162
    %2195 = vmatpush1.bf16.msra.mxu0 %v2165
    %2196 = vmatprep.subr.bf16.mxu0 %v2158
    %2197 = vmatpush1.bf16.msra.mxu0 %v2164
    %2198 = vmatprep.subr.bf16.mxu0 0
    %2199 = vmatpush2.bf16.msra.mxu0 0
    %2200 = vmatprep.subr.bf16.mxu0 0
    %2201 = vmatpush2.bf16.msra.mxu0 0
    %2202 = vmatprep.subr.bf16.mxu0 0
    %2203 = vmatpush2.bf16.msra.mxu0 0
    %2204 = vmatprep.subr.bf16.mxu0 0
    %2205 = vmatpush2.bf16.msra.mxu0 0
    %2206 = vmatprep.subr.bf16.mxu0 0
    %2207 = vmatpush2.bf16.msra.mxu0 0
    %2208 = vmatprep.subr.bf16.mxu0 0
    %2209 = vmatpush2.bf16.msra.mxu0 0
    %2210 = vmatprep.subr.bf16.mxu0 0
    %2211 = vmatpush2.bf16.msra.mxu0 0
    %2212 = vmatprep.subr.bf16.mxu0 0
    %2213 = vmatpush2.bf16.msra.mxu0 0
    %2214 = vmatprep.mubr.bf16.mxu0 0
    %2215 = vmatmul.mubr.bf16.gmra.mxu0 %v2171
    %v2216 = vpop.f32.mrf.mxu0
    %v2217 = vadd.f32 0.0, %v2216
    %v2218 = vpop.f32.mrf.mxu0
    %v2219 = vadd.f32 0.0, %v2218
    %v2220 = vpop.f32.mrf.mxu0
    %v2221 = vadd.f32 0.0, %v2220
    %v2222 = vpop.f32.mrf.mxu0
    %v2223 = vadd.f32 0.0, %v2222
    %2224 = vmatprep.mubr.bf16.mxu0 0
    %2225 = vmatmul.mubr.bf16.gmra.mxu0 %v2174
    %v2226 = vpop.f32.mrf.mxu0
    %v2227 = vadd.f32 0.0, %v2226
    %v2228 = vpop.f32.mrf.mxu0
    %v2229 = vadd.f32 0.0, %v2228
    %v2230 = vpop.f32.mrf.mxu0
    %v2231 = vadd.f32 0.0, %v2230
    %v2232 = vpop.f32.mrf.mxu0
    %v2233 = vadd.f32 0.0, %v2232
    %2234 = vmatprep.mubr.bf16.mxu0 0
    %2235 = vmatmul.mubr.bf16.gmra.mxu0 %v2177
    %v2236 = vpop.f32.mrf.mxu0
    %v2237 = vadd.f32 0.0, %v2236
    %v2238 = vpop.f32.mrf.mxu0
    %v2239 = vadd.f32 0.0, %v2238
    %v2240 = vpop.f32.mrf.mxu0
    %v2241 = vadd.f32 0.0, %v2240
    %v2242 = vpop.f32.mrf.mxu0
    %v2243 = vadd.f32 0.0, %v2242
    %2244 = vmatprep.mubr.bf16.mxu0 0
    %2245 = vmatmul.mubr.bf16.gmra.mxu0 %v2180
    %v2246 = vpop.f32.mrf.mxu0
    %v2247 = vadd.f32 0.0, %v2246
    %v2248 = vpop.f32.mrf.mxu0
    %v2249 = vadd.f32 0.0, %v2248
    %v2250 = vpop.f32.mrf.mxu0
    %v2251 = vadd.f32 0.0, %v2250
    %v2252 = vpop.f32.mrf.mxu0
    %v2253 = vadd.f32 0.0, %v2252
    %2254 = vdwg.mxu0
    %v2255 = vadd.f32 %v2110, %v2217
    %v2256 = vadd.f32 %v2111, %v2219
    %v2257 = vadd.f32 %v2112, %v2221
    %v2258 = vadd.f32 %v2113, %v2223
    %v2259 = vadd.f32 %v2114, %v2227
    %v2260 = vadd.f32 %v2115, %v2229
    %v2261 = vadd.f32 %v2116, %v2231
    %v2262 = vadd.f32 %v2117, %v2233
    %v2263 = vadd.f32 %v2118, %v2237
    %v2264 = vadd.f32 %v2119, %v2239
    %v2265 = vadd.f32 %v2120, %v2241
    %v2266 = vadd.f32 %v2121, %v2243
    %v2267 = vadd.f32 %v2122, %v2247
    %v2268 = vadd.f32 %v2123, %v2249
    %v2269 = vadd.f32 %v2124, %v2251
    %v2270 = vadd.f32 %v2125, %v2253
    %s2271 = scalar_lea.vmem %s3, 416
    %v2272 = vld [vmem:[%s2271] sm:$0xf]
    %v2273 = vld [vmem:[%s2271 + $0x4] sm:$0xf]
    %v2274 = vld [vmem:[%s2271 + $0x8] sm:$0xf]
    %v2275 = vld [vmem:[%s2271 + $0xc] sm:$0xf]
    %v2276 = vld [vmem:[%s2271 + $0x10] sm:$0xf]
    %v2277 = vld [vmem:[%s2271 + $0x14] sm:$0xf]
    %v2278 = vld [vmem:[%s2271 + $0x18] sm:$0xf]
    %v2279 = vld [vmem:[%s2271 + $0x1c] sm:$0xf]
    %v2288 = vunpack.c.l.b16 %v2272
    %v2289 = vunpack.c.l.b16 %v2273
    %v2290 = vunpack.c.l.b16 %v2274
    %v2291 = vunpack.c.l.b16 %v2275
    %v2292 = vunpack.c.l.b16 %v2276
    %v2293 = vunpack.c.l.b16 %v2277
    %v2294 = vunpack.c.l.b16 %v2278
    %v2295 = vunpack.c.l.b16 %v2279
    %v2296 = vpack.c.b16 %v2289, %v2288
    %v2297 = vpack.c.b16 %v2291, %v2290
    %v2298 = vpack.c.b16 %v2293, %v2292
    %v2299 = vpack.c.b16 %v2295, %v2294
    %2300 = vrot.lane.b32.xlu0 %v462, 98
    %v2301 = vpop.permute.xlu0 %2300
    %2302 = vrot.lane.b32.xlu0 %v463, 98
    %v2303 = vpop.permute.xlu0 %2302
    %2304 = vrot.lane.b32.xlu0 %v464, 98
    %v2305 = vpop.permute.xlu0 %2304
    %2306 = vrot.lane.b32.xlu0 %v465, 98
    %v2307 = vpop.permute.xlu0 %2306
    %v2308 = vsel %vm2163, %v2301, %v2303
    %v2309 = vsel %vm2163, %v2305, %v2307
    %v2315 = vsel %vm470, %v2296, 0
    %v2318 = vsel %vm470, %v2297, 0
    %v2321 = vsel %vm470, %v2298, 0
    %v2324 = vsel %vm470, %v2299, 0
    %2326 = vmatprep.subr.bf16.mxu0 0
    %2327 = vmatpush1.bf16.msra.mxu0 0
    %2328 = vmatprep.subr.bf16.mxu0 0
    %2329 = vmatpush1.bf16.msra.mxu0 0
    %2330 = vmatprep.subr.bf16.mxu0 0
    %2331 = vmatpush1.bf16.msra.mxu0 0
    %2332 = vmatprep.subr.bf16.mxu0 0
    %2333 = vmatpush1.bf16.msra.mxu0 0
    %2334 = vmatprep.subr.bf16.mxu0 0
    %2335 = vmatpush1.bf16.msra.mxu0 0
    %2336 = vmatprep.subr.bf16.mxu0 0
    %2337 = vmatpush1.bf16.msra.mxu0 0
    %2338 = vmatprep.subr.bf16.mxu0 %v2307
    %2339 = vmatpush1.bf16.msra.mxu0 %v2309
    %2340 = vmatprep.subr.bf16.mxu0 %v2303
    %2341 = vmatpush1.bf16.msra.mxu0 %v2308
    %2342 = vmatprep.subr.bf16.mxu0 0
    %2343 = vmatpush2.bf16.msra.mxu0 0
    %2344 = vmatprep.subr.bf16.mxu0 0
    %2345 = vmatpush2.bf16.msra.mxu0 0
    %2346 = vmatprep.subr.bf16.mxu0 0
    %2347 = vmatpush2.bf16.msra.mxu0 0
    %2348 = vmatprep.subr.bf16.mxu0 0
    %2349 = vmatpush2.bf16.msra.mxu0 0
    %2350 = vmatprep.subr.bf16.mxu0 0
    %2351 = vmatpush2.bf16.msra.mxu0 0
    %2352 = vmatprep.subr.bf16.mxu0 0
    %2353 = vmatpush2.bf16.msra.mxu0 0
    %2354 = vmatprep.subr.bf16.mxu0 0
    %2355 = vmatpush2.bf16.msra.mxu0 0
    %2356 = vmatprep.subr.bf16.mxu0 0
    %2357 = vmatpush2.bf16.msra.mxu0 0
    %2358 = vmatprep.mubr.bf16.mxu0 0
    %2359 = vmatmul.mubr.bf16.gmra.mxu0 %v2315
    %v2360 = vpop.f32.mrf.mxu0
    %v2361 = vadd.f32 0.0, %v2360
    %v2362 = vpop.f32.mrf.mxu0
    %v2363 = vadd.f32 0.0, %v2362
    %v2364 = vpop.f32.mrf.mxu0
    %v2365 = vadd.f32 0.0, %v2364
    %v2366 = vpop.f32.mrf.mxu0
    %v2367 = vadd.f32 0.0, %v2366
    %2368 = vmatprep.mubr.bf16.mxu0 0
    %2369 = vmatmul.mubr.bf16.gmra.mxu0 %v2318
    %v2370 = vpop.f32.mrf.mxu0
    %v2371 = vadd.f32 0.0, %v2370
    %v2372 = vpop.f32.mrf.mxu0
    %v2373 = vadd.f32 0.0, %v2372
    %v2374 = vpop.f32.mrf.mxu0
    %v2375 = vadd.f32 0.0, %v2374
    %v2376 = vpop.f32.mrf.mxu0
    %v2377 = vadd.f32 0.0, %v2376
    %2378 = vmatprep.mubr.bf16.mxu0 0
    %2379 = vmatmul.mubr.bf16.gmra.mxu0 %v2321
    %v2380 = vpop.f32.mrf.mxu0
    %v2381 = vadd.f32 0.0, %v2380
    %v2382 = vpop.f32.mrf.mxu0
    %v2383 = vadd.f32 0.0, %v2382
    %v2384 = vpop.f32.mrf.mxu0
    %v2385 = vadd.f32 0.0, %v2384
    %v2386 = vpop.f32.mrf.mxu0
    %v2387 = vadd.f32 0.0, %v2386
    %2388 = vmatprep.mubr.bf16.mxu0 0
    %2389 = vmatmul.mubr.bf16.gmra.mxu0 %v2324
    %v2390 = vpop.f32.mrf.mxu0
    %v2391 = vadd.f32 0.0, %v2390
    %v2392 = vpop.f32.mrf.mxu0
    %v2393 = vadd.f32 0.0, %v2392
    %v2394 = vpop.f32.mrf.mxu0
    %v2395 = vadd.f32 0.0, %v2394
    %v2396 = vpop.f32.mrf.mxu0
    %v2397 = vadd.f32 0.0, %v2396
    %2398 = vdwg.mxu0
    %v2399 = vadd.f32 %v2255, %v2361
    %v2400 = vadd.f32 %v2256, %v2363
    %v2401 = vadd.f32 %v2257, %v2365
    %v2402 = vadd.f32 %v2258, %v2367
    %v2403 = vadd.f32 %v2259, %v2371
    %v2404 = vadd.f32 %v2260, %v2373
    %v2405 = vadd.f32 %v2261, %v2375
    %v2406 = vadd.f32 %v2262, %v2377
    %v2407 = vadd.f32 %v2263, %v2381
    %v2408 = vadd.f32 %v2264, %v2383
    %v2409 = vadd.f32 %v2265, %v2385
    %v2410 = vadd.f32 %v2266, %v2387
    %v2411 = vadd.f32 %v2267, %v2391
    %v2412 = vadd.f32 %v2268, %v2393
    %v2413 = vadd.f32 %v2269, %v2395
    %v2414 = vadd.f32 %v2270, %v2397
    %s2415 = scalar_lea.vmem %s3, 448
    %v2416 = vld [vmem:[%s2415] sm:$0xf]
    %v2417 = vld [vmem:[%s2415 + $0x4] sm:$0xf]
    %v2418 = vld [vmem:[%s2415 + $0x8] sm:$0xf]
    %v2419 = vld [vmem:[%s2415 + $0xc] sm:$0xf]
    %v2420 = vld [vmem:[%s2415 + $0x10] sm:$0xf]
    %v2421 = vld [vmem:[%s2415 + $0x14] sm:$0xf]
    %v2422 = vld [vmem:[%s2415 + $0x18] sm:$0xf]
    %v2423 = vld [vmem:[%s2415 + $0x1c] sm:$0xf]
    %v2432 = vunpack.c.l.b16 %v2416
    %v2433 = vunpack.c.l.b16 %v2417
    %v2434 = vunpack.c.l.b16 %v2418
    %v2435 = vunpack.c.l.b16 %v2419
    %v2436 = vunpack.c.l.b16 %v2420
    %v2437 = vunpack.c.l.b16 %v2421
    %v2438 = vunpack.c.l.b16 %v2422
    %v2439 = vunpack.c.l.b16 %v2423
    %v2440 = vpack.c.b16 %v2433, %v2432
    %v2441 = vpack.c.b16 %v2435, %v2434
    %v2442 = vpack.c.b16 %v2437, %v2436
    %v2443 = vpack.c.b16 %v2439, %v2438
    %2444 = vrot.lane.b32.xlu0 %v588, 97
    %v2445 = vpop.permute.xlu0 %2444
    %2446 = vrot.lane.b32.xlu0 %v589, 97
    %v2447 = vpop.permute.xlu0 %2446
    %2448 = vrot.lane.b32.xlu0 %v590, 97
    %v2449 = vpop.permute.xlu0 %2448
    %2450 = vrot.lane.b32.xlu0 %v591, 97
    %v2451 = vpop.permute.xlu0 %2450
    %vm2452 = vcmask 793600
    %v2453 = vsel %vm2452, %v2445, %v2447
    %v2454 = vsel %vm2452, %v2449, %v2451
    %v2460 = vsel %vm470, %v2440, 0
    %v2463 = vsel %vm470, %v2441, 0
    %v2466 = vsel %vm470, %v2442, 0
    %v2469 = vsel %vm470, %v2443, 0
    %2471 = vmatprep.subr.bf16.mxu0 0
    %2472 = vmatpush1.bf16.msra.mxu0 0
    %2473 = vmatprep.subr.bf16.mxu0 0
    %2474 = vmatpush1.bf16.msra.mxu0 0
    %2475 = vmatprep.subr.bf16.mxu0 0
    %2476 = vmatpush1.bf16.msra.mxu0 0
    %2477 = vmatprep.subr.bf16.mxu0 0
    %2478 = vmatpush1.bf16.msra.mxu0 0
    %2479 = vmatprep.subr.bf16.mxu0 0
    %2480 = vmatpush1.bf16.msra.mxu0 0
    %2481 = vmatprep.subr.bf16.mxu0 0
    %2482 = vmatpush1.bf16.msra.mxu0 0
    %2483 = vmatprep.subr.bf16.mxu0 %v2451
    %2484 = vmatpush1.bf16.msra.mxu0 %v2454
    %2485 = vmatprep.subr.bf16.mxu0 %v2447
    %2486 = vmatpush1.bf16.msra.mxu0 %v2453
    %2487 = vmatprep.subr.bf16.mxu0 0
    %2488 = vmatpush2.bf16.msra.mxu0 0
    %2489 = vmatprep.subr.bf16.mxu0 0
    %2490 = vmatpush2.bf16.msra.mxu0 0
    %2491 = vmatprep.subr.bf16.mxu0 0
    %2492 = vmatpush2.bf16.msra.mxu0 0
    %2493 = vmatprep.subr.bf16.mxu0 0
    %2494 = vmatpush2.bf16.msra.mxu0 0
    %2495 = vmatprep.subr.bf16.mxu0 0
    %2496 = vmatpush2.bf16.msra.mxu0 0
    %2497 = vmatprep.subr.bf16.mxu0 0
    %2498 = vmatpush2.bf16.msra.mxu0 0
    %2499 = vmatprep.subr.bf16.mxu0 0
    %2500 = vmatpush2.bf16.msra.mxu0 0
    %2501 = vmatprep.subr.bf16.mxu0 0
    %2502 = vmatpush2.bf16.msra.mxu0 0
    %2503 = vmatprep.mubr.bf16.mxu0 0
    %2504 = vmatmul.mubr.bf16.gmra.mxu0 %v2460
    %v2505 = vpop.f32.mrf.mxu0
    %v2506 = vadd.f32 0.0, %v2505
    %v2507 = vpop.f32.mrf.mxu0
    %v2508 = vadd.f32 0.0, %v2507
    %v2509 = vpop.f32.mrf.mxu0
    %v2510 = vadd.f32 0.0, %v2509
    %v2511 = vpop.f32.mrf.mxu0
    %v2512 = vadd.f32 0.0, %v2511
    %2513 = vmatprep.mubr.bf16.mxu0 0
    %2514 = vmatmul.mubr.bf16.gmra.mxu0 %v2463
    %v2515 = vpop.f32.mrf.mxu0
    %v2516 = vadd.f32 0.0, %v2515
    %v2517 = vpop.f32.mrf.mxu0
    %v2518 = vadd.f32 0.0, %v2517
    %v2519 = vpop.f32.mrf.mxu0
    %v2520 = vadd.f32 0.0, %v2519
    %v2521 = vpop.f32.mrf.mxu0
    %v2522 = vadd.f32 0.0, %v2521
    %2523 = vmatprep.mubr.bf16.mxu0 0
    %2524 = vmatmul.mubr.bf16.gmra.mxu0 %v2466
    %v2525 = vpop.f32.mrf.mxu0
    %v2526 = vadd.f32 0.0, %v2525
    %v2527 = vpop.f32.mrf.mxu0
    %v2528 = vadd.f32 0.0, %v2527
    %v2529 = vpop.f32.mrf.mxu0
    %v2530 = vadd.f32 0.0, %v2529
    %v2531 = vpop.f32.mrf.mxu0
    %v2532 = vadd.f32 0.0, %v2531
    %2533 = vmatprep.mubr.bf16.mxu0 0
    %2534 = vmatmul.mubr.bf16.gmra.mxu0 %v2469
    %v2535 = vpop.f32.mrf.mxu0
    %v2536 = vadd.f32 0.0, %v2535
    %v2537 = vpop.f32.mrf.mxu0
    %v2538 = vadd.f32 0.0, %v2537
    %v2539 = vpop.f32.mrf.mxu0
    %v2540 = vadd.f32 0.0, %v2539
    %v2541 = vpop.f32.mrf.mxu0
    %v2542 = vadd.f32 0.0, %v2541
    %2543 = vdwg.mxu0
    %v2544 = vadd.f32 %v2399, %v2506
    %v2545 = vadd.f32 %v2400, %v2508
    %v2546 = vadd.f32 %v2401, %v2510
    %v2547 = vadd.f32 %v2402, %v2512
    %v2548 = vadd.f32 %v2403, %v2516
    %v2549 = vadd.f32 %v2404, %v2518
    %v2550 = vadd.f32 %v2405, %v2520
    %v2551 = vadd.f32 %v2406, %v2522
    %v2552 = vadd.f32 %v2407, %v2526
    %v2553 = vadd.f32 %v2408, %v2528
    %v2554 = vadd.f32 %v2409, %v2530
    %v2555 = vadd.f32 %v2410, %v2532
    %v2556 = vadd.f32 %v2411, %v2536
    %v2557 = vadd.f32 %v2412, %v2538
    %v2558 = vadd.f32 %v2413, %v2540
    %v2559 = vadd.f32 %v2414, %v2542
    %s2560 = scalar_lea.vmem %s3, 480
    %v2561 = vld [vmem:[%s2560] sm:$0xf]
    %v2562 = vld [vmem:[%s2560 + $0x4] sm:$0xf]
    %v2563 = vld [vmem:[%s2560 + $0x8] sm:$0xf]
    %v2564 = vld [vmem:[%s2560 + $0xc] sm:$0xf]
    %v2565 = vld [vmem:[%s2560 + $0x10] sm:$0xf]
    %v2566 = vld [vmem:[%s2560 + $0x14] sm:$0xf]
    %v2567 = vld [vmem:[%s2560 + $0x18] sm:$0xf]
    %v2568 = vld [vmem:[%s2560 + $0x1c] sm:$0xf]
    %v2577 = vunpack.c.l.b16 %v2561
    %v2578 = vunpack.c.l.b16 %v2562
    %v2579 = vunpack.c.l.b16 %v2563
    %v2580 = vunpack.c.l.b16 %v2564
    %v2581 = vunpack.c.l.b16 %v2565
    %v2582 = vunpack.c.l.b16 %v2566
    %v2583 = vunpack.c.l.b16 %v2567
    %v2584 = vunpack.c.l.b16 %v2568
    %v2585 = vpack.c.b16 %v2578, %v2577
    %v2586 = vpack.c.b16 %v2580, %v2579
    %v2587 = vpack.c.b16 %v2582, %v2581
    %v2588 = vpack.c.b16 %v2584, %v2583
    %2589 = vrot.lane.b32.xlu0 %v462, 97
    %v2590 = vpop.permute.xlu0 %2589
    %2591 = vrot.lane.b32.xlu0 %v463, 97
    %v2592 = vpop.permute.xlu0 %2591
    %2593 = vrot.lane.b32.xlu0 %v464, 97
    %v2594 = vpop.permute.xlu0 %2593
    %2595 = vrot.lane.b32.xlu0 %v465, 97
    %v2596 = vpop.permute.xlu0 %2595
    %v2597 = vsel %vm2452, %v2590, %v2592
    %v2598 = vsel %vm2452, %v2594, %v2596
    %v2604 = vsel %vm470, %v2585, 0
    %v2607 = vsel %vm470, %v2586, 0
    %v2610 = vsel %vm470, %v2587, 0
    %v2613 = vsel %vm470, %v2588, 0
    %2615 = vmatprep.subr.bf16.mxu0 0
    %2616 = vmatpush1.bf16.msra.mxu0 0
    %2617 = vmatprep.subr.bf16.mxu0 0
    %2618 = vmatpush1.bf16.msra.mxu0 0
    %2619 = vmatprep.subr.bf16.mxu0 0
    %2620 = vmatpush1.bf16.msra.mxu0 0
    %2621 = vmatprep.subr.bf16.mxu0 0
    %2622 = vmatpush1.bf16.msra.mxu0 0
    %2623 = vmatprep.subr.bf16.mxu0 0
    %2624 = vmatpush1.bf16.msra.mxu0 0
    %2625 = vmatprep.subr.bf16.mxu0 0
    %2626 = vmatpush1.bf16.msra.mxu0 0
    %2627 = vmatprep.subr.bf16.mxu0 %v2596
    %2628 = vmatpush1.bf16.msra.mxu0 %v2598
    %2629 = vmatprep.subr.bf16.mxu0 %v2592
    %2630 = vmatpush1.bf16.msra.mxu0 %v2597
    %2631 = vmatprep.subr.bf16.mxu0 0
    %2632 = vmatpush2.bf16.msra.mxu0 0
    %2633 = vmatprep.subr.bf16.mxu0 0
    %2634 = vmatpush2.bf16.msra.mxu0 0
    %2635 = vmatprep.subr.bf16.mxu0 0
    %2636 = vmatpush2.bf16.msra.mxu0 0
    %2637 = vmatprep.subr.bf16.mxu0 0
    %2638 = vmatpush2.bf16.msra.mxu0 0
    %2639 = vmatprep.subr.bf16.mxu0 0
    %2640 = vmatpush2.bf16.msra.mxu0 0
    %2641 = vmatprep.subr.bf16.mxu0 0
    %2642 = vmatpush2.bf16.msra.mxu0 0
    %2643 = vmatprep.subr.bf16.mxu0 0
    %2644 = vmatpush2.bf16.msra.mxu0 0
    %2645 = vmatprep.subr.bf16.mxu0 0
    %2646 = vmatpush2.bf16.msra.mxu0 0
    %2647 = vmatprep.mubr.bf16.mxu0 0
    %2648 = vmatmul.mubr.bf16.gmra.mxu0 %v2604
    %v2649 = vpop.f32.mrf.mxu0
    %v2650 = vadd.f32 0.0, %v2649
    %v2651 = vpop.f32.mrf.mxu0
    %v2652 = vadd.f32 0.0, %v2651
    %v2653 = vpop.f32.mrf.mxu0
    %v2654 = vadd.f32 0.0, %v2653
    %v2655 = vpop.f32.mrf.mxu0
    %v2656 = vadd.f32 0.0, %v2655
    %2657 = vmatprep.mubr.bf16.mxu0 0
    %2658 = vmatmul.mubr.bf16.gmra.mxu0 %v2607
    %v2659 = vpop.f32.mrf.mxu0
    %v2660 = vadd.f32 0.0, %v2659
    %v2661 = vpop.f32.mrf.mxu0
    %v2662 = vadd.f32 0.0, %v2661
    %v2663 = vpop.f32.mrf.mxu0
    %v2664 = vadd.f32 0.0, %v2663
    %v2665 = vpop.f32.mrf.mxu0
    %v2666 = vadd.f32 0.0, %v2665
    %2667 = vmatprep.mubr.bf16.mxu0 0
    %2668 = vmatmul.mubr.bf16.gmra.mxu0 %v2610
    %v2669 = vpop.f32.mrf.mxu0
    %v2670 = vadd.f32 0.0, %v2669
    %v2671 = vpop.f32.mrf.mxu0
    %v2672 = vadd.f32 0.0, %v2671
    %v2673 = vpop.f32.mrf.mxu0
    %v2674 = vadd.f32 0.0, %v2673
    %v2675 = vpop.f32.mrf.mxu0
    %v2676 = vadd.f32 0.0, %v2675
    %2677 = vmatprep.mubr.bf16.mxu0 0
    %2678 = vmatmul.mubr.bf16.gmra.mxu0 %v2613
    %v2679 = vpop.f32.mrf.mxu0
    %v2680 = vadd.f32 0.0, %v2679
    %v2681 = vpop.f32.mrf.mxu0
    %v2682 = vadd.f32 0.0, %v2681
    %v2683 = vpop.f32.mrf.mxu0
    %v2684 = vadd.f32 0.0, %v2683
    %v2685 = vpop.f32.mrf.mxu0
    %v2686 = vadd.f32 0.0, %v2685
    %2687 = vdwg.mxu0
    %v2688 = vadd.f32 %v2544, %v2650
    %v2689 = vadd.f32 %v2545, %v2652
    %v2690 = vadd.f32 %v2546, %v2654
    %v2691 = vadd.f32 %v2547, %v2656
    %v2692 = vadd.f32 %v2548, %v2660
    %v2693 = vadd.f32 %v2549, %v2662
    %v2694 = vadd.f32 %v2550, %v2664
    %v2695 = vadd.f32 %v2551, %v2666
    %v2696 = vadd.f32 %v2552, %v2670
    %v2697 = vadd.f32 %v2553, %v2672
    %v2698 = vadd.f32 %v2554, %v2674
    %v2699 = vadd.f32 %v2555, %v2676
    %v2700 = vadd.f32 %v2556, %v2680
    %v2701 = vadd.f32 %v2557, %v2682
    %v2702 = vadd.f32 %v2558, %v2684
    %v2703 = vadd.f32 %v2559, %v2686
    %v2704 = vld [vmem:[%s4] sm:$0xff]
    %v2705 = vld [vmem:[%s4 + $0x8] sm:$0xff]
    %v2706 = vld [vmem:[%s4 + $0x10] sm:$0xff]
    %v2707 = vld [vmem:[%s4 + $0x18] sm:$0xff]
    %v2708 = vld [vmem:[%s4 + $0x20] sm:$0xff]
    %v2709 = vld [vmem:[%s4 + $0x28] sm:$0xff]
    %v2710 = vld [vmem:[%s4 + $0x30] sm:$0xff]
    %v2711 = vld [vmem:[%s4 + $0x38] sm:$0xff]
    %2713 = vset.pattern.permute.xlu0 0
    %2714 = vperm.xlu0 %2713, %v2704
    %v2715 = vpop.permute.xlu0 %2714
    %2718 = vset.pattern.permute.xlu0 0
    %2719 = vperm.xlu0 %2718, %v2705
    %v2720 = vpop.permute.xlu0 %2719
    %2723 = vset.pattern.permute.xlu0 0
    %2724 = vperm.xlu0 %2723, %v2706
    %v2725 = vpop.permute.xlu0 %2724
    %2728 = vset.pattern.permute.xlu0 0
    %2729 = vperm.xlu0 %2728, %v2707
    %v2730 = vpop.permute.xlu0 %2729
    %2733 = vset.pattern.permute.xlu0 0
    %2734 = vperm.xlu0 %2733, %v2708
    %v2735 = vpop.permute.xlu0 %2734
    %2738 = vset.pattern.permute.xlu0 0
    %2739 = vperm.xlu0 %2738, %v2709
    %v2740 = vpop.permute.xlu0 %2739
    %2743 = vset.pattern.permute.xlu0 0
    %2744 = vperm.xlu0 %2743, %v2710
    %v2745 = vpop.permute.xlu0 %2744
    %2748 = vset.pattern.permute.xlu0 0
    %2749 = vperm.xlu0 %2748, %v2711
    %v2750 = vpop.permute.xlu0 %2749
    %v2752 = vadd.f32 %v2688, %v2715
    %v2753 = vadd.f32 %v2689, %v2715
    %v2754 = vadd.f32 %v2690, %v2720
    %v2755 = vadd.f32 %v2691, %v2720
    %v2756 = vadd.f32 %v2692, %v2725
    %v2757 = vadd.f32 %v2693, %v2725
    %v2758 = vadd.f32 %v2694, %v2730
    %v2759 = vadd.f32 %v2695, %v2730
    %v2760 = vadd.f32 %v2696, %v2735
    %v2761 = vadd.f32 %v2697, %v2735
    %v2762 = vadd.f32 %v2698, %v2740
    %v2763 = vadd.f32 %v2699, %v2740
    %v2764 = vadd.f32 %v2700, %v2745
    %v2765 = vadd.f32 %v2701, %v2745
    %v2766 = vadd.f32 %v2702, %v2750
    %v2767 = vadd.f32 %v2703, %v2750
    %v2768 = vmax.f32 %v2752, 0.0
    %v2769 = vmax.f32 %v2753, 0.0
    %v2770 = vmax.f32 %v2754, 0.0
    %v2771 = vmax.f32 %v2755, 0.0
    %v2772 = vmax.f32 %v2756, 0.0
    %v2773 = vmax.f32 %v2757, 0.0
    %v2774 = vmax.f32 %v2758, 0.0
    %v2775 = vmax.f32 %v2759, 0.0
    %v2776 = vmax.f32 %v2760, 0.0
    %v2777 = vmax.f32 %v2761, 0.0
    %v2778 = vmax.f32 %v2762, 0.0
    %v2779 = vmax.f32 %v2763, 0.0
    %v2780 = vmax.f32 %v2764, 0.0
    %v2781 = vmax.f32 %v2765, 0.0
    %v2782 = vmax.f32 %v2766, 0.0
    %v2783 = vmax.f32 %v2767, 0.0
    %v2784 = vpack.c.bf16 %v2770, %v2768
    %v2785 = vpack.c.bf16 %v2771, %v2769
    %v2786 = vpack.c.bf16 %v2774, %v2772
    %v2787 = vpack.c.bf16 %v2775, %v2773
    %v2788 = vpack.c.bf16 %v2778, %v2776
    %v2789 = vpack.c.bf16 %v2779, %v2777
    %v2790 = vpack.c.bf16 %v2782, %v2780
    %v2791 = vpack.c.bf16 %v2783, %v2781
    %v2800 = vunpack.c.l.b16 %v2784
    %v2801 = vunpack.c.l.b16 %v2785
    %v2802 = vunpack.c.h.b16 %v2784
    %v2803 = vunpack.c.h.b16 %v2785
    %v2804 = vunpack.c.l.b16 %v2786
    %v2805 = vunpack.c.l.b16 %v2787
    %v2806 = vunpack.c.h.b16 %v2786
    %v2807 = vunpack.c.h.b16 %v2787
    %v2808 = vunpack.c.l.b16 %v2788
    %v2809 = vunpack.c.l.b16 %v2789
    %v2810 = vunpack.c.h.b16 %v2788
    %v2811 = vunpack.c.h.b16 %v2789
    %v2812 = vunpack.c.l.b16 %v2790
    %v2813 = vunpack.c.l.b16 %v2791
    %v2814 = vunpack.c.h.b16 %v2790
    %v2815 = vunpack.c.h.b16 %v2791
    %v2816 = vpack.c.b16 %v2801, %v2800
    %v2817 = vpack.c.b16 %v2803, %v2802
    %v2818 = vpack.c.b16 %v2805, %v2804
    %v2819 = vpack.c.b16 %v2807, %v2806
    %v2820 = vpack.c.b16 %v2809, %v2808
    %v2821 = vpack.c.b16 %v2811, %v2810
    %v2822 = vpack.c.b16 %v2813, %v2812
    %v2823 = vpack.c.b16 %v2815, %v2814
    %vm2832 = vcmask 1043456
    %vm2833 = vcmask 523268
    %vm2834 = vmor %vm2833, %vm2832
    %2835 = vst.msk [vmem:[#allocation3] sm:$0xff] %vm2834, %v2816
    %2836 = vst.msk [vmem:[#allocation3 + $0x8] sm:$0xff] %vm2834, %v2817
    %2837 = vst.msk [vmem:[#allocation3 + $0x10] sm:$0xff] %vm2834, %v2818
    %2838 = vst.msk [vmem:[#allocation3 + $0x18] sm:$0xff] %vm2834, %v2819
    %2839 = vst.msk [vmem:[#allocation3 + $0x20] sm:$0xff] %vm2834, %v2820
    %2840 = vst.msk [vmem:[#allocation3 + $0x28] sm:$0xff] %vm2834, %v2821
    %2841 = vst.msk [vmem:[#allocation3 + $0x30] sm:$0xff] %vm2834, %v2822
    %2842 = vst.msk [vmem:[#allocation3 + $0x38] sm:$0xff] %vm2834, %v2823
    %v2843 = vld [vmem:[#allocation3] sm:$0xf]
    %v2844 = vld [vmem:[#allocation3 + $0x8] sm:$0xf]
    %v2845 = vld [vmem:[#allocation3 + $0x10] sm:$0xf]
    %v2846 = vld [vmem:[#allocation3 + $0x18] sm:$0xf]
    %v2847 = vld [vmem:[#allocation3 + $0x20] sm:$0xf]
    %v2848 = vld [vmem:[#allocation3 + $0x28] sm:$0xf]
    %v2849 = vld [vmem:[#allocation3 + $0x30] sm:$0xf]
    %v2850 = vld [vmem:[#allocation3 + $0x38] sm:$0xf]
    %v2851 = vld [vmem:[%s5] sm:$0xf]
    %v2852 = vld [vmem:[%s5 + $0x4] sm:$0xf]
    %v2853 = vld [vmem:[%s5 + $0x8] sm:$0xf]
    %v2854 = vld [vmem:[%s5 + $0xc] sm:$0xf]
    %v2855 = vld [vmem:[%s5 + $0x10] sm:$0xf]
    %v2856 = vld [vmem:[%s5 + $0x14] sm:$0xf]
    %v2857 = vld [vmem:[%s5 + $0x18] sm:$0xf]
    %v2858 = vld [vmem:[%s5 + $0x1c] sm:$0xf]
    %v2859 = vld [vmem:[#allocation3] sm:$0xff]
    %v2860 = vld [vmem:[#allocation3 + $0x8] sm:$0xff]
    %v2861 = vld [vmem:[#allocation3 + $0x10] sm:$0xff]
    %v2862 = vld [vmem:[#allocation3 + $0x18] sm:$0xff]
    %v2863 = vld [vmem:[#allocation3 + $0x20] sm:$0xff]
    %v2864 = vld [vmem:[#allocation3 + $0x28] sm:$0xff]
    %v2865 = vld [vmem:[#allocation3 + $0x30] sm:$0xff]
    %v2866 = vld [vmem:[#allocation3 + $0x38] sm:$0xff]
    %s2867 = scalar_lea.vmem %s5, 32
    %v2868 = vld [vmem:[%s2867] sm:$0xf]
    %v2869 = vld [vmem:[%s2867 + $0x4] sm:$0xf]
    %v2870 = vld [vmem:[%s2867 + $0x8] sm:$0xf]
    %v2871 = vld [vmem:[%s2867 + $0xc] sm:$0xf]
    %v2872 = vld [vmem:[%s2867 + $0x10] sm:$0xf]
    %v2873 = vld [vmem:[%s2867 + $0x14] sm:$0xf]
    %v2874 = vld [vmem:[%s2867 + $0x18] sm:$0xf]
    %v2875 = vld [vmem:[%s2867 + $0x1c] sm:$0xf]
    %v2884 = vunpack.c.l.b16 %v2868
    %v2885 = vunpack.c.l.b16 %v2869
    %v2886 = vunpack.c.l.b16 %v2870
    %v2887 = vunpack.c.l.b16 %v2871
    %v2888 = vunpack.c.l.b16 %v2872
    %v2889 = vunpack.c.l.b16 %v2873
    %v2890 = vunpack.c.l.b16 %v2874
    %v2891 = vunpack.c.l.b16 %v2875
    %v2892 = vpack.c.b16 %v2885, %v2884
    %v2893 = vpack.c.b16 %v2887, %v2886
    %v2894 = vpack.c.b16 %v2889, %v2888
    %v2895 = vpack.c.b16 %v2891, %v2890
    %v2904 = vunpack.c.l.b16 %v2859
    %v2905 = vunpack.c.h.b16 %v2859
    %v2906 = vunpack.c.l.b16 %v2860
    %v2907 = vunpack.c.h.b16 %v2860
    %v2908 = vunpack.c.l.b16 %v2861
    %v2909 = vunpack.c.h.b16 %v2861
    %v2910 = vunpack.c.l.b16 %v2862
    %v2911 = vunpack.c.h.b16 %v2862
    %v2912 = vunpack.c.l.b16 %v2863
    %v2913 = vunpack.c.h.b16 %v2863
    %v2914 = vunpack.c.l.b16 %v2864
    %v2915 = vunpack.c.h.b16 %v2864
    %v2916 = vunpack.c.l.b16 %v2865
    %v2917 = vunpack.c.h.b16 %v2865
    %v2918 = vunpack.c.l.b16 %v2866
    %v2919 = vunpack.c.h.b16 %v2866
    %v2920 = vpack.c.b16 %v2906, %v2904
    %v2921 = vpack.c.b16 %v2907, %v2905
    %v2922 = vpack.c.b16 %v2910, %v2908
    %v2923 = vpack.c.b16 %v2911, %v2909
    %v2924 = vpack.c.b16 %v2914, %v2912
    %v2925 = vpack.c.b16 %v2915, %v2913
    %v2926 = vpack.c.b16 %v2918, %v2916
    %v2927 = vpack.c.b16 %v2919, %v2917
    %2928 = vrot.lane.b32.xlu0 %v2920, 127
    %v2929 = vpop.permute.xlu0 %2928
    %2930 = vrot.lane.b32.xlu0 %v2921, 127
    %v2931 = vpop.permute.xlu0 %2930
    %2932 = vrot.lane.b32.xlu0 %v2922, 127
    %v2933 = vpop.permute.xlu0 %2932
    %2934 = vrot.lane.b32.xlu0 %v2923, 127
    %v2935 = vpop.permute.xlu0 %2934
    %2936 = vrot.lane.b32.xlu0 %v2924, 127
    %v2937 = vpop.permute.xlu0 %2936
    %2938 = vrot.lane.b32.xlu0 %v2925, 127
    %v2939 = vpop.permute.xlu0 %2938
    %2940 = vrot.lane.b32.xlu0 %v2926, 127
    %v2941 = vpop.permute.xlu0 %2940
    %2942 = vrot.lane.b32.xlu0 %v2927, 127
    %v2943 = vpop.permute.xlu0 %2942
    %v2944 = vsel %vm718, %v2929, %v2931
    %v2945 = vsel %vm718, %v2933, %v2935
    %v2946 = vsel %vm718, %v2937, %v2939
    %v2947 = vsel %vm718, %v2941, %v2943
    %v2953 = vsel %vm126, %v2892, 0
    %v2956 = vsel %vm126, %v2893, 0
    %v2959 = vsel %vm126, %v2894, 0
    %v2962 = vsel %vm126, %v2895, 0
    %2964 = vmatprep.subr.bf16.mxu0 0
    %2965 = vmatpush1.bf16.msra.mxu0 0
    %2966 = vmatprep.subr.bf16.mxu0 0
    %2967 = vmatpush1.bf16.msra.mxu0 0
    %2968 = vmatprep.subr.bf16.mxu0 0
    %2969 = vmatpush1.bf16.msra.mxu0 0
    %2970 = vmatprep.subr.bf16.mxu0 0
    %2971 = vmatpush1.bf16.msra.mxu0 0
    %2972 = vmatprep.subr.bf16.mxu0 0
    %2973 = vmatpush1.bf16.msra.mxu0 %v2947
    %2974 = vmatprep.subr.bf16.mxu0 0
    %2975 = vmatpush1.bf16.msra.mxu0 %v2946
    %2976 = vmatprep.subr.bf16.mxu0 0
    %2977 = vmatpush1.bf16.msra.mxu0 %v2945
    %2978 = vmatprep.subr.bf16.mxu0 0
    %2979 = vmatpush1.bf16.msra.mxu0 %v2944
    %2980 = vmatprep.subr.bf16.mxu0 0
    %2981 = vmatpush2.bf16.msra.mxu0 0
    %2982 = vmatprep.subr.bf16.mxu0 0
    %2983 = vmatpush2.bf16.msra.mxu0 0
    %2984 = vmatprep.subr.bf16.mxu0 0
    %2985 = vmatpush2.bf16.msra.mxu0 0
    %2986 = vmatprep.subr.bf16.mxu0 0
    %2987 = vmatpush2.bf16.msra.mxu0 0
    %2988 = vmatprep.subr.bf16.mxu0 0
    %2989 = vmatpush2.bf16.msra.mxu0 0
    %2990 = vmatprep.subr.bf16.mxu0 0
    %2991 = vmatpush2.bf16.msra.mxu0 0
    %2992 = vmatprep.subr.bf16.mxu0 0
    %2993 = vmatpush2.bf16.msra.mxu0 0
    %2994 = vmatprep.subr.bf16.mxu0 0
    %2995 = vmatpush2.bf16.msra.mxu0 0
    %2996 = vmatprep.mubr.bf16.mxu0 0
    %2997 = vmatmul.mubr.bf16.gmra.mxu0 %v2953
    %v2998 = vpop.f32.mrf.mxu0
    %v2999 = vadd.f32 0.0, %v2998
    %v3000 = vpop.f32.mrf.mxu0
    %v3001 = vpop.f32.mrf.mxu0
    %v3002 = vadd.f32 0.0, %v3001
    %v3003 = vpop.f32.mrf.mxu0
    %3004 = vmatprep.mubr.bf16.mxu0 0
    %3005 = vmatmul.mubr.bf16.gmra.mxu0 %v2956
    %v3006 = vpop.f32.mrf.mxu0
    %v3007 = vadd.f32 0.0, %v3006
    %v3008 = vpop.f32.mrf.mxu0
    %v3009 = vpop.f32.mrf.mxu0
    %v3010 = vadd.f32 0.0, %v3009
    %v3011 = vpop.f32.mrf.mxu0
    %3012 = vmatprep.mubr.bf16.mxu0 0
    %3013 = vmatmul.mubr.bf16.gmra.mxu0 %v2959
    %v3014 = vpop.f32.mrf.mxu0
    %v3015 = vadd.f32 0.0, %v3014
    %v3016 = vpop.f32.mrf.mxu0
    %v3017 = vpop.f32.mrf.mxu0
    %v3018 = vadd.f32 0.0, %v3017
    %v3019 = vpop.f32.mrf.mxu0
    %3020 = vmatprep.mubr.bf16.mxu0 0
    %3021 = vmatmul.mubr.bf16.gmra.mxu0 %v2962
    %v3022 = vpop.f32.mrf.mxu0
    %v3023 = vadd.f32 0.0, %v3022
    %v3024 = vpop.f32.mrf.mxu0
    %v3025 = vpop.f32.mrf.mxu0
    %v3026 = vadd.f32 0.0, %v3025
    %v3027 = vpop.f32.mrf.mxu0
    %3028 = vdwg.mxu0
    %v3037 = vunpack.c.l.b16 %v2851
    %v3038 = vunpack.c.l.b16 %v2852
    %v3039 = vunpack.c.l.b16 %v2853
    %v3040 = vunpack.c.l.b16 %v2854
    %v3041 = vunpack.c.l.b16 %v2855
    %v3042 = vunpack.c.l.b16 %v2856
    %v3043 = vunpack.c.l.b16 %v2857
    %v3044 = vunpack.c.l.b16 %v2858
    %v3045 = vpack.c.b16 %v3038, %v3037
    %v3046 = vpack.c.b16 %v3040, %v3039
    %v3047 = vpack.c.b16 %v3042, %v3041
    %v3048 = vpack.c.b16 %v3044, %v3043
    %v3057 = vunpack.c.l.b16 %v2843
    %v3058 = vunpack.c.l.b16 %v2844
    %v3059 = vunpack.c.l.b16 %v2845
    %v3060 = vunpack.c.l.b16 %v2846
    %v3061 = vunpack.c.l.b16 %v2847
    %v3062 = vunpack.c.l.b16 %v2848
    %v3063 = vunpack.c.l.b16 %v2849
    %v3064 = vunpack.c.l.b16 %v2850
    %v3065 = vpack.c.b16 %v3058, %v3057
    %v3066 = vpack.c.b16 %v3060, %v3059
    %v3067 = vpack.c.b16 %v3062, %v3061
    %v3068 = vpack.c.b16 %v3064, %v3063
    %v3074 = vsel %vm126, %v3045, 0
    %v3077 = vsel %vm126, %v3046, 0
    %v3080 = vsel %vm126, %v3047, 0
    %v3083 = vsel %vm126, %v3048, 0
    %3085 = vmatprep.subr.bf16.mxu0 0
    %3086 = vmatpush1.bf16.msra.mxu0 0
    %3087 = vmatprep.subr.bf16.mxu0 0
    %3088 = vmatpush1.bf16.msra.mxu0 0
    %3089 = vmatprep.subr.bf16.mxu0 0
    %3090 = vmatpush1.bf16.msra.mxu0 0
    %3091 = vmatprep.subr.bf16.mxu0 0
    %3092 = vmatpush1.bf16.msra.mxu0 0
    %3093 = vmatprep.subr.bf16.mxu0 0
    %3094 = vmatpush1.bf16.msra.mxu0 %v3068
    %3095 = vmatprep.subr.bf16.mxu0 0
    %3096 = vmatpush1.bf16.msra.mxu0 %v3067
    %3097 = vmatprep.subr.bf16.mxu0 0
    %3098 = vmatpush1.bf16.msra.mxu0 %v3066
    %3099 = vmatprep.subr.bf16.mxu0 0
    %3100 = vmatpush1.bf16.msra.mxu0 %v3065
    %3101 = vmatprep.subr.bf16.mxu0 0
    %3102 = vmatpush2.bf16.msra.mxu0 0
    %3103 = vmatprep.subr.bf16.mxu0 0
    %3104 = vmatpush2.bf16.msra.mxu0 0
    %3105 = vmatprep.subr.bf16.mxu0 0
    %3106 = vmatpush2.bf16.msra.mxu0 0
    %3107 = vmatprep.subr.bf16.mxu0 0
    %3108 = vmatpush2.bf16.msra.mxu0 0
    %3109 = vmatprep.subr.bf16.mxu0 0
    %3110 = vmatpush2.bf16.msra.mxu0 0
    %3111 = vmatprep.subr.bf16.mxu0 0
    %3112 = vmatpush2.bf16.msra.mxu0 0
    %3113 = vmatprep.subr.bf16.mxu0 0
    %3114 = vmatpush2.bf16.msra.mxu0 0
    %3115 = vmatprep.subr.bf16.mxu0 0
    %3116 = vmatpush2.bf16.msra.mxu0 0
    %3117 = vmatprep.mubr.bf16.mxu0 0
    %3118 = vmatmul.mubr.bf16.gmra.mxu0 %v3074
    %v3119 = vpop.f32.mrf.mxu0
    %v3120 = vadd.f32 %v2999, %v3119
    %v3121 = vpop.f32.mrf.mxu0
    %v3122 = vpop.f32.mrf.mxu0
    %v3123 = vadd.f32 %v3002, %v3122
    %v3124 = vpop.f32.mrf.mxu0
    %3125 = vmatprep.mubr.bf16.mxu0 0
    %3126 = vmatmul.mubr.bf16.gmra.mxu0 %v3077
    %v3127 = vpop.f32.mrf.mxu0
    %v3128 = vadd.f32 %v3007, %v3127
    %v3129 = vpop.f32.mrf.mxu0
    %v3130 = vpop.f32.mrf.mxu0
    %v3131 = vadd.f32 %v3010, %v3130
    %v3132 = vpop.f32.mrf.mxu0
    %3133 = vmatprep.mubr.bf16.mxu0 0
    %3134 = vmatmul.mubr.bf16.gmra.mxu0 %v3080
    %v3135 = vpop.f32.mrf.mxu0
    %v3136 = vadd.f32 %v3015, %v3135
    %v3137 = vpop.f32.mrf.mxu0
    %v3138 = vpop.f32.mrf.mxu0
    %v3139 = vadd.f32 %v3018, %v3138
    %v3140 = vpop.f32.mrf.mxu0
    %3141 = vmatprep.mubr.bf16.mxu0 0
    %3142 = vmatmul.mubr.bf16.gmra.mxu0 %v3083
    %v3143 = vpop.f32.mrf.mxu0
    %v3144 = vadd.f32 %v3023, %v3143
    %v3145 = vpop.f32.mrf.mxu0
    %v3146 = vpop.f32.mrf.mxu0
    %v3147 = vadd.f32 %v3026, %v3146
    %v3148 = vpop.f32.mrf.mxu0
    %3149 = vdwg.mxu0
    %s3150 = scalar_lea.vmem %s5, 64
    %v3151 = vld [vmem:[%s3150] sm:$0xf]
    %v3152 = vld [vmem:[%s3150 + $0x4] sm:$0xf]
    %v3153 = vld [vmem:[%s3150 + $0x8] sm:$0xf]
    %v3154 = vld [vmem:[%s3150 + $0xc] sm:$0xf]
    %v3155 = vld [vmem:[%s3150 + $0x10] sm:$0xf]
    %v3156 = vld [vmem:[%s3150 + $0x14] sm:$0xf]
    %v3157 = vld [vmem:[%s3150 + $0x18] sm:$0xf]
    %v3158 = vld [vmem:[%s3150 + $0x1c] sm:$0xf]
    %v3167 = vunpack.c.l.b16 %v3151
    %v3168 = vunpack.c.l.b16 %v3152
    %v3169 = vunpack.c.l.b16 %v3153
    %v3170 = vunpack.c.l.b16 %v3154
    %v3171 = vunpack.c.l.b16 %v3155
    %v3172 = vunpack.c.l.b16 %v3156
    %v3173 = vunpack.c.l.b16 %v3157
    %v3174 = vunpack.c.l.b16 %v3158
    %v3175 = vpack.c.b16 %v3168, %v3167
    %v3176 = vpack.c.b16 %v3170, %v3169
    %v3177 = vpack.c.b16 %v3172, %v3171
    %v3178 = vpack.c.b16 %v3174, %v3173
    %3179 = vrot.lane.b32.xlu0 %v2920, 126
    %v3180 = vpop.permute.xlu0 %3179
    %3181 = vrot.lane.b32.xlu0 %v2921, 126
    %v3182 = vpop.permute.xlu0 %3181
    %3183 = vrot.lane.b32.xlu0 %v2922, 126
    %v3184 = vpop.permute.xlu0 %3183
    %3185 = vrot.lane.b32.xlu0 %v2923, 126
    %v3186 = vpop.permute.xlu0 %3185
    %3187 = vrot.lane.b32.xlu0 %v2924, 126
    %v3188 = vpop.permute.xlu0 %3187
    %3189 = vrot.lane.b32.xlu0 %v2925, 126
    %v3190 = vpop.permute.xlu0 %3189
    %3191 = vrot.lane.b32.xlu0 %v2926, 126
    %v3192 = vpop.permute.xlu0 %3191
    %3193 = vrot.lane.b32.xlu0 %v2927, 126
    %v3194 = vpop.permute.xlu0 %3193
    %vm3195 = vcmask 1031168
    %v3196 = vsel %vm3195, %v3180, %v3182
    %v3197 = vsel %vm3195, %v3184, %v3186
    %v3198 = vsel %vm3195, %v3188, %v3190
    %v3199 = vsel %vm3195, %v3192, %v3194
    %v3205 = vsel %vm126, %v3175, 0
    %v3208 = vsel %vm126, %v3176, 0
    %v3211 = vsel %vm126, %v3177, 0
    %v3214 = vsel %vm126, %v3178, 0
    %3216 = vmatprep.subr.bf16.mxu0 0
    %3217 = vmatpush1.bf16.msra.mxu0 0
    %3218 = vmatprep.subr.bf16.mxu0 0
    %3219 = vmatpush1.bf16.msra.mxu0 0
    %3220 = vmatprep.subr.bf16.mxu0 0
    %3221 = vmatpush1.bf16.msra.mxu0 0
    %3222 = vmatprep.subr.bf16.mxu0 0
    %3223 = vmatpush1.bf16.msra.mxu0 0
    %3224 = vmatprep.subr.bf16.mxu0 0
    %3225 = vmatpush1.bf16.msra.mxu0 %v3199
    %3226 = vmatprep.subr.bf16.mxu0 0
    %3227 = vmatpush1.bf16.msra.mxu0 %v3198
    %3228 = vmatprep.subr.bf16.mxu0 0
    %3229 = vmatpush1.bf16.msra.mxu0 %v3197
    %3230 = vmatprep.subr.bf16.mxu0 0
    %3231 = vmatpush1.bf16.msra.mxu0 %v3196
    %3232 = vmatprep.subr.bf16.mxu0 0
    %3233 = vmatpush2.bf16.msra.mxu0 0
    %3234 = vmatprep.subr.bf16.mxu0 0
    %3235 = vmatpush2.bf16.msra.mxu0 0
    %3236 = vmatprep.subr.bf16.mxu0 0
    %3237 = vmatpush2.bf16.msra.mxu0 0
    %3238 = vmatprep.subr.bf16.mxu0 0
    %3239 = vmatpush2.bf16.msra.mxu0 0
    %3240 = vmatprep.subr.bf16.mxu0 0
    %3241 = vmatpush2.bf16.msra.mxu0 0
    %3242 = vmatprep.subr.bf16.mxu0 0
    %3243 = vmatpush2.bf16.msra.mxu0 0
    %3244 = vmatprep.subr.bf16.mxu0 0
    %3245 = vmatpush2.bf16.msra.mxu0 0
    %3246 = vmatprep.subr.bf16.mxu0 0
    %3247 = vmatpush2.bf16.msra.mxu0 0
    %3248 = vmatprep.mubr.bf16.mxu0 0
    %3249 = vmatmul.mubr.bf16.gmra.mxu0 %v3205
    %v3250 = vpop.f32.mrf.mxu0
    %v3251 = vadd.f32 0.0, %v3250
    %v3252 = vpop.f32.mrf.mxu0
    %v3253 = vpop.f32.mrf.mxu0
    %v3254 = vadd.f32 0.0, %v3253
    %v3255 = vpop.f32.mrf.mxu0
    %3256 = vmatprep.mubr.bf16.mxu0 0
    %3257 = vmatmul.mubr.bf16.gmra.mxu0 %v3208
    %v3258 = vpop.f32.mrf.mxu0
    %v3259 = vadd.f32 0.0, %v3258
    %v3260 = vpop.f32.mrf.mxu0
    %v3261 = vpop.f32.mrf.mxu0
    %v3262 = vadd.f32 0.0, %v3261
    %v3263 = vpop.f32.mrf.mxu0
    %3264 = vmatprep.mubr.bf16.mxu0 0
    %3265 = vmatmul.mubr.bf16.gmra.mxu0 %v3211
    %v3266 = vpop.f32.mrf.mxu0
    %v3267 = vadd.f32 0.0, %v3266
    %v3268 = vpop.f32.mrf.mxu0
    %v3269 = vpop.f32.mrf.mxu0
    %v3270 = vadd.f32 0.0, %v3269
    %v3271 = vpop.f32.mrf.mxu0
    %3272 = vmatprep.mubr.bf16.mxu0 0
    %3273 = vmatmul.mubr.bf16.gmra.mxu0 %v3214
    %v3274 = vpop.f32.mrf.mxu0
    %v3275 = vadd.f32 0.0, %v3274
    %v3276 = vpop.f32.mrf.mxu0
    %v3277 = vpop.f32.mrf.mxu0
    %v3278 = vadd.f32 0.0, %v3277
    %v3279 = vpop.f32.mrf.mxu0
    %3280 = vdwg.mxu0
    %v3281 = vadd.f32 %v3120, %v3251
    %v3282 = vadd.f32 %v3123, %v3254
    %v3283 = vadd.f32 %v3128, %v3259
    %v3284 = vadd.f32 %v3131, %v3262
    %v3285 = vadd.f32 %v3136, %v3267
    %v3286 = vadd.f32 %v3139, %v3270
    %v3287 = vadd.f32 %v3144, %v3275
    %v3288 = vadd.f32 %v3147, %v3278
    %s3289 = scalar_lea.vmem %s5, 96
    %v3290 = vld [vmem:[%s3289] sm:$0xf]
    %v3291 = vld [vmem:[%s3289 + $0x4] sm:$0xf]
    %v3292 = vld [vmem:[%s3289 + $0x8] sm:$0xf]
    %v3293 = vld [vmem:[%s3289 + $0xc] sm:$0xf]
    %v3294 = vld [vmem:[%s3289 + $0x10] sm:$0xf]
    %v3295 = vld [vmem:[%s3289 + $0x14] sm:$0xf]
    %v3296 = vld [vmem:[%s3289 + $0x18] sm:$0xf]
    %v3297 = vld [vmem:[%s3289 + $0x1c] sm:$0xf]
    %v3306 = vunpack.c.l.b16 %v3290
    %v3307 = vunpack.c.l.b16 %v3291
    %v3308 = vunpack.c.l.b16 %v3292
    %v3309 = vunpack.c.l.b16 %v3293
    %v3310 = vunpack.c.l.b16 %v3294
    %v3311 = vunpack.c.l.b16 %v3295
    %v3312 = vunpack.c.l.b16 %v3296
    %v3313 = vunpack.c.l.b16 %v3297
    %v3314 = vpack.c.b16 %v3307, %v3306
    %v3315 = vpack.c.b16 %v3309, %v3308
    %v3316 = vpack.c.b16 %v3311, %v3310
    %v3317 = vpack.c.b16 %v3313, %v3312
    %3318 = vrot.lane.b32.xlu0 %v2920, 108
    %v3319 = vpop.permute.xlu0 %3318
    %3320 = vrot.lane.b32.xlu0 %v2921, 108
    %v3321 = vpop.permute.xlu0 %3320
    %3322 = vrot.lane.b32.xlu0 %v2922, 108
    %v3323 = vpop.permute.xlu0 %3322
    %3324 = vrot.lane.b32.xlu0 %v2923, 108
    %v3325 = vpop.permute.xlu0 %3324
    %3326 = vrot.lane.b32.xlu0 %v2924, 108
    %v3327 = vpop.permute.xlu0 %3326
    %3328 = vrot.lane.b32.xlu0 %v2925, 108
    %v3329 = vpop.permute.xlu0 %3328
    %3330 = vrot.lane.b32.xlu0 %v2926, 108
    %v3331 = vpop.permute.xlu0 %3330
    %3332 = vrot.lane.b32.xlu0 %v2927, 108
    %v3333 = vpop.permute.xlu0 %3332
    %v3334 = vsel %vm1585, %v3319, %v3321
    %v3335 = vsel %vm1585, %v3323, %v3325
    %v3336 = vsel %vm1585, %v3327, %v3329
    %v3337 = vsel %vm1585, %v3331, %v3333
    %v3343 = vsel %vm126, %v3314, 0
    %v3346 = vsel %vm126, %v3315, 0
    %v3349 = vsel %vm126, %v3316, 0
    %v3352 = vsel %vm126, %v3317, 0
    %3354 = vmatprep.subr.bf16.mxu0 0
    %3355 = vmatpush1.bf16.msra.mxu0 0
    %3356 = vmatprep.subr.bf16.mxu0 0
    %3357 = vmatpush1.bf16.msra.mxu0 0
    %3358 = vmatprep.subr.bf16.mxu0 0
    %3359 = vmatpush1.bf16.msra.mxu0 0
    %3360 = vmatprep.subr.bf16.mxu0 0
    %3361 = vmatpush1.bf16.msra.mxu0 0
    %3362 = vmatprep.subr.bf16.mxu0 0
    %3363 = vmatpush1.bf16.msra.mxu0 %v3337
    %3364 = vmatprep.subr.bf16.mxu0 0
    %3365 = vmatpush1.bf16.msra.mxu0 %v3336
    %3366 = vmatprep.subr.bf16.mxu0 0
    %3367 = vmatpush1.bf16.msra.mxu0 %v3335
    %3368 = vmatprep.subr.bf16.mxu0 0
    %3369 = vmatpush1.bf16.msra.mxu0 %v3334
    %3370 = vmatprep.subr.bf16.mxu0 0
    %3371 = vmatpush2.bf16.msra.mxu0 0
    %3372 = vmatprep.subr.bf16.mxu0 0
    %3373 = vmatpush2.bf16.msra.mxu0 0
    %3374 = vmatprep.subr.bf16.mxu0 0
    %3375 = vmatpush2.bf16.msra.mxu0 0
    %3376 = vmatprep.subr.bf16.mxu0 0
    %3377 = vmatpush2.bf16.msra.mxu0 0
    %3378 = vmatprep.subr.bf16.mxu0 0
    %3379 = vmatpush2.bf16.msra.mxu0 0
    %3380 = vmatprep.subr.bf16.mxu0 0
    %3381 = vmatpush2.bf16.msra.mxu0 0
    %3382 = vmatprep.subr.bf16.mxu0 0
    %3383 = vmatpush2.bf16.msra.mxu0 0
    %3384 = vmatprep.subr.bf16.mxu0 0
    %3385 = vmatpush2.bf16.msra.mxu0 0
    %3386 = vmatprep.mubr.bf16.mxu0 0
    %3387 = vmatmul.mubr.bf16.gmra.mxu0 %v3343
    %v3388 = vpop.f32.mrf.mxu0
    %v3389 = vadd.f32 0.0, %v3388
    %v3390 = vpop.f32.mrf.mxu0
    %v3391 = vpop.f32.mrf.mxu0
    %v3392 = vadd.f32 0.0, %v3391
    %v3393 = vpop.f32.mrf.mxu0
    %3394 = vmatprep.mubr.bf16.mxu0 0
    %3395 = vmatmul.mubr.bf16.gmra.mxu0 %v3346
    %v3396 = vpop.f32.mrf.mxu0
    %v3397 = vadd.f32 0.0, %v3396
    %v3398 = vpop.f32.mrf.mxu0
    %v3399 = vpop.f32.mrf.mxu0
    %v3400 = vadd.f32 0.0, %v3399
    %v3401 = vpop.f32.mrf.mxu0
    %3402 = vmatprep.mubr.bf16.mxu0 0
    %3403 = vmatmul.mubr.bf16.gmra.mxu0 %v3349
    %v3404 = vpop.f32.mrf.mxu0
    %v3405 = vadd.f32 0.0, %v3404
    %v3406 = vpop.f32.mrf.mxu0
    %v3407 = vpop.f32.mrf.mxu0
    %v3408 = vadd.f32 0.0, %v3407
    %v3409 = vpop.f32.mrf.mxu0
    %3410 = vmatprep.mubr.bf16.mxu0 0
    %3411 = vmatmul.mubr.bf16.gmra.mxu0 %v3352
    %v3412 = vpop.f32.mrf.mxu0
    %v3413 = vadd.f32 0.0, %v3412
    %v3414 = vpop.f32.mrf.mxu0
    %v3415 = vpop.f32.mrf.mxu0
    %v3416 = vadd.f32 0.0, %v3415
    %v3417 = vpop.f32.mrf.mxu0
    %3418 = vdwg.mxu0
    %v3419 = vadd.f32 %v3281, %v3389
    %v3420 = vadd.f32 %v3282, %v3392
    %v3421 = vadd.f32 %v3283, %v3397
    %v3422 = vadd.f32 %v3284, %v3400
    %v3423 = vadd.f32 %v3285, %v3405
    %v3424 = vadd.f32 %v3286, %v3408
    %v3425 = vadd.f32 %v3287, %v3413
    %v3426 = vadd.f32 %v3288, %v3416
    %s3427 = scalar_lea.vmem %s5, 128
    %v3428 = vld [vmem:[%s3427] sm:$0xf]
    %v3429 = vld [vmem:[%s3427 + $0x4] sm:$0xf]
    %v3430 = vld [vmem:[%s3427 + $0x8] sm:$0xf]
    %v3431 = vld [vmem:[%s3427 + $0xc] sm:$0xf]
    %v3432 = vld [vmem:[%s3427 + $0x10] sm:$0xf]
    %v3433 = vld [vmem:[%s3427 + $0x14] sm:$0xf]
    %v3434 = vld [vmem:[%s3427 + $0x18] sm:$0xf]
    %v3435 = vld [vmem:[%s3427 + $0x1c] sm:$0xf]
    %v3444 = vunpack.c.l.b16 %v3428
    %v3445 = vunpack.c.l.b16 %v3429
    %v3446 = vunpack.c.l.b16 %v3430
    %v3447 = vunpack.c.l.b16 %v3431
    %v3448 = vunpack.c.l.b16 %v3432
    %v3449 = vunpack.c.l.b16 %v3433
    %v3450 = vunpack.c.l.b16 %v3434
    %v3451 = vunpack.c.l.b16 %v3435
    %v3452 = vpack.c.b16 %v3445, %v3444
    %v3453 = vpack.c.b16 %v3447, %v3446
    %v3454 = vpack.c.b16 %v3449, %v3448
    %v3455 = vpack.c.b16 %v3451, %v3450
    %3456 = vrot.lane.b32.xlu0 %v2920, 107
    %v3457 = vpop.permute.xlu0 %3456
    %3458 = vrot.lane.b32.xlu0 %v2921, 107
    %v3459 = vpop.permute.xlu0 %3458
    %3460 = vrot.lane.b32.xlu0 %v2922, 107
    %v3461 = vpop.permute.xlu0 %3460
    %3462 = vrot.lane.b32.xlu0 %v2923, 107
    %v3463 = vpop.permute.xlu0 %3462
    %3464 = vrot.lane.b32.xlu0 %v2924, 107
    %v3465 = vpop.permute.xlu0 %3464
    %3466 = vrot.lane.b32.xlu0 %v2925, 107
    %v3467 = vpop.permute.xlu0 %3466
    %3468 = vrot.lane.b32.xlu0 %v2926, 107
    %v3469 = vpop.permute.xlu0 %3468
    %3470 = vrot.lane.b32.xlu0 %v2927, 107
    %v3471 = vpop.permute.xlu0 %3470
    %v3472 = vsel %vm1874, %v3457, %v3459
    %v3473 = vsel %vm1874, %v3461, %v3463
    %v3474 = vsel %vm1874, %v3465, %v3467
    %v3475 = vsel %vm1874, %v3469, %v3471
    %v3481 = vsel %vm126, %v3452, 0
    %v3484 = vsel %vm126, %v3453, 0
    %v3487 = vsel %vm126, %v3454, 0
    %v3490 = vsel %vm126, %v3455, 0
    %3492 = vmatprep.subr.bf16.mxu0 0
    %3493 = vmatpush1.bf16.msra.mxu0 0
    %3494 = vmatprep.subr.bf16.mxu0 0
    %3495 = vmatpush1.bf16.msra.mxu0 0
    %3496 = vmatprep.subr.bf16.mxu0 0
    %3497 = vmatpush1.bf16.msra.mxu0 0
    %3498 = vmatprep.subr.bf16.mxu0 0
    %3499 = vmatpush1.bf16.msra.mxu0 0
    %3500 = vmatprep.subr.bf16.mxu0 0
    %3501 = vmatpush1.bf16.msra.mxu0 %v3475
    %3502 = vmatprep.subr.bf16.mxu0 0
    %3503 = vmatpush1.bf16.msra.mxu0 %v3474
    %3504 = vmatprep.subr.bf16.mxu0 0
    %3505 = vmatpush1.bf16.msra.mxu0 %v3473
    %3506 = vmatprep.subr.bf16.mxu0 0
    %3507 = vmatpush1.bf16.msra.mxu0 %v3472
    %3508 = vmatprep.subr.bf16.mxu0 0
    %3509 = vmatpush2.bf16.msra.mxu0 0
    %3510 = vmatprep.subr.bf16.mxu0 0
    %3511 = vmatpush2.bf16.msra.mxu0 0
    %3512 = vmatprep.subr.bf16.mxu0 0
    %3513 = vmatpush2.bf16.msra.mxu0 0
    %3514 = vmatprep.subr.bf16.mxu0 0
    %3515 = vmatpush2.bf16.msra.mxu0 0
    %3516 = vmatprep.subr.bf16.mxu0 0
    %3517 = vmatpush2.bf16.msra.mxu0 0
    %3518 = vmatprep.subr.bf16.mxu0 0
    %3519 = vmatpush2.bf16.msra.mxu0 0
    %3520 = vmatprep.subr.bf16.mxu0 0
    %3521 = vmatpush2.bf16.msra.mxu0 0
    %3522 = vmatprep.subr.bf16.mxu0 0
    %3523 = vmatpush2.bf16.msra.mxu0 0
    %3524 = vmatprep.mubr.bf16.mxu0 0
    %3525 = vmatmul.mubr.bf16.gmra.mxu0 %v3481
    %v3526 = vpop.f32.mrf.mxu0
    %v3527 = vadd.f32 0.0, %v3526
    %v3528 = vpop.f32.mrf.mxu0
    %v3529 = vpop.f32.mrf.mxu0
    %v3530 = vadd.f32 0.0, %v3529
    %v3531 = vpop.f32.mrf.mxu0
    %3532 = vmatprep.mubr.bf16.mxu0 0
    %3533 = vmatmul.mubr.bf16.gmra.mxu0 %v3484
    %v3534 = vpop.f32.mrf.mxu0
    %v3535 = vadd.f32 0.0, %v3534
    %v3536 = vpop.f32.mrf.mxu0
    %v3537 = vpop.f32.mrf.mxu0
    %v3538 = vadd.f32 0.0, %v3537
    %v3539 = vpop.f32.mrf.mxu0
    %3540 = vmatprep.mubr.bf16.mxu0 0
    %3541 = vmatmul.mubr.bf16.gmra.mxu0 %v3487
    %v3542 = vpop.f32.mrf.mxu0
    %v3543 = vadd.f32 0.0, %v3542
    %v3544 = vpop.f32.mrf.mxu0
    %v3545 = vpop.f32.mrf.mxu0
    %v3546 = vadd.f32 0.0, %v3545
    %v3547 = vpop.f32.mrf.mxu0
    %3548 = vmatprep.mubr.bf16.mxu0 0
    %3549 = vmatmul.mubr.bf16.gmra.mxu0 %v3490
    %v3550 = vpop.f32.mrf.mxu0
    %v3551 = vadd.f32 0.0, %v3550
    %v3552 = vpop.f32.mrf.mxu0
    %v3553 = vpop.f32.mrf.mxu0
    %v3554 = vadd.f32 0.0, %v3553
    %v3555 = vpop.f32.mrf.mxu0
    %3556 = vdwg.mxu0
    %v3557 = vadd.f32 %v3419, %v3527
    %v3558 = vadd.f32 %v3420, %v3530
    %v3559 = vadd.f32 %v3421, %v3535
    %v3560 = vadd.f32 %v3422, %v3538
    %v3561 = vadd.f32 %v3423, %v3543
    %v3562 = vadd.f32 %v3424, %v3546
    %v3563 = vadd.f32 %v3425, %v3551
    %v3564 = vadd.f32 %v3426, %v3554
    %s3565 = scalar_lea.vmem %s5, 160
    %v3566 = vld [vmem:[%s3565] sm:$0xf]
    %v3567 = vld [vmem:[%s3565 + $0x4] sm:$0xf]
    %v3568 = vld [vmem:[%s3565 + $0x8] sm:$0xf]
    %v3569 = vld [vmem:[%s3565 + $0xc] sm:$0xf]
    %v3570 = vld [vmem:[%s3565 + $0x10] sm:$0xf]
    %v3571 = vld [vmem:[%s3565 + $0x14] sm:$0xf]
    %v3572 = vld [vmem:[%s3565 + $0x18] sm:$0xf]
    %v3573 = vld [vmem:[%s3565 + $0x1c] sm:$0xf]
    %v3582 = vunpack.c.l.b16 %v3566
    %v3583 = vunpack.c.l.b16 %v3567
    %v3584 = vunpack.c.l.b16 %v3568
    %v3585 = vunpack.c.l.b16 %v3569
    %v3586 = vunpack.c.l.b16 %v3570
    %v3587 = vunpack.c.l.b16 %v3571
    %v3588 = vunpack.c.l.b16 %v3572
    %v3589 = vunpack.c.l.b16 %v3573
    %v3590 = vpack.c.b16 %v3583, %v3582
    %v3591 = vpack.c.b16 %v3585, %v3584
    %v3592 = vpack.c.b16 %v3587, %v3586
    %v3593 = vpack.c.b16 %v3589, %v3588
    %3594 = vrot.lane.b32.xlu0 %v2920, 106
    %v3595 = vpop.permute.xlu0 %3594
    %3596 = vrot.lane.b32.xlu0 %v2921, 106
    %v3597 = vpop.permute.xlu0 %3596
    %3598 = vrot.lane.b32.xlu0 %v2922, 106
    %v3599 = vpop.permute.xlu0 %3598
    %3600 = vrot.lane.b32.xlu0 %v2923, 106
    %v3601 = vpop.permute.xlu0 %3600
    %3602 = vrot.lane.b32.xlu0 %v2924, 106
    %v3603 = vpop.permute.xlu0 %3602
    %3604 = vrot.lane.b32.xlu0 %v2925, 106
    %v3605 = vpop.permute.xlu0 %3604
    %3606 = vrot.lane.b32.xlu0 %v2926, 106
    %v3607 = vpop.permute.xlu0 %3606
    %3608 = vrot.lane.b32.xlu0 %v2927, 106
    %v3609 = vpop.permute.xlu0 %3608
    %vm3610 = vcmask 867328
    %v3611 = vsel %vm3610, %v3595, %v3597
    %v3612 = vsel %vm3610, %v3599, %v3601
    %v3613 = vsel %vm3610, %v3603, %v3605
    %v3614 = vsel %vm3610, %v3607, %v3609
    %v3620 = vsel %vm126, %v3590, 0
    %v3623 = vsel %vm126, %v3591, 0
    %v3626 = vsel %vm126, %v3592, 0
    %v3629 = vsel %vm126, %v3593, 0
    %3631 = vmatprep.subr.bf16.mxu0 0
    %3632 = vmatpush1.bf16.msra.mxu0 0
    %3633 = vmatprep.subr.bf16.mxu0 0
    %3634 = vmatpush1.bf16.msra.mxu0 0
    %3635 = vmatprep.subr.bf16.mxu0 0
    %3636 = vmatpush1.bf16.msra.mxu0 0
    %3637 = vmatprep.subr.bf16.mxu0 0
    %3638 = vmatpush1.bf16.msra.mxu0 0
    %3639 = vmatprep.subr.bf16.mxu0 0
    %3640 = vmatpush1.bf16.msra.mxu0 %v3614
    %3641 = vmatprep.subr.bf16.mxu0 0
    %3642 = vmatpush1.bf16.msra.mxu0 %v3613
    %3643 = vmatprep.subr.bf16.mxu0 0
    %3644 = vmatpush1.bf16.msra.mxu0 %v3612
    %3645 = vmatprep.subr.bf16.mxu0 0
    %3646 = vmatpush1.bf16.msra.mxu0 %v3611
    %3647 = vmatprep.subr.bf16.mxu0 0
    %3648 = vmatpush2.bf16.msra.mxu0 0
    %3649 = vmatprep.subr.bf16.mxu0 0
    %3650 = vmatpush2.bf16.msra.mxu0 0
    %3651 = vmatprep.subr.bf16.mxu0 0
    %3652 = vmatpush2.bf16.msra.mxu0 0
    %3653 = vmatprep.subr.bf16.mxu0 0
    %3654 = vmatpush2.bf16.msra.mxu0 0
    %3655 = vmatprep.subr.bf16.mxu0 0
    %3656 = vmatpush2.bf16.msra.mxu0 0
    %3657 = vmatprep.subr.bf16.mxu0 0
    %3658 = vmatpush2.bf16.msra.mxu0 0
    %3659 = vmatprep.subr.bf16.mxu0 0
    %3660 = vmatpush2.bf16.msra.mxu0 0
    %3661 = vmatprep.subr.bf16.mxu0 0
    %3662 = vmatpush2.bf16.msra.mxu0 0
    %3663 = vmatprep.mubr.bf16.mxu0 0
    %3664 = vmatmul.mubr.bf16.gmra.mxu0 %v3620
    %v3665 = vpop.f32.mrf.mxu0
    %v3666 = vadd.f32 0.0, %v3665
    %v3667 = vpop.f32.mrf.mxu0
    %v3668 = vpop.f32.mrf.mxu0
    %v3669 = vadd.f32 0.0, %v3668
    %v3670 = vpop.f32.mrf.mxu0
    %3671 = vmatprep.mubr.bf16.mxu0 0
    %3672 = vmatmul.mubr.bf16.gmra.mxu0 %v3623
    %v3673 = vpop.f32.mrf.mxu0
    %v3674 = vadd.f32 0.0, %v3673
    %v3675 = vpop.f32.mrf.mxu0
    %v3676 = vpop.f32.mrf.mxu0
    %v3677 = vadd.f32 0.0, %v3676
    %v3678 = vpop.f32.mrf.mxu0
    %3679 = vmatprep.mubr.bf16.mxu0 0
    %3680 = vmatmul.mubr.bf16.gmra.mxu0 %v3626
    %v3681 = vpop.f32.mrf.mxu0
    %v3682 = vadd.f32 0.0, %v3681
    %v3683 = vpop.f32.mrf.mxu0
    %v3684 = vpop.f32.mrf.mxu0
    %v3685 = vadd.f32 0.0, %v3684
    %v3686 = vpop.f32.mrf.mxu0
    %3687 = vmatprep.mubr.bf16.mxu0 0
    %3688 = vmatmul.mubr.bf16.gmra.mxu0 %v3629
    %v3689 = vpop.f32.mrf.mxu0
    %v3690 = vadd.f32 0.0, %v3689
    %v3691 = vpop.f32.mrf.mxu0
    %v3692 = vpop.f32.mrf.mxu0
    %v3693 = vadd.f32 0.0, %v3692
    %v3694 = vpop.f32.mrf.mxu0
    %3695 = vdwg.mxu0
    %v3696 = vadd.f32 %v3557, %v3666
    %v3697 = vadd.f32 %v3558, %v3669
    %v3698 = vadd.f32 %v3559, %v3674
    %v3699 = vadd.f32 %v3560, %v3677
    %v3700 = vadd.f32 %v3561, %v3682
    %v3701 = vadd.f32 %v3562, %v3685
    %v3702 = vadd.f32 %v3563, %v3690
    %v3703 = vadd.f32 %v3564, %v3693
    %s3704 = scalar_lea.vmem %s5, 192
    %v3705 = vld [vmem:[%s3704] sm:$0xf]
    %v3706 = vld [vmem:[%s3704 + $0x4] sm:$0xf]
    %v3707 = vld [vmem:[%s3704 + $0x8] sm:$0xf]
    %v3708 = vld [vmem:[%s3704 + $0xc] sm:$0xf]
    %v3709 = vld [vmem:[%s3704 + $0x10] sm:$0xf]
    %v3710 = vld [vmem:[%s3704 + $0x14] sm:$0xf]
    %v3711 = vld [vmem:[%s3704 + $0x18] sm:$0xf]
    %v3712 = vld [vmem:[%s3704 + $0x1c] sm:$0xf]
    %v3721 = vunpack.c.l.b16 %v3705
    %v3722 = vunpack.c.l.b16 %v3706
    %v3723 = vunpack.c.l.b16 %v3707
    %v3724 = vunpack.c.l.b16 %v3708
    %v3725 = vunpack.c.l.b16 %v3709
    %v3726 = vunpack.c.l.b16 %v3710
    %v3727 = vunpack.c.l.b16 %v3711
    %v3728 = vunpack.c.l.b16 %v3712
    %v3729 = vpack.c.b16 %v3722, %v3721
    %v3730 = vpack.c.b16 %v3724, %v3723
    %v3731 = vpack.c.b16 %v3726, %v3725
    %v3732 = vpack.c.b16 %v3728, %v3727
    %3733 = vrot.lane.b32.xlu0 %v2920, 88
    %v3734 = vpop.permute.xlu0 %3733
    %3735 = vrot.lane.b32.xlu0 %v2921, 88
    %v3736 = vpop.permute.xlu0 %3735
    %3737 = vrot.lane.b32.xlu0 %v2922, 88
    %v3738 = vpop.permute.xlu0 %3737
    %3739 = vrot.lane.b32.xlu0 %v2923, 88
    %v3740 = vpop.permute.xlu0 %3739
    %3741 = vrot.lane.b32.xlu0 %v2924, 88
    %v3742 = vpop.permute.xlu0 %3741
    %3743 = vrot.lane.b32.xlu0 %v2925, 88
    %v3744 = vpop.permute.xlu0 %3743
    %3745 = vrot.lane.b32.xlu0 %v2926, 88
    %v3746 = vpop.permute.xlu0 %3745
    %3747 = vrot.lane.b32.xlu0 %v2927, 88
    %v3748 = vpop.permute.xlu0 %3747
    %vm3749 = vcmask 719872
    %v3750 = vsel %vm3749, %v3734, %v3736
    %v3751 = vsel %vm3749, %v3738, %v3740
    %v3752 = vsel %vm3749, %v3742, %v3744
    %v3753 = vsel %vm3749, %v3746, %v3748
    %v3759 = vsel %vm126, %v3729, 0
    %v3762 = vsel %vm126, %v3730, 0
    %v3765 = vsel %vm126, %v3731, 0
    %v3768 = vsel %vm126, %v3732, 0
    %3770 = vmatprep.subr.bf16.mxu0 0
    %3771 = vmatpush1.bf16.msra.mxu0 0
    %3772 = vmatprep.subr.bf16.mxu0 0
    %3773 = vmatpush1.bf16.msra.mxu0 0
    %3774 = vmatprep.subr.bf16.mxu0 0
    %3775 = vmatpush1.bf16.msra.mxu0 0
    %3776 = vmatprep.subr.bf16.mxu0 0
    %3777 = vmatpush1.bf16.msra.mxu0 0
    %3778 = vmatprep.subr.bf16.mxu0 0
    %3779 = vmatpush1.bf16.msra.mxu0 %v3753
    %3780 = vmatprep.subr.bf16.mxu0 0
    %3781 = vmatpush1.bf16.msra.mxu0 %v3752
    %3782 = vmatprep.subr.bf16.mxu0 0
    %3783 = vmatpush1.bf16.msra.mxu0 %v3751
    %3784 = vmatprep.subr.bf16.mxu0 0
    %3785 = vmatpush1.bf16.msra.mxu0 %v3750
    %3786 = vmatprep.subr.bf16.mxu0 0
    %3787 = vmatpush2.bf16.msra.mxu0 0
    %3788 = vmatprep.subr.bf16.mxu0 0
    %3789 = vmatpush2.bf16.msra.mxu0 0
    %3790 = vmatprep.subr.bf16.mxu0 0
    %3791 = vmatpush2.bf16.msra.mxu0 0
    %3792 = vmatprep.subr.bf16.mxu0 0
    %3793 = vmatpush2.bf16.msra.mxu0 0
    %3794 = vmatprep.subr.bf16.mxu0 0
    %3795 = vmatpush2.bf16.msra.mxu0 0
    %3796 = vmatprep.subr.bf16.mxu0 0
    %3797 = vmatpush2.bf16.msra.mxu0 0
    %3798 = vmatprep.subr.bf16.mxu0 0
    %3799 = vmatpush2.bf16.msra.mxu0 0
    %3800 = vmatprep.subr.bf16.mxu0 0
    %3801 = vmatpush2.bf16.msra.mxu0 0
    %3802 = vmatprep.mubr.bf16.mxu0 0
    %3803 = vmatmul.mubr.bf16.gmra.mxu0 %v3759
    %v3804 = vpop.f32.mrf.mxu0
    %v3805 = vadd.f32 0.0, %v3804
    %v3806 = vpop.f32.mrf.mxu0
    %v3807 = vpop.f32.mrf.mxu0
    %v3808 = vadd.f32 0.0, %v3807
    %v3809 = vpop.f32.mrf.mxu0
    %3810 = vmatprep.mubr.bf16.mxu0 0
    %3811 = vmatmul.mubr.bf16.gmra.mxu0 %v3762
    %v3812 = vpop.f32.mrf.mxu0
    %v3813 = vadd.f32 0.0, %v3812
    %v3814 = vpop.f32.mrf.mxu0
    %v3815 = vpop.f32.mrf.mxu0
    %v3816 = vadd.f32 0.0, %v3815
    %v3817 = vpop.f32.mrf.mxu0
    %3818 = vmatprep.mubr.bf16.mxu0 0
    %3819 = vmatmul.mubr.bf16.gmra.mxu0 %v3765
    %v3820 = vpop.f32.mrf.mxu0
    %v3821 = vadd.f32 0.0, %v3820
    %v3822 = vpop.f32.mrf.mxu0
    %v3823 = vpop.f32.mrf.mxu0
    %v3824 = vadd.f32 0.0, %v3823
    %v3825 = vpop.f32.mrf.mxu0
    %3826 = vmatprep.mubr.bf16.mxu0 0
    %3827 = vmatmul.mubr.bf16.gmra.mxu0 %v3768
    %v3828 = vpop.f32.mrf.mxu0
    %v3829 = vadd.f32 0.0, %v3828
    %v3830 = vpop.f32.mrf.mxu0
    %v3831 = vpop.f32.mrf.mxu0
    %v3832 = vadd.f32 0.0, %v3831
    %v3833 = vpop.f32.mrf.mxu0
    %3834 = vdwg.mxu0
    %v3835 = vadd.f32 %v3696, %v3805
    %v3836 = vadd.f32 %v3697, %v3808
    %v3837 = vadd.f32 %v3698, %v3813
    %v3838 = vadd.f32 %v3699, %v3816
    %v3839 = vadd.f32 %v3700, %v3821
    %v3840 = vadd.f32 %v3701, %v3824
    %v3841 = vadd.f32 %v3702, %v3829
    %v3842 = vadd.f32 %v3703, %v3832
    %s3843 = scalar_lea.vmem %s5, 224
    %v3844 = vld [vmem:[%s3843] sm:$0xf]
    %v3845 = vld [vmem:[%s3843 + $0x4] sm:$0xf]
    %v3846 = vld [vmem:[%s3843 + $0x8] sm:$0xf]
    %v3847 = vld [vmem:[%s3843 + $0xc] sm:$0xf]
    %v3848 = vld [vmem:[%s3843 + $0x10] sm:$0xf]
    %v3849 = vld [vmem:[%s3843 + $0x14] sm:$0xf]
    %v3850 = vld [vmem:[%s3843 + $0x18] sm:$0xf]
    %v3851 = vld [vmem:[%s3843 + $0x1c] sm:$0xf]
    %v3860 = vunpack.c.l.b16 %v3844
    %v3861 = vunpack.c.l.b16 %v3845
    %v3862 = vunpack.c.l.b16 %v3846
    %v3863 = vunpack.c.l.b16 %v3847
    %v3864 = vunpack.c.l.b16 %v3848
    %v3865 = vunpack.c.l.b16 %v3849
    %v3866 = vunpack.c.l.b16 %v3850
    %v3867 = vunpack.c.l.b16 %v3851
    %v3868 = vpack.c.b16 %v3861, %v3860
    %v3869 = vpack.c.b16 %v3863, %v3862
    %v3870 = vpack.c.b16 %v3865, %v3864
    %v3871 = vpack.c.b16 %v3867, %v3866
    %3872 = vrot.lane.b32.xlu0 %v2920, 87
    %v3873 = vpop.permute.xlu0 %3872
    %3874 = vrot.lane.b32.xlu0 %v2921, 87
    %v3875 = vpop.permute.xlu0 %3874
    %3876 = vrot.lane.b32.xlu0 %v2922, 87
    %v3877 = vpop.permute.xlu0 %3876
    %3878 = vrot.lane.b32.xlu0 %v2923, 87
    %v3879 = vpop.permute.xlu0 %3878
    %3880 = vrot.lane.b32.xlu0 %v2924, 87
    %v3881 = vpop.permute.xlu0 %3880
    %3882 = vrot.lane.b32.xlu0 %v2925, 87
    %v3883 = vpop.permute.xlu0 %3882
    %3884 = vrot.lane.b32.xlu0 %v2926, 87
    %v3885 = vpop.permute.xlu0 %3884
    %3886 = vrot.lane.b32.xlu0 %v2927, 87
    %v3887 = vpop.permute.xlu0 %3886
    %vm3888 = vcmask 711680
    %v3889 = vsel %vm3888, %v3873, %v3875
    %v3890 = vsel %vm3888, %v3877, %v3879
    %v3891 = vsel %vm3888, %v3881, %v3883
    %v3892 = vsel %vm3888, %v3885, %v3887
    %v3898 = vsel %vm126, %v3868, 0
    %v3901 = vsel %vm126, %v3869, 0
    %v3904 = vsel %vm126, %v3870, 0
    %v3907 = vsel %vm126, %v3871, 0
    %3909 = vmatprep.subr.bf16.mxu0 0
    %3910 = vmatpush1.bf16.msra.mxu0 0
    %3911 = vmatprep.subr.bf16.mxu0 0
    %3912 = vmatpush1.bf16.msra.mxu0 0
    %3913 = vmatprep.subr.bf16.mxu0 0
    %3914 = vmatpush1.bf16.msra.mxu0 0
    %3915 = vmatprep.subr.bf16.mxu0 0
    %3916 = vmatpush1.bf16.msra.mxu0 0
    %3917 = vmatprep.subr.bf16.mxu0 0
    %3918 = vmatpush1.bf16.msra.mxu0 %v3892
    %3919 = vmatprep.subr.bf16.mxu0 0
    %3920 = vmatpush1.bf16.msra.mxu0 %v3891
    %3921 = vmatprep.subr.bf16.mxu0 0
    %3922 = vmatpush1.bf16.msra.mxu0 %v3890
    %3923 = vmatprep.subr.bf16.mxu0 0
    %3924 = vmatpush1.bf16.msra.mxu0 %v3889
    %3925 = vmatprep.subr.bf16.mxu0 0
    %3926 = vmatpush2.bf16.msra.mxu0 0
    %3927 = vmatprep.subr.bf16.mxu0 0
    %3928 = vmatpush2.bf16.msra.mxu0 0
    %3929 = vmatprep.subr.bf16.mxu0 0
    %3930 = vmatpush2.bf16.msra.mxu0 0
    %3931 = vmatprep.subr.bf16.mxu0 0
    %3932 = vmatpush2.bf16.msra.mxu0 0
    %3933 = vmatprep.subr.bf16.mxu0 0
    %3934 = vmatpush2.bf16.msra.mxu0 0
    %3935 = vmatprep.subr.bf16.mxu0 0
    %3936 = vmatpush2.bf16.msra.mxu0 0
    %3937 = vmatprep.subr.bf16.mxu0 0
    %3938 = vmatpush2.bf16.msra.mxu0 0
    %3939 = vmatprep.subr.bf16.mxu0 0
    %3940 = vmatpush2.bf16.msra.mxu0 0
    %3941 = vmatprep.mubr.bf16.mxu0 0
    %3942 = vmatmul.mubr.bf16.gmra.mxu0 %v3898
    %v3943 = vpop.f32.mrf.mxu0
    %v3944 = vadd.f32 0.0, %v3943
    %v3945 = vpop.f32.mrf.mxu0
    %v3946 = vpop.f32.mrf.mxu0
    %v3947 = vadd.f32 0.0, %v3946
    %v3948 = vpop.f32.mrf.mxu0
    %3949 = vmatprep.mubr.bf16.mxu0 0
    %3950 = vmatmul.mubr.bf16.gmra.mxu0 %v3901
    %v3951 = vpop.f32.mrf.mxu0
    %v3952 = vadd.f32 0.0, %v3951
    %v3953 = vpop.f32.mrf.mxu0
    %v3954 = vpop.f32.mrf.mxu0
    %v3955 = vadd.f32 0.0, %v3954
    %v3956 = vpop.f32.mrf.mxu0
    %3957 = vmatprep.mubr.bf16.mxu0 0
    %3958 = vmatmul.mubr.bf16.gmra.mxu0 %v3904
    %v3959 = vpop.f32.mrf.mxu0
    %v3960 = vadd.f32 0.0, %v3959
    %v3961 = vpop.f32.mrf.mxu0
    %v3962 = vpop.f32.mrf.mxu0
    %v3963 = vadd.f32 0.0, %v3962
    %v3964 = vpop.f32.mrf.mxu0
    %3965 = vmatprep.mubr.bf16.mxu0 0
    %3966 = vmatmul.mubr.bf16.gmra.mxu0 %v3907
    %v3967 = vpop.f32.mrf.mxu0
    %v3968 = vadd.f32 0.0, %v3967
    %v3969 = vpop.f32.mrf.mxu0
    %v3970 = vpop.f32.mrf.mxu0
    %v3971 = vadd.f32 0.0, %v3970
    %v3972 = vpop.f32.mrf.mxu0
    %3973 = vdwg.mxu0
    %v3974 = vadd.f32 %v3835, %v3944
    %v3975 = vadd.f32 %v3836, %v3947
    %v3976 = vadd.f32 %v3837, %v3952
    %v3977 = vadd.f32 %v3838, %v3955
    %v3978 = vadd.f32 %v3839, %v3960
    %v3979 = vadd.f32 %v3840, %v3963
    %v3980 = vadd.f32 %v3841, %v3968
    %v3981 = vadd.f32 %v3842, %v3971
    %s3982 = scalar_lea.vmem %s5, 256
    %v3983 = vld [vmem:[%s3982] sm:$0xf]
    %v3984 = vld [vmem:[%s3982 + $0x4] sm:$0xf]
    %v3985 = vld [vmem:[%s3982 + $0x8] sm:$0xf]
    %v3986 = vld [vmem:[%s3982 + $0xc] sm:$0xf]
    %v3987 = vld [vmem:[%s3982 + $0x10] sm:$0xf]
    %v3988 = vld [vmem:[%s3982 + $0x14] sm:$0xf]
    %v3989 = vld [vmem:[%s3982 + $0x18] sm:$0xf]
    %v3990 = vld [vmem:[%s3982 + $0x1c] sm:$0xf]
    %v3999 = vunpack.c.l.b16 %v3983
    %v4000 = vunpack.c.l.b16 %v3984
    %v4001 = vunpack.c.l.b16 %v3985
    %v4002 = vunpack.c.l.b16 %v3986
    %v4003 = vunpack.c.l.b16 %v3987
    %v4004 = vunpack.c.l.b16 %v3988
    %v4005 = vunpack.c.l.b16 %v3989
    %v4006 = vunpack.c.l.b16 %v3990
    %v4007 = vpack.c.b16 %v4000, %v3999
    %v4008 = vpack.c.b16 %v4002, %v4001
    %v4009 = vpack.c.b16 %v4004, %v4003
    %v4010 = vpack.c.b16 %v4006, %v4005
    %4011 = vrot.lane.b32.xlu0 %v2920, 86
    %v4012 = vpop.permute.xlu0 %4011
    %4013 = vrot.lane.b32.xlu0 %v2921, 86
    %v4014 = vpop.permute.xlu0 %4013
    %4015 = vrot.lane.b32.xlu0 %v2922, 86
    %v4016 = vpop.permute.xlu0 %4015
    %4017 = vrot.lane.b32.xlu0 %v2923, 86
    %v4018 = vpop.permute.xlu0 %4017
    %4019 = vrot.lane.b32.xlu0 %v2924, 86
    %v4020 = vpop.permute.xlu0 %4019
    %4021 = vrot.lane.b32.xlu0 %v2925, 86
    %v4022 = vpop.permute.xlu0 %4021
    %4023 = vrot.lane.b32.xlu0 %v2926, 86
    %v4024 = vpop.permute.xlu0 %4023
    %4025 = vrot.lane.b32.xlu0 %v2927, 86
    %v4026 = vpop.permute.xlu0 %4025
    %vm4027 = vcmask 703488
    %v4028 = vsel %vm4027, %v4012, %v4014
    %v4029 = vsel %vm4027, %v4016, %v4018
    %v4030 = vsel %vm4027, %v4020, %v4022
    %v4031 = vsel %vm4027, %v4024, %v4026
    %v4037 = vsel %vm126, %v4007, 0
    %v4040 = vsel %vm126, %v4008, 0
    %v4043 = vsel %vm126, %v4009, 0
    %v4046 = vsel %vm126, %v4010, 0
    %4048 = vmatprep.subr.bf16.mxu0 0
    %4049 = vmatpush1.bf16.msra.mxu0 0
    %4050 = vmatprep.subr.bf16.mxu0 0
    %4051 = vmatpush1.bf16.msra.mxu0 0
    %4052 = vmatprep.subr.bf16.mxu0 0
    %4053 = vmatpush1.bf16.msra.mxu0 0
    %4054 = vmatprep.subr.bf16.mxu0 0
    %4055 = vmatpush1.bf16.msra.mxu0 0
    %4056 = vmatprep.subr.bf16.mxu0 0
    %4057 = vmatpush1.bf16.msra.mxu0 %v4031
    %4058 = vmatprep.subr.bf16.mxu0 0
    %4059 = vmatpush1.bf16.msra.mxu0 %v4030
    %4060 = vmatprep.subr.bf16.mxu0 0
    %4061 = vmatpush1.bf16.msra.mxu0 %v4029
    %4062 = vmatprep.subr.bf16.mxu0 0
    %4063 = vmatpush1.bf16.msra.mxu0 %v4028
    %4064 = vmatprep.subr.bf16.mxu0 0
    %4065 = vmatpush2.bf16.msra.mxu0 0
    %4066 = vmatprep.subr.bf16.mxu0 0
    %4067 = vmatpush2.bf16.msra.mxu0 0
    %4068 = vmatprep.subr.bf16.mxu0 0
    %4069 = vmatpush2.bf16.msra.mxu0 0
    %4070 = vmatprep.subr.bf16.mxu0 0
    %4071 = vmatpush2.bf16.msra.mxu0 0
    %4072 = vmatprep.subr.bf16.mxu0 0
    %4073 = vmatpush2.bf16.msra.mxu0 0
    %4074 = vmatprep.subr.bf16.mxu0 0
    %4075 = vmatpush2.bf16.msra.mxu0 0
    %4076 = vmatprep.subr.bf16.mxu0 0
    %4077 = vmatpush2.bf16.msra.mxu0 0
    %4078 = vmatprep.subr.bf16.mxu0 0
    %4079 = vmatpush2.bf16.msra.mxu0 0
    %4080 = vmatprep.mubr.bf16.mxu0 0
    %4081 = vmatmul.mubr.bf16.gmra.mxu0 %v4037
    %v4082 = vpop.f32.mrf.mxu0
    %v4083 = vadd.f32 0.0, %v4082
    %v4084 = vpop.f32.mrf.mxu0
    %v4085 = vpop.f32.mrf.mxu0
    %v4086 = vadd.f32 0.0, %v4085
    %v4087 = vpop.f32.mrf.mxu0
    %4088 = vmatprep.mubr.bf16.mxu0 0
    %4089 = vmatmul.mubr.bf16.gmra.mxu0 %v4040
    %v4090 = vpop.f32.mrf.mxu0
    %v4091 = vadd.f32 0.0, %v4090
    %v4092 = vpop.f32.mrf.mxu0
    %v4093 = vpop.f32.mrf.mxu0
    %v4094 = vadd.f32 0.0, %v4093
    %v4095 = vpop.f32.mrf.mxu0
    %4096 = vmatprep.mubr.bf16.mxu0 0
    %4097 = vmatmul.mubr.bf16.gmra.mxu0 %v4043
    %v4098 = vpop.f32.mrf.mxu0
    %v4099 = vadd.f32 0.0, %v4098
    %v4100 = vpop.f32.mrf.mxu0
    %v4101 = vpop.f32.mrf.mxu0
    %v4102 = vadd.f32 0.0, %v4101
    %v4103 = vpop.f32.mrf.mxu0
    %4104 = vmatprep.mubr.bf16.mxu0 0
    %4105 = vmatmul.mubr.bf16.gmra.mxu0 %v4046
    %v4106 = vpop.f32.mrf.mxu0
    %v4107 = vadd.f32 0.0, %v4106
    %v4108 = vpop.f32.mrf.mxu0
    %v4109 = vpop.f32.mrf.mxu0
    %v4110 = vadd.f32 0.0, %v4109
    %v4111 = vpop.f32.mrf.mxu0
    %4112 = vdwg.mxu0
    %v4113 = vadd.f32 %v3974, %v4083
    %v4114 = vadd.f32 %v3975, %v4086
    %v4115 = vadd.f32 %v3976, %v4091
    %v4116 = vadd.f32 %v3977, %v4094
    %v4117 = vadd.f32 %v3978, %v4099
    %v4118 = vadd.f32 %v3979, %v4102
    %v4119 = vadd.f32 %v3980, %v4107
    %v4120 = vadd.f32 %v3981, %v4110
    %v4121 = vld [vmem:[%s6] sm:$0xff]
    %v4122 = vld [vmem:[%s6 + $0x8] sm:$0xff]
    %v4123 = vld [vmem:[%s6 + $0x10] sm:$0xff]
    %v4124 = vld [vmem:[%s6 + $0x18] sm:$0xff]
    %v4125 = vld [vmem:[%s6 + $0x20] sm:$0xff]
    %v4126 = vld [vmem:[%s6 + $0x28] sm:$0xff]
    %v4127 = vld [vmem:[%s6 + $0x30] sm:$0xff]
    %v4128 = vld [vmem:[%s6 + $0x38] sm:$0xff]
    %4130 = vset.pattern.permute.xlu0 0
    %4131 = vperm.xlu0 %4130, %v4121
    %v4132 = vpop.permute.xlu0 %4131
    %4135 = vset.pattern.permute.xlu0 0
    %4136 = vperm.xlu0 %4135, %v4122
    %v4137 = vpop.permute.xlu0 %4136
    %4140 = vset.pattern.permute.xlu0 0
    %4141 = vperm.xlu0 %4140, %v4123
    %v4142 = vpop.permute.xlu0 %4141
    %4145 = vset.pattern.permute.xlu0 0
    %4146 = vperm.xlu0 %4145, %v4124
    %v4147 = vpop.permute.xlu0 %4146
    %4150 = vset.pattern.permute.xlu0 0
    %4151 = vperm.xlu0 %4150, %v4125
    %v4152 = vpop.permute.xlu0 %4151
    %4155 = vset.pattern.permute.xlu0 0
    %4156 = vperm.xlu0 %4155, %v4126
    %v4157 = vpop.permute.xlu0 %4156
    %4160 = vset.pattern.permute.xlu0 0
    %4161 = vperm.xlu0 %4160, %v4127
    %v4162 = vpop.permute.xlu0 %4161
    %4165 = vset.pattern.permute.xlu0 0
    %4166 = vperm.xlu0 %4165, %v4128
    %v4167 = vpop.permute.xlu0 %4166
    %v4169 = vadd.f32 %v4113, %v4132
    %v4170 = vadd.f32 %v4114, %v4137
    %v4171 = vadd.f32 %v4115, %v4142
    %v4172 = vadd.f32 %v4116, %v4147
    %v4173 = vadd.f32 %v4117, %v4152
    %v4174 = vadd.f32 %v4118, %v4157
    %v4175 = vadd.f32 %v4119, %v4162
    %v4176 = vadd.f32 %v4120, %v4167
    %v4177 = vmax.f32 %v4169, 0.0
    %v4178 = vmax.f32 %v4170, 0.0
    %v4179 = vmax.f32 %v4171, 0.0
    %v4180 = vmax.f32 %v4172, 0.0
    %v4181 = vmax.f32 %v4173, 0.0
    %v4182 = vmax.f32 %v4174, 0.0
    %v4183 = vmax.f32 %v4175, 0.0
    %v4184 = vmax.f32 %v4176, 0.0
    %v4185 = vpack.c.bf16 %v4178, %v4177
    %v4186 = vpack.c.bf16 %v4180, %v4179
    %v4187 = vpack.c.bf16 %v4182, %v4181
    %v4188 = vpack.c.bf16 %v4184, %v4183
    %4193 = vrot.lane.b32.xlu0 %v4185, 115
    %v4194 = vpop.permute.xlu0 %4193
    %4195 = vrot.lane.b32.xlu0 %v4186, 115
    %v4196 = vpop.permute.xlu0 %4195
    %4197 = vrot.lane.b32.xlu0 %v4187, 115
    %v4198 = vpop.permute.xlu0 %4197
    %4199 = vrot.lane.b32.xlu0 %v4188, 115
    %v4200 = vpop.permute.xlu0 %4199
    %4201 = vrot.lane.b32.xlu0 %v4185, 102
    %v4202 = vpop.permute.xlu0 %4201
    %4203 = vrot.lane.b32.xlu0 %v4186, 102
    %v4204 = vpop.permute.xlu0 %4203
    %4205 = vrot.lane.b32.xlu0 %v4187, 102
    %v4206 = vpop.permute.xlu0 %4205
    %4207 = vrot.lane.b32.xlu0 %v4188, 102
    %v4208 = vpop.permute.xlu0 %4207
    %4209 = vrot.lane.b32.xlu0 %v4185, 89
    %v4210 = vpop.permute.xlu0 %4209
    %4211 = vrot.lane.b32.xlu0 %v4186, 89
    %v4212 = vpop.permute.xlu0 %4211
    %4213 = vrot.lane.b32.xlu0 %v4187, 89
    %v4214 = vpop.permute.xlu0 %4213
    %4215 = vrot.lane.b32.xlu0 %v4188, 89
    %v4216 = vpop.permute.xlu0 %4215
    %4217 = vrot.lane.b32.xlu0 %v4185, 76
    %v4218 = vpop.permute.xlu0 %4217
    %4219 = vrot.lane.b32.xlu0 %v4186, 76
    %v4220 = vpop.permute.xlu0 %4219
    %4221 = vrot.lane.b32.xlu0 %v4187, 76
    %v4222 = vpop.permute.xlu0 %4221
    %4223 = vrot.lane.b32.xlu0 %v4188, 76
    %v4224 = vpop.permute.xlu0 %4223
    %4225 = vrot.lane.b32.xlu0 %v4185, 63
    %v4226 = vpop.permute.xlu0 %4225
    %4227 = vrot.lane.b32.xlu0 %v4186, 63
    %v4228 = vpop.permute.xlu0 %4227
    %4229 = vrot.lane.b32.xlu0 %v4187, 63
    %v4230 = vpop.permute.xlu0 %4229
    %4231 = vrot.lane.b32.xlu0 %v4188, 63
    %v4232 = vpop.permute.xlu0 %4231
    %4233 = vrot.lane.b32.xlu0 %v4185, 50
    %v4234 = vpop.permute.xlu0 %4233
    %4235 = vrot.lane.b32.xlu0 %v4186, 50
    %v4236 = vpop.permute.xlu0 %4235
    %4237 = vrot.lane.b32.xlu0 %v4187, 50
    %v4238 = vpop.permute.xlu0 %4237
    %4239 = vrot.lane.b32.xlu0 %v4188, 50
    %v4240 = vpop.permute.xlu0 %4239
    %vm4241 = vcmask 56320
    %v4244 = vsel %vm4241, %v4185, %v4194
    %v4247 = vsel %vm4241, %v4186, %v4196
    %v4250 = vsel %vm4241, %v4187, %v4198
    %v4253 = vsel %vm4241, %v4188, %v4200
    %vm4254 = vcmask 113664
    %v4256 = vsel %vm4254, %v4244, %v4202
    %v4258 = vsel %vm4254, %v4247, %v4204
    %v4260 = vsel %vm4254, %v4250, %v4206
    %v4262 = vsel %vm4254, %v4253, %v4208
    %vm4263 = vcmask 171008
    %v4265 = vsel %vm4263, %v4256, %v4210
    %v4267 = vsel %vm4263, %v4258, %v4212
    %v4269 = vsel %vm4263, %v4260, %v4214
    %v4271 = vsel %vm4263, %v4262, %v4216
    %vm4272 = vcmask 228352
    %v4274 = vsel %vm4272, %v4265, %v4218
    %v4276 = vsel %vm4272, %v4267, %v4220
    %v4278 = vsel %vm4272, %v4269, %v4222
    %v4280 = vsel %vm4272, %v4271, %v4224
    %vm4281 = vcmask 285696
    %v4283 = vsel %vm4281, %v4274, %v4226
    %v4285 = vsel %vm4281, %v4276, %v4228
    %v4287 = vsel %vm4281, %v4278, %v4230
    %v4289 = vsel %vm4281, %v4280, %v4232
    %vm4290 = vcmask 343040
    %v4292 = vsel %vm4290, %v4283, %v4234
    %v4294 = vsel %vm4290, %v4285, %v4236
    %v4296 = vsel %vm4290, %v4287, %v4238
    %v4298 = vsel %vm4290, %v4289, %v4240
    %v4299 = vshrl.u32 %v4292, 16
    %4301 = vrot.lane.b32.xlu0 %v4299, 49
    %v4302 = vpop.permute.xlu0 %4301
    %v4304 = vrot.slane %v4292, 1
    %4305 = vrot.lane.b32.xlu0 %v4304, 98
    %v4306 = vpop.permute.xlu0 %4305
    %v4307 = vrot.slane %v4299, 1
    %4308 = vrot.lane.b32.xlu0 %v4307, 19
    %v4309 = vpop.permute.xlu0 %4308
    %v4310 = vrot.slane %v4292, 2
    %4311 = vrot.lane.b32.xlu0 %v4310, 68
    %v4312 = vpop.permute.xlu0 %4311
    %v4313 = vrot.slane %v4299, 2
    %4314 = vrot.lane.b32.xlu0 %v4313, 117
    %v4315 = vpop.permute.xlu0 %4314
    %v4316 = vrot.slane %v4292, 3
    %4317 = vrot.lane.b32.xlu0 %v4316, 38
    %v4318 = vpop.permute.xlu0 %4317
    %v4319 = vrot.slane %v4299, 3
    %4320 = vrot.lane.b32.xlu0 %v4319, 87
    %v4321 = vpop.permute.xlu0 %4320
    %v4322 = vrot.slane %v4292, 4
    %4323 = vrot.lane.b32.xlu0 %v4322, 8
    %v4324 = vpop.permute.xlu0 %4323
    %v4325 = vrot.slane %v4299, 4
    %4326 = vrot.lane.b32.xlu0 %v4325, 57
    %v4327 = vpop.permute.xlu0 %4326
    %v4328 = vrot.slane %v4292, 5
    %4329 = vrot.lane.b32.xlu0 %v4328, 106
    %v4330 = vpop.permute.xlu0 %4329
    %v4331 = vrot.slane %v4299, 5
    %4332 = vrot.lane.b32.xlu0 %v4331, 27
    %v4333 = vpop.permute.xlu0 %4332
    %v4334 = vrot.slane %v4292, 6
    %4335 = vrot.lane.b32.xlu0 %v4334, 76
    %v4336 = vpop.permute.xlu0 %4335
    %v4337 = vrot.slane %v4299, 6
    %4338 = vrot.lane.b32.xlu0 %v4337, 125
    %v4339 = vpop.permute.xlu0 %4338
    %v4340 = vrot.slane %v4292, 7
    %4341 = vrot.lane.b32.xlu0 %v4340, 46
    %v4342 = vpop.permute.xlu0 %4341
    %v4343 = vrot.slane %v4299, 7
    %4344 = vrot.lane.b32.xlu0 %v4343, 95
    %v4345 = vpop.permute.xlu0 %4344
    %vm4346 = vcmask 400384
    %v4348 = vsel %vm4346, %v4292, %v4302
    %vm4349 = vcmask 801792
    %v4351 = vsel %vm4349, %v4348, %v4306
    %vm4353 = vcmask 154624
    %v4355 = vsel %vm4353, %v4306, %v4309
    %vm4356 = vcmask 556032
    %v4358 = vsel %vm4356, %v4355, %v4312
    %vm4359 = vcmask 957440
    %v4361 = vsel %vm4359, %v4358, %v4315
    %vm4363 = vcmask 310272
    %v4365 = vsel %vm4363, %v4315, %v4318
    %vm4366 = vcmask 711680
    %v4368 = vsel %vm4366, %v4365, %v4321
    %vm4370 = vcmask 64512
    %v4372 = vsel %vm4370, %v4321, %v4324
    %vm4373 = vcmask 465920
    %v4375 = vsel %vm4373, %v4372, %v4327
    %vm4376 = vcmask 867328
    %v4378 = vsel %vm4376, %v4375, %v4330
    %vm4380 = vcmask 220160
    %v4382 = vsel %vm4380, %v4330, %v4333
    %vm4383 = vcmask 621568
    %v4385 = vsel %vm4383, %v4382, %v4336
    %vm4386 = vcmask 1022976
    %v4388 = vsel %vm4386, %v4385, %v4339
    %vm4390 = vcmask 375808
    %v4392 = vsel %vm4390, %v4339, %v4342
    %vm4393 = vcmask 777216
    %v4395 = vsel %vm4393, %v4392, %v4345
    %v4397 = vshrl.u32 %v4294, 16
    %4399 = vrot.lane.b32.xlu0 %v4397, 49
    %v4400 = vpop.permute.xlu0 %4399
    %v4402 = vrot.slane %v4294, 1
    %4403 = vrot.lane.b32.xlu0 %v4402, 98
    %v4404 = vpop.permute.xlu0 %4403
    %v4405 = vrot.slane %v4397, 1
    %4406 = vrot.lane.b32.xlu0 %v4405, 19
    %v4407 = vpop.permute.xlu0 %4406
    %v4408 = vrot.slane %v4294, 2
    %4409 = vrot.lane.b32.xlu0 %v4408, 68
    %v4410 = vpop.permute.xlu0 %4409
    %v4411 = vrot.slane %v4397, 2
    %4412 = vrot.lane.b32.xlu0 %v4411, 117
    %v4413 = vpop.permute.xlu0 %4412
    %v4414 = vrot.slane %v4294, 3
    %4415 = vrot.lane.b32.xlu0 %v4414, 38
    %v4416 = vpop.permute.xlu0 %4415
    %v4417 = vrot.slane %v4397, 3
    %4418 = vrot.lane.b32.xlu0 %v4417, 87
    %v4419 = vpop.permute.xlu0 %4418
    %v4420 = vrot.slane %v4294, 4
    %4421 = vrot.lane.b32.xlu0 %v4420, 8
    %v4422 = vpop.permute.xlu0 %4421
    %v4423 = vrot.slane %v4397, 4
    %4424 = vrot.lane.b32.xlu0 %v4423, 57
    %v4425 = vpop.permute.xlu0 %4424
    %v4426 = vrot.slane %v4294, 5
    %4427 = vrot.lane.b32.xlu0 %v4426, 106
    %v4428 = vpop.permute.xlu0 %4427
    %v4429 = vrot.slane %v4397, 5
    %4430 = vrot.lane.b32.xlu0 %v4429, 27
    %v4431 = vpop.permute.xlu0 %4430
    %v4432 = vrot.slane %v4294, 6
    %4433 = vrot.lane.b32.xlu0 %v4432, 76
    %v4434 = vpop.permute.xlu0 %4433
    %v4435 = vrot.slane %v4397, 6
    %4436 = vrot.lane.b32.xlu0 %v4435, 125
    %v4437 = vpop.permute.xlu0 %4436
    %v4438 = vrot.slane %v4294, 7
    %4439 = vrot.lane.b32.xlu0 %v4438, 46
    %v4440 = vpop.permute.xlu0 %4439
    %v4441 = vrot.slane %v4397, 7
    %4442 = vrot.lane.b32.xlu0 %v4441, 95
    %v4443 = vpop.permute.xlu0 %4442
    %v4445 = vsel %vm4346, %v4294, %v4400
    %v4447 = vsel %vm4349, %v4445, %v4404
    %v4449 = vsel %vm4353, %v4404, %v4407
    %v4451 = vsel %vm4356, %v4449, %v4410
    %v4453 = vsel %vm4359, %v4451, %v4413
    %v4455 = vsel %vm4363, %v4413, %v4416
    %v4457 = vsel %vm4366, %v4455, %v4419
    %v4459 = vsel %vm4370, %v4419, %v4422
    %v4461 = vsel %vm4373, %v4459, %v4425
    %v4463 = vsel %vm4376, %v4461, %v4428
    %v4465 = vsel %vm4380, %v4428, %v4431
    %v4467 = vsel %vm4383, %v4465, %v4434
    %v4469 = vsel %vm4386, %v4467, %v4437
    %v4471 = vsel %vm4390, %v4437, %v4440
    %v4473 = vsel %vm4393, %v4471, %v4443
    %v4474 = vshrl.u32 %v4296, 16
    %4476 = vrot.lane.b32.xlu0 %v4474, 49
    %v4477 = vpop.permute.xlu0 %4476
    %v4479 = vrot.slane %v4296, 1
    %4480 = vrot.lane.b32.xlu0 %v4479, 98
    %v4481 = vpop.permute.xlu0 %4480
    %v4482 = vrot.slane %v4474, 1
    %4483 = vrot.lane.b32.xlu0 %v4482, 19
    %v4484 = vpop.permute.xlu0 %4483
    %v4485 = vrot.slane %v4296, 2
    %4486 = vrot.lane.b32.xlu0 %v4485, 68
    %v4487 = vpop.permute.xlu0 %4486
    %v4488 = vrot.slane %v4474, 2
    %4489 = vrot.lane.b32.xlu0 %v4488, 117
    %v4490 = vpop.permute.xlu0 %4489
    %v4491 = vrot.slane %v4296, 3
    %4492 = vrot.lane.b32.xlu0 %v4491, 38
    %v4493 = vpop.permute.xlu0 %4492
    %v4494 = vrot.slane %v4474, 3
    %4495 = vrot.lane.b32.xlu0 %v4494, 87
    %v4496 = vpop.permute.xlu0 %4495
    %v4497 = vrot.slane %v4296, 4
    %4498 = vrot.lane.b32.xlu0 %v4497, 8
    %v4499 = vpop.permute.xlu0 %4498
    %v4500 = vrot.slane %v4474, 4
    %4501 = vrot.lane.b32.xlu0 %v4500, 57
    %v4502 = vpop.permute.xlu0 %4501
    %v4503 = vrot.slane %v4296, 5
    %4504 = vrot.lane.b32.xlu0 %v4503, 106
    %v4505 = vpop.permute.xlu0 %4504
    %v4506 = vrot.slane %v4474, 5
    %4507 = vrot.lane.b32.xlu0 %v4506, 27
    %v4508 = vpop.permute.xlu0 %4507
    %v4509 = vrot.slane %v4296, 6
    %4510 = vrot.lane.b32.xlu0 %v4509, 76
    %v4511 = vpop.permute.xlu0 %4510
    %v4512 = vrot.slane %v4474, 6
    %4513 = vrot.lane.b32.xlu0 %v4512, 125
    %v4514 = vpop.permute.xlu0 %4513
    %v4515 = vrot.slane %v4296, 7
    %4516 = vrot.lane.b32.xlu0 %v4515, 46
    %v4517 = vpop.permute.xlu0 %4516
    %v4518 = vrot.slane %v4474, 7
    %4519 = vrot.lane.b32.xlu0 %v4518, 95
    %v4520 = vpop.permute.xlu0 %4519
    %v4522 = vsel %vm4346, %v4296, %v4477
    %v4524 = vsel %vm4349, %v4522, %v4481
    %v4526 = vsel %vm4353, %v4481, %v4484
    %v4528 = vsel %vm4356, %v4526, %v4487
    %v4530 = vsel %vm4359, %v4528, %v4490
    %v4532 = vsel %vm4363, %v4490, %v4493
    %v4534 = vsel %vm4366, %v4532, %v4496
    %v4536 = vsel %vm4370, %v4496, %v4499
    %v4538 = vsel %vm4373, %v4536, %v4502
    %v4540 = vsel %vm4376, %v4538, %v4505
    %v4542 = vsel %vm4380, %v4505, %v4508
    %v4544 = vsel %vm4383, %v4542, %v4511
    %v4546 = vsel %vm4386, %v4544, %v4514
    %v4548 = vsel %vm4390, %v4514, %v4517
    %v4550 = vsel %vm4393, %v4548, %v4520
    %v4551 = vshrl.u32 %v4298, 16
    %4553 = vrot.lane.b32.xlu0 %v4551, 49
    %v4554 = vpop.permute.xlu0 %4553
    %v4556 = vrot.slane %v4298, 1
    %4557 = vrot.lane.b32.xlu0 %v4556, 98
    %v4558 = vpop.permute.xlu0 %4557
    %v4559 = vrot.slane %v4551, 1
    %4560 = vrot.lane.b32.xlu0 %v4559, 19
    %v4561 = vpop.permute.xlu0 %4560
    %v4562 = vrot.slane %v4298, 2
    %4563 = vrot.lane.b32.xlu0 %v4562, 68
    %v4564 = vpop.permute.xlu0 %4563
    %v4565 = vrot.slane %v4551, 2
    %4566 = vrot.lane.b32.xlu0 %v4565, 117
    %v4567 = vpop.permute.xlu0 %4566
    %v4568 = vrot.slane %v4298, 3
    %4569 = vrot.lane.b32.xlu0 %v4568, 38
    %v4570 = vpop.permute.xlu0 %4569
    %v4571 = vrot.slane %v4551, 3
    %4572 = vrot.lane.b32.xlu0 %v4571, 87
    %v4573 = vpop.permute.xlu0 %4572
    %v4574 = vrot.slane %v4298, 4
    %4575 = vrot.lane.b32.xlu0 %v4574, 8
    %v4576 = vpop.permute.xlu0 %4575
    %v4577 = vrot.slane %v4551, 4
    %4578 = vrot.lane.b32.xlu0 %v4577, 57
    %v4579 = vpop.permute.xlu0 %4578
    %v4580 = vrot.slane %v4298, 5
    %4581 = vrot.lane.b32.xlu0 %v4580, 106
    %v4582 = vpop.permute.xlu0 %4581
    %v4583 = vrot.slane %v4551, 5
    %4584 = vrot.lane.b32.xlu0 %v4583, 27
    %v4585 = vpop.permute.xlu0 %4584
    %v4586 = vrot.slane %v4298, 6
    %4587 = vrot.lane.b32.xlu0 %v4586, 76
    %v4588 = vpop.permute.xlu0 %4587
    %v4589 = vrot.slane %v4551, 6
    %4590 = vrot.lane.b32.xlu0 %v4589, 125
    %v4591 = vpop.permute.xlu0 %4590
    %v4592 = vrot.slane %v4298, 7
    %4593 = vrot.lane.b32.xlu0 %v4592, 46
    %v4594 = vpop.permute.xlu0 %4593
    %v4595 = vrot.slane %v4551, 7
    %4596 = vrot.lane.b32.xlu0 %v4595, 95
    %v4597 = vpop.permute.xlu0 %4596
    %v4599 = vsel %vm4346, %v4298, %v4554
    %v4601 = vsel %vm4349, %v4599, %v4558
    %v4603 = vsel %vm4353, %v4558, %v4561
    %v4605 = vsel %vm4356, %v4603, %v4564
    %v4607 = vsel %vm4359, %v4605, %v4567
    %v4609 = vsel %vm4363, %v4567, %v4570
    %v4611 = vsel %vm4366, %v4609, %v4573
    %v4613 = vsel %vm4370, %v4573, %v4576
    %v4615 = vsel %vm4373, %v4613, %v4579
    %v4617 = vsel %vm4376, %v4615, %v4582
    %v4619 = vsel %vm4380, %v4582, %v4585
    %v4621 = vsel %vm4383, %v4619, %v4588
    %v4623 = vsel %vm4386, %v4621, %v4591
    %v4625 = vsel %vm4390, %v4591, %v4594
    %v4627 = vsel %vm4393, %v4625, %v4597
    %4634 = vrot.lane.b32.xlu0 %v4447, 16
    %v4635 = vpop.permute.xlu0 %4634
    %4636 = vrot.lane.b32.xlu0 %v4453, 16
    %v4637 = vpop.permute.xlu0 %4636
    %4638 = vrot.lane.b32.xlu0 %v4457, 16
    %v4639 = vpop.permute.xlu0 %4638
    %4640 = vrot.lane.b32.xlu0 %v4463, 16
    %v4641 = vpop.permute.xlu0 %4640
    %4642 = vrot.lane.b32.xlu0 %v4469, 16
    %v4643 = vpop.permute.xlu0 %4642
    %4644 = vrot.lane.b32.xlu0 %v4473, 16
    %v4645 = vpop.permute.xlu0 %4644
    %4646 = vrot.lane.b32.xlu0 %v4443, 16
    %v4647 = vpop.permute.xlu0 %4646
    %vm4648 = vcmask 130048
    %v4649 = vsel %vm4648, %v4635, %v4637
    %v4650 = vsel %vm4648, %v4637, %v4639
    %v4651 = vsel %vm4648, %v4639, %v4641
    %v4652 = vsel %vm4648, %v4641, %v4643
    %v4653 = vsel %vm4648, %v4643, %v4645
    %v4654 = vsel %vm4648, %v4645, %v4647
    %4666 = vrot.lane.b32.xlu0 %v4524, 32
    %v4667 = vpop.permute.xlu0 %4666
    %4668 = vrot.lane.b32.xlu0 %v4530, 32
    %v4669 = vpop.permute.xlu0 %4668
    %4670 = vrot.lane.b32.xlu0 %v4534, 32
    %v4671 = vpop.permute.xlu0 %4670
    %4672 = vrot.lane.b32.xlu0 %v4540, 32
    %v4673 = vpop.permute.xlu0 %4672
    %4674 = vrot.lane.b32.xlu0 %v4546, 32
    %v4675 = vpop.permute.xlu0 %4674
    %4676 = vrot.lane.b32.xlu0 %v4550, 32
    %v4677 = vpop.permute.xlu0 %4676
    %4678 = vrot.lane.b32.xlu0 %v4520, 32
    %v4679 = vpop.permute.xlu0 %4678
    %vm4680 = vcmask 261120
    %v4681 = vsel %vm4680, %v4667, %v4669
    %v4682 = vsel %vm4680, %v4669, %v4671
    %v4683 = vsel %vm4680, %v4671, %v4673
    %v4684 = vsel %vm4680, %v4673, %v4675
    %v4685 = vsel %vm4680, %v4675, %v4677
    %v4686 = vsel %vm4680, %v4677, %v4679
    %4698 = vrot.lane.b32.xlu0 %v4601, 48
    %v4699 = vpop.permute.xlu0 %4698
    %4700 = vrot.lane.b32.xlu0 %v4607, 48
    %v4701 = vpop.permute.xlu0 %4700
    %4702 = vrot.lane.b32.xlu0 %v4611, 48
    %v4703 = vpop.permute.xlu0 %4702
    %4704 = vrot.lane.b32.xlu0 %v4617, 48
    %v4705 = vpop.permute.xlu0 %4704
    %4706 = vrot.lane.b32.xlu0 %v4623, 48
    %v4707 = vpop.permute.xlu0 %4706
    %4708 = vrot.lane.b32.xlu0 %v4627, 48
    %v4709 = vpop.permute.xlu0 %4708
    %4710 = vrot.lane.b32.xlu0 %v4597, 48
    %v4711 = vpop.permute.xlu0 %4710
    %vm4712 = vcmask 392192
    %v4713 = vsel %vm4712, %v4699, %v4701
    %v4714 = vsel %vm4712, %v4701, %v4703
    %v4715 = vsel %vm4712, %v4703, %v4705
    %v4716 = vsel %vm4712, %v4705, %v4707
    %v4717 = vsel %vm4712, %v4707, %v4709
    %v4718 = vsel %vm4712, %v4709, %v4711
    %vm4724 = vcmask 130048
    %v4726 = vsel %vm4724, %v4345, %v4635
    %v4730 = vsel %vm470, %v4654, %v4667
    %vm4732 = vcmask 392192
    %v4735 = vsel %vm4732, %v4686, %v4699
    %v4737 = vld [vmem:[%s7] sm:$0xff]
    %v4738 = vld [vmem:[%s7 + $0x8] sm:$0xff]
    %v4739 = vld [vmem:[%s7 + $0x10] sm:$0xff]
    %v4740 = vld [vmem:[%s7 + $0x18] sm:$0xff]
    %v4741 = vld [vmem:[%s7 + $0x20] sm:$0xff]
    %v4742 = vld [vmem:[%s7 + $0x28] sm:$0xff]
    %v4743 = vld [vmem:[%s7 + $0x30] sm:$0xff]
    %v4744 = vld [vmem:[%s7 + $0x38] sm:$0xff]
    %v4745 = vld [vmem:[%s7 + $0x40] sm:$0xff]
    %v4746 = vld [vmem:[%s7 + $0x48] sm:$0xff]
    %v4747 = vld [vmem:[%s7 + $0x50] sm:$0xff]
    %v4748 = vld [vmem:[%s7 + $0x58] sm:$0xff]
    %v4749 = vld [vmem:[%s7 + $0x60] sm:$0xff]
    %v4750 = vld [vmem:[%s7 + $0x68] sm:$0xff]
    %v4751 = vld [vmem:[%s7 + $0x70] sm:$0xff]
    %v4752 = vld [vmem:[%s7 + $0x78] sm:$0xff]
    %v4753 = vld [vmem:[%s7 + $0x80] sm:$0xff]
    %v4754 = vld [vmem:[%s7 + $0x88] sm:$0xff]
    %v4755 = vld [vmem:[%s7 + $0x90] sm:$0xff]
    %v4756 = vld [vmem:[%s7 + $0x98] sm:$0xff]
    %v4757 = vld [vmem:[%s7 + $0xa0] sm:$0xff]
    %v4758 = vld [vmem:[%s7 + $0xa8] sm:$0xff]
    %v4759 = vld [vmem:[%s7 + $0xb0] sm:$0xff]
    %v4760 = vld [vmem:[%s7 + $0xb8] sm:$0xff]
    %v4761 = vld [vmem:[%s7 + $0xc0] sm:$0xff]
    %v4762 = vld [vmem:[%s7 + $0xc8] sm:$0xff]
    %v4763 = vld [vmem:[%s7 + $0xd0] sm:$0xff]
    %v4764 = vld [vmem:[%s7 + $0xd8] sm:$0xff]
    %v4765 = vld [vmem:[%s7 + $0xe0] sm:$0xff]
    %v4766 = vld [vmem:[%s7 + $0xe8] sm:$0xff]
    %v4767 = vld [vmem:[%s7 + $0xf0] sm:$0xff]
    %v4768 = vld [vmem:[%s7 + $0xf8] sm:$0xff]
    %v4769 = vld [vmem:[%s7 + $0x100] sm:$0xff]
    %v4770 = vld [vmem:[%s7 + $0x108] sm:$0xff]
    %v4771 = vld [vmem:[%s7 + $0x110] sm:$0xff]
    %v4772 = vld [vmem:[%s7 + $0x118] sm:$0xff]
    %v4773 = vld [vmem:[%s7 + $0x120] sm:$0xff]
    %v4774 = vld [vmem:[%s7 + $0x128] sm:$0xff]
    %v4775 = vld [vmem:[%s7 + $0x130] sm:$0xff]
    %v4776 = vld [vmem:[%s7 + $0x138] sm:$0xff]
    %v4777 = vld [vmem:[%s7 + $0x140] sm:$0xff]
    %v4778 = vld [vmem:[%s7 + $0x148] sm:$0xff]
    %v4779 = vld [vmem:[%s7 + $0x150] sm:$0xff]
    %v4780 = vld [vmem:[%s7 + $0x158] sm:$0xff]
    %v4781 = vld [vmem:[%s7 + $0x160] sm:$0xff]
    %v4782 = vld [vmem:[%s7 + $0x168] sm:$0xff]
    %v4783 = vld [vmem:[%s7 + $0x170] sm:$0xff]
    %v4784 = vld [vmem:[%s7 + $0x178] sm:$0xff]
    %v4785 = vld [vmem:[%s7 + $0x180] sm:$0xff]
    %v4786 = vld [vmem:[%s7 + $0x188] sm:$0xff]
    %v4787 = vld [vmem:[%s7 + $0x190] sm:$0xff]
    %v4788 = vld [vmem:[%s7 + $0x198] sm:$0xff]
    %v4789 = vld [vmem:[%s7 + $0x1a0] sm:$0xff]
    %v4790 = vld [vmem:[%s7 + $0x1a8] sm:$0xff]
    %v4791 = vld [vmem:[%s7 + $0x1b0] sm:$0xff]
    %v4792 = vld [vmem:[%s7 + $0x1b8] sm:$0xff]
    %v4793 = vld [vmem:[%s7 + $0x1c0] sm:$0xff]
    %v4794 = vld [vmem:[%s7 + $0x1c8] sm:$0xff]
    %v4795 = vld [vmem:[%s7 + $0x1d0] sm:$0xff]
    %v4796 = vld [vmem:[%s7 + $0x1d8] sm:$0xff]
    %v4797 = vld [vmem:[%s7 + $0x1e0] sm:$0xff]
    %v4798 = vld [vmem:[%s7 + $0x1e8] sm:$0xff]
    %v4799 = vld [vmem:[%s7 + $0x1f0] sm:$0xff]
    %v4800 = vld [vmem:[%s7 + $0x1f8] sm:$0xff]
    %v4801 = vld [vmem:[%s7 + $0x200] sm:$0xff]
    %v4802 = vld [vmem:[%s7 + $0x208] sm:$0xff]
    %v4803 = vld [vmem:[%s7 + $0x210] sm:$0xff]
    %v4804 = vld [vmem:[%s7 + $0x218] sm:$0xff]
    %v4805 = vld [vmem:[%s7 + $0x220] sm:$0xff]
    %v4806 = vld [vmem:[%s7 + $0x228] sm:$0xff]
    %v4807 = vld [vmem:[%s7 + $0x230] sm:$0xff]
    %v4808 = vld [vmem:[%s7 + $0x238] sm:$0xff]
    %v4809 = vld [vmem:[%s7 + $0x240] sm:$0xff]
    %v4810 = vld [vmem:[%s7 + $0x248] sm:$0xff]
    %v4811 = vld [vmem:[%s7 + $0x250] sm:$0xff]
    %v4812 = vld [vmem:[%s7 + $0x258] sm:$0xff]
    %v4813 = vld [vmem:[%s7 + $0x260] sm:$0xff]
    %v4814 = vld [vmem:[%s7 + $0x268] sm:$0xff]
    %v4815 = vld [vmem:[%s7 + $0x270] sm:$0xff]
    %v4816 = vld [vmem:[%s7 + $0x278] sm:$0xff]
    %v4817 = vld [vmem:[%s7 + $0x280] sm:$0xff]
    %v4818 = vld [vmem:[%s7 + $0x288] sm:$0xff]
    %v4819 = vld [vmem:[%s7 + $0x290] sm:$0xff]
    %v4820 = vld [vmem:[%s7 + $0x298] sm:$0xff]
    %v4821 = vld [vmem:[%s7 + $0x2a0] sm:$0xff]
    %v4822 = vld [vmem:[%s7 + $0x2a8] sm:$0xff]
    %v4823 = vld [vmem:[%s7 + $0x2b0] sm:$0xff]
    %v4824 = vld [vmem:[%s7 + $0x2b8] sm:$0xff]
    %v4825 = vld [vmem:[%s7 + $0x2c0] sm:$0xff]
    %v4826 = vld [vmem:[%s7 + $0x2c8] sm:$0xff]
    %v4827 = vld [vmem:[%s7 + $0x2d0] sm:$0xff]
    %v4828 = vld [vmem:[%s7 + $0x2d8] sm:$0xff]
    %v4829 = vld [vmem:[%s7 + $0x2e0] sm:$0xff]
    %v4830 = vld [vmem:[%s7 + $0x2e8] sm:$0xff]
    %v4831 = vld [vmem:[%s7 + $0x2f0] sm:$0xff]
    %v4832 = vld [vmem:[%s7 + $0x2f8] sm:$0xff]
    %v4833 = vld [vmem:[%s7 + $0x300] sm:$0xff]
    %v4834 = vld [vmem:[%s7 + $0x308] sm:$0xff]
    %v4835 = vld [vmem:[%s7 + $0x310] sm:$0xff]
    %v4836 = vld [vmem:[%s7 + $0x318] sm:$0xff]
    %v4837 = vld [vmem:[%s7 + $0x320] sm:$0xff]
    %v4838 = vld [vmem:[%s7 + $0x328] sm:$0xff]
    %v4839 = vld [vmem:[%s7 + $0x330] sm:$0xff]
    %v4840 = vld [vmem:[%s7 + $0x338] sm:$0xff]
    %v4841 = vld [vmem:[%s7 + $0x340] sm:$0xff]
    %v4842 = vld [vmem:[%s7 + $0x348] sm:$0xff]
    %v4843 = vld [vmem:[%s7 + $0x350] sm:$0xff]
    %v4844 = vld [vmem:[%s7 + $0x358] sm:$0xff]
    %v4845 = vld [vmem:[%s7 + $0x360] sm:$0xff]
    %v4846 = vld [vmem:[%s7 + $0x368] sm:$0xff]
    %v4847 = vld [vmem:[%s7 + $0x370] sm:$0xff]
    %v4848 = vld [vmem:[%s7 + $0x378] sm:$0xff]
    %v4849 = vld [vmem:[%s7 + $0x380] sm:$0xff]
    %v4850 = vld [vmem:[%s7 + $0x388] sm:$0xff]
    %v4851 = vld [vmem:[%s7 + $0x390] sm:$0xff]
    %v4852 = vld [vmem:[%s7 + $0x398] sm:$0xff]
    %v4853 = vld [vmem:[%s7 + $0x3a0] sm:$0xff]
    %v4854 = vld [vmem:[%s7 + $0x3a8] sm:$0xff]
    %v4855 = vld [vmem:[%s7 + $0x3b0] sm:$0xff]
    %v4856 = vld [vmem:[%s7 + $0x3b8] sm:$0xff]
    %v4857 = vld [vmem:[%s7 + $0x3c0] sm:$0xff]
    %v4858 = vld [vmem:[%s7 + $0x3c8] sm:$0xff]
    %v4859 = vld [vmem:[%s7 + $0x3d0] sm:$0xff]
    %v4860 = vld [vmem:[%s7 + $0x3d8] sm:$0xff]
    %v4861 = vld [vmem:[%s7 + $0x3e0] sm:$0xff]
    %v4862 = vld [vmem:[%s7 + $0x3e8] sm:$0xff]
    %v4863 = vld [vmem:[%s7 + $0x3f0] sm:$0xff]
    %v4864 = vld [vmem:[%s7 + $0x3f8] sm:$0xff]
    %v4865 = vld [vmem:[%s7 + $0x400] sm:$0xff]
    %v4866 = vld [vmem:[%s7 + $0x408] sm:$0xff]
    %v4867 = vld [vmem:[%s7 + $0x410] sm:$0xff]
    %v4868 = vld [vmem:[%s7 + $0x418] sm:$0xff]
    %v4869 = vld [vmem:[%s7 + $0x420] sm:$0xff]
    %v4870 = vld [vmem:[%s7 + $0x428] sm:$0xff]
    %v4871 = vld [vmem:[%s7 + $0x430] sm:$0xff]
    %v4872 = vld [vmem:[%s7 + $0x438] sm:$0xff]
    %v4873 = vld [vmem:[%s7 + $0x440] sm:$0xff]
    %v4874 = vld [vmem:[%s7 + $0x448] sm:$0xff]
    %v4875 = vld [vmem:[%s7 + $0x450] sm:$0xff]
    %v4876 = vld [vmem:[%s7 + $0x458] sm:$0xff]
    %v4877 = vld [vmem:[%s7 + $0x460] sm:$0xff]
    %v4878 = vld [vmem:[%s7 + $0x468] sm:$0xff]
    %v4879 = vld [vmem:[%s7 + $0x470] sm:$0xff]
    %v4880 = vld [vmem:[%s7 + $0x478] sm:$0xff]
    %v4881 = vld [vmem:[%s7 + $0x480] sm:$0xff]
    %v4882 = vld [vmem:[%s7 + $0x488] sm:$0xff]
    %v4883 = vld [vmem:[%s7 + $0x490] sm:$0xff]
    %v4884 = vld [vmem:[%s7 + $0x498] sm:$0xff]
    %v4885 = vld [vmem:[%s7 + $0x4a0] sm:$0xff]
    %v4886 = vld [vmem:[%s7 + $0x4a8] sm:$0xff]
    %v4887 = vld [vmem:[%s7 + $0x4b0] sm:$0xff]
    %v4888 = vld [vmem:[%s7 + $0x4b8] sm:$0xff]
    %v4889 = vld [vmem:[%s7 + $0x4c0] sm:$0xff]
    %v4890 = vld [vmem:[%s7 + $0x4c8] sm:$0xff]
    %v4891 = vld [vmem:[%s7 + $0x4d0] sm:$0xff]
    %v4892 = vld [vmem:[%s7 + $0x4d8] sm:$0xff]
    %v4893 = vld [vmem:[%s7 + $0x4e0] sm:$0xff]
    %v4894 = vld [vmem:[%s7 + $0x4e8] sm:$0xff]
    %v4895 = vld [vmem:[%s7 + $0x4f0] sm:$0xff]
    %v4896 = vld [vmem:[%s7 + $0x4f8] sm:$0xff]
    %v4897 = vld [vmem:[%s7 + $0x500] sm:$0xff]
    %v4898 = vld [vmem:[%s7 + $0x508] sm:$0xff]
    %v4899 = vld [vmem:[%s7 + $0x510] sm:$0xff]
    %v4900 = vld [vmem:[%s7 + $0x518] sm:$0xff]
    %v4901 = vld [vmem:[%s7 + $0x520] sm:$0xff]
    %v4902 = vld [vmem:[%s7 + $0x528] sm:$0xff]
    %v4903 = vld [vmem:[%s7 + $0x530] sm:$0xff]
    %v4904 = vld [vmem:[%s7 + $0x538] sm:$0xff]
    %v4905 = vld [vmem:[%s7 + $0x540] sm:$0xff]
    %v4906 = vld [vmem:[%s7 + $0x548] sm:$0xff]
    %v4907 = vld [vmem:[%s7 + $0x550] sm:$0xff]
    %v4908 = vld [vmem:[%s7 + $0x558] sm:$0xff]
    %v4909 = vld [vmem:[%s7 + $0x560] sm:$0xff]
    %v4910 = vld [vmem:[%s7 + $0x568] sm:$0xff]
    %v4911 = vld [vmem:[%s7 + $0x570] sm:$0xff]
    %v4912 = vld [vmem:[%s7 + $0x578] sm:$0xff]
    %v4913 = vld [vmem:[%s7 + $0x580] sm:$0xff]
    %v4914 = vld [vmem:[%s7 + $0x588] sm:$0xff]
    %v4915 = vld [vmem:[%s7 + $0x590] sm:$0xff]
    %v4916 = vld [vmem:[%s7 + $0x598] sm:$0xff]
    %v4917 = vld [vmem:[%s7 + $0x5a0] sm:$0xff]
    %v4918 = vld [vmem:[%s7 + $0x5a8] sm:$0xff]
    %v4919 = vld [vmem:[%s7 + $0x5b0] sm:$0xff]
    %v4920 = vld [vmem:[%s7 + $0x5b8] sm:$0xff]
    %v4921 = vld [vmem:[%s7 + $0x5c0] sm:$0xff]
    %v4922 = vld [vmem:[%s7 + $0x5c8] sm:$0xff]
    %v4923 = vld [vmem:[%s7 + $0x5d0] sm:$0xff]
    %v4924 = vld [vmem:[%s7 + $0x5d8] sm:$0xff]
    %v4925 = vld [vmem:[%s7 + $0x5e0] sm:$0xff]
    %v4926 = vld [vmem:[%s7 + $0x5e8] sm:$0xff]
    %v4927 = vld [vmem:[%s7 + $0x5f0] sm:$0xff]
    %v4928 = vld [vmem:[%s7 + $0x5f8] sm:$0xff]
    %v4929 = vld [vmem:[%s7 + $0x600] sm:$0xff]
    %v4930 = vld [vmem:[%s7 + $0x608] sm:$0xff]
    %v4931 = vld [vmem:[%s7 + $0x610] sm:$0xff]
    %v4932 = vld [vmem:[%s7 + $0x618] sm:$0xff]
    %v4933 = vld [vmem:[%s7 + $0x620] sm:$0xff]
    %v4934 = vld [vmem:[%s7 + $0x628] sm:$0xff]
    %v4935 = vld [vmem:[%s7 + $0x630] sm:$0xff]
    %v4936 = vld [vmem:[%s7 + $0x638] sm:$0xff]
    %v4937 = vld [vmem:[%s7 + $0x640] sm:$0xff]
    %v4938 = vld [vmem:[%s7 + $0x648] sm:$0xff]
    %v4939 = vld [vmem:[%s7 + $0x650] sm:$0xff]
    %v4940 = vld [vmem:[%s7 + $0x658] sm:$0xff]
    %v4941 = vld [vmem:[%s7 + $0x660] sm:$0xff]
    %v4942 = vld [vmem:[%s7 + $0x668] sm:$0xff]
    %v4943 = vld [vmem:[%s7 + $0x670] sm:$0xff]
    %v4944 = vld [vmem:[%s7 + $0x678] sm:$0xff]
    %v4945 = vld [vmem:[%s7 + $0x680] sm:$0xff]
    %v4946 = vld [vmem:[%s7 + $0x688] sm:$0xff]
    %v4947 = vld [vmem:[%s7 + $0x690] sm:$0xff]
    %v4948 = vld [vmem:[%s7 + $0x698] sm:$0xff]
    %v4949 = vld [vmem:[%s7 + $0x6a0] sm:$0xff]
    %v4950 = vld [vmem:[%s7 + $0x6a8] sm:$0xff]
    %v4951 = vld [vmem:[%s7 + $0x6b0] sm:$0xff]
    %v4952 = vld [vmem:[%s7 + $0x6b8] sm:$0xff]
    %v4953 = vld [vmem:[%s7 + $0x6c0] sm:$0xff]
    %v4954 = vld [vmem:[%s7 + $0x6c8] sm:$0xff]
    %v4955 = vld [vmem:[%s7 + $0x6d0] sm:$0xff]
    %v4956 = vld [vmem:[%s7 + $0x6d8] sm:$0xff]
    %v4957 = vld [vmem:[%s7 + $0x6e0] sm:$0xff]
    %v4958 = vld [vmem:[%s7 + $0x6e8] sm:$0xff]
    %v4959 = vld [vmem:[%s7 + $0x6f0] sm:$0xff]
    %v4960 = vld [vmem:[%s7 + $0x6f8] sm:$0xff]
    %v4961 = vld [vmem:[%s7 + $0x700] sm:$0xff]
    %v4962 = vld [vmem:[%s7 + $0x708] sm:$0xff]
    %v4963 = vld [vmem:[%s7 + $0x710] sm:$0xff]
    %v4964 = vld [vmem:[%s7 + $0x718] sm:$0xff]
    %v4965 = vld [vmem:[%s7 + $0x720] sm:$0xff]
    %v4966 = vld [vmem:[%s7 + $0x728] sm:$0xff]
    %v4967 = vld [vmem:[%s7 + $0x730] sm:$0xff]
    %v4968 = vld [vmem:[%s7 + $0x738] sm:$0xff]
    %v4969 = vld [vmem:[%s7 + $0x740] sm:$0xff]
    %v4970 = vld [vmem:[%s7 + $0x748] sm:$0xff]
    %v4971 = vld [vmem:[%s7 + $0x750] sm:$0xff]
    %v4972 = vld [vmem:[%s7 + $0x758] sm:$0xff]
    %v4973 = vld [vmem:[%s7 + $0x760] sm:$0xff]
    %v4974 = vld [vmem:[%s7 + $0x768] sm:$0xff]
    %v4975 = vld [vmem:[%s7 + $0x770] sm:$0xff]
    %v4976 = vld [vmem:[%s7 + $0x778] sm:$0xff]
    %v4977 = vld [vmem:[%s7 + $0x780] sm:$0xff]
    %v4978 = vld [vmem:[%s7 + $0x788] sm:$0xff]
    %v4979 = vld [vmem:[%s7 + $0x790] sm:$0xff]
    %v4980 = vld [vmem:[%s7 + $0x798] sm:$0xff]
    %v4981 = vld [vmem:[%s7 + $0x7a0] sm:$0xff]
    %v4982 = vld [vmem:[%s7 + $0x7a8] sm:$0xff]
    %v4983 = vld [vmem:[%s7 + $0x7b0] sm:$0xff]
    %v4984 = vld [vmem:[%s7 + $0x7b8] sm:$0xff]
    %v4985 = vld [vmem:[%s7 + $0x7c0] sm:$0xff]
    %v4986 = vld [vmem:[%s7 + $0x7c8] sm:$0xff]
    %v4987 = vld [vmem:[%s7 + $0x7d0] sm:$0xff]
    %v4988 = vld [vmem:[%s7 + $0x7d8] sm:$0xff]
    %v4989 = vld [vmem:[%s7 + $0x7e0] sm:$0xff]
    %v4990 = vld [vmem:[%s7 + $0x7e8] sm:$0xff]
    %v4991 = vld [vmem:[%s7 + $0x7f0] sm:$0xff]
    %v4992 = vld [vmem:[%s7 + $0x7f8] sm:$0xff]
    %v4993 = vld [vmem:[%s7 + $0x800] sm:$0xff]
    %v4994 = vld [vmem:[%s7 + $0x808] sm:$0xff]
    %v4995 = vld [vmem:[%s7 + $0x810] sm:$0xff]
    %v4996 = vld [vmem:[%s7 + $0x818] sm:$0xff]
    %v4997 = vld [vmem:[%s7 + $0x820] sm:$0xff]
    %v4998 = vld [vmem:[%s7 + $0x828] sm:$0xff]
    %v4999 = vld [vmem:[%s7 + $0x830] sm:$0xff]
    %v5000 = vld [vmem:[%s7 + $0x838] sm:$0xff]
    %v5001 = vld [vmem:[%s7 + $0x840] sm:$0xff]
    %v5002 = vld [vmem:[%s7 + $0x848] sm:$0xff]
    %v5003 = vld [vmem:[%s7 + $0x850] sm:$0xff]
    %v5004 = vld [vmem:[%s7 + $0x858] sm:$0xff]
    %v5005 = vld [vmem:[%s7 + $0x860] sm:$0xff]
    %v5006 = vld [vmem:[%s7 + $0x868] sm:$0xff]
    %v5007 = vld [vmem:[%s7 + $0x870] sm:$0xff]
    %v5008 = vld [vmem:[%s7 + $0x878] sm:$0xff]
    %v5009 = vld [vmem:[%s7 + $0x880] sm:$0xff]
    %v5010 = vld [vmem:[%s7 + $0x888] sm:$0xff]
    %v5011 = vld [vmem:[%s7 + $0x890] sm:$0xff]
    %v5012 = vld [vmem:[%s7 + $0x898] sm:$0xff]
    %v5013 = vld [vmem:[%s7 + $0x8a0] sm:$0xff]
    %v5014 = vld [vmem:[%s7 + $0x8a8] sm:$0xff]
    %v5015 = vld [vmem:[%s7 + $0x8b0] sm:$0xff]
    %v5016 = vld [vmem:[%s7 + $0x8b8] sm:$0xff]
    %v5017 = vld [vmem:[%s7 + $0x8c0] sm:$0xff]
    %v5018 = vld [vmem:[%s7 + $0x8c8] sm:$0xff]
    %v5019 = vld [vmem:[%s7 + $0x8d0] sm:$0xff]
    %v5020 = vld [vmem:[%s7 + $0x8d8] sm:$0xff]
    %v5021 = vld [vmem:[%s7 + $0x8e0] sm:$0xff]
    %v5022 = vld [vmem:[%s7 + $0x8e8] sm:$0xff]
    %v5023 = vld [vmem:[%s7 + $0x8f0] sm:$0xff]
    %v5024 = vld [vmem:[%s7 + $0x8f8] sm:$0xff]
    %v5025 = vld [vmem:[%s7 + $0x900] sm:$0xff]
    %v5026 = vld [vmem:[%s7 + $0x908] sm:$0xff]
    %v5027 = vld [vmem:[%s7 + $0x910] sm:$0xff]
    %v5028 = vld [vmem:[%s7 + $0x918] sm:$0xff]
    %v5029 = vld [vmem:[%s7 + $0x920] sm:$0xff]
    %v5030 = vld [vmem:[%s7 + $0x928] sm:$0xff]
    %v5031 = vld [vmem:[%s7 + $0x930] sm:$0xff]
    %v5032 = vld [vmem:[%s7 + $0x938] sm:$0xff]
    %v5033 = vld [vmem:[%s7 + $0x940] sm:$0xff]
    %v5034 = vld [vmem:[%s7 + $0x948] sm:$0xff]
    %v5035 = vld [vmem:[%s7 + $0x950] sm:$0xff]
    %v5036 = vld [vmem:[%s7 + $0x958] sm:$0xff]
    %v5037 = vld [vmem:[%s7 + $0x960] sm:$0xff]
    %v5038 = vld [vmem:[%s7 + $0x968] sm:$0xff]
    %v5039 = vld [vmem:[%s7 + $0x970] sm:$0xff]
    %v5040 = vld [vmem:[%s7 + $0x978] sm:$0xff]
    %v5041 = vld [vmem:[%s7 + $0x980] sm:$0xff]
    %v5042 = vld [vmem:[%s7 + $0x988] sm:$0xff]
    %v5043 = vld [vmem:[%s7 + $0x990] sm:$0xff]
    %v5044 = vld [vmem:[%s7 + $0x998] sm:$0xff]
    %v5045 = vld [vmem:[%s7 + $0x9a0] sm:$0xff]
    %v5046 = vld [vmem:[%s7 + $0x9a8] sm:$0xff]
    %v5047 = vld [vmem:[%s7 + $0x9b0] sm:$0xff]
    %v5048 = vld [vmem:[%s7 + $0x9b8] sm:$0xff]
    %v5049 = vld [vmem:[%s7 + $0x9c0] sm:$0xff]
    %v5050 = vld [vmem:[%s7 + $0x9c8] sm:$0xff]
    %v5051 = vld [vmem:[%s7 + $0x9d0] sm:$0xff]
    %v5052 = vld [vmem:[%s7 + $0x9d8] sm:$0xff]
    %v5053 = vld [vmem:[%s7 + $0x9e0] sm:$0xff]
    %v5054 = vld [vmem:[%s7 + $0x9e8] sm:$0xff]
    %v5055 = vld [vmem:[%s7 + $0x9f0] sm:$0xff]
    %v5056 = vld [vmem:[%s7 + $0x9f8] sm:$0xff]
    %v5057 = vld [vmem:[%s7 + $0xa00] sm:$0xff]
    %v5058 = vld [vmem:[%s7 + $0xa08] sm:$0xff]
    %v5059 = vld [vmem:[%s7 + $0xa10] sm:$0xff]
    %v5060 = vld [vmem:[%s7 + $0xa18] sm:$0xff]
    %v5061 = vld [vmem:[%s7 + $0xa20] sm:$0xff]
    %v5062 = vld [vmem:[%s7 + $0xa28] sm:$0xff]
    %v5063 = vld [vmem:[%s7 + $0xa30] sm:$0xff]
    %v5064 = vld [vmem:[%s7 + $0xa38] sm:$0xff]
    %v5065 = vld [vmem:[%s7 + $0xa40] sm:$0xff]
    %v5066 = vld [vmem:[%s7 + $0xa48] sm:$0xff]
    %v5067 = vld [vmem:[%s7 + $0xa50] sm:$0xff]
    %v5068 = vld [vmem:[%s7 + $0xa58] sm:$0xff]
    %v5069 = vld [vmem:[%s7 + $0xa60] sm:$0xff]
    %v5070 = vld [vmem:[%s7 + $0xa68] sm:$0xff]
    %v5071 = vld [vmem:[%s7 + $0xa70] sm:$0xff]
    %v5072 = vld [vmem:[%s7 + $0xa78] sm:$0xff]
    %v5073 = vld [vmem:[%s7 + $0xa80] sm:$0xff]
    %v5074 = vld [vmem:[%s7 + $0xa88] sm:$0xff]
    %v5075 = vld [vmem:[%s7 + $0xa90] sm:$0xff]
    %v5076 = vld [vmem:[%s7 + $0xa98] sm:$0xff]
    %v5077 = vld [vmem:[%s7 + $0xaa0] sm:$0xff]
    %v5078 = vld [vmem:[%s7 + $0xaa8] sm:$0xff]
    %v5079 = vld [vmem:[%s7 + $0xab0] sm:$0xff]
    %v5080 = vld [vmem:[%s7 + $0xab8] sm:$0xff]
    %v5081 = vld [vmem:[%s7 + $0xac0] sm:$0xff]
    %v5082 = vld [vmem:[%s7 + $0xac8] sm:$0xff]
    %v5083 = vld [vmem:[%s7 + $0xad0] sm:$0xff]
    %v5084 = vld [vmem:[%s7 + $0xad8] sm:$0xff]
    %v5085 = vld [vmem:[%s7 + $0xae0] sm:$0xff]
    %v5086 = vld [vmem:[%s7 + $0xae8] sm:$0xff]
    %v5087 = vld [vmem:[%s7 + $0xaf0] sm:$0xff]
    %v5088 = vld [vmem:[%s7 + $0xaf8] sm:$0xff]
    %v5089 = vld [vmem:[%s7 + $0xb00] sm:$0xff]
    %v5090 = vld [vmem:[%s7 + $0xb08] sm:$0xff]
    %v5091 = vld [vmem:[%s7 + $0xb10] sm:$0xff]
    %v5092 = vld [vmem:[%s7 + $0xb18] sm:$0xff]
    %v5093 = vld [vmem:[%s7 + $0xb20] sm:$0xff]
    %v5094 = vld [vmem:[%s7 + $0xb28] sm:$0xff]
    %v5095 = vld [vmem:[%s7 + $0xb30] sm:$0xff]
    %v5096 = vld [vmem:[%s7 + $0xb38] sm:$0xff]
    %v5097 = vld [vmem:[%s7 + $0xb40] sm:$0xff]
    %v5098 = vld [vmem:[%s7 + $0xb48] sm:$0xff]
    %v5099 = vld [vmem:[%s7 + $0xb50] sm:$0xff]
    %v5100 = vld [vmem:[%s7 + $0xb58] sm:$0xff]
    %v5101 = vld [vmem:[%s7 + $0xb60] sm:$0xff]
    %v5102 = vld [vmem:[%s7 + $0xb68] sm:$0xff]
    %v5103 = vld [vmem:[%s7 + $0xb70] sm:$0xff]
    %v5104 = vld [vmem:[%s7 + $0xb78] sm:$0xff]
    %v5105 = vld [vmem:[%s7 + $0xb80] sm:$0xff]
    %v5106 = vld [vmem:[%s7 + $0xb88] sm:$0xff]
    %v5107 = vld [vmem:[%s7 + $0xb90] sm:$0xff]
    %v5108 = vld [vmem:[%s7 + $0xb98] sm:$0xff]
    %v5109 = vld [vmem:[%s7 + $0xba0] sm:$0xff]
    %v5110 = vld [vmem:[%s7 + $0xba8] sm:$0xff]
    %v5111 = vld [vmem:[%s7 + $0xbb0] sm:$0xff]
    %v5112 = vld [vmem:[%s7 + $0xbb8] sm:$0xff]
    %v5113 = vld [vmem:[%s7 + $0xbc0] sm:$0xff]
    %v5114 = vld [vmem:[%s7 + $0xbc8] sm:$0xff]
    %v5115 = vld [vmem:[%s7 + $0xbd0] sm:$0xff]
    %v5116 = vld [vmem:[%s7 + $0xbd8] sm:$0xff]
    %v5117 = vld [vmem:[%s7 + $0xbe0] sm:$0xff]
    %v5118 = vld [vmem:[%s7 + $0xbe8] sm:$0xff]
    %v5119 = vld [vmem:[%s7 + $0xbf0] sm:$0xff]
    %v5120 = vld [vmem:[%s7 + $0xbf8] sm:$0xff]
    %v5121 = vld [vmem:[%s7 + $0xc00] sm:$0xff]
    %v5122 = vld [vmem:[%s7 + $0xc08] sm:$0xff]
    %v5123 = vld [vmem:[%s7 + $0xc10] sm:$0xff]
    %v5124 = vld [vmem:[%s7 + $0xc18] sm:$0xff]
    %v5125 = vld [vmem:[%s7 + $0xc20] sm:$0xff]
    %v5126 = vld [vmem:[%s7 + $0xc28] sm:$0xff]
    %v5127 = vld [vmem:[%s7 + $0xc30] sm:$0xff]
    %v5128 = vld [vmem:[%s7 + $0xc38] sm:$0xff]
    %v5129 = vld [vmem:[%s7 + $0xc40] sm:$0xff]
    %v5130 = vld [vmem:[%s7 + $0xc48] sm:$0xff]
    %v5131 = vld [vmem:[%s7 + $0xc50] sm:$0xff]
    %v5132 = vld [vmem:[%s7 + $0xc58] sm:$0xff]
    %v5133 = vld [vmem:[%s7 + $0xc60] sm:$0xff]
    %v5134 = vld [vmem:[%s7 + $0xc68] sm:$0xff]
    %v5135 = vld [vmem:[%s7 + $0xc70] sm:$0xff]
    %v5136 = vld [vmem:[%s7 + $0xc78] sm:$0xff]
    %v5137 = vld [vmem:[%s7 + $0xc80] sm:$0xff]
    %v5138 = vld [vmem:[%s7 + $0xc88] sm:$0xff]
    %v5139 = vld [vmem:[%s7 + $0xc90] sm:$0xff]
    %v5140 = vld [vmem:[%s7 + $0xc98] sm:$0xff]
    %v5141 = vld [vmem:[%s7 + $0xca0] sm:$0xff]
    %v5142 = vld [vmem:[%s7 + $0xca8] sm:$0xff]
    %v5143 = vld [vmem:[%s7 + $0xcb0] sm:$0xff]
    %v5144 = vld [vmem:[%s7 + $0xcb8] sm:$0xff]
    %v5145 = vld [vmem:[%s7 + $0xcc0] sm:$0xff]
    %v5146 = vld [vmem:[%s7 + $0xcc8] sm:$0xff]
    %v5147 = vld [vmem:[%s7 + $0xcd0] sm:$0xff]
    %v5148 = vld [vmem:[%s7 + $0xcd8] sm:$0xff]
    %v5149 = vld [vmem:[%s7 + $0xce0] sm:$0xff]
    %v5150 = vld [vmem:[%s7 + $0xce8] sm:$0xff]
    %v5151 = vld [vmem:[%s7 + $0xcf0] sm:$0xff]
    %v5152 = vld [vmem:[%s7 + $0xcf8] sm:$0xff]
    %v5153 = vld [vmem:[%s7 + $0xd00] sm:$0xff]
    %v5154 = vld [vmem:[%s7 + $0xd08] sm:$0xff]
    %v5155 = vld [vmem:[%s7 + $0xd10] sm:$0xff]
    %v5156 = vld [vmem:[%s7 + $0xd18] sm:$0xff]
    %v5157 = vld [vmem:[%s7 + $0xd20] sm:$0xff]
    %v5158 = vld [vmem:[%s7 + $0xd28] sm:$0xff]
    %v5159 = vld [vmem:[%s7 + $0xd30] sm:$0xff]
    %v5160 = vld [vmem:[%s7 + $0xd38] sm:$0xff]
    %v5161 = vld [vmem:[%s7 + $0xd40] sm:$0xff]
    %v5162 = vld [vmem:[%s7 + $0xd48] sm:$0xff]
    %v5163 = vld [vmem:[%s7 + $0xd50] sm:$0xff]
    %v5164 = vld [vmem:[%s7 + $0xd58] sm:$0xff]
    %v5165 = vld [vmem:[%s7 + $0xd60] sm:$0xff]
    %v5166 = vld [vmem:[%s7 + $0xd68] sm:$0xff]
    %v5167 = vld [vmem:[%s7 + $0xd70] sm:$0xff]
    %v5168 = vld [vmem:[%s7 + $0xd78] sm:$0xff]
    %v5169 = vld [vmem:[%s7 + $0xd80] sm:$0xff]
    %v5170 = vld [vmem:[%s7 + $0xd88] sm:$0xff]
    %v5171 = vld [vmem:[%s7 + $0xd90] sm:$0xff]
    %v5172 = vld [vmem:[%s7 + $0xd98] sm:$0xff]
    %v5173 = vld [vmem:[%s7 + $0xda0] sm:$0xff]
    %v5174 = vld [vmem:[%s7 + $0xda8] sm:$0xff]
    %v5175 = vld [vmem:[%s7 + $0xdb0] sm:$0xff]
    %v5176 = vld [vmem:[%s7 + $0xdb8] sm:$0xff]
    %v5177 = vld [vmem:[%s7 + $0xdc0] sm:$0xff]
    %v5178 = vld [vmem:[%s7 + $0xdc8] sm:$0xff]
    %v5179 = vld [vmem:[%s7 + $0xdd0] sm:$0xff]
    %v5180 = vld [vmem:[%s7 + $0xdd8] sm:$0xff]
    %v5181 = vld [vmem:[%s7 + $0xde0] sm:$0xff]
    %v5182 = vld [vmem:[%s7 + $0xde8] sm:$0xff]
    %v5183 = vld [vmem:[%s7 + $0xdf0] sm:$0xff]
    %v5184 = vld [vmem:[%s7 + $0xdf8] sm:$0xff]
    %v5185 = vld [vmem:[%s7 + $0xe00] sm:$0xff]
    %v5186 = vld [vmem:[%s7 + $0xe08] sm:$0xff]
    %v5187 = vld [vmem:[%s7 + $0xe10] sm:$0xff]
    %v5188 = vld [vmem:[%s7 + $0xe18] sm:$0xff]
    %v5189 = vld [vmem:[%s7 + $0xe20] sm:$0xff]
    %v5190 = vld [vmem:[%s7 + $0xe28] sm:$0xff]
    %v5191 = vld [vmem:[%s7 + $0xe30] sm:$0xff]
    %v5192 = vld [vmem:[%s7 + $0xe38] sm:$0xff]
    %v5193 = vld [vmem:[%s7 + $0xe40] sm:$0xff]
    %v5194 = vld [vmem:[%s7 + $0xe48] sm:$0xff]
    %v5195 = vld [vmem:[%s7 + $0xe50] sm:$0xff]
    %v5196 = vld [vmem:[%s7 + $0xe58] sm:$0xff]
    %v5197 = vld [vmem:[%s7 + $0xe60] sm:$0xff]
    %v5198 = vld [vmem:[%s7 + $0xe68] sm:$0xff]
    %v5199 = vld [vmem:[%s7 + $0xe70] sm:$0xff]
    %v5200 = vld [vmem:[%s7 + $0xe78] sm:$0xff]
    %v5201 = vld [vmem:[%s7 + $0xe80] sm:$0xff]
    %v5202 = vld [vmem:[%s7 + $0xe88] sm:$0xff]
    %v5203 = vld [vmem:[%s7 + $0xe90] sm:$0xff]
    %v5204 = vld [vmem:[%s7 + $0xe98] sm:$0xff]
    %v5205 = vld [vmem:[%s7 + $0xea0] sm:$0xff]
    %v5206 = vld [vmem:[%s7 + $0xea8] sm:$0xff]
    %v5207 = vld [vmem:[%s7 + $0xeb0] sm:$0xff]
    %v5208 = vld [vmem:[%s7 + $0xeb8] sm:$0xff]
    %v5209 = vld [vmem:[%s7 + $0xec0] sm:$0xff]
    %v5210 = vld [vmem:[%s7 + $0xec8] sm:$0xff]
    %v5211 = vld [vmem:[%s7 + $0xed0] sm:$0xff]
    %v5212 = vld [vmem:[%s7 + $0xed8] sm:$0xff]
    %v5213 = vld [vmem:[%s7 + $0xee0] sm:$0xff]
    %v5214 = vld [vmem:[%s7 + $0xee8] sm:$0xff]
    %v5215 = vld [vmem:[%s7 + $0xef0] sm:$0xff]
    %v5216 = vld [vmem:[%s7 + $0xef8] sm:$0xff]
    %v5217 = vld [vmem:[%s7 + $0xf00] sm:$0xff]
    %v5218 = vld [vmem:[%s7 + $0xf08] sm:$0xff]
    %v5219 = vld [vmem:[%s7 + $0xf10] sm:$0xff]
    %v5220 = vld [vmem:[%s7 + $0xf18] sm:$0xff]
    %v5221 = vld [vmem:[%s7 + $0xf20] sm:$0xff]
    %v5222 = vld [vmem:[%s7 + $0xf28] sm:$0xff]
    %v5223 = vld [vmem:[%s7 + $0xf30] sm:$0xff]
    %v5224 = vld [vmem:[%s7 + $0xf38] sm:$0xff]
    %v5225 = vld [vmem:[%s7 + $0xf40] sm:$0xff]
    %v5226 = vld [vmem:[%s7 + $0xf48] sm:$0xff]
    %v5227 = vld [vmem:[%s7 + $0xf50] sm:$0xff]
    %v5228 = vld [vmem:[%s7 + $0xf58] sm:$0xff]
    %v5229 = vld [vmem:[%s7 + $0xf60] sm:$0xff]
    %v5230 = vld [vmem:[%s7 + $0xf68] sm:$0xff]
    %v5231 = vld [vmem:[%s7 + $0xf70] sm:$0xff]
    %v5232 = vld [vmem:[%s7 + $0xf78] sm:$0xff]
    %v5233 = vld [vmem:[%s7 + $0xf80] sm:$0xff]
    %v5234 = vld [vmem:[%s7 + $0xf88] sm:$0xff]
    %v5235 = vld [vmem:[%s7 + $0xf90] sm:$0xff]
    %v5236 = vld [vmem:[%s7 + $0xf98] sm:$0xff]
    %v5237 = vld [vmem:[%s7 + $0xfa0] sm:$0xff]
    %v5238 = vld [vmem:[%s7 + $0xfa8] sm:$0xff]
    %v5239 = vld [vmem:[%s7 + $0xfb0] sm:$0xff]
    %v5240 = vld [vmem:[%s7 + $0xfb8] sm:$0xff]
    %v5241 = vld [vmem:[%s7 + $0xfc0] sm:$0xff]
    %v5242 = vld [vmem:[%s7 + $0xfc8] sm:$0xff]
    %v5243 = vld [vmem:[%s7 + $0xfd0] sm:$0xff]
    %v5244 = vld [vmem:[%s7 + $0xfd8] sm:$0xff]
    %v5245 = vld [vmem:[%s7 + $0xfe0] sm:$0xff]
    %v5246 = vld [vmem:[%s7 + $0xfe8] sm:$0xff]
    %v5247 = vld [vmem:[%s7 + $0xff0] sm:$0xff]
    %v5248 = vld [vmem:[%s7 + $0xff8] sm:$0xff]
    %v5249 = vld [vmem:[%s7 + $0x1000] sm:$0xff]
    %v5250 = vld [vmem:[%s7 + $0x1008] sm:$0xff]
    %v5251 = vld [vmem:[%s7 + $0x1010] sm:$0xff]
    %v5252 = vld [vmem:[%s7 + $0x1018] sm:$0xff]
    %v5253 = vld [vmem:[%s7 + $0x1020] sm:$0xff]
    %v5254 = vld [vmem:[%s7 + $0x1028] sm:$0xff]
    %v5255 = vld [vmem:[%s7 + $0x1030] sm:$0xff]
    %v5256 = vld [vmem:[%s7 + $0x1038] sm:$0xff]
    %v5257 = vld [vmem:[%s7 + $0x1040] sm:$0xff]
    %v5258 = vld [vmem:[%s7 + $0x1048] sm:$0xff]
    %v5259 = vld [vmem:[%s7 + $0x1050] sm:$0xff]
    %v5260 = vld [vmem:[%s7 + $0x1058] sm:$0xff]
    %v5261 = vld [vmem:[%s7 + $0x1060] sm:$0xff]
    %v5262 = vld [vmem:[%s7 + $0x1068] sm:$0xff]
    %v5263 = vld [vmem:[%s7 + $0x1070] sm:$0xff]
    %v5264 = vld [vmem:[%s7 + $0x1078] sm:$0xff]
    %v5265 = vld [vmem:[%s7 + $0x1080] sm:$0xff]
    %v5266 = vld [vmem:[%s7 + $0x1088] sm:$0xff]
    %v5267 = vld [vmem:[%s7 + $0x1090] sm:$0xff]
    %v5268 = vld [vmem:[%s7 + $0x1098] sm:$0xff]
    %v5269 = vld [vmem:[%s7 + $0x10a0] sm:$0xff]
    %v5270 = vld [vmem:[%s7 + $0x10a8] sm:$0xff]
    %v5271 = vld [vmem:[%s7 + $0x10b0] sm:$0xff]
    %v5272 = vld [vmem:[%s7 + $0x10b8] sm:$0xff]
    %v5273 = vld [vmem:[%s7 + $0x10c0] sm:$0xff]
    %v5274 = vld [vmem:[%s7 + $0x10c8] sm:$0xff]
    %v5275 = vld [vmem:[%s7 + $0x10d0] sm:$0xff]
    %v5276 = vld [vmem:[%s7 + $0x10d8] sm:$0xff]
    %v5277 = vld [vmem:[%s7 + $0x10e0] sm:$0xff]
    %v5278 = vld [vmem:[%s7 + $0x10e8] sm:$0xff]
    %v5279 = vld [vmem:[%s7 + $0x10f0] sm:$0xff]
    %v5280 = vld [vmem:[%s7 + $0x10f8] sm:$0xff]
    %v5281 = vld [vmem:[%s7 + $0x1100] sm:$0xff]
    %v5282 = vld [vmem:[%s7 + $0x1108] sm:$0xff]
    %v5283 = vld [vmem:[%s7 + $0x1110] sm:$0xff]
    %v5284 = vld [vmem:[%s7 + $0x1118] sm:$0xff]
    %v5285 = vld [vmem:[%s7 + $0x1120] sm:$0xff]
    %v5286 = vld [vmem:[%s7 + $0x1128] sm:$0xff]
    %v5287 = vld [vmem:[%s7 + $0x1130] sm:$0xff]
    %v5288 = vld [vmem:[%s7 + $0x1138] sm:$0xff]
    %v5289 = vld [vmem:[%s7 + $0x1140] sm:$0xff]
    %v5290 = vld [vmem:[%s7 + $0x1148] sm:$0xff]
    %v5291 = vld [vmem:[%s7 + $0x1150] sm:$0xff]
    %v5292 = vld [vmem:[%s7 + $0x1158] sm:$0xff]
    %v5293 = vld [vmem:[%s7 + $0x1160] sm:$0xff]
    %v5294 = vld [vmem:[%s7 + $0x1168] sm:$0xff]
    %v5295 = vld [vmem:[%s7 + $0x1170] sm:$0xff]
    %v5296 = vld [vmem:[%s7 + $0x1178] sm:$0xff]
    %v5297 = vld [vmem:[%s7 + $0x1180] sm:$0xff]
    %v5298 = vld [vmem:[%s7 + $0x1188] sm:$0xff]
    %v5299 = vld [vmem:[%s7 + $0x1190] sm:$0xff]
    %v5300 = vld [vmem:[%s7 + $0x1198] sm:$0xff]
    %v5301 = vld [vmem:[%s7 + $0x11a0] sm:$0xff]
    %v5302 = vld [vmem:[%s7 + $0x11a8] sm:$0xff]
    %v5303 = vld [vmem:[%s7 + $0x11b0] sm:$0xff]
    %v5304 = vld [vmem:[%s7 + $0x11b8] sm:$0xff]
    %v5305 = vld [vmem:[%s7 + $0x11c0] sm:$0xff]
    %v5306 = vld [vmem:[%s7 + $0x11c8] sm:$0xff]
    %v5307 = vld [vmem:[%s7 + $0x11d0] sm:$0xff]
    %v5308 = vld [vmem:[%s7 + $0x11d8] sm:$0xff]
    %v5309 = vld [vmem:[%s7 + $0x11e0] sm:$0xff]
    %v5310 = vld [vmem:[%s7 + $0x11e8] sm:$0xff]
    %v5311 = vld [vmem:[%s7 + $0x11f0] sm:$0xff]
    %v5312 = vld [vmem:[%s7 + $0x11f8] sm:$0xff]
    %v5313 = vld [vmem:[%s7 + $0x1200] sm:$0xff]
    %v5314 = vld [vmem:[%s7 + $0x1208] sm:$0xff]
    %v5315 = vld [vmem:[%s7 + $0x1210] sm:$0xff]
    %v5316 = vld [vmem:[%s7 + $0x1218] sm:$0xff]
    %v5317 = vld [vmem:[%s7 + $0x1220] sm:$0xff]
    %v5318 = vld [vmem:[%s7 + $0x1228] sm:$0xff]
    %v5319 = vld [vmem:[%s7 + $0x1230] sm:$0xff]
    %v5320 = vld [vmem:[%s7 + $0x1238] sm:$0xff]
    %v5321 = vld [vmem:[%s7 + $0x1240] sm:$0xff]
    %v5322 = vld [vmem:[%s7 + $0x1248] sm:$0xff]
    %v5323 = vld [vmem:[%s7 + $0x1250] sm:$0xff]
    %v5324 = vld [vmem:[%s7 + $0x1258] sm:$0xff]
    %v5325 = vld [vmem:[%s7 + $0x1260] sm:$0xff]
    %v5326 = vld [vmem:[%s7 + $0x1268] sm:$0xff]
    %v5327 = vld [vmem:[%s7 + $0x1270] sm:$0xff]
    %v5328 = vld [vmem:[%s7 + $0x1278] sm:$0xff]
    %v5329 = vld [vmem:[%s7 + $0x1280] sm:$0xff]
    %v5330 = vld [vmem:[%s7 + $0x1288] sm:$0xff]
    %v5331 = vld [vmem:[%s7 + $0x1290] sm:$0xff]
    %v5332 = vld [vmem:[%s7 + $0x1298] sm:$0xff]
    %v5333 = vld [vmem:[%s7 + $0x12a0] sm:$0xff]
    %v5334 = vld [vmem:[%s7 + $0x12a8] sm:$0xff]
    %v5335 = vld [vmem:[%s7 + $0x12b0] sm:$0xff]
    %v5336 = vld [vmem:[%s7 + $0x12b8] sm:$0xff]
    %v5337 = vld [vmem:[%s7 + $0x12c0] sm:$0xff]
    %v5338 = vld [vmem:[%s7 + $0x12c8] sm:$0xff]
    %v5339 = vld [vmem:[%s7 + $0x12d0] sm:$0xff]
    %v5340 = vld [vmem:[%s7 + $0x12d8] sm:$0xff]
    %v5341 = vld [vmem:[%s7 + $0x12e0] sm:$0xff]
    %v5342 = vld [vmem:[%s7 + $0x12e8] sm:$0xff]
    %v5343 = vld [vmem:[%s7 + $0x12f0] sm:$0xff]
    %v5344 = vld [vmem:[%s7 + $0x12f8] sm:$0xff]
    %v5345 = vld [vmem:[%s7 + $0x1300] sm:$0xff]
    %v5346 = vld [vmem:[%s7 + $0x1308] sm:$0xff]
    %v5347 = vld [vmem:[%s7 + $0x1310] sm:$0xff]
    %v5348 = vld [vmem:[%s7 + $0x1318] sm:$0xff]
    %v5349 = vld [vmem:[%s7 + $0x1320] sm:$0xff]
    %v5350 = vld [vmem:[%s7 + $0x1328] sm:$0xff]
    %v5351 = vld [vmem:[%s7 + $0x1330] sm:$0xff]
    %v5352 = vld [vmem:[%s7 + $0x1338] sm:$0xff]
    %v5353 = vld [vmem:[%s7 + $0x1340] sm:$0xff]
    %v5354 = vld [vmem:[%s7 + $0x1348] sm:$0xff]
    %v5355 = vld [vmem:[%s7 + $0x1350] sm:$0xff]
    %v5356 = vld [vmem:[%s7 + $0x1358] sm:$0xff]
    %v5357 = vld [vmem:[%s7 + $0x1360] sm:$0xff]
    %v5358 = vld [vmem:[%s7 + $0x1368] sm:$0xff]
    %v5359 = vld [vmem:[%s7 + $0x1370] sm:$0xff]
    %v5360 = vld [vmem:[%s7 + $0x1378] sm:$0xff]
    %v5361 = vld [vmem:[%s7 + $0x1380] sm:$0xff]
    %v5362 = vld [vmem:[%s7 + $0x1388] sm:$0xff]
    %v5363 = vld [vmem:[%s7 + $0x1390] sm:$0xff]
    %v5364 = vld [vmem:[%s7 + $0x1398] sm:$0xff]
    %v5365 = vld [vmem:[%s7 + $0x13a0] sm:$0xff]
    %v5366 = vld [vmem:[%s7 + $0x13a8] sm:$0xff]
    %v5367 = vld [vmem:[%s7 + $0x13b0] sm:$0xff]
    %v5368 = vld [vmem:[%s7 + $0x13b8] sm:$0xff]
    %v5369 = vld [vmem:[%s7 + $0x13c0] sm:$0xff]
    %v5370 = vld [vmem:[%s7 + $0x13c8] sm:$0xff]
    %v5371 = vld [vmem:[%s7 + $0x13d0] sm:$0xff]
    %v5372 = vld [vmem:[%s7 + $0x13d8] sm:$0xff]
    %v5373 = vld [vmem:[%s7 + $0x13e0] sm:$0xff]
    %v5374 = vld [vmem:[%s7 + $0x13e8] sm:$0xff]
    %v5375 = vld [vmem:[%s7 + $0x13f0] sm:$0xff]
    %v5376 = vld [vmem:[%s7 + $0x13f8] sm:$0xff]
    %v5377 = vld [vmem:[%s7 + $0x1400] sm:$0xff]
    %v5378 = vld [vmem:[%s7 + $0x1408] sm:$0xff]
    %v5379 = vld [vmem:[%s7 + $0x1410] sm:$0xff]
    %v5380 = vld [vmem:[%s7 + $0x1418] sm:$0xff]
    %v5381 = vld [vmem:[%s7 + $0x1420] sm:$0xff]
    %v5382 = vld [vmem:[%s7 + $0x1428] sm:$0xff]
    %v5383 = vld [vmem:[%s7 + $0x1430] sm:$0xff]
    %v5384 = vld [vmem:[%s7 + $0x1438] sm:$0xff]
    %v5385 = vld [vmem:[%s7 + $0x1440] sm:$0xff]
    %v5386 = vld [vmem:[%s7 + $0x1448] sm:$0xff]
    %v5387 = vld [vmem:[%s7 + $0x1450] sm:$0xff]
    %v5388 = vld [vmem:[%s7 + $0x1458] sm:$0xff]
    %v5389 = vld [vmem:[%s7 + $0x1460] sm:$0xff]
    %v5390 = vld [vmem:[%s7 + $0x1468] sm:$0xff]
    %v5391 = vld [vmem:[%s7 + $0x1470] sm:$0xff]
    %v5392 = vld [vmem:[%s7 + $0x1478] sm:$0xff]
    %v5393 = vld [vmem:[%s7 + $0x1480] sm:$0xff]
    %v5394 = vld [vmem:[%s7 + $0x1488] sm:$0xff]
    %v5395 = vld [vmem:[%s7 + $0x1490] sm:$0xff]
    %v5396 = vld [vmem:[%s7 + $0x1498] sm:$0xff]
    %v5397 = vld [vmem:[%s7 + $0x14a0] sm:$0xff]
    %v5398 = vld [vmem:[%s7 + $0x14a8] sm:$0xff]
    %v5399 = vld [vmem:[%s7 + $0x14b0] sm:$0xff]
    %v5400 = vld [vmem:[%s7 + $0x14b8] sm:$0xff]
    %v5401 = vld [vmem:[%s7 + $0x14c0] sm:$0xff]
    %v5402 = vld [vmem:[%s7 + $0x14c8] sm:$0xff]
    %v5403 = vld [vmem:[%s7 + $0x14d0] sm:$0xff]
    %v5404 = vld [vmem:[%s7 + $0x14d8] sm:$0xff]
    %v5405 = vld [vmem:[%s7 + $0x14e0] sm:$0xff]
    %v5406 = vld [vmem:[%s7 + $0x14e8] sm:$0xff]
    %v5407 = vld [vmem:[%s7 + $0x14f0] sm:$0xff]
    %v5408 = vld [vmem:[%s7 + $0x14f8] sm:$0xff]
    %v5409 = vld [vmem:[%s7 + $0x1500] sm:$0xff]
    %v5410 = vld [vmem:[%s7 + $0x1508] sm:$0xff]
    %v5411 = vld [vmem:[%s7 + $0x1510] sm:$0xff]
    %v5412 = vld [vmem:[%s7 + $0x1518] sm:$0xff]
    %v5413 = vld [vmem:[%s7 + $0x1520] sm:$0xff]
    %v5414 = vld [vmem:[%s7 + $0x1528] sm:$0xff]
    %v5415 = vld [vmem:[%s7 + $0x1530] sm:$0xff]
    %v5416 = vld [vmem:[%s7 + $0x1538] sm:$0xff]
    %v5417 = vld [vmem:[%s7 + $0x1540] sm:$0xff]
    %v5418 = vld [vmem:[%s7 + $0x1548] sm:$0xff]
    %v5419 = vld [vmem:[%s7 + $0x1550] sm:$0xff]
    %v5420 = vld [vmem:[%s7 + $0x1558] sm:$0xff]
    %v5421 = vld [vmem:[%s7 + $0x1560] sm:$0xff]
    %v5422 = vld [vmem:[%s7 + $0x1568] sm:$0xff]
    %v5423 = vld [vmem:[%s7 + $0x1570] sm:$0xff]
    %v5424 = vld [vmem:[%s7 + $0x1578] sm:$0xff]
    %v5425 = vld [vmem:[%s7 + $0x1580] sm:$0xff]
    %v5426 = vld [vmem:[%s7 + $0x1588] sm:$0xff]
    %v5427 = vld [vmem:[%s7 + $0x1590] sm:$0xff]
    %v5428 = vld [vmem:[%s7 + $0x1598] sm:$0xff]
    %v5429 = vld [vmem:[%s7 + $0x15a0] sm:$0xff]
    %v5430 = vld [vmem:[%s7 + $0x15a8] sm:$0xff]
    %v5431 = vld [vmem:[%s7 + $0x15b0] sm:$0xff]
    %v5432 = vld [vmem:[%s7 + $0x15b8] sm:$0xff]
    %v5433 = vld [vmem:[%s7 + $0x15c0] sm:$0xff]
    %v5434 = vld [vmem:[%s7 + $0x15c8] sm:$0xff]
    %v5435 = vld [vmem:[%s7 + $0x15d0] sm:$0xff]
    %v5436 = vld [vmem:[%s7 + $0x15d8] sm:$0xff]
    %v5437 = vld [vmem:[%s7 + $0x15e0] sm:$0xff]
    %v5438 = vld [vmem:[%s7 + $0x15e8] sm:$0xff]
    %v5439 = vld [vmem:[%s7 + $0x15f0] sm:$0xff]
    %v5440 = vld [vmem:[%s7 + $0x15f8] sm:$0xff]
    %v5441 = vld [vmem:[%s7 + $0x1600] sm:$0xff]
    %v5442 = vld [vmem:[%s7 + $0x1608] sm:$0xff]
    %v5443 = vld [vmem:[%s7 + $0x1610] sm:$0xff]
    %v5444 = vld [vmem:[%s7 + $0x1618] sm:$0xff]
    %v5445 = vld [vmem:[%s7 + $0x1620] sm:$0xff]
    %v5446 = vld [vmem:[%s7 + $0x1628] sm:$0xff]
    %v5447 = vld [vmem:[%s7 + $0x1630] sm:$0xff]
    %v5448 = vld [vmem:[%s7 + $0x1638] sm:$0xff]
    %v5449 = vld [vmem:[%s7 + $0x1640] sm:$0xff]
    %v5450 = vld [vmem:[%s7 + $0x1648] sm:$0xff]
    %v5451 = vld [vmem:[%s7 + $0x1650] sm:$0xff]
    %v5452 = vld [vmem:[%s7 + $0x1658] sm:$0xff]
    %v5453 = vld [vmem:[%s7 + $0x1660] sm:$0xff]
    %v5454 = vld [vmem:[%s7 + $0x1668] sm:$0xff]
    %v5455 = vld [vmem:[%s7 + $0x1670] sm:$0xff]
    %v5456 = vld [vmem:[%s7 + $0x1678] sm:$0xff]
    %v5457 = vld [vmem:[%s7 + $0x1680] sm:$0xff]
    %v5458 = vld [vmem:[%s7 + $0x1688] sm:$0xff]
    %v5459 = vld [vmem:[%s7 + $0x1690] sm:$0xff]
    %v5460 = vld [vmem:[%s7 + $0x1698] sm:$0xff]
    %v5461 = vld [vmem:[%s7 + $0x16a0] sm:$0xff]
    %v5462 = vld [vmem:[%s7 + $0x16a8] sm:$0xff]
    %v5463 = vld [vmem:[%s7 + $0x16b0] sm:$0xff]
    %v5464 = vld [vmem:[%s7 + $0x16b8] sm:$0xff]
    %v5465 = vld [vmem:[%s7 + $0x16c0] sm:$0xff]
    %v5466 = vld [vmem:[%s7 + $0x16c8] sm:$0xff]
    %v5467 = vld [vmem:[%s7 + $0x16d0] sm:$0xff]
    %v5468 = vld [vmem:[%s7 + $0x16d8] sm:$0xff]
    %v5469 = vld [vmem:[%s7 + $0x16e0] sm:$0xff]
    %v5470 = vld [vmem:[%s7 + $0x16e8] sm:$0xff]
    %v5471 = vld [vmem:[%s7 + $0x16f0] sm:$0xff]
    %v5472 = vld [vmem:[%s7 + $0x16f8] sm:$0xff]
    %v5473 = vld [vmem:[%s7 + $0x1700] sm:$0xff]
    %v5474 = vld [vmem:[%s7 + $0x1708] sm:$0xff]
    %v5475 = vld [vmem:[%s7 + $0x1710] sm:$0xff]
    %v5476 = vld [vmem:[%s7 + $0x1718] sm:$0xff]
    %v5477 = vld [vmem:[%s7 + $0x1720] sm:$0xff]
    %v5478 = vld [vmem:[%s7 + $0x1728] sm:$0xff]
    %v5479 = vld [vmem:[%s7 + $0x1730] sm:$0xff]
    %v5480 = vld [vmem:[%s7 + $0x1738] sm:$0xff]
    %v5481 = vld [vmem:[%s7 + $0x1740] sm:$0xff]
    %v5482 = vld [vmem:[%s7 + $0x1748] sm:$0xff]
    %v5483 = vld [vmem:[%s7 + $0x1750] sm:$0xff]
    %v5484 = vld [vmem:[%s7 + $0x1758] sm:$0xff]
    %v5485 = vld [vmem:[%s7 + $0x1760] sm:$0xff]
    %v5486 = vld [vmem:[%s7 + $0x1768] sm:$0xff]
    %v5487 = vld [vmem:[%s7 + $0x1770] sm:$0xff]
    %v5488 = vld [vmem:[%s7 + $0x1778] sm:$0xff]
    %v5489 = vld [vmem:[%s7 + $0x1780] sm:$0xff]
    %v5490 = vld [vmem:[%s7 + $0x1788] sm:$0xff]
    %v5491 = vld [vmem:[%s7 + $0x1790] sm:$0xff]
    %v5492 = vld [vmem:[%s7 + $0x1798] sm:$0xff]
    %v5493 = vld [vmem:[%s7 + $0x17a0] sm:$0xff]
    %v5494 = vld [vmem:[%s7 + $0x17a8] sm:$0xff]
    %v5495 = vld [vmem:[%s7 + $0x17b0] sm:$0xff]
    %v5496 = vld [vmem:[%s7 + $0x17b8] sm:$0xff]
    %v5497 = vld [vmem:[%s7 + $0x17c0] sm:$0xff]
    %v5498 = vld [vmem:[%s7 + $0x17c8] sm:$0xff]
    %v5499 = vld [vmem:[%s7 + $0x17d0] sm:$0xff]
    %v5500 = vld [vmem:[%s7 + $0x17d8] sm:$0xff]
    %v5501 = vld [vmem:[%s7 + $0x17e0] sm:$0xff]
    %v5502 = vld [vmem:[%s7 + $0x17e8] sm:$0xff]
    %v5503 = vld [vmem:[%s7 + $0x17f0] sm:$0xff]
    %v5504 = vld [vmem:[%s7 + $0x17f8] sm:$0xff]
    %v5505 = vld [vmem:[%s7 + $0x1800] sm:$0xff]
    %v5506 = vld [vmem:[%s7 + $0x1808] sm:$0xff]
    %v5507 = vld [vmem:[%s7 + $0x1810] sm:$0xff]
    %v5508 = vld [vmem:[%s7 + $0x1818] sm:$0xff]
    %v5509 = vld [vmem:[%s7 + $0x1820] sm:$0xff]
    %v5510 = vld [vmem:[%s7 + $0x1828] sm:$0xff]
    %v5511 = vld [vmem:[%s7 + $0x1830] sm:$0xff]
    %v5512 = vld [vmem:[%s7 + $0x1838] sm:$0xff]
    %v5513 = vld [vmem:[%s7 + $0x1840] sm:$0xff]
    %v5514 = vld [vmem:[%s7 + $0x1848] sm:$0xff]
    %v5515 = vld [vmem:[%s7 + $0x1850] sm:$0xff]
    %v5516 = vld [vmem:[%s7 + $0x1858] sm:$0xff]
    %v5517 = vld [vmem:[%s7 + $0x1860] sm:$0xff]
    %v5518 = vld [vmem:[%s7 + $0x1868] sm:$0xff]
    %v5519 = vld [vmem:[%s7 + $0x1870] sm:$0xff]
    %v5520 = vld [vmem:[%s7 + $0x1878] sm:$0xff]
    %v5521 = vld [vmem:[%s8] sm:$0xf]
    %v6306 = vunpack.c.l.b16 %v4737
    %v6307 = vunpack.c.h.b16 %v4737
    %v6308 = vunpack.c.l.b16 %v4738
    %v6309 = vunpack.c.h.b16 %v4738
    %v6310 = vunpack.c.l.b16 %v4739
    %v6311 = vunpack.c.h.b16 %v4739
    %v6312 = vunpack.c.l.b16 %v4740
    %v6313 = vunpack.c.h.b16 %v4740
    %v6314 = vunpack.c.l.b16 %v4741
    %v6315 = vunpack.c.h.b16 %v4741
    %v6316 = vunpack.c.l.b16 %v4742
    %v6317 = vunpack.c.h.b16 %v4742
    %v6318 = vunpack.c.l.b16 %v4743
    %v6319 = vunpack.c.h.b16 %v4743
    %v6320 = vunpack.c.l.b16 %v4744
    %v6321 = vunpack.c.h.b16 %v4744
    %v6322 = vunpack.c.l.b16 %v4745
    %v6323 = vunpack.c.h.b16 %v4745
    %v6324 = vunpack.c.l.b16 %v4746
    %v6325 = vunpack.c.h.b16 %v4746
    %v6326 = vunpack.c.l.b16 %v4747
    %v6327 = vunpack.c.h.b16 %v4747
    %v6328 = vunpack.c.l.b16 %v4748
    %v6329 = vunpack.c.h.b16 %v4748
    %v6330 = vunpack.c.l.b16 %v4749
    %v6331 = vunpack.c.h.b16 %v4749
    %v6332 = vunpack.c.l.b16 %v4750
    %v6333 = vunpack.c.h.b16 %v4750
    %v6334 = vunpack.c.l.b16 %v4751
    %v6335 = vunpack.c.h.b16 %v4751
    %v6336 = vunpack.c.l.b16 %v4752
    %v6337 = vunpack.c.h.b16 %v4752
    %v6338 = vunpack.c.l.b16 %v4753
    %v6339 = vunpack.c.h.b16 %v4753
    %v6340 = vunpack.c.l.b16 %v4754
    %v6341 = vunpack.c.h.b16 %v4754
    %v6342 = vunpack.c.l.b16 %v4755
    %v6343 = vunpack.c.h.b16 %v4755
    %v6344 = vunpack.c.l.b16 %v4756
    %v6345 = vunpack.c.h.b16 %v4756
    %v6346 = vunpack.c.l.b16 %v4757
    %v6347 = vunpack.c.h.b16 %v4757
    %v6348 = vunpack.c.l.b16 %v4758
    %v6349 = vunpack.c.h.b16 %v4758
    %v6350 = vunpack.c.l.b16 %v4759
    %v6351 = vunpack.c.h.b16 %v4759
    %v6352 = vunpack.c.l.b16 %v4760
    %v6353 = vunpack.c.h.b16 %v4760
    %v6354 = vunpack.c.l.b16 %v4761
    %v6355 = vunpack.c.h.b16 %v4761
    %v6356 = vunpack.c.l.b16 %v4762
    %v6357 = vunpack.c.h.b16 %v4762
    %v6358 = vunpack.c.l.b16 %v4763
    %v6359 = vunpack.c.h.b16 %v4763
    %v6360 = vunpack.c.l.b16 %v4764
    %v6361 = vunpack.c.h.b16 %v4764
    %v6362 = vunpack.c.l.b16 %v4765
    %v6363 = vunpack.c.h.b16 %v4765
    %v6364 = vunpack.c.l.b16 %v4766
    %v6365 = vunpack.c.h.b16 %v4766
    %v6366 = vunpack.c.l.b16 %v4767
    %v6367 = vunpack.c.h.b16 %v4767
    %v6368 = vunpack.c.l.b16 %v4768
    %v6369 = vunpack.c.h.b16 %v4768
    %v6370 = vunpack.c.l.b16 %v4769
    %v6371 = vunpack.c.h.b16 %v4769
    %v6372 = vunpack.c.l.b16 %v4770
    %v6373 = vunpack.c.h.b16 %v4770
    %v6374 = vunpack.c.l.b16 %v4771
    %v6375 = vunpack.c.h.b16 %v4771
    %v6376 = vunpack.c.l.b16 %v4772
    %v6377 = vunpack.c.h.b16 %v4772
    %v6378 = vunpack.c.l.b16 %v4773
    %v6379 = vunpack.c.h.b16 %v4773
    %v6380 = vunpack.c.l.b16 %v4774
    %v6381 = vunpack.c.h.b16 %v4774
    %v6382 = vunpack.c.l.b16 %v4775
    %v6383 = vunpack.c.h.b16 %v4775
    %v6384 = vunpack.c.l.b16 %v4776
    %v6385 = vunpack.c.h.b16 %v4776
    %v6386 = vunpack.c.l.b16 %v4777
    %v6387 = vunpack.c.h.b16 %v4777
    %v6388 = vunpack.c.l.b16 %v4778
    %v6389 = vunpack.c.h.b16 %v4778
    %v6390 = vunpack.c.l.b16 %v4779
    %v6391 = vunpack.c.h.b16 %v4779
    %v6392 = vunpack.c.l.b16 %v4780
    %v6393 = vunpack.c.h.b16 %v4780
    %v6394 = vunpack.c.l.b16 %v4781
    %v6395 = vunpack.c.h.b16 %v4781
    %v6396 = vunpack.c.l.b16 %v4782
    %v6397 = vunpack.c.h.b16 %v4782
    %v6398 = vunpack.c.l.b16 %v4783
    %v6399 = vunpack.c.h.b16 %v4783
    %v6400 = vunpack.c.l.b16 %v4784
    %v6401 = vunpack.c.h.b16 %v4784
    %v6402 = vunpack.c.l.b16 %v4785
    %v6403 = vunpack.c.h.b16 %v4785
    %v6404 = vunpack.c.l.b16 %v4786
    %v6405 = vunpack.c.h.b16 %v4786
    %v6406 = vunpack.c.l.b16 %v4787
    %v6407 = vunpack.c.h.b16 %v4787
    %v6408 = vunpack.c.l.b16 %v4788
    %v6409 = vunpack.c.h.b16 %v4788
    %v6410 = vunpack.c.l.b16 %v4789
    %v6411 = vunpack.c.h.b16 %v4789
    %v6412 = vunpack.c.l.b16 %v4790
    %v6413 = vunpack.c.h.b16 %v4790
    %v6414 = vunpack.c.l.b16 %v4791
    %v6415 = vunpack.c.h.b16 %v4791
    %v6416 = vunpack.c.l.b16 %v4792
    %v6417 = vunpack.c.h.b16 %v4792
    %v6418 = vunpack.c.l.b16 %v4793
    %v6419 = vunpack.c.h.b16 %v4793
    %v6420 = vunpack.c.l.b16 %v4794
    %v6421 = vunpack.c.h.b16 %v4794
    %v6422 = vunpack.c.l.b16 %v4795
    %v6423 = vunpack.c.h.b16 %v4795
    %v6424 = vunpack.c.l.b16 %v4796
    %v6425 = vunpack.c.h.b16 %v4796
    %v6426 = vunpack.c.l.b16 %v4797
    %v6427 = vunpack.c.h.b16 %v4797
    %v6428 = vunpack.c.l.b16 %v4798
    %v6429 = vunpack.c.h.b16 %v4798
    %v6430 = vunpack.c.l.b16 %v4799
    %v6431 = vunpack.c.h.b16 %v4799
    %v6432 = vunpack.c.l.b16 %v4800
    %v6433 = vunpack.c.h.b16 %v4800
    %v6434 = vunpack.c.l.b16 %v4801
    %v6435 = vunpack.c.h.b16 %v4801
    %v6436 = vunpack.c.l.b16 %v4802
    %v6437 = vunpack.c.h.b16 %v4802
    %v6438 = vunpack.c.l.b16 %v4803
    %v6439 = vunpack.c.h.b16 %v4803
    %v6440 = vunpack.c.l.b16 %v4804
    %v6441 = vunpack.c.h.b16 %v4804
    %v6442 = vunpack.c.l.b16 %v4805
    %v6443 = vunpack.c.h.b16 %v4805
    %v6444 = vunpack.c.l.b16 %v4806
    %v6445 = vunpack.c.h.b16 %v4806
    %v6446 = vunpack.c.l.b16 %v4807
    %v6447 = vunpack.c.h.b16 %v4807
    %v6448 = vunpack.c.l.b16 %v4808
    %v6449 = vunpack.c.h.b16 %v4808
    %v6450 = vunpack.c.l.b16 %v4809
    %v6451 = vunpack.c.h.b16 %v4809
    %v6452 = vunpack.c.l.b16 %v4810
    %v6453 = vunpack.c.h.b16 %v4810
    %v6454 = vunpack.c.l.b16 %v4811
    %v6455 = vunpack.c.h.b16 %v4811
    %v6456 = vunpack.c.l.b16 %v4812
    %v6457 = vunpack.c.h.b16 %v4812
    %v6458 = vunpack.c.l.b16 %v4813
    %v6459 = vunpack.c.h.b16 %v4813
    %v6460 = vunpack.c.l.b16 %v4814
    %v6461 = vunpack.c.h.b16 %v4814
    %v6462 = vunpack.c.l.b16 %v4815
    %v6463 = vunpack.c.h.b16 %v4815
    %v6464 = vunpack.c.l.b16 %v4816
    %v6465 = vunpack.c.h.b16 %v4816
    %v6466 = vunpack.c.l.b16 %v4817
    %v6467 = vunpack.c.h.b16 %v4817
    %v6468 = vunpack.c.l.b16 %v4818
    %v6469 = vunpack.c.h.b16 %v4818
    %v6470 = vunpack.c.l.b16 %v4819
    %v6471 = vunpack.c.h.b16 %v4819
    %v6472 = vunpack.c.l.b16 %v4820
    %v6473 = vunpack.c.h.b16 %v4820
    %v6474 = vunpack.c.l.b16 %v4821
    %v6475 = vunpack.c.h.b16 %v4821
    %v6476 = vunpack.c.l.b16 %v4822
    %v6477 = vunpack.c.h.b16 %v4822
    %v6478 = vunpack.c.l.b16 %v4823
    %v6479 = vunpack.c.h.b16 %v4823
    %v6480 = vunpack.c.l.b16 %v4824
    %v6481 = vunpack.c.h.b16 %v4824
    %v6482 = vunpack.c.l.b16 %v4825
    %v6483 = vunpack.c.h.b16 %v4825
    %v6484 = vunpack.c.l.b16 %v4826
    %v6485 = vunpack.c.h.b16 %v4826
    %v6486 = vunpack.c.l.b16 %v4827
    %v6487 = vunpack.c.h.b16 %v4827
    %v6488 = vunpack.c.l.b16 %v4828
    %v6489 = vunpack.c.h.b16 %v4828
    %v6490 = vunpack.c.l.b16 %v4829
    %v6491 = vunpack.c.h.b16 %v4829
    %v6492 = vunpack.c.l.b16 %v4830
    %v6493 = vunpack.c.h.b16 %v4830
    %v6494 = vunpack.c.l.b16 %v4831
    %v6495 = vunpack.c.h.b16 %v4831
    %v6496 = vunpack.c.l.b16 %v4832
    %v6497 = vunpack.c.h.b16 %v4832
    %v6498 = vunpack.c.l.b16 %v4833
    %v6499 = vunpack.c.h.b16 %v4833
    %v6500 = vunpack.c.l.b16 %v4834
    %v6501 = vunpack.c.h.b16 %v4834
    %v6502 = vunpack.c.l.b16 %v4835
    %v6503 = vunpack.c.h.b16 %v4835
    %v6504 = vunpack.c.l.b16 %v4836
    %v6505 = vunpack.c.h.b16 %v4836
    %v6506 = vunpack.c.l.b16 %v4837
    %v6507 = vunpack.c.h.b16 %v4837
    %v6508 = vunpack.c.l.b16 %v4838
    %v6509 = vunpack.c.h.b16 %v4838
    %v6510 = vunpack.c.l.b16 %v4839
    %v6511 = vunpack.c.h.b16 %v4839
    %v6512 = vunpack.c.l.b16 %v4840
    %v6513 = vunpack.c.h.b16 %v4840
    %v6514 = vunpack.c.l.b16 %v4841
    %v6515 = vunpack.c.h.b16 %v4841
    %v6516 = vunpack.c.l.b16 %v4842
    %v6517 = vunpack.c.h.b16 %v4842
    %v6518 = vunpack.c.l.b16 %v4843
    %v6519 = vunpack.c.h.b16 %v4843
    %v6520 = vunpack.c.l.b16 %v4844
    %v6521 = vunpack.c.h.b16 %v4844
    %v6522 = vunpack.c.l.b16 %v4845
    %v6523 = vunpack.c.h.b16 %v4845
    %v6524 = vunpack.c.l.b16 %v4846
    %v6525 = vunpack.c.h.b16 %v4846
    %v6526 = vunpack.c.l.b16 %v4847
    %v6527 = vunpack.c.h.b16 %v4847
    %v6528 = vunpack.c.l.b16 %v4848
    %v6529 = vunpack.c.h.b16 %v4848
    %v6530 = vunpack.c.l.b16 %v4849
    %v6531 = vunpack.c.h.b16 %v4849
    %v6532 = vunpack.c.l.b16 %v4850
    %v6533 = vunpack.c.h.b16 %v4850
    %v6534 = vunpack.c.l.b16 %v4851
    %v6535 = vunpack.c.h.b16 %v4851
    %v6536 = vunpack.c.l.b16 %v4852
    %v6537 = vunpack.c.h.b16 %v4852
    %v6538 = vunpack.c.l.b16 %v4853
    %v6539 = vunpack.c.h.b16 %v4853
    %v6540 = vunpack.c.l.b16 %v4854
    %v6541 = vunpack.c.h.b16 %v4854
    %v6542 = vunpack.c.l.b16 %v4855
    %v6543 = vunpack.c.h.b16 %v4855
    %v6544 = vunpack.c.l.b16 %v4856
    %v6545 = vunpack.c.h.b16 %v4856
    %v6546 = vunpack.c.l.b16 %v4857
    %v6547 = vunpack.c.h.b16 %v4857
    %v6548 = vunpack.c.l.b16 %v4858
    %v6549 = vunpack.c.h.b16 %v4858
    %v6550 = vunpack.c.l.b16 %v4859
    %v6551 = vunpack.c.h.b16 %v4859
    %v6552 = vunpack.c.l.b16 %v4860
    %v6553 = vunpack.c.h.b16 %v4860
    %v6554 = vunpack.c.l.b16 %v4861
    %v6555 = vunpack.c.h.b16 %v4861
    %v6556 = vunpack.c.l.b16 %v4862
    %v6557 = vunpack.c.h.b16 %v4862
    %v6558 = vunpack.c.l.b16 %v4863
    %v6559 = vunpack.c.h.b16 %v4863
    %v6560 = vunpack.c.l.b16 %v4864
    %v6561 = vunpack.c.h.b16 %v4864
    %v6562 = vunpack.c.l.b16 %v4865
    %v6563 = vunpack.c.h.b16 %v4865
    %v6564 = vunpack.c.l.b16 %v4866
    %v6565 = vunpack.c.h.b16 %v4866
    %v6566 = vunpack.c.l.b16 %v4867
    %v6567 = vunpack.c.h.b16 %v4867
    %v6568 = vunpack.c.l.b16 %v4868
    %v6569 = vunpack.c.h.b16 %v4868
    %v6570 = vunpack.c.l.b16 %v4869
    %v6571 = vunpack.c.h.b16 %v4869
    %v6572 = vunpack.c.l.b16 %v4870
    %v6573 = vunpack.c.h.b16 %v4870
    %v6574 = vunpack.c.l.b16 %v4871
    %v6575 = vunpack.c.h.b16 %v4871
    %v6576 = vunpack.c.l.b16 %v4872
    %v6577 = vunpack.c.h.b16 %v4872
    %v6578 = vunpack.c.l.b16 %v4873
    %v6579 = vunpack.c.h.b16 %v4873
    %v6580 = vunpack.c.l.b16 %v4874
    %v6581 = vunpack.c.h.b16 %v4874
    %v6582 = vunpack.c.l.b16 %v4875
    %v6583 = vunpack.c.h.b16 %v4875
    %v6584 = vunpack.c.l.b16 %v4876
    %v6585 = vunpack.c.h.b16 %v4876
    %v6586 = vunpack.c.l.b16 %v4877
    %v6587 = vunpack.c.h.b16 %v4877
    %v6588 = vunpack.c.l.b16 %v4878
    %v6589 = vunpack.c.h.b16 %v4878
    %v6590 = vunpack.c.l.b16 %v4879
    %v6591 = vunpack.c.h.b16 %v4879
    %v6592 = vunpack.c.l.b16 %v4880
    %v6593 = vunpack.c.h.b16 %v4880
    %v6594 = vunpack.c.l.b16 %v4881
    %v6595 = vunpack.c.h.b16 %v4881
    %v6596 = vunpack.c.l.b16 %v4882
    %v6597 = vunpack.c.h.b16 %v4882
    %v6598 = vunpack.c.l.b16 %v4883
    %v6599 = vunpack.c.h.b16 %v4883
    %v6600 = vunpack.c.l.b16 %v4884
    %v6601 = vunpack.c.h.b16 %v4884
    %v6602 = vunpack.c.l.b16 %v4885
    %v6603 = vunpack.c.h.b16 %v4885
    %v6604 = vunpack.c.l.b16 %v4886
    %v6605 = vunpack.c.h.b16 %v4886
    %v6606 = vunpack.c.l.b16 %v4887
    %v6607 = vunpack.c.h.b16 %v4887
    %v6608 = vunpack.c.l.b16 %v4888
    %v6609 = vunpack.c.h.b16 %v4888
    %v6610 = vunpack.c.l.b16 %v4889
    %v6611 = vunpack.c.h.b16 %v4889
    %v6612 = vunpack.c.l.b16 %v4890
    %v6613 = vunpack.c.h.b16 %v4890
    %v6614 = vunpack.c.l.b16 %v4891
    %v6615 = vunpack.c.h.b16 %v4891
    %v6616 = vunpack.c.l.b16 %v4892
    %v6617 = vunpack.c.h.b16 %v4892
    %v6618 = vunpack.c.l.b16 %v4893
    %v6619 = vunpack.c.h.b16 %v4893
    %v6620 = vunpack.c.l.b16 %v4894
    %v6621 = vunpack.c.h.b16 %v4894
    %v6622 = vunpack.c.l.b16 %v4895
    %v6623 = vunpack.c.h.b16 %v4895
    %v6624 = vunpack.c.l.b16 %v4896
    %v6625 = vunpack.c.h.b16 %v4896
    %v6626 = vunpack.c.l.b16 %v4897
    %v6627 = vunpack.c.h.b16 %v4897
    %v6628 = vunpack.c.l.b16 %v4898
    %v6629 = vunpack.c.h.b16 %v4898
    %v6630 = vunpack.c.l.b16 %v4899
    %v6631 = vunpack.c.h.b16 %v4899
    %v6632 = vunpack.c.l.b16 %v4900
    %v6633 = vunpack.c.h.b16 %v4900
    %v6634 = vunpack.c.l.b16 %v4901
    %v6635 = vunpack.c.h.b16 %v4901
    %v6636 = vunpack.c.l.b16 %v4902
    %v6637 = vunpack.c.h.b16 %v4902
    %v6638 = vunpack.c.l.b16 %v4903
    %v6639 = vunpack.c.h.b16 %v4903
    %v6640 = vunpack.c.l.b16 %v4904
    %v6641 = vunpack.c.h.b16 %v4904
    %v6642 = vunpack.c.l.b16 %v4905
    %v6643 = vunpack.c.h.b16 %v4905
    %v6644 = vunpack.c.l.b16 %v4906
    %v6645 = vunpack.c.h.b16 %v4906
    %v6646 = vunpack.c.l.b16 %v4907
    %v6647 = vunpack.c.h.b16 %v4907
    %v6648 = vunpack.c.l.b16 %v4908
    %v6649 = vunpack.c.h.b16 %v4908
    %v6650 = vunpack.c.l.b16 %v4909
    %v6651 = vunpack.c.h.b16 %v4909
    %v6652 = vunpack.c.l.b16 %v4910
    %v6653 = vunpack.c.h.b16 %v4910
    %v6654 = vunpack.c.l.b16 %v4911
    %v6655 = vunpack.c.h.b16 %v4911
    %v6656 = vunpack.c.l.b16 %v4912
    %v6657 = vunpack.c.h.b16 %v4912
    %v6658 = vunpack.c.l.b16 %v4913
    %v6659 = vunpack.c.h.b16 %v4913
    %v6660 = vunpack.c.l.b16 %v4914
    %v6661 = vunpack.c.h.b16 %v4914
    %v6662 = vunpack.c.l.b16 %v4915
    %v6663 = vunpack.c.h.b16 %v4915
    %v6664 = vunpack.c.l.b16 %v4916
    %v6665 = vunpack.c.h.b16 %v4916
    %v6666 = vunpack.c.l.b16 %v4917
    %v6667 = vunpack.c.h.b16 %v4917
    %v6668 = vunpack.c.l.b16 %v4918
    %v6669 = vunpack.c.h.b16 %v4918
    %v6670 = vunpack.c.l.b16 %v4919
    %v6671 = vunpack.c.h.b16 %v4919
    %v6672 = vunpack.c.l.b16 %v4920
    %v6673 = vunpack.c.h.b16 %v4920
    %v6674 = vunpack.c.l.b16 %v4921
    %v6675 = vunpack.c.h.b16 %v4921
    %v6676 = vunpack.c.l.b16 %v4922
    %v6677 = vunpack.c.h.b16 %v4922
    %v6678 = vunpack.c.l.b16 %v4923
    %v6679 = vunpack.c.h.b16 %v4923
    %v6680 = vunpack.c.l.b16 %v4924
    %v6681 = vunpack.c.h.b16 %v4924
    %v6682 = vunpack.c.l.b16 %v4925
    %v6683 = vunpack.c.h.b16 %v4925
    %v6684 = vunpack.c.l.b16 %v4926
    %v6685 = vunpack.c.h.b16 %v4926
    %v6686 = vunpack.c.l.b16 %v4927
    %v6687 = vunpack.c.h.b16 %v4927
    %v6688 = vunpack.c.l.b16 %v4928
    %v6689 = vunpack.c.h.b16 %v4928
    %v6690 = vunpack.c.l.b16 %v4929
    %v6691 = vunpack.c.h.b16 %v4929
    %v6692 = vunpack.c.l.b16 %v4930
    %v6693 = vunpack.c.h.b16 %v4930
    %v6694 = vunpack.c.l.b16 %v4931
    %v6695 = vunpack.c.h.b16 %v4931
    %v6696 = vunpack.c.l.b16 %v4932
    %v6697 = vunpack.c.h.b16 %v4932
    %v6698 = vunpack.c.l.b16 %v4933
    %v6699 = vunpack.c.h.b16 %v4933
    %v6700 = vunpack.c.l.b16 %v4934
    %v6701 = vunpack.c.h.b16 %v4934
    %v6702 = vunpack.c.l.b16 %v4935
    %v6703 = vunpack.c.h.b16 %v4935
    %v6704 = vunpack.c.l.b16 %v4936
    %v6705 = vunpack.c.h.b16 %v4936
    %v6706 = vunpack.c.l.b16 %v4937
    %v6707 = vunpack.c.h.b16 %v4937
    %v6708 = vunpack.c.l.b16 %v4938
    %v6709 = vunpack.c.h.b16 %v4938
    %v6710 = vunpack.c.l.b16 %v4939
    %v6711 = vunpack.c.h.b16 %v4939
    %v6712 = vunpack.c.l.b16 %v4940
    %v6713 = vunpack.c.h.b16 %v4940
    %v6714 = vunpack.c.l.b16 %v4941
    %v6715 = vunpack.c.h.b16 %v4941
    %v6716 = vunpack.c.l.b16 %v4942
    %v6717 = vunpack.c.h.b16 %v4942
    %v6718 = vunpack.c.l.b16 %v4943
    %v6719 = vunpack.c.h.b16 %v4943
    %v6720 = vunpack.c.l.b16 %v4944
    %v6721 = vunpack.c.h.b16 %v4944
    %v6722 = vunpack.c.l.b16 %v4945
    %v6723 = vunpack.c.h.b16 %v4945
    %v6724 = vunpack.c.l.b16 %v4946
    %v6725 = vunpack.c.h.b16 %v4946
    %v6726 = vunpack.c.l.b16 %v4947
    %v6727 = vunpack.c.h.b16 %v4947
    %v6728 = vunpack.c.l.b16 %v4948
    %v6729 = vunpack.c.h.b16 %v4948
    %v6730 = vunpack.c.l.b16 %v4949
    %v6731 = vunpack.c.h.b16 %v4949
    %v6732 = vunpack.c.l.b16 %v4950
    %v6733 = vunpack.c.h.b16 %v4950
    %v6734 = vunpack.c.l.b16 %v4951
    %v6735 = vunpack.c.h.b16 %v4951
    %v6736 = vunpack.c.l.b16 %v4952
    %v6737 = vunpack.c.h.b16 %v4952
    %v6738 = vunpack.c.l.b16 %v4953
    %v6739 = vunpack.c.h.b16 %v4953
    %v6740 = vunpack.c.l.b16 %v4954
    %v6741 = vunpack.c.h.b16 %v4954
    %v6742 = vunpack.c.l.b16 %v4955
    %v6743 = vunpack.c.h.b16 %v4955
    %v6744 = vunpack.c.l.b16 %v4956
    %v6745 = vunpack.c.h.b16 %v4956
    %v6746 = vunpack.c.l.b16 %v4957
    %v6747 = vunpack.c.h.b16 %v4957
    %v6748 = vunpack.c.l.b16 %v4958
    %v6749 = vunpack.c.h.b16 %v4958
    %v6750 = vunpack.c.l.b16 %v4959
    %v6751 = vunpack.c.h.b16 %v4959
    %v6752 = vunpack.c.l.b16 %v4960
    %v6753 = vunpack.c.h.b16 %v4960
    %v6754 = vunpack.c.l.b16 %v4961
    %v6755 = vunpack.c.h.b16 %v4961
    %v6756 = vunpack.c.l.b16 %v4962
    %v6757 = vunpack.c.h.b16 %v4962
    %v6758 = vunpack.c.l.b16 %v4963
    %v6759 = vunpack.c.h.b16 %v4963
    %v6760 = vunpack.c.l.b16 %v4964
    %v6761 = vunpack.c.h.b16 %v4964
    %v6762 = vunpack.c.l.b16 %v4965
    %v6763 = vunpack.c.h.b16 %v4965
    %v6764 = vunpack.c.l.b16 %v4966
    %v6765 = vunpack.c.h.b16 %v4966
    %v6766 = vunpack.c.l.b16 %v4967
    %v6767 = vunpack.c.h.b16 %v4967
    %v6768 = vunpack.c.l.b16 %v4968
    %v6769 = vunpack.c.h.b16 %v4968
    %v6770 = vunpack.c.l.b16 %v4969
    %v6771 = vunpack.c.h.b16 %v4969
    %v6772 = vunpack.c.l.b16 %v4970
    %v6773 = vunpack.c.h.b16 %v4970
    %v6774 = vunpack.c.l.b16 %v4971
    %v6775 = vunpack.c.h.b16 %v4971
    %v6776 = vunpack.c.l.b16 %v4972
    %v6777 = vunpack.c.h.b16 %v4972
    %v6778 = vunpack.c.l.b16 %v4973
    %v6779 = vunpack.c.h.b16 %v4973
    %v6780 = vunpack.c.l.b16 %v4974
    %v6781 = vunpack.c.h.b16 %v4974
    %v6782 = vunpack.c.l.b16 %v4975
    %v6783 = vunpack.c.h.b16 %v4975
    %v6784 = vunpack.c.l.b16 %v4976
    %v6785 = vunpack.c.h.b16 %v4976
    %v6786 = vunpack.c.l.b16 %v4977
    %v6787 = vunpack.c.h.b16 %v4977
    %v6788 = vunpack.c.l.b16 %v4978
    %v6789 = vunpack.c.h.b16 %v4978
    %v6790 = vunpack.c.l.b16 %v4979
    %v6791 = vunpack.c.h.b16 %v4979
    %v6792 = vunpack.c.l.b16 %v4980
    %v6793 = vunpack.c.h.b16 %v4980
    %v6794 = vunpack.c.l.b16 %v4981
    %v6795 = vunpack.c.h.b16 %v4981
    %v6796 = vunpack.c.l.b16 %v4982
    %v6797 = vunpack.c.h.b16 %v4982
    %v6798 = vunpack.c.l.b16 %v4983
    %v6799 = vunpack.c.h.b16 %v4983
    %v6800 = vunpack.c.l.b16 %v4984
    %v6801 = vunpack.c.h.b16 %v4984
    %v6802 = vunpack.c.l.b16 %v4985
    %v6803 = vunpack.c.h.b16 %v4985
    %v6804 = vunpack.c.l.b16 %v4986
    %v6805 = vunpack.c.h.b16 %v4986
    %v6806 = vunpack.c.l.b16 %v4987
    %v6807 = vunpack.c.h.b16 %v4987
    %v6808 = vunpack.c.l.b16 %v4988
    %v6809 = vunpack.c.h.b16 %v4988
    %v6810 = vunpack.c.l.b16 %v4989
    %v6811 = vunpack.c.h.b16 %v4989
    %v6812 = vunpack.c.l.b16 %v4990
    %v6813 = vunpack.c.h.b16 %v4990
    %v6814 = vunpack.c.l.b16 %v4991
    %v6815 = vunpack.c.h.b16 %v4991
    %v6816 = vunpack.c.l.b16 %v4992
    %v6817 = vunpack.c.h.b16 %v4992
    %v6818 = vunpack.c.l.b16 %v4993
    %v6819 = vunpack.c.h.b16 %v4993
    %v6820 = vunpack.c.l.b16 %v4994
    %v6821 = vunpack.c.h.b16 %v4994
    %v6822 = vunpack.c.l.b16 %v4995
    %v6823 = vunpack.c.h.b16 %v4995
    %v6824 = vunpack.c.l.b16 %v4996
    %v6825 = vunpack.c.h.b16 %v4996
    %v6826 = vunpack.c.l.b16 %v4997
    %v6827 = vunpack.c.h.b16 %v4997
    %v6828 = vunpack.c.l.b16 %v4998
    %v6829 = vunpack.c.h.b16 %v4998
    %v6830 = vunpack.c.l.b16 %v4999
    %v6831 = vunpack.c.h.b16 %v4999
    %v6832 = vunpack.c.l.b16 %v5000
    %v6833 = vunpack.c.h.b16 %v5000
    %v6834 = vunpack.c.l.b16 %v5001
    %v6835 = vunpack.c.h.b16 %v5001
    %v6836 = vunpack.c.l.b16 %v5002
    %v6837 = vunpack.c.h.b16 %v5002
    %v6838 = vunpack.c.l.b16 %v5003
    %v6839 = vunpack.c.h.b16 %v5003
    %v6840 = vunpack.c.l.b16 %v5004
    %v6841 = vunpack.c.h.b16 %v5004
    %v6842 = vunpack.c.l.b16 %v5005
    %v6843 = vunpack.c.h.b16 %v5005
    %v6844 = vunpack.c.l.b16 %v5006
    %v6845 = vunpack.c.h.b16 %v5006
    %v6846 = vunpack.c.l.b16 %v5007
    %v6847 = vunpack.c.h.b16 %v5007
    %v6848 = vunpack.c.l.b16 %v5008
    %v6849 = vunpack.c.h.b16 %v5008
    %v6850 = vunpack.c.l.b16 %v5009
    %v6851 = vunpack.c.h.b16 %v5009
    %v6852 = vunpack.c.l.b16 %v5010
    %v6853 = vunpack.c.h.b16 %v5010
    %v6854 = vunpack.c.l.b16 %v5011
    %v6855 = vunpack.c.h.b16 %v5011
    %v6856 = vunpack.c.l.b16 %v5012
    %v6857 = vunpack.c.h.b16 %v5012
    %v6858 = vunpack.c.l.b16 %v5013
    %v6859 = vunpack.c.h.b16 %v5013
    %v6860 = vunpack.c.l.b16 %v5014
    %v6861 = vunpack.c.h.b16 %v5014
    %v6862 = vunpack.c.l.b16 %v5015
    %v6863 = vunpack.c.h.b16 %v5015
    %v6864 = vunpack.c.l.b16 %v5016
    %v6865 = vunpack.c.h.b16 %v5016
    %v6866 = vunpack.c.l.b16 %v5017
    %v6867 = vunpack.c.h.b16 %v5017
    %v6868 = vunpack.c.l.b16 %v5018
    %v6869 = vunpack.c.h.b16 %v5018
    %v6870 = vunpack.c.l.b16 %v5019
    %v6871 = vunpack.c.h.b16 %v5019
    %v6872 = vunpack.c.l.b16 %v5020
    %v6873 = vunpack.c.h.b16 %v5020
    %v6874 = vunpack.c.l.b16 %v5021
    %v6875 = vunpack.c.h.b16 %v5021
    %v6876 = vunpack.c.l.b16 %v5022
    %v6877 = vunpack.c.h.b16 %v5022
    %v6878 = vunpack.c.l.b16 %v5023
    %v6879 = vunpack.c.h.b16 %v5023
    %v6880 = vunpack.c.l.b16 %v5024
    %v6881 = vunpack.c.h.b16 %v5024
    %v6882 = vunpack.c.l.b16 %v5025
    %v6883 = vunpack.c.h.b16 %v5025
    %v6884 = vunpack.c.l.b16 %v5026
    %v6885 = vunpack.c.h.b16 %v5026
    %v6886 = vunpack.c.l.b16 %v5027
    %v6887 = vunpack.c.h.b16 %v5027
    %v6888 = vunpack.c.l.b16 %v5028
    %v6889 = vunpack.c.h.b16 %v5028
    %v6890 = vunpack.c.l.b16 %v5029
    %v6891 = vunpack.c.h.b16 %v5029
    %v6892 = vunpack.c.l.b16 %v5030
    %v6893 = vunpack.c.h.b16 %v5030
    %v6894 = vunpack.c.l.b16 %v5031
    %v6895 = vunpack.c.h.b16 %v5031
    %v6896 = vunpack.c.l.b16 %v5032
    %v6897 = vunpack.c.h.b16 %v5032
    %v6898 = vunpack.c.l.b16 %v5033
    %v6899 = vunpack.c.h.b16 %v5033
    %v6900 = vunpack.c.l.b16 %v5034
    %v6901 = vunpack.c.h.b16 %v5034
    %v6902 = vunpack.c.l.b16 %v5035
    %v6903 = vunpack.c.h.b16 %v5035
    %v6904 = vunpack.c.l.b16 %v5036
    %v6905 = vunpack.c.h.b16 %v5036
    %v6906 = vunpack.c.l.b16 %v5037
    %v6907 = vunpack.c.h.b16 %v5037
    %v6908 = vunpack.c.l.b16 %v5038
    %v6909 = vunpack.c.h.b16 %v5038
    %v6910 = vunpack.c.l.b16 %v5039
    %v6911 = vunpack.c.h.b16 %v5039
    %v6912 = vunpack.c.l.b16 %v5040
    %v6913 = vunpack.c.h.b16 %v5040
    %v6914 = vunpack.c.l.b16 %v5041
    %v6915 = vunpack.c.h.b16 %v5041
    %v6916 = vunpack.c.l.b16 %v5042
    %v6917 = vunpack.c.h.b16 %v5042
    %v6918 = vunpack.c.l.b16 %v5043
    %v6919 = vunpack.c.h.b16 %v5043
    %v6920 = vunpack.c.l.b16 %v5044
    %v6921 = vunpack.c.h.b16 %v5044
    %v6922 = vunpack.c.l.b16 %v5045
    %v6923 = vunpack.c.h.b16 %v5045
    %v6924 = vunpack.c.l.b16 %v5046
    %v6925 = vunpack.c.h.b16 %v5046
    %v6926 = vunpack.c.l.b16 %v5047
    %v6927 = vunpack.c.h.b16 %v5047
    %v6928 = vunpack.c.l.b16 %v5048
    %v6929 = vunpack.c.h.b16 %v5048
    %v6930 = vunpack.c.l.b16 %v5049
    %v6931 = vunpack.c.h.b16 %v5049
    %v6932 = vunpack.c.l.b16 %v5050
    %v6933 = vunpack.c.h.b16 %v5050
    %v6934 = vunpack.c.l.b16 %v5051
    %v6935 = vunpack.c.h.b16 %v5051
    %v6936 = vunpack.c.l.b16 %v5052
    %v6937 = vunpack.c.h.b16 %v5052
    %v6938 = vunpack.c.l.b16 %v5053
    %v6939 = vunpack.c.h.b16 %v5053
    %v6940 = vunpack.c.l.b16 %v5054
    %v6941 = vunpack.c.h.b16 %v5054
    %v6942 = vunpack.c.l.b16 %v5055
    %v6943 = vunpack.c.h.b16 %v5055
    %v6944 = vunpack.c.l.b16 %v5056
    %v6945 = vunpack.c.h.b16 %v5056
    %v6946 = vunpack.c.l.b16 %v5057
    %v6947 = vunpack.c.h.b16 %v5057
    %v6948 = vunpack.c.l.b16 %v5058
    %v6949 = vunpack.c.h.b16 %v5058
    %v6950 = vunpack.c.l.b16 %v5059
    %v6951 = vunpack.c.h.b16 %v5059
    %v6952 = vunpack.c.l.b16 %v5060
    %v6953 = vunpack.c.h.b16 %v5060
    %v6954 = vunpack.c.l.b16 %v5061
    %v6955 = vunpack.c.h.b16 %v5061
    %v6956 = vunpack.c.l.b16 %v5062
    %v6957 = vunpack.c.h.b16 %v5062
    %v6958 = vunpack.c.l.b16 %v5063
    %v6959 = vunpack.c.h.b16 %v5063
    %v6960 = vunpack.c.l.b16 %v5064
    %v6961 = vunpack.c.h.b16 %v5064
    %v6962 = vunpack.c.l.b16 %v5065
    %v6963 = vunpack.c.h.b16 %v5065
    %v6964 = vunpack.c.l.b16 %v5066
    %v6965 = vunpack.c.h.b16 %v5066
    %v6966 = vunpack.c.l.b16 %v5067
    %v6967 = vunpack.c.h.b16 %v5067
    %v6968 = vunpack.c.l.b16 %v5068
    %v6969 = vunpack.c.h.b16 %v5068
    %v6970 = vunpack.c.l.b16 %v5069
    %v6971 = vunpack.c.h.b16 %v5069
    %v6972 = vunpack.c.l.b16 %v5070
    %v6973 = vunpack.c.h.b16 %v5070
    %v6974 = vunpack.c.l.b16 %v5071
    %v6975 = vunpack.c.h.b16 %v5071
    %v6976 = vunpack.c.l.b16 %v5072
    %v6977 = vunpack.c.h.b16 %v5072
    %v6978 = vunpack.c.l.b16 %v5073
    %v6979 = vunpack.c.h.b16 %v5073
    %v6980 = vunpack.c.l.b16 %v5074
    %v6981 = vunpack.c.h.b16 %v5074
    %v6982 = vunpack.c.l.b16 %v5075
    %v6983 = vunpack.c.h.b16 %v5075
    %v6984 = vunpack.c.l.b16 %v5076
    %v6985 = vunpack.c.h.b16 %v5076
    %v6986 = vunpack.c.l.b16 %v5077
    %v6987 = vunpack.c.h.b16 %v5077
    %v6988 = vunpack.c.l.b16 %v5078
    %v6989 = vunpack.c.h.b16 %v5078
    %v6990 = vunpack.c.l.b16 %v5079
    %v6991 = vunpack.c.h.b16 %v5079
    %v6992 = vunpack.c.l.b16 %v5080
    %v6993 = vunpack.c.h.b16 %v5080
    %v6994 = vunpack.c.l.b16 %v5081
    %v6995 = vunpack.c.h.b16 %v5081
    %v6996 = vunpack.c.l.b16 %v5082
    %v6997 = vunpack.c.h.b16 %v5082
    %v6998 = vunpack.c.l.b16 %v5083
    %v6999 = vunpack.c.h.b16 %v5083
    %v7000 = vunpack.c.l.b16 %v5084
    %v7001 = vunpack.c.h.b16 %v5084
    %v7002 = vunpack.c.l.b16 %v5085
    %v7003 = vunpack.c.h.b16 %v5085
    %v7004 = vunpack.c.l.b16 %v5086
    %v7005 = vunpack.c.h.b16 %v5086
    %v7006 = vunpack.c.l.b16 %v5087
    %v7007 = vunpack.c.h.b16 %v5087
    %v7008 = vunpack.c.l.b16 %v5088
    %v7009 = vunpack.c.h.b16 %v5088
    %v7010 = vunpack.c.l.b16 %v5089
    %v7011 = vunpack.c.h.b16 %v5089
    %v7012 = vunpack.c.l.b16 %v5090
    %v7013 = vunpack.c.h.b16 %v5090
    %v7014 = vunpack.c.l.b16 %v5091
    %v7015 = vunpack.c.h.b16 %v5091
    %v7016 = vunpack.c.l.b16 %v5092
    %v7017 = vunpack.c.h.b16 %v5092
    %v7018 = vunpack.c.l.b16 %v5093
    %v7019 = vunpack.c.h.b16 %v5093
    %v7020 = vunpack.c.l.b16 %v5094
    %v7021 = vunpack.c.h.b16 %v5094
    %v7022 = vunpack.c.l.b16 %v5095
    %v7023 = vunpack.c.h.b16 %v5095
    %v7024 = vunpack.c.l.b16 %v5096
    %v7025 = vunpack.c.h.b16 %v5096
    %v7026 = vunpack.c.l.b16 %v5097
    %v7027 = vunpack.c.h.b16 %v5097
    %v7028 = vunpack.c.l.b16 %v5098
    %v7029 = vunpack.c.h.b16 %v5098
    %v7030 = vunpack.c.l.b16 %v5099
    %v7031 = vunpack.c.h.b16 %v5099
    %v7032 = vunpack.c.l.b16 %v5100
    %v7033 = vunpack.c.h.b16 %v5100
    %v7034 = vunpack.c.l.b16 %v5101
    %v7035 = vunpack.c.h.b16 %v5101
    %v7036 = vunpack.c.l.b16 %v5102
    %v7037 = vunpack.c.h.b16 %v5102
    %v7038 = vunpack.c.l.b16 %v5103
    %v7039 = vunpack.c.h.b16 %v5103
    %v7040 = vunpack.c.l.b16 %v5104
    %v7041 = vunpack.c.h.b16 %v5104
    %v7042 = vunpack.c.l.b16 %v5105
    %v7043 = vunpack.c.h.b16 %v5105
    %v7044 = vunpack.c.l.b16 %v5106
    %v7045 = vunpack.c.h.b16 %v5106
    %v7046 = vunpack.c.l.b16 %v5107
    %v7047 = vunpack.c.h.b16 %v5107
    %v7048 = vunpack.c.l.b16 %v5108
    %v7049 = vunpack.c.h.b16 %v5108
    %v7050 = vunpack.c.l.b16 %v5109
    %v7051 = vunpack.c.h.b16 %v5109
    %v7052 = vunpack.c.l.b16 %v5110
    %v7053 = vunpack.c.h.b16 %v5110
    %v7054 = vunpack.c.l.b16 %v5111
    %v7055 = vunpack.c.h.b16 %v5111
    %v7056 = vunpack.c.l.b16 %v5112
    %v7057 = vunpack.c.h.b16 %v5112
    %v7058 = vunpack.c.l.b16 %v5113
    %v7059 = vunpack.c.h.b16 %v5113
    %v7060 = vunpack.c.l.b16 %v5114
    %v7061 = vunpack.c.h.b16 %v5114
    %v7062 = vunpack.c.l.b16 %v5115
    %v7063 = vunpack.c.h.b16 %v5115
    %v7064 = vunpack.c.l.b16 %v5116
    %v7065 = vunpack.c.h.b16 %v5116
    %v7066 = vunpack.c.l.b16 %v5117
    %v7067 = vunpack.c.h.b16 %v5117
    %v7068 = vunpack.c.l.b16 %v5118
    %v7069 = vunpack.c.h.b16 %v5118
    %v7070 = vunpack.c.l.b16 %v5119
    %v7071 = vunpack.c.h.b16 %v5119
    %v7072 = vunpack.c.l.b16 %v5120
    %v7073 = vunpack.c.h.b16 %v5120
    %v7074 = vunpack.c.l.b16 %v5121
    %v7075 = vunpack.c.h.b16 %v5121
    %v7076 = vunpack.c.l.b16 %v5122
    %v7077 = vunpack.c.h.b16 %v5122
    %v7078 = vunpack.c.l.b16 %v5123
    %v7079 = vunpack.c.h.b16 %v5123
    %v7080 = vunpack.c.l.b16 %v5124
    %v7081 = vunpack.c.h.b16 %v5124
    %v7082 = vunpack.c.l.b16 %v5125
    %v7083 = vunpack.c.h.b16 %v5125
    %v7084 = vunpack.c.l.b16 %v5126
    %v7085 = vunpack.c.h.b16 %v5126
    %v7086 = vunpack.c.l.b16 %v5127
    %v7087 = vunpack.c.h.b16 %v5127
    %v7088 = vunpack.c.l.b16 %v5128
    %v7089 = vunpack.c.h.b16 %v5128
    %v7090 = vunpack.c.l.b16 %v5129
    %v7091 = vunpack.c.h.b16 %v5129
    %v7092 = vunpack.c.l.b16 %v5130
    %v7093 = vunpack.c.h.b16 %v5130
    %v7094 = vunpack.c.l.b16 %v5131
    %v7095 = vunpack.c.h.b16 %v5131
    %v7096 = vunpack.c.l.b16 %v5132
    %v7097 = vunpack.c.h.b16 %v5132
    %v7098 = vunpack.c.l.b16 %v5133
    %v7099 = vunpack.c.h.b16 %v5133
    %v7100 = vunpack.c.l.b16 %v5134
    %v7101 = vunpack.c.h.b16 %v5134
    %v7102 = vunpack.c.l.b16 %v5135
    %v7103 = vunpack.c.h.b16 %v5135
    %v7104 = vunpack.c.l.b16 %v5136
    %v7105 = vunpack.c.h.b16 %v5136
    %v7106 = vunpack.c.l.b16 %v5137
    %v7107 = vunpack.c.h.b16 %v5137
    %v7108 = vunpack.c.l.b16 %v5138
    %v7109 = vunpack.c.h.b16 %v5138
    %v7110 = vunpack.c.l.b16 %v5139
    %v7111 = vunpack.c.h.b16 %v5139
    %v7112 = vunpack.c.l.b16 %v5140
    %v7113 = vunpack.c.h.b16 %v5140
    %v7114 = vunpack.c.l.b16 %v5141
    %v7115 = vunpack.c.h.b16 %v5141
    %v7116 = vunpack.c.l.b16 %v5142
    %v7117 = vunpack.c.h.b16 %v5142
    %v7118 = vunpack.c.l.b16 %v5143
    %v7119 = vunpack.c.h.b16 %v5143
    %v7120 = vunpack.c.l.b16 %v5144
    %v7121 = vunpack.c.h.b16 %v5144
    %v7122 = vunpack.c.l.b16 %v5145
    %v7123 = vunpack.c.h.b16 %v5145
    %v7124 = vunpack.c.l.b16 %v5146
    %v7125 = vunpack.c.h.b16 %v5146
    %v7126 = vunpack.c.l.b16 %v5147
    %v7127 = vunpack.c.h.b16 %v5147
    %v7128 = vunpack.c.l.b16 %v5148
    %v7129 = vunpack.c.h.b16 %v5148
    %v7130 = vunpack.c.l.b16 %v5149
    %v7131 = vunpack.c.h.b16 %v5149
    %v7132 = vunpack.c.l.b16 %v5150
    %v7133 = vunpack.c.h.b16 %v5150
    %v7134 = vunpack.c.l.b16 %v5151
    %v7135 = vunpack.c.h.b16 %v5151
    %v7136 = vunpack.c.l.b16 %v5152
    %v7137 = vunpack.c.h.b16 %v5152
    %v7138 = vunpack.c.l.b16 %v5153
    %v7139 = vunpack.c.h.b16 %v5153
    %v7140 = vunpack.c.l.b16 %v5154
    %v7141 = vunpack.c.h.b16 %v5154
    %v7142 = vunpack.c.l.b16 %v5155
    %v7143 = vunpack.c.h.b16 %v5155
    %v7144 = vunpack.c.l.b16 %v5156
    %v7145 = vunpack.c.h.b16 %v5156
    %v7146 = vunpack.c.l.b16 %v5157
    %v7147 = vunpack.c.h.b16 %v5157
    %v7148 = vunpack.c.l.b16 %v5158
    %v7149 = vunpack.c.h.b16 %v5158
    %v7150 = vunpack.c.l.b16 %v5159
    %v7151 = vunpack.c.h.b16 %v5159
    %v7152 = vunpack.c.l.b16 %v5160
    %v7153 = vunpack.c.h.b16 %v5160
    %v7154 = vunpack.c.l.b16 %v5161
    %v7155 = vunpack.c.h.b16 %v5161
    %v7156 = vunpack.c.l.b16 %v5162
    %v7157 = vunpack.c.h.b16 %v5162
    %v7158 = vunpack.c.l.b16 %v5163
    %v7159 = vunpack.c.h.b16 %v5163
    %v7160 = vunpack.c.l.b16 %v5164
    %v7161 = vunpack.c.h.b16 %v5164
    %v7162 = vunpack.c.l.b16 %v5165
    %v7163 = vunpack.c.h.b16 %v5165
    %v7164 = vunpack.c.l.b16 %v5166
    %v7165 = vunpack.c.h.b16 %v5166
    %v7166 = vunpack.c.l.b16 %v5167
    %v7167 = vunpack.c.h.b16 %v5167
    %v7168 = vunpack.c.l.b16 %v5168
    %v7169 = vunpack.c.h.b16 %v5168
    %v7170 = vunpack.c.l.b16 %v5169
    %v7171 = vunpack.c.h.b16 %v5169
    %v7172 = vunpack.c.l.b16 %v5170
    %v7173 = vunpack.c.h.b16 %v5170
    %v7174 = vunpack.c.l.b16 %v5171
    %v7175 = vunpack.c.h.b16 %v5171
    %v7176 = vunpack.c.l.b16 %v5172
    %v7177 = vunpack.c.h.b16 %v5172
    %v7178 = vunpack.c.l.b16 %v5173
    %v7179 = vunpack.c.h.b16 %v5173
    %v7180 = vunpack.c.l.b16 %v5174
    %v7181 = vunpack.c.h.b16 %v5174
    %v7182 = vunpack.c.l.b16 %v5175
    %v7183 = vunpack.c.h.b16 %v5175
    %v7184 = vunpack.c.l.b16 %v5176
    %v7185 = vunpack.c.h.b16 %v5176
    %v7186 = vunpack.c.l.b16 %v5177
    %v7187 = vunpack.c.h.b16 %v5177
    %v7188 = vunpack.c.l.b16 %v5178
    %v7189 = vunpack.c.h.b16 %v5178
    %v7190 = vunpack.c.l.b16 %v5179
    %v7191 = vunpack.c.h.b16 %v5179
    %v7192 = vunpack.c.l.b16 %v5180
    %v7193 = vunpack.c.h.b16 %v5180
    %v7194 = vunpack.c.l.b16 %v5181
    %v7195 = vunpack.c.h.b16 %v5181
    %v7196 = vunpack.c.l.b16 %v5182
    %v7197 = vunpack.c.h.b16 %v5182
    %v7198 = vunpack.c.l.b16 %v5183
    %v7199 = vunpack.c.h.b16 %v5183
    %v7200 = vunpack.c.l.b16 %v5184
    %v7201 = vunpack.c.h.b16 %v5184
    %v7202 = vunpack.c.l.b16 %v5185
    %v7203 = vunpack.c.h.b16 %v5185
    %v7204 = vunpack.c.l.b16 %v5186
    %v7205 = vunpack.c.h.b16 %v5186
    %v7206 = vunpack.c.l.b16 %v5187
    %v7207 = vunpack.c.h.b16 %v5187
    %v7208 = vunpack.c.l.b16 %v5188
    %v7209 = vunpack.c.h.b16 %v5188
    %v7210 = vunpack.c.l.b16 %v5189
    %v7211 = vunpack.c.h.b16 %v5189
    %v7212 = vunpack.c.l.b16 %v5190
    %v7213 = vunpack.c.h.b16 %v5190
    %v7214 = vunpack.c.l.b16 %v5191
    %v7215 = vunpack.c.h.b16 %v5191
    %v7216 = vunpack.c.l.b16 %v5192
    %v7217 = vunpack.c.h.b16 %v5192
    %v7218 = vunpack.c.l.b16 %v5193
    %v7219 = vunpack.c.h.b16 %v5193
    %v7220 = vunpack.c.l.b16 %v5194
    %v7221 = vunpack.c.h.b16 %v5194
    %v7222 = vunpack.c.l.b16 %v5195
    %v7223 = vunpack.c.h.b16 %v5195
    %v7224 = vunpack.c.l.b16 %v5196
    %v7225 = vunpack.c.h.b16 %v5196
    %v7226 = vunpack.c.l.b16 %v5197
    %v7227 = vunpack.c.h.b16 %v5197
    %v7228 = vunpack.c.l.b16 %v5198
    %v7229 = vunpack.c.h.b16 %v5198
    %v7230 = vunpack.c.l.b16 %v5199
    %v7231 = vunpack.c.h.b16 %v5199
    %v7232 = vunpack.c.l.b16 %v5200
    %v7233 = vunpack.c.h.b16 %v5200
    %v7234 = vunpack.c.l.b16 %v5201
    %v7235 = vunpack.c.h.b16 %v5201
    %v7236 = vunpack.c.l.b16 %v5202
    %v7237 = vunpack.c.h.b16 %v5202
    %v7238 = vunpack.c.l.b16 %v5203
    %v7239 = vunpack.c.h.b16 %v5203
    %v7240 = vunpack.c.l.b16 %v5204
    %v7241 = vunpack.c.h.b16 %v5204
    %v7242 = vunpack.c.l.b16 %v5205
    %v7243 = vunpack.c.h.b16 %v5205
    %v7244 = vunpack.c.l.b16 %v5206
    %v7245 = vunpack.c.h.b16 %v5206
    %v7246 = vunpack.c.l.b16 %v5207
    %v7247 = vunpack.c.h.b16 %v5207
    %v7248 = vunpack.c.l.b16 %v5208
    %v7249 = vunpack.c.h.b16 %v5208
    %v7250 = vunpack.c.l.b16 %v5209
    %v7251 = vunpack.c.h.b16 %v5209
    %v7252 = vunpack.c.l.b16 %v5210
    %v7253 = vunpack.c.h.b16 %v5210
    %v7254 = vunpack.c.l.b16 %v5211
    %v7255 = vunpack.c.h.b16 %v5211
    %v7256 = vunpack.c.l.b16 %v5212
    %v7257 = vunpack.c.h.b16 %v5212
    %v7258 = vunpack.c.l.b16 %v5213
    %v7259 = vunpack.c.h.b16 %v5213
    %v7260 = vunpack.c.l.b16 %v5214
    %v7261 = vunpack.c.h.b16 %v5214
    %v7262 = vunpack.c.l.b16 %v5215
    %v7263 = vunpack.c.h.b16 %v5215
    %v7264 = vunpack.c.l.b16 %v5216
    %v7265 = vunpack.c.h.b16 %v5216
    %v7266 = vunpack.c.l.b16 %v5217
    %v7267 = vunpack.c.h.b16 %v5217
    %v7268 = vunpack.c.l.b16 %v5218
    %v7269 = vunpack.c.h.b16 %v5218
    %v7270 = vunpack.c.l.b16 %v5219
    %v7271 = vunpack.c.h.b16 %v5219
    %v7272 = vunpack.c.l.b16 %v5220
    %v7273 = vunpack.c.h.b16 %v5220
    %v7274 = vunpack.c.l.b16 %v5221
    %v7275 = vunpack.c.h.b16 %v5221
    %v7276 = vunpack.c.l.b16 %v5222
    %v7277 = vunpack.c.h.b16 %v5222
    %v7278 = vunpack.c.l.b16 %v5223
    %v7279 = vunpack.c.h.b16 %v5223
    %v7280 = vunpack.c.l.b16 %v5224
    %v7281 = vunpack.c.h.b16 %v5224
    %v7282 = vunpack.c.l.b16 %v5225
    %v7283 = vunpack.c.h.b16 %v5225
    %v7284 = vunpack.c.l.b16 %v5226
    %v7285 = vunpack.c.h.b16 %v5226
    %v7286 = vunpack.c.l.b16 %v5227
    %v7287 = vunpack.c.h.b16 %v5227
    %v7288 = vunpack.c.l.b16 %v5228
    %v7289 = vunpack.c.h.b16 %v5228
    %v7290 = vunpack.c.l.b16 %v5229
    %v7291 = vunpack.c.h.b16 %v5229
    %v7292 = vunpack.c.l.b16 %v5230
    %v7293 = vunpack.c.h.b16 %v5230
    %v7294 = vunpack.c.l.b16 %v5231
    %v7295 = vunpack.c.h.b16 %v5231
    %v7296 = vunpack.c.l.b16 %v5232
    %v7297 = vunpack.c.h.b16 %v5232
    %v7298 = vunpack.c.l.b16 %v5233
    %v7299 = vunpack.c.h.b16 %v5233
    %v7300 = vunpack.c.l.b16 %v5234
    %v7301 = vunpack.c.h.b16 %v5234
    %v7302 = vunpack.c.l.b16 %v5235
    %v7303 = vunpack.c.h.b16 %v5235
    %v7304 = vunpack.c.l.b16 %v5236
    %v7305 = vunpack.c.h.b16 %v5236
    %v7306 = vunpack.c.l.b16 %v5237
    %v7307 = vunpack.c.h.b16 %v5237
    %v7308 = vunpack.c.l.b16 %v5238
    %v7309 = vunpack.c.h.b16 %v5238
    %v7310 = vunpack.c.l.b16 %v5239
    %v7311 = vunpack.c.h.b16 %v5239
    %v7312 = vunpack.c.l.b16 %v5240
    %v7313 = vunpack.c.h.b16 %v5240
    %v7314 = vunpack.c.l.b16 %v5241
    %v7315 = vunpack.c.h.b16 %v5241
    %v7316 = vunpack.c.l.b16 %v5242
    %v7317 = vunpack.c.h.b16 %v5242
    %v7318 = vunpack.c.l.b16 %v5243
    %v7319 = vunpack.c.h.b16 %v5243
    %v7320 = vunpack.c.l.b16 %v5244
    %v7321 = vunpack.c.h.b16 %v5244
    %v7322 = vunpack.c.l.b16 %v5245
    %v7323 = vunpack.c.h.b16 %v5245
    %v7324 = vunpack.c.l.b16 %v5246
    %v7325 = vunpack.c.h.b16 %v5246
    %v7326 = vunpack.c.l.b16 %v5247
    %v7327 = vunpack.c.h.b16 %v5247
    %v7328 = vunpack.c.l.b16 %v5248
    %v7329 = vunpack.c.h.b16 %v5248
    %v7330 = vunpack.c.l.b16 %v5249
    %v7331 = vunpack.c.h.b16 %v5249
    %v7332 = vunpack.c.l.b16 %v5250
    %v7333 = vunpack.c.h.b16 %v5250
    %v7334 = vunpack.c.l.b16 %v5251
    %v7335 = vunpack.c.h.b16 %v5251
    %v7336 = vunpack.c.l.b16 %v5252
    %v7337 = vunpack.c.h.b16 %v5252
    %v7338 = vunpack.c.l.b16 %v5253
    %v7339 = vunpack.c.h.b16 %v5253
    %v7340 = vunpack.c.l.b16 %v5254
    %v7341 = vunpack.c.h.b16 %v5254
    %v7342 = vunpack.c.l.b16 %v5255
    %v7343 = vunpack.c.h.b16 %v5255
    %v7344 = vunpack.c.l.b16 %v5256
    %v7345 = vunpack.c.h.b16 %v5256
    %v7346 = vunpack.c.l.b16 %v5257
    %v7347 = vunpack.c.h.b16 %v5257
    %v7348 = vunpack.c.l.b16 %v5258
    %v7349 = vunpack.c.h.b16 %v5258
    %v7350 = vunpack.c.l.b16 %v5259
    %v7351 = vunpack.c.h.b16 %v5259
    %v7352 = vunpack.c.l.b16 %v5260
    %v7353 = vunpack.c.h.b16 %v5260
    %v7354 = vunpack.c.l.b16 %v5261
    %v7355 = vunpack.c.h.b16 %v5261
    %v7356 = vunpack.c.l.b16 %v5262
    %v7357 = vunpack.c.h.b16 %v5262
    %v7358 = vunpack.c.l.b16 %v5263
    %v7359 = vunpack.c.h.b16 %v5263
    %v7360 = vunpack.c.l.b16 %v5264
    %v7361 = vunpack.c.h.b16 %v5264
    %v7362 = vunpack.c.l.b16 %v5265
    %v7363 = vunpack.c.h.b16 %v5265
    %v7364 = vunpack.c.l.b16 %v5266
    %v7365 = vunpack.c.h.b16 %v5266
    %v7366 = vunpack.c.l.b16 %v5267
    %v7367 = vunpack.c.h.b16 %v5267
    %v7368 = vunpack.c.l.b16 %v5268
    %v7369 = vunpack.c.h.b16 %v5268
    %v7370 = vunpack.c.l.b16 %v5269
    %v7371 = vunpack.c.h.b16 %v5269
    %v7372 = vunpack.c.l.b16 %v5270
    %v7373 = vunpack.c.h.b16 %v5270
    %v7374 = vunpack.c.l.b16 %v5271
    %v7375 = vunpack.c.h.b16 %v5271
    %v7376 = vunpack.c.l.b16 %v5272
    %v7377 = vunpack.c.h.b16 %v5272
    %v7378 = vunpack.c.l.b16 %v5273
    %v7379 = vunpack.c.h.b16 %v5273
    %v7380 = vunpack.c.l.b16 %v5274
    %v7381 = vunpack.c.h.b16 %v5274
    %v7382 = vunpack.c.l.b16 %v5275
    %v7383 = vunpack.c.h.b16 %v5275
    %v7384 = vunpack.c.l.b16 %v5276
    %v7385 = vunpack.c.h.b16 %v5276
    %v7386 = vunpack.c.l.b16 %v5277
    %v7387 = vunpack.c.h.b16 %v5277
    %v7388 = vunpack.c.l.b16 %v5278
    %v7389 = vunpack.c.h.b16 %v5278
    %v7390 = vunpack.c.l.b16 %v5279
    %v7391 = vunpack.c.h.b16 %v5279
    %v7392 = vunpack.c.l.b16 %v5280
    %v7393 = vunpack.c.h.b16 %v5280
    %v7394 = vunpack.c.l.b16 %v5281
    %v7395 = vunpack.c.h.b16 %v5281
    %v7396 = vunpack.c.l.b16 %v5282
    %v7397 = vunpack.c.h.b16 %v5282
    %v7398 = vunpack.c.l.b16 %v5283
    %v7399 = vunpack.c.h.b16 %v5283
    %v7400 = vunpack.c.l.b16 %v5284
    %v7401 = vunpack.c.h.b16 %v5284
    %v7402 = vunpack.c.l.b16 %v5285
    %v7403 = vunpack.c.h.b16 %v5285
    %v7404 = vunpack.c.l.b16 %v5286
    %v7405 = vunpack.c.h.b16 %v5286
    %v7406 = vunpack.c.l.b16 %v5287
    %v7407 = vunpack.c.h.b16 %v5287
    %v7408 = vunpack.c.l.b16 %v5288
    %v7409 = vunpack.c.h.b16 %v5288
    %v7410 = vunpack.c.l.b16 %v5289
    %v7411 = vunpack.c.h.b16 %v5289
    %v7412 = vunpack.c.l.b16 %v5290
    %v7413 = vunpack.c.h.b16 %v5290
    %v7414 = vunpack.c.l.b16 %v5291
    %v7415 = vunpack.c.h.b16 %v5291
    %v7416 = vunpack.c.l.b16 %v5292
    %v7417 = vunpack.c.h.b16 %v5292
    %v7418 = vunpack.c.l.b16 %v5293
    %v7419 = vunpack.c.h.b16 %v5293
    %v7420 = vunpack.c.l.b16 %v5294
    %v7421 = vunpack.c.h.b16 %v5294
    %v7422 = vunpack.c.l.b16 %v5295
    %v7423 = vunpack.c.h.b16 %v5295
    %v7424 = vunpack.c.l.b16 %v5296
    %v7425 = vunpack.c.h.b16 %v5296
    %v7426 = vunpack.c.l.b16 %v5297
    %v7427 = vunpack.c.h.b16 %v5297
    %v7428 = vunpack.c.l.b16 %v5298
    %v7429 = vunpack.c.h.b16 %v5298
    %v7430 = vunpack.c.l.b16 %v5299
    %v7431 = vunpack.c.h.b16 %v5299
    %v7432 = vunpack.c.l.b16 %v5300
    %v7433 = vunpack.c.h.b16 %v5300
    %v7434 = vunpack.c.l.b16 %v5301
    %v7435 = vunpack.c.h.b16 %v5301
    %v7436 = vunpack.c.l.b16 %v5302
    %v7437 = vunpack.c.h.b16 %v5302
    %v7438 = vunpack.c.l.b16 %v5303
    %v7439 = vunpack.c.h.b16 %v5303
    %v7440 = vunpack.c.l.b16 %v5304
    %v7441 = vunpack.c.h.b16 %v5304
    %v7442 = vunpack.c.l.b16 %v5305
    %v7443 = vunpack.c.h.b16 %v5305
    %v7444 = vunpack.c.l.b16 %v5306
    %v7445 = vunpack.c.h.b16 %v5306
    %v7446 = vunpack.c.l.b16 %v5307
    %v7447 = vunpack.c.h.b16 %v5307
    %v7448 = vunpack.c.l.b16 %v5308
    %v7449 = vunpack.c.h.b16 %v5308
    %v7450 = vunpack.c.l.b16 %v5309
    %v7451 = vunpack.c.h.b16 %v5309
    %v7452 = vunpack.c.l.b16 %v5310
    %v7453 = vunpack.c.h.b16 %v5310
    %v7454 = vunpack.c.l.b16 %v5311
    %v7455 = vunpack.c.h.b16 %v5311
    %v7456 = vunpack.c.l.b16 %v5312
    %v7457 = vunpack.c.h.b16 %v5312
    %v7458 = vunpack.c.l.b16 %v5313
    %v7459 = vunpack.c.h.b16 %v5313
    %v7460 = vunpack.c.l.b16 %v5314
    %v7461 = vunpack.c.h.b16 %v5314
    %v7462 = vunpack.c.l.b16 %v5315
    %v7463 = vunpack.c.h.b16 %v5315
    %v7464 = vunpack.c.l.b16 %v5316
    %v7465 = vunpack.c.h.b16 %v5316
    %v7466 = vunpack.c.l.b16 %v5317
    %v7467 = vunpack.c.h.b16 %v5317
    %v7468 = vunpack.c.l.b16 %v5318
    %v7469 = vunpack.c.h.b16 %v5318
    %v7470 = vunpack.c.l.b16 %v5319
    %v7471 = vunpack.c.h.b16 %v5319
    %v7472 = vunpack.c.l.b16 %v5320
    %v7473 = vunpack.c.h.b16 %v5320
    %v7474 = vunpack.c.l.b16 %v5321
    %v7475 = vunpack.c.h.b16 %v5321
    %v7476 = vunpack.c.l.b16 %v5322
    %v7477 = vunpack.c.h.b16 %v5322
    %v7478 = vunpack.c.l.b16 %v5323
    %v7479 = vunpack.c.h.b16 %v5323
    %v7480 = vunpack.c.l.b16 %v5324
    %v7481 = vunpack.c.h.b16 %v5324
    %v7482 = vunpack.c.l.b16 %v5325
    %v7483 = vunpack.c.h.b16 %v5325
    %v7484 = vunpack.c.l.b16 %v5326
    %v7485 = vunpack.c.h.b16 %v5326
    %v7486 = vunpack.c.l.b16 %v5327
    %v7487 = vunpack.c.h.b16 %v5327
    %v7488 = vunpack.c.l.b16 %v5328
    %v7489 = vunpack.c.h.b16 %v5328
    %v7490 = vunpack.c.l.b16 %v5329
    %v7491 = vunpack.c.h.b16 %v5329
    %v7492 = vunpack.c.l.b16 %v5330
    %v7493 = vunpack.c.h.b16 %v5330
    %v7494 = vunpack.c.l.b16 %v5331
    %v7495 = vunpack.c.h.b16 %v5331
    %v7496 = vunpack.c.l.b16 %v5332
    %v7497 = vunpack.c.h.b16 %v5332
    %v7498 = vunpack.c.l.b16 %v5333
    %v7499 = vunpack.c.h.b16 %v5333
    %v7500 = vunpack.c.l.b16 %v5334
    %v7501 = vunpack.c.h.b16 %v5334
    %v7502 = vunpack.c.l.b16 %v5335
    %v7503 = vunpack.c.h.b16 %v5335
    %v7504 = vunpack.c.l.b16 %v5336
    %v7505 = vunpack.c.h.b16 %v5336
    %v7506 = vunpack.c.l.b16 %v5337
    %v7507 = vunpack.c.h.b16 %v5337
    %v7508 = vunpack.c.l.b16 %v5338
    %v7509 = vunpack.c.h.b16 %v5338
    %v7510 = vunpack.c.l.b16 %v5339
    %v7511 = vunpack.c.h.b16 %v5339
    %v7512 = vunpack.c.l.b16 %v5340
    %v7513 = vunpack.c.h.b16 %v5340
    %v7514 = vunpack.c.l.b16 %v5341
    %v7515 = vunpack.c.h.b16 %v5341
    %v7516 = vunpack.c.l.b16 %v5342
    %v7517 = vunpack.c.h.b16 %v5342
    %v7518 = vunpack.c.l.b16 %v5343
    %v7519 = vunpack.c.h.b16 %v5343
    %v7520 = vunpack.c.l.b16 %v5344
    %v7521 = vunpack.c.h.b16 %v5344
    %v7522 = vunpack.c.l.b16 %v5345
    %v7523 = vunpack.c.h.b16 %v5345
    %v7524 = vunpack.c.l.b16 %v5346
    %v7525 = vunpack.c.h.b16 %v5346
    %v7526 = vunpack.c.l.b16 %v5347
    %v7527 = vunpack.c.h.b16 %v5347
    %v7528 = vunpack.c.l.b16 %v5348
    %v7529 = vunpack.c.h.b16 %v5348
    %v7530 = vunpack.c.l.b16 %v5349
    %v7531 = vunpack.c.h.b16 %v5349
    %v7532 = vunpack.c.l.b16 %v5350
    %v7533 = vunpack.c.h.b16 %v5350
    %v7534 = vunpack.c.l.b16 %v5351
    %v7535 = vunpack.c.h.b16 %v5351
    %v7536 = vunpack.c.l.b16 %v5352
    %v7537 = vunpack.c.h.b16 %v5352
    %v7538 = vunpack.c.l.b16 %v5353
    %v7539 = vunpack.c.h.b16 %v5353
    %v7540 = vunpack.c.l.b16 %v5354
    %v7541 = vunpack.c.h.b16 %v5354
    %v7542 = vunpack.c.l.b16 %v5355
    %v7543 = vunpack.c.h.b16 %v5355
    %v7544 = vunpack.c.l.b16 %v5356
    %v7545 = vunpack.c.h.b16 %v5356
    %v7546 = vunpack.c.l.b16 %v5357
    %v7547 = vunpack.c.h.b16 %v5357
    %v7548 = vunpack.c.l.b16 %v5358
    %v7549 = vunpack.c.h.b16 %v5358
    %v7550 = vunpack.c.l.b16 %v5359
    %v7551 = vunpack.c.h.b16 %v5359
    %v7552 = vunpack.c.l.b16 %v5360
    %v7553 = vunpack.c.h.b16 %v5360
    %v7554 = vunpack.c.l.b16 %v5361
    %v7555 = vunpack.c.h.b16 %v5361
    %v7556 = vunpack.c.l.b16 %v5362
    %v7557 = vunpack.c.h.b16 %v5362
    %v7558 = vunpack.c.l.b16 %v5363
    %v7559 = vunpack.c.h.b16 %v5363
    %v7560 = vunpack.c.l.b16 %v5364
    %v7561 = vunpack.c.h.b16 %v5364
    %v7562 = vunpack.c.l.b16 %v5365
    %v7563 = vunpack.c.h.b16 %v5365
    %v7564 = vunpack.c.l.b16 %v5366
    %v7565 = vunpack.c.h.b16 %v5366
    %v7566 = vunpack.c.l.b16 %v5367
    %v7567 = vunpack.c.h.b16 %v5367
    %v7568 = vunpack.c.l.b16 %v5368
    %v7569 = vunpack.c.h.b16 %v5368
    %v7570 = vunpack.c.l.b16 %v5369
    %v7571 = vunpack.c.h.b16 %v5369
    %v7572 = vunpack.c.l.b16 %v5370
    %v7573 = vunpack.c.h.b16 %v5370
    %v7574 = vunpack.c.l.b16 %v5371
    %v7575 = vunpack.c.h.b16 %v5371
    %v7576 = vunpack.c.l.b16 %v5372
    %v7577 = vunpack.c.h.b16 %v5372
    %v7578 = vunpack.c.l.b16 %v5373
    %v7579 = vunpack.c.h.b16 %v5373
    %v7580 = vunpack.c.l.b16 %v5374
    %v7581 = vunpack.c.h.b16 %v5374
    %v7582 = vunpack.c.l.b16 %v5375
    %v7583 = vunpack.c.h.b16 %v5375
    %v7584 = vunpack.c.l.b16 %v5376
    %v7585 = vunpack.c.h.b16 %v5376
    %v7586 = vunpack.c.l.b16 %v5377
    %v7587 = vunpack.c.h.b16 %v5377
    %v7588 = vunpack.c.l.b16 %v5378
    %v7589 = vunpack.c.h.b16 %v5378
    %v7590 = vunpack.c.l.b16 %v5379
    %v7591 = vunpack.c.h.b16 %v5379
    %v7592 = vunpack.c.l.b16 %v5380
    %v7593 = vunpack.c.h.b16 %v5380
    %v7594 = vunpack.c.l.b16 %v5381
    %v7595 = vunpack.c.h.b16 %v5381
    %v7596 = vunpack.c.l.b16 %v5382
    %v7597 = vunpack.c.h.b16 %v5382
    %v7598 = vunpack.c.l.b16 %v5383
    %v7599 = vunpack.c.h.b16 %v5383
    %v7600 = vunpack.c.l.b16 %v5384
    %v7601 = vunpack.c.h.b16 %v5384
    %v7602 = vunpack.c.l.b16 %v5385
    %v7603 = vunpack.c.h.b16 %v5385
    %v7604 = vunpack.c.l.b16 %v5386
    %v7605 = vunpack.c.h.b16 %v5386
    %v7606 = vunpack.c.l.b16 %v5387
    %v7607 = vunpack.c.h.b16 %v5387
    %v7608 = vunpack.c.l.b16 %v5388
    %v7609 = vunpack.c.h.b16 %v5388
    %v7610 = vunpack.c.l.b16 %v5389
    %v7611 = vunpack.c.h.b16 %v5389
    %v7612 = vunpack.c.l.b16 %v5390
    %v7613 = vunpack.c.h.b16 %v5390
    %v7614 = vunpack.c.l.b16 %v5391
    %v7615 = vunpack.c.h.b16 %v5391
    %v7616 = vunpack.c.l.b16 %v5392
    %v7617 = vunpack.c.h.b16 %v5392
    %v7618 = vunpack.c.l.b16 %v5393
    %v7619 = vunpack.c.h.b16 %v5393
    %v7620 = vunpack.c.l.b16 %v5394
    %v7621 = vunpack.c.h.b16 %v5394
    %v7622 = vunpack.c.l.b16 %v5395
    %v7623 = vunpack.c.h.b16 %v5395
    %v7624 = vunpack.c.l.b16 %v5396
    %v7625 = vunpack.c.h.b16 %v5396
    %v7626 = vunpack.c.l.b16 %v5397
    %v7627 = vunpack.c.h.b16 %v5397
    %v7628 = vunpack.c.l.b16 %v5398
    %v7629 = vunpack.c.h.b16 %v5398
    %v7630 = vunpack.c.l.b16 %v5399
    %v7631 = vunpack.c.h.b16 %v5399
    %v7632 = vunpack.c.l.b16 %v5400
    %v7633 = vunpack.c.h.b16 %v5400
    %v7634 = vunpack.c.l.b16 %v5401
    %v7635 = vunpack.c.h.b16 %v5401
    %v7636 = vunpack.c.l.b16 %v5402
    %v7637 = vunpack.c.h.b16 %v5402
    %v7638 = vunpack.c.l.b16 %v5403
    %v7639 = vunpack.c.h.b16 %v5403
    %v7640 = vunpack.c.l.b16 %v5404
    %v7641 = vunpack.c.h.b16 %v5404
    %v7642 = vunpack.c.l.b16 %v5405
    %v7643 = vunpack.c.h.b16 %v5405
    %v7644 = vunpack.c.l.b16 %v5406
    %v7645 = vunpack.c.h.b16 %v5406
    %v7646 = vunpack.c.l.b16 %v5407
    %v7647 = vunpack.c.h.b16 %v5407
    %v7648 = vunpack.c.l.b16 %v5408
    %v7649 = vunpack.c.h.b16 %v5408
    %v7650 = vunpack.c.l.b16 %v5409
    %v7651 = vunpack.c.h.b16 %v5409
    %v7652 = vunpack.c.l.b16 %v5410
    %v7653 = vunpack.c.h.b16 %v5410
    %v7654 = vunpack.c.l.b16 %v5411
    %v7655 = vunpack.c.h.b16 %v5411
    %v7656 = vunpack.c.l.b16 %v5412
    %v7657 = vunpack.c.h.b16 %v5412
    %v7658 = vunpack.c.l.b16 %v5413
    %v7659 = vunpack.c.h.b16 %v5413
    %v7660 = vunpack.c.l.b16 %v5414
    %v7661 = vunpack.c.h.b16 %v5414
    %v7662 = vunpack.c.l.b16 %v5415
    %v7663 = vunpack.c.h.b16 %v5415
    %v7664 = vunpack.c.l.b16 %v5416
    %v7665 = vunpack.c.h.b16 %v5416
    %v7666 = vunpack.c.l.b16 %v5417
    %v7667 = vunpack.c.h.b16 %v5417
    %v7668 = vunpack.c.l.b16 %v5418
    %v7669 = vunpack.c.h.b16 %v5418
    %v7670 = vunpack.c.l.b16 %v5419
    %v7671 = vunpack.c.h.b16 %v5419
    %v7672 = vunpack.c.l.b16 %v5420
    %v7673 = vunpack.c.h.b16 %v5420
    %v7674 = vunpack.c.l.b16 %v5421
    %v7675 = vunpack.c.h.b16 %v5421
    %v7676 = vunpack.c.l.b16 %v5422
    %v7677 = vunpack.c.h.b16 %v5422
    %v7678 = vunpack.c.l.b16 %v5423
    %v7679 = vunpack.c.h.b16 %v5423
    %v7680 = vunpack.c.l.b16 %v5424
    %v7681 = vunpack.c.h.b16 %v5424
    %v7682 = vunpack.c.l.b16 %v5425
    %v7683 = vunpack.c.h.b16 %v5425
    %v7684 = vunpack.c.l.b16 %v5426
    %v7685 = vunpack.c.h.b16 %v5426
    %v7686 = vunpack.c.l.b16 %v5427
    %v7687 = vunpack.c.h.b16 %v5427
    %v7688 = vunpack.c.l.b16 %v5428
    %v7689 = vunpack.c.h.b16 %v5428
    %v7690 = vunpack.c.l.b16 %v5429
    %v7691 = vunpack.c.h.b16 %v5429
    %v7692 = vunpack.c.l.b16 %v5430
    %v7693 = vunpack.c.h.b16 %v5430
    %v7694 = vunpack.c.l.b16 %v5431
    %v7695 = vunpack.c.h.b16 %v5431
    %v7696 = vunpack.c.l.b16 %v5432
    %v7697 = vunpack.c.h.b16 %v5432
    %v7698 = vunpack.c.l.b16 %v5433
    %v7699 = vunpack.c.h.b16 %v5433
    %v7700 = vunpack.c.l.b16 %v5434
    %v7701 = vunpack.c.h.b16 %v5434
    %v7702 = vunpack.c.l.b16 %v5435
    %v7703 = vunpack.c.h.b16 %v5435
    %v7704 = vunpack.c.l.b16 %v5436
    %v7705 = vunpack.c.h.b16 %v5436
    %v7706 = vunpack.c.l.b16 %v5437
    %v7707 = vunpack.c.h.b16 %v5437
    %v7708 = vunpack.c.l.b16 %v5438
    %v7709 = vunpack.c.h.b16 %v5438
    %v7710 = vunpack.c.l.b16 %v5439
    %v7711 = vunpack.c.h.b16 %v5439
    %v7712 = vunpack.c.l.b16 %v5440
    %v7713 = vunpack.c.h.b16 %v5440
    %v7714 = vunpack.c.l.b16 %v5441
    %v7715 = vunpack.c.h.b16 %v5441
    %v7716 = vunpack.c.l.b16 %v5442
    %v7717 = vunpack.c.h.b16 %v5442
    %v7718 = vunpack.c.l.b16 %v5443
    %v7719 = vunpack.c.h.b16 %v5443
    %v7720 = vunpack.c.l.b16 %v5444
    %v7721 = vunpack.c.h.b16 %v5444
    %v7722 = vunpack.c.l.b16 %v5445
    %v7723 = vunpack.c.h.b16 %v5445
    %v7724 = vunpack.c.l.b16 %v5446
    %v7725 = vunpack.c.h.b16 %v5446
    %v7726 = vunpack.c.l.b16 %v5447
    %v7727 = vunpack.c.h.b16 %v5447
    %v7728 = vunpack.c.l.b16 %v5448
    %v7729 = vunpack.c.h.b16 %v5448
    %v7730 = vunpack.c.l.b16 %v5449
    %v7731 = vunpack.c.h.b16 %v5449
    %v7732 = vunpack.c.l.b16 %v5450
    %v7733 = vunpack.c.h.b16 %v5450
    %v7734 = vunpack.c.l.b16 %v5451
    %v7735 = vunpack.c.h.b16 %v5451
    %v7736 = vunpack.c.l.b16 %v5452
    %v7737 = vunpack.c.h.b16 %v5452
    %v7738 = vunpack.c.l.b16 %v5453
    %v7739 = vunpack.c.h.b16 %v5453
    %v7740 = vunpack.c.l.b16 %v5454
    %v7741 = vunpack.c.h.b16 %v5454
    %v7742 = vunpack.c.l.b16 %v5455
    %v7743 = vunpack.c.h.b16 %v5455
    %v7744 = vunpack.c.l.b16 %v5456
    %v7745 = vunpack.c.h.b16 %v5456
    %v7746 = vunpack.c.l.b16 %v5457
    %v7747 = vunpack.c.h.b16 %v5457
    %v7748 = vunpack.c.l.b16 %v5458
    %v7749 = vunpack.c.h.b16 %v5458
    %v7750 = vunpack.c.l.b16 %v5459
    %v7751 = vunpack.c.h.b16 %v5459
    %v7752 = vunpack.c.l.b16 %v5460
    %v7753 = vunpack.c.h.b16 %v5460
    %v7754 = vunpack.c.l.b16 %v5461
    %v7755 = vunpack.c.h.b16 %v5461
    %v7756 = vunpack.c.l.b16 %v5462
    %v7757 = vunpack.c.h.b16 %v5462
    %v7758 = vunpack.c.l.b16 %v5463
    %v7759 = vunpack.c.h.b16 %v5463
    %v7760 = vunpack.c.l.b16 %v5464
    %v7761 = vunpack.c.h.b16 %v5464
    %v7762 = vunpack.c.l.b16 %v5465
    %v7763 = vunpack.c.h.b16 %v5465
    %v7764 = vunpack.c.l.b16 %v5466
    %v7765 = vunpack.c.h.b16 %v5466
    %v7766 = vunpack.c.l.b16 %v5467
    %v7767 = vunpack.c.h.b16 %v5467
    %v7768 = vunpack.c.l.b16 %v5468
    %v7769 = vunpack.c.h.b16 %v5468
    %v7770 = vunpack.c.l.b16 %v5469
    %v7771 = vunpack.c.h.b16 %v5469
    %v7772 = vunpack.c.l.b16 %v5470
    %v7773 = vunpack.c.h.b16 %v5470
    %v7774 = vunpack.c.l.b16 %v5471
    %v7775 = vunpack.c.h.b16 %v5471
    %v7776 = vunpack.c.l.b16 %v5472
    %v7777 = vunpack.c.h.b16 %v5472
    %v7778 = vunpack.c.l.b16 %v5473
    %v7779 = vunpack.c.h.b16 %v5473
    %v7780 = vunpack.c.l.b16 %v5474
    %v7781 = vunpack.c.h.b16 %v5474
    %v7782 = vunpack.c.l.b16 %v5475
    %v7783 = vunpack.c.h.b16 %v5475
    %v7784 = vunpack.c.l.b16 %v5476
    %v7785 = vunpack.c.h.b16 %v5476
    %v7786 = vunpack.c.l.b16 %v5477
    %v7787 = vunpack.c.h.b16 %v5477
    %v7788 = vunpack.c.l.b16 %v5478
    %v7789 = vunpack.c.h.b16 %v5478
    %v7790 = vunpack.c.l.b16 %v5479
    %v7791 = vunpack.c.h.b16 %v5479
    %v7792 = vunpack.c.l.b16 %v5480
    %v7793 = vunpack.c.h.b16 %v5480
    %v7794 = vunpack.c.l.b16 %v5481
    %v7795 = vunpack.c.h.b16 %v5481
    %v7796 = vunpack.c.l.b16 %v5482
    %v7797 = vunpack.c.h.b16 %v5482
    %v7798 = vunpack.c.l.b16 %v5483
    %v7799 = vunpack.c.h.b16 %v5483
    %v7800 = vunpack.c.l.b16 %v5484
    %v7801 = vunpack.c.h.b16 %v5484
    %v7802 = vunpack.c.l.b16 %v5485
    %v7803 = vunpack.c.h.b16 %v5485
    %v7804 = vunpack.c.l.b16 %v5486
    %v7805 = vunpack.c.h.b16 %v5486
    %v7806 = vunpack.c.l.b16 %v5487
    %v7807 = vunpack.c.h.b16 %v5487
    %v7808 = vunpack.c.l.b16 %v5488
    %v7809 = vunpack.c.h.b16 %v5488
    %v7810 = vunpack.c.l.b16 %v5489
    %v7811 = vunpack.c.h.b16 %v5489
    %v7812 = vunpack.c.l.b16 %v5490
    %v7813 = vunpack.c.h.b16 %v5490
    %v7814 = vunpack.c.l.b16 %v5491
    %v7815 = vunpack.c.h.b16 %v5491
    %v7816 = vunpack.c.l.b16 %v5492
    %v7817 = vunpack.c.h.b16 %v5492
    %v7818 = vunpack.c.l.b16 %v5493
    %v7819 = vunpack.c.h.b16 %v5493
    %v7820 = vunpack.c.l.b16 %v5494
    %v7821 = vunpack.c.h.b16 %v5494
    %v7822 = vunpack.c.l.b16 %v5495
    %v7823 = vunpack.c.h.b16 %v5495
    %v7824 = vunpack.c.l.b16 %v5496
    %v7825 = vunpack.c.h.b16 %v5496
    %v7826 = vunpack.c.l.b16 %v5497
    %v7827 = vunpack.c.h.b16 %v5497
    %v7828 = vunpack.c.l.b16 %v5498
    %v7829 = vunpack.c.h.b16 %v5498
    %v7830 = vunpack.c.l.b16 %v5499
    %v7831 = vunpack.c.h.b16 %v5499
    %v7832 = vunpack.c.l.b16 %v5500
    %v7833 = vunpack.c.h.b16 %v5500
    %v7834 = vunpack.c.l.b16 %v5501
    %v7835 = vunpack.c.h.b16 %v5501
    %v7836 = vunpack.c.l.b16 %v5502
    %v7837 = vunpack.c.h.b16 %v5502
    %v7838 = vunpack.c.l.b16 %v5503
    %v7839 = vunpack.c.h.b16 %v5503
    %v7840 = vunpack.c.l.b16 %v5504
    %v7841 = vunpack.c.h.b16 %v5504
    %v7842 = vunpack.c.l.b16 %v5505
    %v7843 = vunpack.c.h.b16 %v5505
    %v7844 = vunpack.c.l.b16 %v5506
    %v7845 = vunpack.c.h.b16 %v5506
    %v7846 = vunpack.c.l.b16 %v5507
    %v7847 = vunpack.c.h.b16 %v5507
    %v7848 = vunpack.c.l.b16 %v5508
    %v7849 = vunpack.c.h.b16 %v5508
    %v7850 = vunpack.c.l.b16 %v5509
    %v7851 = vunpack.c.h.b16 %v5509
    %v7852 = vunpack.c.l.b16 %v5510
    %v7853 = vunpack.c.h.b16 %v5510
    %v7854 = vunpack.c.l.b16 %v5511
    %v7855 = vunpack.c.h.b16 %v5511
    %v7856 = vunpack.c.l.b16 %v5512
    %v7857 = vunpack.c.h.b16 %v5512
    %v7858 = vunpack.c.l.b16 %v5513
    %v7859 = vunpack.c.h.b16 %v5513
    %v7860 = vunpack.c.l.b16 %v5514
    %v7861 = vunpack.c.h.b16 %v5514
    %v7862 = vunpack.c.l.b16 %v5515
    %v7863 = vunpack.c.h.b16 %v5515
    %v7864 = vunpack.c.l.b16 %v5516
    %v7865 = vunpack.c.h.b16 %v5516
    %v7866 = vunpack.c.l.b16 %v5517
    %v7867 = vunpack.c.h.b16 %v5517
    %v7868 = vunpack.c.l.b16 %v5518
    %v7869 = vunpack.c.h.b16 %v5518
    %v7870 = vunpack.c.l.b16 %v5519
    %v7871 = vunpack.c.h.b16 %v5519
    %v7872 = vunpack.c.l.b16 %v5520
    %v7873 = vunpack.c.h.b16 %v5520
    %v7874 = vpack.c.b16 %v6310, %v6306
    %v7875 = vpack.c.b16 %v6311, %v6307
    %v7876 = vpack.c.b16 %v6312, %v6308
    %v7877 = vpack.c.b16 %v6313, %v6309
    %v7878 = vpack.c.b16 %v6318, %v6314
    %v7879 = vpack.c.b16 %v6319, %v6315
    %v7880 = vpack.c.b16 %v6320, %v6316
    %v7881 = vpack.c.b16 %v6321, %v6317
    %v7882 = vpack.c.b16 %v6326, %v6322
    %v7883 = vpack.c.b16 %v6327, %v6323
    %v7884 = vpack.c.b16 %v6328, %v6324
    %v7885 = vpack.c.b16 %v6329, %v6325
    %v7886 = vpack.c.b16 %v6334, %v6330
    %v7887 = vpack.c.b16 %v6335, %v6331
    %v7888 = vpack.c.b16 %v6336, %v6332
    %v7889 = vpack.c.b16 %v6337, %v6333
    %v7890 = vpack.c.b16 %v6342, %v6338
    %v7891 = vpack.c.b16 %v6343, %v6339
    %v7892 = vpack.c.b16 %v6344, %v6340
    %v7893 = vpack.c.b16 %v6345, %v6341
    %v7894 = vpack.c.b16 %v6350, %v6346
    %v7895 = vpack.c.b16 %v6351, %v6347
    %v7896 = vpack.c.b16 %v6352, %v6348
    %v7897 = vpack.c.b16 %v6353, %v6349
    %v7898 = vpack.c.b16 %v6358, %v6354
    %v7899 = vpack.c.b16 %v6359, %v6355
    %v7900 = vpack.c.b16 %v6360, %v6356
    %v7901 = vpack.c.b16 %v6361, %v6357
    %v7902 = vpack.c.b16 %v6366, %v6362
    %v7903 = vpack.c.b16 %v6367, %v6363
    %v7904 = vpack.c.b16 %v6368, %v6364
    %v7905 = vpack.c.b16 %v6369, %v6365
    %v7906 = vpack.c.b16 %v6374, %v6370
    %v7907 = vpack.c.b16 %v6375, %v6371
    %v7908 = vpack.c.b16 %v6376, %v6372
    %v7909 = vpack.c.b16 %v6377, %v6373
    %v7910 = vpack.c.b16 %v6382, %v6378
    %v7911 = vpack.c.b16 %v6383, %v6379
    %v7912 = vpack.c.b16 %v6384, %v6380
    %v7913 = vpack.c.b16 %v6385, %v6381
    %v7914 = vpack.c.b16 %v6390, %v6386
    %v7915 = vpack.c.b16 %v6391, %v6387
    %v7916 = vpack.c.b16 %v6392, %v6388
    %v7917 = vpack.c.b16 %v6393, %v6389
    %v7918 = vpack.c.b16 %v6398, %v6394
    %v7919 = vpack.c.b16 %v6399, %v6395
    %v7920 = vpack.c.b16 %v6400, %v6396
    %v7921 = vpack.c.b16 %v6401, %v6397
    %v7922 = vpack.c.b16 %v6406, %v6402
    %v7923 = vpack.c.b16 %v6407, %v6403
    %v7924 = vpack.c.b16 %v6408, %v6404
    %v7925 = vpack.c.b16 %v6409, %v6405
    %v7926 = vpack.c.b16 %v6414, %v6410
    %v7927 = vpack.c.b16 %v6415, %v6411
    %v7928 = vpack.c.b16 %v6416, %v6412
    %v7929 = vpack.c.b16 %v6417, %v6413
    %v7930 = vpack.c.b16 %v6422, %v6418
    %v7931 = vpack.c.b16 %v6423, %v6419
    %v7932 = vpack.c.b16 %v6424, %v6420
    %v7933 = vpack.c.b16 %v6425, %v6421
    %v7934 = vpack.c.b16 %v6430, %v6426
    %v7935 = vpack.c.b16 %v6431, %v6427
    %v7936 = vpack.c.b16 %v6432, %v6428
    %v7937 = vpack.c.b16 %v6433, %v6429
    %v7938 = vpack.c.b16 %v6438, %v6434
    %v7939 = vpack.c.b16 %v6439, %v6435
    %v7940 = vpack.c.b16 %v6440, %v6436
    %v7941 = vpack.c.b16 %v6441, %v6437
    %v7942 = vpack.c.b16 %v6446, %v6442
    %v7943 = vpack.c.b16 %v6447, %v6443
    %v7944 = vpack.c.b16 %v6448, %v6444
    %v7945 = vpack.c.b16 %v6449, %v6445
    %v7946 = vpack.c.b16 %v6454, %v6450
    %v7947 = vpack.c.b16 %v6455, %v6451
    %v7948 = vpack.c.b16 %v6456, %v6452
    %v7949 = vpack.c.b16 %v6457, %v6453
    %v7950 = vpack.c.b16 %v6462, %v6458
    %v7951 = vpack.c.b16 %v6463, %v6459
    %v7952 = vpack.c.b16 %v6464, %v6460
    %v7953 = vpack.c.b16 %v6465, %v6461
    %v7954 = vpack.c.b16 %v6470, %v6466
    %v7955 = vpack.c.b16 %v6471, %v6467
    %v7956 = vpack.c.b16 %v6472, %v6468
    %v7957 = vpack.c.b16 %v6473, %v6469
    %v7958 = vpack.c.b16 %v6478, %v6474
    %v7959 = vpack.c.b16 %v6479, %v6475
    %v7960 = vpack.c.b16 %v6480, %v6476
    %v7961 = vpack.c.b16 %v6481, %v6477
    %v7962 = vpack.c.b16 %v6486, %v6482
    %v7963 = vpack.c.b16 %v6487, %v6483
    %v7964 = vpack.c.b16 %v6488, %v6484
    %v7965 = vpack.c.b16 %v6489, %v6485
    %v7966 = vpack.c.b16 %v6494, %v6490
    %v7967 = vpack.c.b16 %v6495, %v6491
    %v7968 = vpack.c.b16 %v6496, %v6492
    %v7969 = vpack.c.b16 %v6497, %v6493
    %v7970 = vpack.c.b16 %v6502, %v6498
    %v7971 = vpack.c.b16 %v6503, %v6499
    %v7972 = vpack.c.b16 %v6504, %v6500
    %v7973 = vpack.c.b16 %v6505, %v6501
    %v7974 = vpack.c.b16 %v6510, %v6506
    %v7975 = vpack.c.b16 %v6511, %v6507
    %v7976 = vpack.c.b16 %v6512, %v6508
    %v7977 = vpack.c.b16 %v6513, %v6509
    %v7978 = vpack.c.b16 %v6518, %v6514
    %v7979 = vpack.c.b16 %v6519, %v6515
    %v7980 = vpack.c.b16 %v6520, %v6516
    %v7981 = vpack.c.b16 %v6521, %v6517
    %v7982 = vpack.c.b16 %v6526, %v6522
    %v7983 = vpack.c.b16 %v6527, %v6523
    %v7984 = vpack.c.b16 %v6528, %v6524
    %v7985 = vpack.c.b16 %v6529, %v6525
    %v7986 = vpack.c.b16 %v6534, %v6530
    %v7987 = vpack.c.b16 %v6535, %v6531
    %v7988 = vpack.c.b16 %v6536, %v6532
    %v7989 = vpack.c.b16 %v6537, %v6533
    %v7990 = vpack.c.b16 %v6542, %v6538
    %v7991 = vpack.c.b16 %v6543, %v6539
    %v7992 = vpack.c.b16 %v6544, %v6540
    %v7993 = vpack.c.b16 %v6545, %v6541
    %v7994 = vpack.c.b16 %v6550, %v6546
    %v7995 = vpack.c.b16 %v6551, %v6547
    %v7996 = vpack.c.b16 %v6552, %v6548
    %v7997 = vpack.c.b16 %v6553, %v6549
    %v7998 = vpack.c.b16 %v6558, %v6554
    %v7999 = vpack.c.b16 %v6559, %v6555
    %v8000 = vpack.c.b16 %v6560, %v6556
    %v8001 = vpack.c.b16 %v6561, %v6557
    %v8002 = vpack.c.b16 %v6566, %v6562
    %v8003 = vpack.c.b16 %v6567, %v6563
    %v8004 = vpack.c.b16 %v6568, %v6564
    %v8005 = vpack.c.b16 %v6569, %v6565
    %v8006 = vpack.c.b16 %v6574, %v6570
    %v8007 = vpack.c.b16 %v6575, %v6571
    %v8008 = vpack.c.b16 %v6576, %v6572
    %v8009 = vpack.c.b16 %v6577, %v6573
    %v8010 = vpack.c.b16 %v6582, %v6578
    %v8011 = vpack.c.b16 %v6583, %v6579
    %v8012 = vpack.c.b16 %v6584, %v6580
    %v8013 = vpack.c.b16 %v6585, %v6581
    %v8014 = vpack.c.b16 %v6590, %v6586
    %v8015 = vpack.c.b16 %v6591, %v6587
    %v8016 = vpack.c.b16 %v6592, %v6588
    %v8017 = vpack.c.b16 %v6593, %v6589
    %v8018 = vpack.c.b16 %v6598, %v6594
    %v8019 = vpack.c.b16 %v6599, %v6595
    %v8020 = vpack.c.b16 %v6600, %v6596
    %v8021 = vpack.c.b16 %v6601, %v6597
    %v8022 = vpack.c.b16 %v6606, %v6602
    %v8023 = vpack.c.b16 %v6607, %v6603
    %v8024 = vpack.c.b16 %v6608, %v6604
    %v8025 = vpack.c.b16 %v6609, %v6605
    %v8026 = vpack.c.b16 %v6614, %v6610
    %v8027 = vpack.c.b16 %v6615, %v6611
    %v8028 = vpack.c.b16 %v6616, %v6612
    %v8029 = vpack.c.b16 %v6617, %v6613
    %v8030 = vpack.c.b16 %v6622, %v6618
    %v8031 = vpack.c.b16 %v6623, %v6619
    %v8032 = vpack.c.b16 %v6624, %v6620
    %v8033 = vpack.c.b16 %v6625, %v6621
    %v8034 = vpack.c.b16 %v6630, %v6626
    %v8035 = vpack.c.b16 %v6631, %v6627
    %v8036 = vpack.c.b16 %v6632, %v6628
    %v8037 = vpack.c.b16 %v6633, %v6629
    %v8038 = vpack.c.b16 %v6638, %v6634
    %v8039 = vpack.c.b16 %v6639, %v6635
    %v8040 = vpack.c.b16 %v6640, %v6636
    %v8041 = vpack.c.b16 %v6641, %v6637
    %v8042 = vpack.c.b16 %v6646, %v6642
    %v8043 = vpack.c.b16 %v6647, %v6643
    %v8044 = vpack.c.b16 %v6648, %v6644
    %v8045 = vpack.c.b16 %v6649, %v6645
    %v8046 = vpack.c.b16 %v6654, %v6650
    %v8047 = vpack.c.b16 %v6655, %v6651
    %v8048 = vpack.c.b16 %v6656, %v6652
    %v8049 = vpack.c.b16 %v6657, %v6653
    %v8050 = vpack.c.b16 %v6662, %v6658
    %v8051 = vpack.c.b16 %v6663, %v6659
    %v8052 = vpack.c.b16 %v6664, %v6660
    %v8053 = vpack.c.b16 %v6665, %v6661
    %v8054 = vpack.c.b16 %v6670, %v6666
    %v8055 = vpack.c.b16 %v6671, %v6667
    %v8056 = vpack.c.b16 %v6672, %v6668
    %v8057 = vpack.c.b16 %v6673, %v6669
    %v8058 = vpack.c.b16 %v6678, %v6674
    %v8059 = vpack.c.b16 %v6679, %v6675
    %v8060 = vpack.c.b16 %v6680, %v6676
    %v8061 = vpack.c.b16 %v6681, %v6677
    %v8062 = vpack.c.b16 %v6686, %v6682
    %v8063 = vpack.c.b16 %v6687, %v6683
    %v8064 = vpack.c.b16 %v6688, %v6684
    %v8065 = vpack.c.b16 %v6689, %v6685
    %v8066 = vpack.c.b16 %v6694, %v6690
    %v8067 = vpack.c.b16 %v6695, %v6691
    %v8068 = vpack.c.b16 %v6696, %v6692
    %v8069 = vpack.c.b16 %v6697, %v6693
    %v8070 = vpack.c.b16 %v6702, %v6698
    %v8071 = vpack.c.b16 %v6703, %v6699
    %v8072 = vpack.c.b16 %v6704, %v6700
    %v8073 = vpack.c.b16 %v6705, %v6701
    %v8074 = vpack.c.b16 %v6710, %v6706
    %v8075 = vpack.c.b16 %v6711, %v6707
    %v8076 = vpack.c.b16 %v6712, %v6708
    %v8077 = vpack.c.b16 %v6713, %v6709
    %v8078 = vpack.c.b16 %v6718, %v6714
    %v8079 = vpack.c.b16 %v6719, %v6715
    %v8080 = vpack.c.b16 %v6720, %v6716
    %v8081 = vpack.c.b16 %v6721, %v6717
    %v8082 = vpack.c.b16 %v6726, %v6722
    %v8083 = vpack.c.b16 %v6727, %v6723
    %v8084 = vpack.c.b16 %v6728, %v6724
    %v8085 = vpack.c.b16 %v6729, %v6725
    %v8086 = vpack.c.b16 %v6734, %v6730
    %v8087 = vpack.c.b16 %v6735, %v6731
    %v8088 = vpack.c.b16 %v6736, %v6732
    %v8089 = vpack.c.b16 %v6737, %v6733
    %v8090 = vpack.c.b16 %v6742, %v6738
    %v8091 = vpack.c.b16 %v6743, %v6739
    %v8092 = vpack.c.b16 %v6744, %v6740
    %v8093 = vpack.c.b16 %v6745, %v6741
    %v8094 = vpack.c.b16 %v6750, %v6746
    %v8095 = vpack.c.b16 %v6751, %v6747
    %v8096 = vpack.c.b16 %v6752, %v6748
    %v8097 = vpack.c.b16 %v6753, %v6749
    %v8098 = vpack.c.b16 %v6758, %v6754
    %v8099 = vpack.c.b16 %v6759, %v6755
    %v8100 = vpack.c.b16 %v6760, %v6756
    %v8101 = vpack.c.b16 %v6761, %v6757
    %v8102 = vpack.c.b16 %v6766, %v6762
    %v8103 = vpack.c.b16 %v6767, %v6763
    %v8104 = vpack.c.b16 %v6768, %v6764
    %v8105 = vpack.c.b16 %v6769, %v6765
    %v8106 = vpack.c.b16 %v6774, %v6770
    %v8107 = vpack.c.b16 %v6775, %v6771
    %v8108 = vpack.c.b16 %v6776, %v6772
    %v8109 = vpack.c.b16 %v6777, %v6773
    %v8110 = vpack.c.b16 %v6782, %v6778
    %v8111 = vpack.c.b16 %v6783, %v6779
    %v8112 = vpack.c.b16 %v6784, %v6780
    %v8113 = vpack.c.b16 %v6785, %v6781
    %v8114 = vpack.c.b16 %v6790, %v6786
    %v8115 = vpack.c.b16 %v6791, %v6787
    %v8116 = vpack.c.b16 %v6792, %v6788
    %v8117 = vpack.c.b16 %v6793, %v6789
    %v8118 = vpack.c.b16 %v6798, %v6794
    %v8119 = vpack.c.b16 %v6799, %v6795
    %v8120 = vpack.c.b16 %v6800, %v6796
    %v8121 = vpack.c.b16 %v6801, %v6797
    %v8122 = vpack.c.b16 %v6806, %v6802
    %v8123 = vpack.c.b16 %v6807, %v6803
    %v8124 = vpack.c.b16 %v6808, %v6804
    %v8125 = vpack.c.b16 %v6809, %v6805
    %v8126 = vpack.c.b16 %v6814, %v6810
    %v8127 = vpack.c.b16 %v6815, %v6811
    %v8128 = vpack.c.b16 %v6816, %v6812
    %v8129 = vpack.c.b16 %v6817, %v6813
    %v8130 = vpack.c.b16 %v6822, %v6818
    %v8131 = vpack.c.b16 %v6823, %v6819
    %v8132 = vpack.c.b16 %v6824, %v6820
    %v8133 = vpack.c.b16 %v6825, %v6821
    %v8134 = vpack.c.b16 %v6830, %v6826
    %v8135 = vpack.c.b16 %v6831, %v6827
    %v8136 = vpack.c.b16 %v6832, %v6828
    %v8137 = vpack.c.b16 %v6833, %v6829
    %v8138 = vpack.c.b16 %v6838, %v6834
    %v8139 = vpack.c.b16 %v6839, %v6835
    %v8140 = vpack.c.b16 %v6840, %v6836
    %v8141 = vpack.c.b16 %v6841, %v6837
    %v8142 = vpack.c.b16 %v6846, %v6842
    %v8143 = vpack.c.b16 %v6847, %v6843
    %v8144 = vpack.c.b16 %v6848, %v6844
    %v8145 = vpack.c.b16 %v6849, %v6845
    %v8146 = vpack.c.b16 %v6854, %v6850
    %v8147 = vpack.c.b16 %v6855, %v6851
    %v8148 = vpack.c.b16 %v6856, %v6852
    %v8149 = vpack.c.b16 %v6857, %v6853
    %v8150 = vpack.c.b16 %v6862, %v6858
    %v8151 = vpack.c.b16 %v6863, %v6859
    %v8152 = vpack.c.b16 %v6864, %v6860
    %v8153 = vpack.c.b16 %v6865, %v6861
    %v8154 = vpack.c.b16 %v6870, %v6866
    %v8155 = vpack.c.b16 %v6871, %v6867
    %v8156 = vpack.c.b16 %v6872, %v6868
    %v8157 = vpack.c.b16 %v6873, %v6869
    %v8158 = vpack.c.b16 %v6878, %v6874
    %v8159 = vpack.c.b16 %v6879, %v6875
    %v8160 = vpack.c.b16 %v6880, %v6876
    %v8161 = vpack.c.b16 %v6881, %v6877
    %v8162 = vpack.c.b16 %v6886, %v6882
    %v8163 = vpack.c.b16 %v6887, %v6883
    %v8164 = vpack.c.b16 %v6888, %v6884
    %v8165 = vpack.c.b16 %v6889, %v6885
    %v8166 = vpack.c.b16 %v6894, %v6890
    %v8167 = vpack.c.b16 %v6895, %v6891
    %v8168 = vpack.c.b16 %v6896, %v6892
    %v8169 = vpack.c.b16 %v6897, %v6893
    %v8170 = vpack.c.b16 %v6902, %v6898
    %v8171 = vpack.c.b16 %v6903, %v6899
    %v8172 = vpack.c.b16 %v6904, %v6900
    %v8173 = vpack.c.b16 %v6905, %v6901
    %v8174 = vpack.c.b16 %v6910, %v6906
    %v8175 = vpack.c.b16 %v6911, %v6907
    %v8176 = vpack.c.b16 %v6912, %v6908
    %v8177 = vpack.c.b16 %v6913, %v6909
    %v8178 = vpack.c.b16 %v6918, %v6914
    %v8179 = vpack.c.b16 %v6919, %v6915
    %v8180 = vpack.c.b16 %v6920, %v6916
    %v8181 = vpack.c.b16 %v6921, %v6917
    %v8182 = vpack.c.b16 %v6926, %v6922
    %v8183 = vpack.c.b16 %v6927, %v6923
    %v8184 = vpack.c.b16 %v6928, %v6924
    %v8185 = vpack.c.b16 %v6929, %v6925
    %v8186 = vpack.c.b16 %v6934, %v6930
    %v8187 = vpack.c.b16 %v6935, %v6931
    %v8188 = vpack.c.b16 %v6936, %v6932
    %v8189 = vpack.c.b16 %v6937, %v6933
    %v8190 = vpack.c.b16 %v6942, %v6938
    %v8191 = vpack.c.b16 %v6943, %v6939
    %v8192 = vpack.c.b16 %v6944, %v6940
    %v8193 = vpack.c.b16 %v6945, %v6941
    %v8194 = vpack.c.b16 %v6950, %v6946
    %v8195 = vpack.c.b16 %v6951, %v6947
    %v8196 = vpack.c.b16 %v6952, %v6948
    %v8197 = vpack.c.b16 %v6953, %v6949
    %v8198 = vpack.c.b16 %v6958, %v6954
    %v8199 = vpack.c.b16 %v6959, %v6955
    %v8200 = vpack.c.b16 %v6960, %v6956
    %v8201 = vpack.c.b16 %v6961, %v6957
    %v8202 = vpack.c.b16 %v6966, %v6962
    %v8203 = vpack.c.b16 %v6967, %v6963
    %v8204 = vpack.c.b16 %v6968, %v6964
    %v8205 = vpack.c.b16 %v6969, %v6965
    %v8206 = vpack.c.b16 %v6974, %v6970
    %v8207 = vpack.c.b16 %v6975, %v6971
    %v8208 = vpack.c.b16 %v6976, %v6972
    %v8209 = vpack.c.b16 %v6977, %v6973
    %v8210 = vpack.c.b16 %v6982, %v6978
    %v8211 = vpack.c.b16 %v6983, %v6979
    %v8212 = vpack.c.b16 %v6984, %v6980
    %v8213 = vpack.c.b16 %v6985, %v6981
    %v8214 = vpack.c.b16 %v6990, %v6986
    %v8215 = vpack.c.b16 %v6991, %v6987
    %v8216 = vpack.c.b16 %v6992, %v6988
    %v8217 = vpack.c.b16 %v6993, %v6989
    %v8218 = vpack.c.b16 %v6998, %v6994
    %v8219 = vpack.c.b16 %v6999, %v6995
    %v8220 = vpack.c.b16 %v7000, %v6996
    %v8221 = vpack.c.b16 %v7001, %v6997
    %v8222 = vpack.c.b16 %v7006, %v7002
    %v8223 = vpack.c.b16 %v7007, %v7003
    %v8224 = vpack.c.b16 %v7008, %v7004
    %v8225 = vpack.c.b16 %v7009, %v7005
    %v8226 = vpack.c.b16 %v7014, %v7010
    %v8227 = vpack.c.b16 %v7015, %v7011
    %v8228 = vpack.c.b16 %v7016, %v7012
    %v8229 = vpack.c.b16 %v7017, %v7013
    %v8230 = vpack.c.b16 %v7022, %v7018
    %v8231 = vpack.c.b16 %v7023, %v7019
    %v8232 = vpack.c.b16 %v7024, %v7020
    %v8233 = vpack.c.b16 %v7025, %v7021
    %v8234 = vpack.c.b16 %v7030, %v7026
    %v8235 = vpack.c.b16 %v7031, %v7027
    %v8236 = vpack.c.b16 %v7032, %v7028
    %v8237 = vpack.c.b16 %v7033, %v7029
    %v8238 = vpack.c.b16 %v7038, %v7034
    %v8239 = vpack.c.b16 %v7039, %v7035
    %v8240 = vpack.c.b16 %v7040, %v7036
    %v8241 = vpack.c.b16 %v7041, %v7037
    %v8242 = vpack.c.b16 %v7046, %v7042
    %v8243 = vpack.c.b16 %v7047, %v7043
    %v8244 = vpack.c.b16 %v7048, %v7044
    %v8245 = vpack.c.b16 %v7049, %v7045
    %v8246 = vpack.c.b16 %v7054, %v7050
    %v8247 = vpack.c.b16 %v7055, %v7051
    %v8248 = vpack.c.b16 %v7056, %v7052
    %v8249 = vpack.c.b16 %v7057, %v7053
    %v8250 = vpack.c.b16 %v7062, %v7058
    %v8251 = vpack.c.b16 %v7063, %v7059
    %v8252 = vpack.c.b16 %v7064, %v7060
    %v8253 = vpack.c.b16 %v7065, %v7061
    %v8254 = vpack.c.b16 %v7070, %v7066
    %v8255 = vpack.c.b16 %v7071, %v7067
    %v8256 = vpack.c.b16 %v7072, %v7068
    %v8257 = vpack.c.b16 %v7073, %v7069
    %v8258 = vpack.c.b16 %v7078, %v7074
    %v8259 = vpack.c.b16 %v7079, %v7075
    %v8260 = vpack.c.b16 %v7080, %v7076
    %v8261 = vpack.c.b16 %v7081, %v7077
    %v8262 = vpack.c.b16 %v7086, %v7082
    %v8263 = vpack.c.b16 %v7087, %v7083
    %v8264 = vpack.c.b16 %v7088, %v7084
    %v8265 = vpack.c.b16 %v7089, %v7085
    %v8266 = vpack.c.b16 %v7094, %v7090
    %v8267 = vpack.c.b16 %v7095, %v7091
    %v8268 = vpack.c.b16 %v7096, %v7092
    %v8269 = vpack.c.b16 %v7097, %v7093
    %v8270 = vpack.c.b16 %v7102, %v7098
    %v8271 = vpack.c.b16 %v7103, %v7099
    %v8272 = vpack.c.b16 %v7104, %v7100
    %v8273 = vpack.c.b16 %v7105, %v7101
    %v8274 = vpack.c.b16 %v7110, %v7106
    %v8275 = vpack.c.b16 %v7111, %v7107
    %v8276 = vpack.c.b16 %v7112, %v7108
    %v8277 = vpack.c.b16 %v7113, %v7109
    %v8278 = vpack.c.b16 %v7118, %v7114
    %v8279 = vpack.c.b16 %v7119, %v7115
    %v8280 = vpack.c.b16 %v7120, %v7116
    %v8281 = vpack.c.b16 %v7121, %v7117
    %v8282 = vpack.c.b16 %v7126, %v7122
    %v8283 = vpack.c.b16 %v7127, %v7123
    %v8284 = vpack.c.b16 %v7128, %v7124
    %v8285 = vpack.c.b16 %v7129, %v7125
    %v8286 = vpack.c.b16 %v7134, %v7130
    %v8287 = vpack.c.b16 %v7135, %v7131
    %v8288 = vpack.c.b16 %v7136, %v7132
    %v8289 = vpack.c.b16 %v7137, %v7133
    %v8290 = vpack.c.b16 %v7142, %v7138
    %v8291 = vpack.c.b16 %v7143, %v7139
    %v8292 = vpack.c.b16 %v7144, %v7140
    %v8293 = vpack.c.b16 %v7145, %v7141
    %v8294 = vpack.c.b16 %v7150, %v7146
    %v8295 = vpack.c.b16 %v7151, %v7147
    %v8296 = vpack.c.b16 %v7152, %v7148
    %v8297 = vpack.c.b16 %v7153, %v7149
    %v8298 = vpack.c.b16 %v7158, %v7154
    %v8299 = vpack.c.b16 %v7159, %v7155
    %v8300 = vpack.c.b16 %v7160, %v7156
    %v8301 = vpack.c.b16 %v7161, %v7157
    %v8302 = vpack.c.b16 %v7166, %v7162
    %v8303 = vpack.c.b16 %v7167, %v7163
    %v8304 = vpack.c.b16 %v7168, %v7164
    %v8305 = vpack.c.b16 %v7169, %v7165
    %v8306 = vpack.c.b16 %v7174, %v7170
    %v8307 = vpack.c.b16 %v7175, %v7171
    %v8308 = vpack.c.b16 %v7176, %v7172
    %v8309 = vpack.c.b16 %v7177, %v7173
    %v8310 = vpack.c.b16 %v7182, %v7178
    %v8311 = vpack.c.b16 %v7183, %v7179
    %v8312 = vpack.c.b16 %v7184, %v7180
    %v8313 = vpack.c.b16 %v7185, %v7181
    %v8314 = vpack.c.b16 %v7190, %v7186
    %v8315 = vpack.c.b16 %v7191, %v7187
    %v8316 = vpack.c.b16 %v7192, %v7188
    %v8317 = vpack.c.b16 %v7193, %v7189
    %v8318 = vpack.c.b16 %v7198, %v7194
    %v8319 = vpack.c.b16 %v7199, %v7195
    %v8320 = vpack.c.b16 %v7200, %v7196
    %v8321 = vpack.c.b16 %v7201, %v7197
    %v8322 = vpack.c.b16 %v7206, %v7202
    %v8323 = vpack.c.b16 %v7207, %v7203
    %v8324 = vpack.c.b16 %v7208, %v7204
    %v8325 = vpack.c.b16 %v7209, %v7205
    %v8326 = vpack.c.b16 %v7214, %v7210
    %v8327 = vpack.c.b16 %v7215, %v7211
    %v8328 = vpack.c.b16 %v7216, %v7212
    %v8329 = vpack.c.b16 %v7217, %v7213
    %v8330 = vpack.c.b16 %v7222, %v7218
    %v8331 = vpack.c.b16 %v7223, %v7219
    %v8332 = vpack.c.b16 %v7224, %v7220
    %v8333 = vpack.c.b16 %v7225, %v7221
    %v8334 = vpack.c.b16 %v7230, %v7226
    %v8335 = vpack.c.b16 %v7231, %v7227
    %v8336 = vpack.c.b16 %v7232, %v7228
    %v8337 = vpack.c.b16 %v7233, %v7229
    %v8338 = vpack.c.b16 %v7238, %v7234
    %v8339 = vpack.c.b16 %v7239, %v7235
    %v8340 = vpack.c.b16 %v7240, %v7236
    %v8341 = vpack.c.b16 %v7241, %v7237
    %v8342 = vpack.c.b16 %v7246, %v7242
    %v8343 = vpack.c.b16 %v7247, %v7243
    %v8344 = vpack.c.b16 %v7248, %v7244
    %v8345 = vpack.c.b16 %v7249, %v7245
    %v8346 = vpack.c.b16 %v7254, %v7250
    %v8347 = vpack.c.b16 %v7255, %v7251
    %v8348 = vpack.c.b16 %v7256, %v7252
    %v8349 = vpack.c.b16 %v7257, %v7253
    %v8350 = vpack.c.b16 %v7262, %v7258
    %v8351 = vpack.c.b16 %v7263, %v7259
    %v8352 = vpack.c.b16 %v7264, %v7260
    %v8353 = vpack.c.b16 %v7265, %v7261
    %v8354 = vpack.c.b16 %v7270, %v7266
    %v8355 = vpack.c.b16 %v7271, %v7267
    %v8356 = vpack.c.b16 %v7272, %v7268
    %v8357 = vpack.c.b16 %v7273, %v7269
    %v8358 = vpack.c.b16 %v7278, %v7274
    %v8359 = vpack.c.b16 %v7279, %v7275
    %v8360 = vpack.c.b16 %v7280, %v7276
    %v8361 = vpack.c.b16 %v7281, %v7277
    %v8362 = vpack.c.b16 %v7286, %v7282
    %v8363 = vpack.c.b16 %v7287, %v7283
    %v8364 = vpack.c.b16 %v7288, %v7284
    %v8365 = vpack.c.b16 %v7289, %v7285
    %v8366 = vpack.c.b16 %v7294, %v7290
    %v8367 = vpack.c.b16 %v7295, %v7291
    %v8368 = vpack.c.b16 %v7296, %v7292
    %v8369 = vpack.c.b16 %v7297, %v7293
    %v8370 = vpack.c.b16 %v7302, %v7298
    %v8371 = vpack.c.b16 %v7303, %v7299
    %v8372 = vpack.c.b16 %v7304, %v7300
    %v8373 = vpack.c.b16 %v7305, %v7301
    %v8374 = vpack.c.b16 %v7310, %v7306
    %v8375 = vpack.c.b16 %v7311, %v7307
    %v8376 = vpack.c.b16 %v7312, %v7308
    %v8377 = vpack.c.b16 %v7313, %v7309
    %v8378 = vpack.c.b16 %v7318, %v7314
    %v8379 = vpack.c.b16 %v7319, %v7315
    %v8380 = vpack.c.b16 %v7320, %v7316
    %v8381 = vpack.c.b16 %v7321, %v7317
    %v8382 = vpack.c.b16 %v7326, %v7322
    %v8383 = vpack.c.b16 %v7327, %v7323
    %v8384 = vpack.c.b16 %v7328, %v7324
    %v8385 = vpack.c.b16 %v7329, %v7325
    %v8386 = vpack.c.b16 %v7334, %v7330
    %v8387 = vpack.c.b16 %v7335, %v7331
    %v8388 = vpack.c.b16 %v7336, %v7332
    %v8389 = vpack.c.b16 %v7337, %v7333
    %v8390 = vpack.c.b16 %v7342, %v7338
    %v8391 = vpack.c.b16 %v7343, %v7339
    %v8392 = vpack.c.b16 %v7344, %v7340
    %v8393 = vpack.c.b16 %v7345, %v7341
    %v8394 = vpack.c.b16 %v7350, %v7346
    %v8395 = vpack.c.b16 %v7351, %v7347
    %v8396 = vpack.c.b16 %v7352, %v7348
    %v8397 = vpack.c.b16 %v7353, %v7349
    %v8398 = vpack.c.b16 %v7358, %v7354
    %v8399 = vpack.c.b16 %v7359, %v7355
    %v8400 = vpack.c.b16 %v7360, %v7356
    %v8401 = vpack.c.b16 %v7361, %v7357
    %v8402 = vpack.c.b16 %v7366, %v7362
    %v8403 = vpack.c.b16 %v7367, %v7363
    %v8404 = vpack.c.b16 %v7368, %v7364
    %v8405 = vpack.c.b16 %v7369, %v7365
    %v8406 = vpack.c.b16 %v7374, %v7370
    %v8407 = vpack.c.b16 %v7375, %v7371
    %v8408 = vpack.c.b16 %v7376, %v7372
    %v8409 = vpack.c.b16 %v7377, %v7373
    %v8410 = vpack.c.b16 %v7382, %v7378
    %v8411 = vpack.c.b16 %v7383, %v7379
    %v8412 = vpack.c.b16 %v7384, %v7380
    %v8413 = vpack.c.b16 %v7385, %v7381
    %v8414 = vpack.c.b16 %v7390, %v7386
    %v8415 = vpack.c.b16 %v7391, %v7387
    %v8416 = vpack.c.b16 %v7392, %v7388
    %v8417 = vpack.c.b16 %v7393, %v7389
    %v8418 = vpack.c.b16 %v7398, %v7394
    %v8419 = vpack.c.b16 %v7399, %v7395
    %v8420 = vpack.c.b16 %v7400, %v7396
    %v8421 = vpack.c.b16 %v7401, %v7397
    %v8422 = vpack.c.b16 %v7406, %v7402
    %v8423 = vpack.c.b16 %v7407, %v7403
    %v8424 = vpack.c.b16 %v7408, %v7404
    %v8425 = vpack.c.b16 %v7409, %v7405
    %v8426 = vpack.c.b16 %v7414, %v7410
    %v8427 = vpack.c.b16 %v7415, %v7411
    %v8428 = vpack.c.b16 %v7416, %v7412
    %v8429 = vpack.c.b16 %v7417, %v7413
    %v8430 = vpack.c.b16 %v7422, %v7418
    %v8431 = vpack.c.b16 %v7423, %v7419
    %v8432 = vpack.c.b16 %v7424, %v7420
    %v8433 = vpack.c.b16 %v7425, %v7421
    %v8434 = vpack.c.b16 %v7430, %v7426
    %v8435 = vpack.c.b16 %v7431, %v7427
    %v8436 = vpack.c.b16 %v7432, %v7428
    %v8437 = vpack.c.b16 %v7433, %v7429
    %v8438 = vpack.c.b16 %v7438, %v7434
    %v8439 = vpack.c.b16 %v7439, %v7435
    %v8440 = vpack.c.b16 %v7440, %v7436
    %v8441 = vpack.c.b16 %v7441, %v7437
    %v8442 = vpack.c.b16 %v7446, %v7442
    %v8443 = vpack.c.b16 %v7447, %v7443
    %v8444 = vpack.c.b16 %v7448, %v7444
    %v8445 = vpack.c.b16 %v7449, %v7445
    %v8446 = vpack.c.b16 %v7454, %v7450
    %v8447 = vpack.c.b16 %v7455, %v7451
    %v8448 = vpack.c.b16 %v7456, %v7452
    %v8449 = vpack.c.b16 %v7457, %v7453
    %v8450 = vpack.c.b16 %v7462, %v7458
    %v8451 = vpack.c.b16 %v7463, %v7459
    %v8452 = vpack.c.b16 %v7464, %v7460
    %v8453 = vpack.c.b16 %v7465, %v7461
    %v8454 = vpack.c.b16 %v7470, %v7466
    %v8455 = vpack.c.b16 %v7471, %v7467
    %v8456 = vpack.c.b16 %v7472, %v7468
    %v8457 = vpack.c.b16 %v7473, %v7469
    %v8458 = vpack.c.b16 %v7478, %v7474
    %v8459 = vpack.c.b16 %v7479, %v7475
    %v8460 = vpack.c.b16 %v7480, %v7476
    %v8461 = vpack.c.b16 %v7481, %v7477
    %v8462 = vpack.c.b16 %v7486, %v7482
    %v8463 = vpack.c.b16 %v7487, %v7483
    %v8464 = vpack.c.b16 %v7488, %v7484
    %v8465 = vpack.c.b16 %v7489, %v7485
    %v8466 = vpack.c.b16 %v7494, %v7490
    %v8467 = vpack.c.b16 %v7495, %v7491
    %v8468 = vpack.c.b16 %v7496, %v7492
    %v8469 = vpack.c.b16 %v7497, %v7493
    %v8470 = vpack.c.b16 %v7502, %v7498
    %v8471 = vpack.c.b16 %v7503, %v7499
    %v8472 = vpack.c.b16 %v7504, %v7500
    %v8473 = vpack.c.b16 %v7505, %v7501
    %v8474 = vpack.c.b16 %v7510, %v7506
    %v8475 = vpack.c.b16 %v7511, %v7507
    %v8476 = vpack.c.b16 %v7512, %v7508
    %v8477 = vpack.c.b16 %v7513, %v7509
    %v8478 = vpack.c.b16 %v7518, %v7514
    %v8479 = vpack.c.b16 %v7519, %v7515
    %v8480 = vpack.c.b16 %v7520, %v7516
    %v8481 = vpack.c.b16 %v7521, %v7517
    %v8482 = vpack.c.b16 %v7526, %v7522
    %v8483 = vpack.c.b16 %v7527, %v7523
    %v8484 = vpack.c.b16 %v7528, %v7524
    %v8485 = vpack.c.b16 %v7529, %v7525
    %v8486 = vpack.c.b16 %v7534, %v7530
    %v8487 = vpack.c.b16 %v7535, %v7531
    %v8488 = vpack.c.b16 %v7536, %v7532
    %v8489 = vpack.c.b16 %v7537, %v7533
    %v8490 = vpack.c.b16 %v7542, %v7538
    %v8491 = vpack.c.b16 %v7543, %v7539
    %v8492 = vpack.c.b16 %v7544, %v7540
    %v8493 = vpack.c.b16 %v7545, %v7541
    %v8494 = vpack.c.b16 %v7550, %v7546
    %v8495 = vpack.c.b16 %v7551, %v7547
    %v8496 = vpack.c.b16 %v7552, %v7548
    %v8497 = vpack.c.b16 %v7553, %v7549
    %v8498 = vpack.c.b16 %v7558, %v7554
    %v8499 = vpack.c.b16 %v7559, %v7555
    %v8500 = vpack.c.b16 %v7560, %v7556
    %v8501 = vpack.c.b16 %v7561, %v7557
    %v8502 = vpack.c.b16 %v7566, %v7562
    %v8503 = vpack.c.b16 %v7567, %v7563
    %v8504 = vpack.c.b16 %v7568, %v7564
    %v8505 = vpack.c.b16 %v7569, %v7565
    %v8506 = vpack.c.b16 %v7574, %v7570
    %v8507 = vpack.c.b16 %v7575, %v7571
    %v8508 = vpack.c.b16 %v7576, %v7572
    %v8509 = vpack.c.b16 %v7577, %v7573
    %v8510 = vpack.c.b16 %v7582, %v7578
    %v8511 = vpack.c.b16 %v7583, %v7579
    %v8512 = vpack.c.b16 %v7584, %v7580
    %v8513 = vpack.c.b16 %v7585, %v7581
    %v8514 = vpack.c.b16 %v7590, %v7586
    %v8515 = vpack.c.b16 %v7591, %v7587
    %v8516 = vpack.c.b16 %v7592, %v7588
    %v8517 = vpack.c.b16 %v7593, %v7589
    %v8518 = vpack.c.b16 %v7598, %v7594
    %v8519 = vpack.c.b16 %v7599, %v7595
    %v8520 = vpack.c.b16 %v7600, %v7596
    %v8521 = vpack.c.b16 %v7601, %v7597
    %v8522 = vpack.c.b16 %v7606, %v7602
    %v8523 = vpack.c.b16 %v7607, %v7603
    %v8524 = vpack.c.b16 %v7608, %v7604
    %v8525 = vpack.c.b16 %v7609, %v7605
    %v8526 = vpack.c.b16 %v7614, %v7610
    %v8527 = vpack.c.b16 %v7615, %v7611
    %v8528 = vpack.c.b16 %v7616, %v7612
    %v8529 = vpack.c.b16 %v7617, %v7613
    %v8530 = vpack.c.b16 %v7622, %v7618
    %v8531 = vpack.c.b16 %v7623, %v7619
    %v8532 = vpack.c.b16 %v7624, %v7620
    %v8533 = vpack.c.b16 %v7625, %v7621
    %v8534 = vpack.c.b16 %v7630, %v7626
    %v8535 = vpack.c.b16 %v7631, %v7627
    %v8536 = vpack.c.b16 %v7632, %v7628
    %v8537 = vpack.c.b16 %v7633, %v7629
    %v8538 = vpack.c.b16 %v7638, %v7634
    %v8539 = vpack.c.b16 %v7639, %v7635
    %v8540 = vpack.c.b16 %v7640, %v7636
    %v8541 = vpack.c.b16 %v7641, %v7637
    %v8542 = vpack.c.b16 %v7646, %v7642
    %v8543 = vpack.c.b16 %v7647, %v7643
    %v8544 = vpack.c.b16 %v7648, %v7644
    %v8545 = vpack.c.b16 %v7649, %v7645
    %v8546 = vpack.c.b16 %v7654, %v7650
    %v8547 = vpack.c.b16 %v7655, %v7651
    %v8548 = vpack.c.b16 %v7656, %v7652
    %v8549 = vpack.c.b16 %v7657, %v7653
    %v8550 = vpack.c.b16 %v7662, %v7658
    %v8551 = vpack.c.b16 %v7663, %v7659
    %v8552 = vpack.c.b16 %v7664, %v7660
    %v8553 = vpack.c.b16 %v7665, %v7661
    %v8554 = vpack.c.b16 %v7670, %v7666
    %v8555 = vpack.c.b16 %v7671, %v7667
    %v8556 = vpack.c.b16 %v7672, %v7668
    %v8557 = vpack.c.b16 %v7673, %v7669
    %v8558 = vpack.c.b16 %v7678, %v7674
    %v8559 = vpack.c.b16 %v7679, %v7675
    %v8560 = vpack.c.b16 %v7680, %v7676
    %v8561 = vpack.c.b16 %v7681, %v7677
    %v8562 = vpack.c.b16 %v7686, %v7682
    %v8563 = vpack.c.b16 %v7687, %v7683
    %v8564 = vpack.c.b16 %v7688, %v7684
    %v8565 = vpack.c.b16 %v7689, %v7685
    %v8566 = vpack.c.b16 %v7694, %v7690
    %v8567 = vpack.c.b16 %v7695, %v7691
    %v8568 = vpack.c.b16 %v7696, %v7692
    %v8569 = vpack.c.b16 %v7697, %v7693
    %v8570 = vpack.c.b16 %v7702, %v7698
    %v8571 = vpack.c.b16 %v7703, %v7699
    %v8572 = vpack.c.b16 %v7704, %v7700
    %v8573 = vpack.c.b16 %v7705, %v7701
    %v8574 = vpack.c.b16 %v7710, %v7706
    %v8575 = vpack.c.b16 %v7711, %v7707
    %v8576 = vpack.c.b16 %v7712, %v7708
    %v8577 = vpack.c.b16 %v7713, %v7709
    %v8578 = vpack.c.b16 %v7718, %v7714
    %v8579 = vpack.c.b16 %v7719, %v7715
    %v8580 = vpack.c.b16 %v7720, %v7716
    %v8581 = vpack.c.b16 %v7721, %v7717
    %v8582 = vpack.c.b16 %v7726, %v7722
    %v8583 = vpack.c.b16 %v7727, %v7723
    %v8584 = vpack.c.b16 %v7728, %v7724
    %v8585 = vpack.c.b16 %v7729, %v7725
    %v8586 = vpack.c.b16 %v7734, %v7730
    %v8587 = vpack.c.b16 %v7735, %v7731
    %v8588 = vpack.c.b16 %v7736, %v7732
    %v8589 = vpack.c.b16 %v7737, %v7733
    %v8590 = vpack.c.b16 %v7742, %v7738
    %v8591 = vpack.c.b16 %v7743, %v7739
    %v8592 = vpack.c.b16 %v7744, %v7740
    %v8593 = vpack.c.b16 %v7745, %v7741
    %v8594 = vpack.c.b16 %v7750, %v7746
    %v8595 = vpack.c.b16 %v7751, %v7747
    %v8596 = vpack.c.b16 %v7752, %v7748
    %v8597 = vpack.c.b16 %v7753, %v7749
    %v8598 = vpack.c.b16 %v7758, %v7754
    %v8599 = vpack.c.b16 %v7759, %v7755
    %v8600 = vpack.c.b16 %v7760, %v7756
    %v8601 = vpack.c.b16 %v7761, %v7757
    %v8602 = vpack.c.b16 %v7766, %v7762
    %v8603 = vpack.c.b16 %v7767, %v7763
    %v8604 = vpack.c.b16 %v7768, %v7764
    %v8605 = vpack.c.b16 %v7769, %v7765
    %v8606 = vpack.c.b16 %v7774, %v7770
    %v8607 = vpack.c.b16 %v7775, %v7771
    %v8608 = vpack.c.b16 %v7776, %v7772
    %v8609 = vpack.c.b16 %v7777, %v7773
    %v8610 = vpack.c.b16 %v7782, %v7778
    %v8611 = vpack.c.b16 %v7783, %v7779
    %v8612 = vpack.c.b16 %v7784, %v7780
    %v8613 = vpack.c.b16 %v7785, %v7781
    %v8614 = vpack.c.b16 %v7790, %v7786
    %v8615 = vpack.c.b16 %v7791, %v7787
    %v8616 = vpack.c.b16 %v7792, %v7788
    %v8617 = vpack.c.b16 %v7793, %v7789
    %v8618 = vpack.c.b16 %v7798, %v7794
    %v8619 = vpack.c.b16 %v7799, %v7795
    %v8620 = vpack.c.b16 %v7800, %v7796
    %v8621 = vpack.c.b16 %v7801, %v7797
    %v8622 = vpack.c.b16 %v7806, %v7802
    %v8623 = vpack.c.b16 %v7807, %v7803
    %v8624 = vpack.c.b16 %v7808, %v7804
    %v8625 = vpack.c.b16 %v7809, %v7805
    %v8626 = vpack.c.b16 %v7814, %v7810
    %v8627 = vpack.c.b16 %v7815, %v7811
    %v8628 = vpack.c.b16 %v7816, %v7812
    %v8629 = vpack.c.b16 %v7817, %v7813
    %v8630 = vpack.c.b16 %v7822, %v7818
    %v8631 = vpack.c.b16 %v7823, %v7819
    %v8632 = vpack.c.b16 %v7824, %v7820
    %v8633 = vpack.c.b16 %v7825, %v7821
    %v8634 = vpack.c.b16 %v7830, %v7826
    %v8635 = vpack.c.b16 %v7831, %v7827
    %v8636 = vpack.c.b16 %v7832, %v7828
    %v8637 = vpack.c.b16 %v7833, %v7829
    %v8638 = vpack.c.b16 %v7838, %v7834
    %v8639 = vpack.c.b16 %v7839, %v7835
    %v8640 = vpack.c.b16 %v7840, %v7836
    %v8641 = vpack.c.b16 %v7841, %v7837
    %v8642 = vpack.c.b16 %v7846, %v7842
    %v8643 = vpack.c.b16 %v7847, %v7843
    %v8644 = vpack.c.b16 %v7848, %v7844
    %v8645 = vpack.c.b16 %v7849, %v7845
    %v8646 = vpack.c.b16 %v7854, %v7850
    %v8647 = vpack.c.b16 %v7855, %v7851
    %v8648 = vpack.c.b16 %v7856, %v7852
    %v8649 = vpack.c.b16 %v7857, %v7853
    %v8650 = vpack.c.b16 %v7862, %v7858
    %v8651 = vpack.c.b16 %v7863, %v7859
    %v8652 = vpack.c.b16 %v7864, %v7860
    %v8653 = vpack.c.b16 %v7865, %v7861
    %v8654 = vpack.c.b16 %v7870, %v7866
    %v8655 = vpack.c.b16 %v7871, %v7867
    %v8656 = vpack.c.b16 %v7872, %v7868
    %v8657 = vpack.c.b16 %v7873, %v7869
    %v9443 = vlaneseq
    %v9444 = vshrl.u32 %v9443, 7
    %v9445 = vsub.s32 0, %v9444
    %v9446 = vrot.slane %v5521, %v9445
    %v9447 = vlaneseq
    %v9448 = vshrl.u32 %v9447, 7
    %v9449 = vsub.s32 1, %v9448
    %v9450 = vrot.slane %v5521, %v9449
    %v9451 = vlaneseq
    %v9452 = vshrl.u32 %v9451, 7
    %v9453 = vsub.s32 2, %v9452
    %v9454 = vrot.slane %v5521, %v9453
    %v9455 = vlaneseq
    %v9456 = vshrl.u32 %v9455, 7
    %v9457 = vsub.s32 3, %v9456
    %v9458 = vrot.slane %v5521, %v9457
    %v9464 = vsel %vm126, %v4718, 0
    %9466 = vmatprep.subr.bf16.mxu0 %v7903
    %9467 = vmatpush1.bf16.msra.mxu0 %v7902
    %9468 = vmatprep.subr.bf16.mxu0 %v7899
    %9469 = vmatpush1.bf16.msra.mxu0 %v7898
    %9470 = vmatprep.subr.bf16.mxu0 %v7895
    %9471 = vmatpush1.bf16.msra.mxu0 %v7894
    %9472 = vmatprep.subr.bf16.mxu0 %v7891
    %9473 = vmatpush1.bf16.msra.mxu0 %v7890
    %9474 = vmatprep.subr.bf16.mxu0 %v7887
    %9475 = vmatpush1.bf16.msra.mxu0 %v7886
    %9476 = vmatprep.subr.bf16.mxu0 %v7883
    %9477 = vmatpush1.bf16.msra.mxu0 %v7882
    %9478 = vmatprep.subr.bf16.mxu0 %v7879
    %9479 = vmatpush1.bf16.msra.mxu0 %v7878
    %9480 = vmatprep.subr.bf16.mxu0 %v7875
    %9481 = vmatpush1.bf16.msra.mxu0 %v7874
    %9482 = vmatprep.subr.bf16.mxu0 %v7935
    %9483 = vmatpush2.bf16.msra.mxu0 %v7934
    %9484 = vmatprep.subr.bf16.mxu0 %v7931
    %9485 = vmatpush2.bf16.msra.mxu0 %v7930
    %9486 = vmatprep.subr.bf16.mxu0 %v7927
    %9487 = vmatpush2.bf16.msra.mxu0 %v7926
    %9488 = vmatprep.subr.bf16.mxu0 %v7923
    %9489 = vmatpush2.bf16.msra.mxu0 %v7922
    %9490 = vmatprep.subr.bf16.mxu0 %v7919
    %9491 = vmatpush2.bf16.msra.mxu0 %v7918
    %9492 = vmatprep.subr.bf16.mxu0 %v7915
    %9493 = vmatpush2.bf16.msra.mxu0 %v7914
    %9494 = vmatprep.subr.bf16.mxu0 %v7911
    %9495 = vmatpush2.bf16.msra.mxu0 %v7910
    %9496 = vmatprep.subr.bf16.mxu0 %v7907
    %9497 = vmatpush2.bf16.msra.mxu0 %v7906
    %9498 = vmatprep.mubr.bf16.mxu0 %v4361
    %9499 = vmatmul.mubr.bf16.gmra.mxu0 %v4351
    %v9500 = vpop.f32.mrf.mxu0
    %v9501 = vadd.f32 %v9446, %v9500
    %v9502 = vpop.f32.mrf.mxu0
    %v9503 = vadd.f32 %v9450, %v9502
    %v9504 = vpop.f32.mrf.mxu0
    %v9505 = vpop.f32.mrf.mxu0
    %9506 = vdwg.mxu0
    %9507 = vmatprep.subr.bf16.mxu0 %v7967
    %9508 = vmatpush1.bf16.msra.mxu0 %v7966
    %9509 = vmatprep.subr.bf16.mxu0 %v7963
    %9510 = vmatpush1.bf16.msra.mxu0 %v7962
    %9511 = vmatprep.subr.bf16.mxu0 %v7959
    %9512 = vmatpush1.bf16.msra.mxu0 %v7958
    %9513 = vmatprep.subr.bf16.mxu0 %v7955
    %9514 = vmatpush1.bf16.msra.mxu0 %v7954
    %9515 = vmatprep.subr.bf16.mxu0 %v7951
    %9516 = vmatpush1.bf16.msra.mxu0 %v7950
    %9517 = vmatprep.subr.bf16.mxu0 %v7947
    %9518 = vmatpush1.bf16.msra.mxu0 %v7946
    %9519 = vmatprep.subr.bf16.mxu0 %v7943
    %9520 = vmatpush1.bf16.msra.mxu0 %v7942
    %9521 = vmatprep.subr.bf16.mxu0 %v7939
    %9522 = vmatpush1.bf16.msra.mxu0 %v7938
    %9523 = vmatprep.subr.bf16.mxu0 %v7999
    %9524 = vmatpush2.bf16.msra.mxu0 %v7998
    %9525 = vmatprep.subr.bf16.mxu0 %v7995
    %9526 = vmatpush2.bf16.msra.mxu0 %v7994
    %9527 = vmatprep.subr.bf16.mxu0 %v7991
    %9528 = vmatpush2.bf16.msra.mxu0 %v7990
    %9529 = vmatprep.subr.bf16.mxu0 %v7987
    %9530 = vmatpush2.bf16.msra.mxu0 %v7986
    %9531 = vmatprep.subr.bf16.mxu0 %v7983
    %9532 = vmatpush2.bf16.msra.mxu0 %v7982
    %9533 = vmatprep.subr.bf16.mxu0 %v7979
    %9534 = vmatpush2.bf16.msra.mxu0 %v7978
    %9535 = vmatprep.subr.bf16.mxu0 %v7975
    %9536 = vmatpush2.bf16.msra.mxu0 %v7974
    %9537 = vmatprep.subr.bf16.mxu0 %v7971
    %9538 = vmatpush2.bf16.msra.mxu0 %v7970
    %9539 = vmatprep.mubr.bf16.mxu0 %v4378
    %9540 = vmatmul.mubr.bf16.gmra.mxu0 %v4368
    %v9541 = vpop.f32.mrf.mxu0
    %v9542 = vadd.f32 %v9501, %v9541
    %v9543 = vpop.f32.mrf.mxu0
    %v9544 = vadd.f32 %v9503, %v9543
    %v9545 = vpop.f32.mrf.mxu0
    %v9546 = vpop.f32.mrf.mxu0
    %9547 = vdwg.mxu0
    %9548 = vmatprep.subr.bf16.mxu0 %v8031
    %9549 = vmatpush1.bf16.msra.mxu0 %v8030
    %9550 = vmatprep.subr.bf16.mxu0 %v8027
    %9551 = vmatpush1.bf16.msra.mxu0 %v8026
    %9552 = vmatprep.subr.bf16.mxu0 %v8023
    %9553 = vmatpush1.bf16.msra.mxu0 %v8022
    %9554 = vmatprep.subr.bf16.mxu0 %v8019
    %9555 = vmatpush1.bf16.msra.mxu0 %v8018
    %9556 = vmatprep.subr.bf16.mxu0 %v8015
    %9557 = vmatpush1.bf16.msra.mxu0 %v8014
    %9558 = vmatprep.subr.bf16.mxu0 %v8011
    %9559 = vmatpush1.bf16.msra.mxu0 %v8010
    %9560 = vmatprep.subr.bf16.mxu0 %v8007
    %9561 = vmatpush1.bf16.msra.mxu0 %v8006
    %9562 = vmatprep.subr.bf16.mxu0 %v8003
    %9563 = vmatpush1.bf16.msra.mxu0 %v8002
    %9564 = vmatprep.subr.bf16.mxu0 %v8063
    %9565 = vmatpush2.bf16.msra.mxu0 %v8062
    %9566 = vmatprep.subr.bf16.mxu0 %v8059
    %9567 = vmatpush2.bf16.msra.mxu0 %v8058
    %9568 = vmatprep.subr.bf16.mxu0 %v8055
    %9569 = vmatpush2.bf16.msra.mxu0 %v8054
    %9570 = vmatprep.subr.bf16.mxu0 %v8051
    %9571 = vmatpush2.bf16.msra.mxu0 %v8050
    %9572 = vmatprep.subr.bf16.mxu0 %v8047
    %9573 = vmatpush2.bf16.msra.mxu0 %v8046
    %9574 = vmatprep.subr.bf16.mxu0 %v8043
    %9575 = vmatpush2.bf16.msra.mxu0 %v8042
    %9576 = vmatprep.subr.bf16.mxu0 %v8039
    %9577 = vmatpush2.bf16.msra.mxu0 %v8038
    %9578 = vmatprep.subr.bf16.mxu0 %v8035
    %9579 = vmatpush2.bf16.msra.mxu0 %v8034
    %9580 = vmatprep.mubr.bf16.mxu0 %v4395
    %9581 = vmatmul.mubr.bf16.gmra.mxu0 %v4388
    %v9582 = vpop.f32.mrf.mxu0
    %v9583 = vadd.f32 %v9542, %v9582
    %v9584 = vpop.f32.mrf.mxu0
    %v9585 = vadd.f32 %v9544, %v9584
    %v9586 = vpop.f32.mrf.mxu0
    %v9587 = vpop.f32.mrf.mxu0
    %9588 = vdwg.mxu0
    %9589 = vmatprep.subr.bf16.mxu0 %v8095
    %9590 = vmatpush1.bf16.msra.mxu0 %v8094
    %9591 = vmatprep.subr.bf16.mxu0 %v8091
    %9592 = vmatpush1.bf16.msra.mxu0 %v8090
    %9593 = vmatprep.subr.bf16.mxu0 %v8087
    %9594 = vmatpush1.bf16.msra.mxu0 %v8086
    %9595 = vmatprep.subr.bf16.mxu0 %v8083
    %9596 = vmatpush1.bf16.msra.mxu0 %v8082
    %9597 = vmatprep.subr.bf16.mxu0 %v8079
    %9598 = vmatpush1.bf16.msra.mxu0 %v8078
    %9599 = vmatprep.subr.bf16.mxu0 %v8075
    %9600 = vmatpush1.bf16.msra.mxu0 %v8074
    %9601 = vmatprep.subr.bf16.mxu0 %v8071
    %9602 = vmatpush1.bf16.msra.mxu0 %v8070
    %9603 = vmatprep.subr.bf16.mxu0 %v8067
    %9604 = vmatpush1.bf16.msra.mxu0 %v8066
    %9605 = vmatprep.subr.bf16.mxu0 %v8127
    %9606 = vmatpush2.bf16.msra.mxu0 %v8126
    %9607 = vmatprep.subr.bf16.mxu0 %v8123
    %9608 = vmatpush2.bf16.msra.mxu0 %v8122
    %9609 = vmatprep.subr.bf16.mxu0 %v8119
    %9610 = vmatpush2.bf16.msra.mxu0 %v8118
    %9611 = vmatprep.subr.bf16.mxu0 %v8115
    %9612 = vmatpush2.bf16.msra.mxu0 %v8114
    %9613 = vmatprep.subr.bf16.mxu0 %v8111
    %9614 = vmatpush2.bf16.msra.mxu0 %v8110
    %9615 = vmatprep.subr.bf16.mxu0 %v8107
    %9616 = vmatpush2.bf16.msra.mxu0 %v8106
    %9617 = vmatprep.subr.bf16.mxu0 %v8103
    %9618 = vmatpush2.bf16.msra.mxu0 %v8102
    %9619 = vmatprep.subr.bf16.mxu0 %v8099
    %9620 = vmatpush2.bf16.msra.mxu0 %v8098
    %9621 = vmatprep.mubr.bf16.mxu0 %v4649
    %9622 = vmatmul.mubr.bf16.gmra.mxu0 %v4726
    %v9623 = vpop.f32.mrf.mxu0
    %v9624 = vadd.f32 %v9583, %v9623
    %v9625 = vpop.f32.mrf.mxu0
    %v9626 = vadd.f32 %v9585, %v9625
    %v9627 = vpop.f32.mrf.mxu0
    %v9628 = vpop.f32.mrf.mxu0
    %9629 = vdwg.mxu0
    %9630 = vmatprep.subr.bf16.mxu0 %v8159
    %9631 = vmatpush1.bf16.msra.mxu0 %v8158
    %9632 = vmatprep.subr.bf16.mxu0 %v8155
    %9633 = vmatpush1.bf16.msra.mxu0 %v8154
    %9634 = vmatprep.subr.bf16.mxu0 %v8151
    %9635 = vmatpush1.bf16.msra.mxu0 %v8150
    %9636 = vmatprep.subr.bf16.mxu0 %v8147
    %9637 = vmatpush1.bf16.msra.mxu0 %v8146
    %9638 = vmatprep.subr.bf16.mxu0 %v8143
    %9639 = vmatpush1.bf16.msra.mxu0 %v8142
    %9640 = vmatprep.subr.bf16.mxu0 %v8139
    %9641 = vmatpush1.bf16.msra.mxu0 %v8138
    %9642 = vmatprep.subr.bf16.mxu0 %v8135
    %9643 = vmatpush1.bf16.msra.mxu0 %v8134
    %9644 = vmatprep.subr.bf16.mxu0 %v8131
    %9645 = vmatpush1.bf16.msra.mxu0 %v8130
    %9646 = vmatprep.subr.bf16.mxu0 %v8191
    %9647 = vmatpush2.bf16.msra.mxu0 %v8190
    %9648 = vmatprep.subr.bf16.mxu0 %v8187
    %9649 = vmatpush2.bf16.msra.mxu0 %v8186
    %9650 = vmatprep.subr.bf16.mxu0 %v8183
    %9651 = vmatpush2.bf16.msra.mxu0 %v8182
    %9652 = vmatprep.subr.bf16.mxu0 %v8179
    %9653 = vmatpush2.bf16.msra.mxu0 %v8178
    %9654 = vmatprep.subr.bf16.mxu0 %v8175
    %9655 = vmatpush2.bf16.msra.mxu0 %v8174
    %9656 = vmatprep.subr.bf16.mxu0 %v8171
    %9657 = vmatpush2.bf16.msra.mxu0 %v8170
    %9658 = vmatprep.subr.bf16.mxu0 %v8167
    %9659 = vmatpush2.bf16.msra.mxu0 %v8166
    %9660 = vmatprep.subr.bf16.mxu0 %v8163
    %9661 = vmatpush2.bf16.msra.mxu0 %v8162
    %9662 = vmatprep.mubr.bf16.mxu0 %v4651
    %9663 = vmatmul.mubr.bf16.gmra.mxu0 %v4650
    %v9664 = vpop.f32.mrf.mxu0
    %v9665 = vadd.f32 %v9624, %v9664
    %v9666 = vpop.f32.mrf.mxu0
    %v9667 = vadd.f32 %v9626, %v9666
    %v9668 = vpop.f32.mrf.mxu0
    %v9669 = vpop.f32.mrf.mxu0
    %9670 = vdwg.mxu0
    %9671 = vmatprep.subr.bf16.mxu0 %v8223
    %9672 = vmatpush1.bf16.msra.mxu0 %v8222
    %9673 = vmatprep.subr.bf16.mxu0 %v8219
    %9674 = vmatpush1.bf16.msra.mxu0 %v8218
    %9675 = vmatprep.subr.bf16.mxu0 %v8215
    %9676 = vmatpush1.bf16.msra.mxu0 %v8214
    %9677 = vmatprep.subr.bf16.mxu0 %v8211
    %9678 = vmatpush1.bf16.msra.mxu0 %v8210
    %9679 = vmatprep.subr.bf16.mxu0 %v8207
    %9680 = vmatpush1.bf16.msra.mxu0 %v8206
    %9681 = vmatprep.subr.bf16.mxu0 %v8203
    %9682 = vmatpush1.bf16.msra.mxu0 %v8202
    %9683 = vmatprep.subr.bf16.mxu0 %v8199
    %9684 = vmatpush1.bf16.msra.mxu0 %v8198
    %9685 = vmatprep.subr.bf16.mxu0 %v8195
    %9686 = vmatpush1.bf16.msra.mxu0 %v8194
    %9687 = vmatprep.subr.bf16.mxu0 %v8255
    %9688 = vmatpush2.bf16.msra.mxu0 %v8254
    %9689 = vmatprep.subr.bf16.mxu0 %v8251
    %9690 = vmatpush2.bf16.msra.mxu0 %v8250
    %9691 = vmatprep.subr.bf16.mxu0 %v8247
    %9692 = vmatpush2.bf16.msra.mxu0 %v8246
    %9693 = vmatprep.subr.bf16.mxu0 %v8243
    %9694 = vmatpush2.bf16.msra.mxu0 %v8242
    %9695 = vmatprep.subr.bf16.mxu0 %v8239
    %9696 = vmatpush2.bf16.msra.mxu0 %v8238
    %9697 = vmatprep.subr.bf16.mxu0 %v8235
    %9698 = vmatpush2.bf16.msra.mxu0 %v8234
    %9699 = vmatprep.subr.bf16.mxu0 %v8231
    %9700 = vmatpush2.bf16.msra.mxu0 %v8230
    %9701 = vmatprep.subr.bf16.mxu0 %v8227
    %9702 = vmatpush2.bf16.msra.mxu0 %v8226
    %9703 = vmatprep.mubr.bf16.mxu0 %v4653
    %9704 = vmatmul.mubr.bf16.gmra.mxu0 %v4652
    %v9705 = vpop.f32.mrf.mxu0
    %v9706 = vadd.f32 %v9665, %v9705
    %v9707 = vpop.f32.mrf.mxu0
    %v9708 = vadd.f32 %v9667, %v9707
    %v9709 = vpop.f32.mrf.mxu0
    %v9710 = vpop.f32.mrf.mxu0
    %9711 = vdwg.mxu0
    %9712 = vmatprep.subr.bf16.mxu0 %v8287
    %9713 = vmatpush1.bf16.msra.mxu0 %v8286
    %9714 = vmatprep.subr.bf16.mxu0 %v8283
    %9715 = vmatpush1.bf16.msra.mxu0 %v8282
    %9716 = vmatprep.subr.bf16.mxu0 %v8279
    %9717 = vmatpush1.bf16.msra.mxu0 %v8278
    %9718 = vmatprep.subr.bf16.mxu0 %v8275
    %9719 = vmatpush1.bf16.msra.mxu0 %v8274
    %9720 = vmatprep.subr.bf16.mxu0 %v8271
    %9721 = vmatpush1.bf16.msra.mxu0 %v8270
    %9722 = vmatprep.subr.bf16.mxu0 %v8267
    %9723 = vmatpush1.bf16.msra.mxu0 %v8266
    %9724 = vmatprep.subr.bf16.mxu0 %v8263
    %9725 = vmatpush1.bf16.msra.mxu0 %v8262
    %9726 = vmatprep.subr.bf16.mxu0 %v8259
    %9727 = vmatpush1.bf16.msra.mxu0 %v8258
    %9728 = vmatprep.subr.bf16.mxu0 %v8319
    %9729 = vmatpush2.bf16.msra.mxu0 %v8318
    %9730 = vmatprep.subr.bf16.mxu0 %v8315
    %9731 = vmatpush2.bf16.msra.mxu0 %v8314
    %9732 = vmatprep.subr.bf16.mxu0 %v8311
    %9733 = vmatpush2.bf16.msra.mxu0 %v8310
    %9734 = vmatprep.subr.bf16.mxu0 %v8307
    %9735 = vmatpush2.bf16.msra.mxu0 %v8306
    %9736 = vmatprep.subr.bf16.mxu0 %v8303
    %9737 = vmatpush2.bf16.msra.mxu0 %v8302
    %9738 = vmatprep.subr.bf16.mxu0 %v8299
    %9739 = vmatpush2.bf16.msra.mxu0 %v8298
    %9740 = vmatprep.subr.bf16.mxu0 %v8295
    %9741 = vmatpush2.bf16.msra.mxu0 %v8294
    %9742 = vmatprep.subr.bf16.mxu0 %v8291
    %9743 = vmatpush2.bf16.msra.mxu0 %v8290
    %9744 = vmatprep.mubr.bf16.mxu0 %v4681
    %9745 = vmatmul.mubr.bf16.gmra.mxu0 %v4730
    %v9746 = vpop.f32.mrf.mxu0
    %v9747 = vadd.f32 %v9706, %v9746
    %v9748 = vpop.f32.mrf.mxu0
    %v9749 = vadd.f32 %v9708, %v9748
    %v9750 = vpop.f32.mrf.mxu0
    %v9751 = vpop.f32.mrf.mxu0
    %9752 = vdwg.mxu0
    %9753 = vmatprep.subr.bf16.mxu0 %v8351
    %9754 = vmatpush1.bf16.msra.mxu0 %v8350
    %9755 = vmatprep.subr.bf16.mxu0 %v8347
    %9756 = vmatpush1.bf16.msra.mxu0 %v8346
    %9757 = vmatprep.subr.bf16.mxu0 %v8343
    %9758 = vmatpush1.bf16.msra.mxu0 %v8342
    %9759 = vmatprep.subr.bf16.mxu0 %v8339
    %9760 = vmatpush1.bf16.msra.mxu0 %v8338
    %9761 = vmatprep.subr.bf16.mxu0 %v8335
    %9762 = vmatpush1.bf16.msra.mxu0 %v8334
    %9763 = vmatprep.subr.bf16.mxu0 %v8331
    %9764 = vmatpush1.bf16.msra.mxu0 %v8330
    %9765 = vmatprep.subr.bf16.mxu0 %v8327
    %9766 = vmatpush1.bf16.msra.mxu0 %v8326
    %9767 = vmatprep.subr.bf16.mxu0 %v8323
    %9768 = vmatpush1.bf16.msra.mxu0 %v8322
    %9769 = vmatprep.subr.bf16.mxu0 %v8383
    %9770 = vmatpush2.bf16.msra.mxu0 %v8382
    %9771 = vmatprep.subr.bf16.mxu0 %v8379
    %9772 = vmatpush2.bf16.msra.mxu0 %v8378
    %9773 = vmatprep.subr.bf16.mxu0 %v8375
    %9774 = vmatpush2.bf16.msra.mxu0 %v8374
    %9775 = vmatprep.subr.bf16.mxu0 %v8371
    %9776 = vmatpush2.bf16.msra.mxu0 %v8370
    %9777 = vmatprep.subr.bf16.mxu0 %v8367
    %9778 = vmatpush2.bf16.msra.mxu0 %v8366
    %9779 = vmatprep.subr.bf16.mxu0 %v8363
    %9780 = vmatpush2.bf16.msra.mxu0 %v8362
    %9781 = vmatprep.subr.bf16.mxu0 %v8359
    %9782 = vmatpush2.bf16.msra.mxu0 %v8358
    %9783 = vmatprep.subr.bf16.mxu0 %v8355
    %9784 = vmatpush2.bf16.msra.mxu0 %v8354
    %9785 = vmatprep.mubr.bf16.mxu0 %v4683
    %9786 = vmatmul.mubr.bf16.gmra.mxu0 %v4682
    %v9787 = vpop.f32.mrf.mxu0
    %v9788 = vadd.f32 %v9747, %v9787
    %v9789 = vpop.f32.mrf.mxu0
    %v9790 = vadd.f32 %v9749, %v9789
    %v9791 = vpop.f32.mrf.mxu0
    %v9792 = vpop.f32.mrf.mxu0
    %9793 = vdwg.mxu0
    %9794 = vmatprep.subr.bf16.mxu0 %v8415
    %9795 = vmatpush1.bf16.msra.mxu0 %v8414
    %9796 = vmatprep.subr.bf16.mxu0 %v8411
    %9797 = vmatpush1.bf16.msra.mxu0 %v8410
    %9798 = vmatprep.subr.bf16.mxu0 %v8407
    %9799 = vmatpush1.bf16.msra.mxu0 %v8406
    %9800 = vmatprep.subr.bf16.mxu0 %v8403
    %9801 = vmatpush1.bf16.msra.mxu0 %v8402
    %9802 = vmatprep.subr.bf16.mxu0 %v8399
    %9803 = vmatpush1.bf16.msra.mxu0 %v8398
    %9804 = vmatprep.subr.bf16.mxu0 %v8395
    %9805 = vmatpush1.bf16.msra.mxu0 %v8394
    %9806 = vmatprep.subr.bf16.mxu0 %v8391
    %9807 = vmatpush1.bf16.msra.mxu0 %v8390
    %9808 = vmatprep.subr.bf16.mxu0 %v8387
    %9809 = vmatpush1.bf16.msra.mxu0 %v8386
    %9810 = vmatprep.subr.bf16.mxu0 %v8447
    %9811 = vmatpush2.bf16.msra.mxu0 %v8446
    %9812 = vmatprep.subr.bf16.mxu0 %v8443
    %9813 = vmatpush2.bf16.msra.mxu0 %v8442
    %9814 = vmatprep.subr.bf16.mxu0 %v8439
    %9815 = vmatpush2.bf16.msra.mxu0 %v8438
    %9816 = vmatprep.subr.bf16.mxu0 %v8435
    %9817 = vmatpush2.bf16.msra.mxu0 %v8434
    %9818 = vmatprep.subr.bf16.mxu0 %v8431
    %9819 = vmatpush2.bf16.msra.mxu0 %v8430
    %9820 = vmatprep.subr.bf16.mxu0 %v8427
    %9821 = vmatpush2.bf16.msra.mxu0 %v8426
    %9822 = vmatprep.subr.bf16.mxu0 %v8423
    %9823 = vmatpush2.bf16.msra.mxu0 %v8422
    %9824 = vmatprep.subr.bf16.mxu0 %v8419
    %9825 = vmatpush2.bf16.msra.mxu0 %v8418
    %9826 = vmatprep.mubr.bf16.mxu0 %v4685
    %9827 = vmatmul.mubr.bf16.gmra.mxu0 %v4684
    %v9828 = vpop.f32.mrf.mxu0
    %v9829 = vadd.f32 %v9788, %v9828
    %v9830 = vpop.f32.mrf.mxu0
    %v9831 = vadd.f32 %v9790, %v9830
    %v9832 = vpop.f32.mrf.mxu0
    %v9833 = vpop.f32.mrf.mxu0
    %9834 = vdwg.mxu0
    %9835 = vmatprep.subr.bf16.mxu0 %v8479
    %9836 = vmatpush1.bf16.msra.mxu0 %v8478
    %9837 = vmatprep.subr.bf16.mxu0 %v8475
    %9838 = vmatpush1.bf16.msra.mxu0 %v8474
    %9839 = vmatprep.subr.bf16.mxu0 %v8471
    %9840 = vmatpush1.bf16.msra.mxu0 %v8470
    %9841 = vmatprep.subr.bf16.mxu0 %v8467
    %9842 = vmatpush1.bf16.msra.mxu0 %v8466
    %9843 = vmatprep.subr.bf16.mxu0 %v8463
    %9844 = vmatpush1.bf16.msra.mxu0 %v8462
    %9845 = vmatprep.subr.bf16.mxu0 %v8459
    %9846 = vmatpush1.bf16.msra.mxu0 %v8458
    %9847 = vmatprep.subr.bf16.mxu0 %v8455
    %9848 = vmatpush1.bf16.msra.mxu0 %v8454
    %9849 = vmatprep.subr.bf16.mxu0 %v8451
    %9850 = vmatpush1.bf16.msra.mxu0 %v8450
    %9851 = vmatprep.subr.bf16.mxu0 %v8511
    %9852 = vmatpush2.bf16.msra.mxu0 %v8510
    %9853 = vmatprep.subr.bf16.mxu0 %v8507
    %9854 = vmatpush2.bf16.msra.mxu0 %v8506
    %9855 = vmatprep.subr.bf16.mxu0 %v8503
    %9856 = vmatpush2.bf16.msra.mxu0 %v8502
    %9857 = vmatprep.subr.bf16.mxu0 %v8499
    %9858 = vmatpush2.bf16.msra.mxu0 %v8498
    %9859 = vmatprep.subr.bf16.mxu0 %v8495
    %9860 = vmatpush2.bf16.msra.mxu0 %v8494
    %9861 = vmatprep.subr.bf16.mxu0 %v8491
    %9862 = vmatpush2.bf16.msra.mxu0 %v8490
    %9863 = vmatprep.subr.bf16.mxu0 %v8487
    %9864 = vmatpush2.bf16.msra.mxu0 %v8486
    %9865 = vmatprep.subr.bf16.mxu0 %v8483
    %9866 = vmatpush2.bf16.msra.mxu0 %v8482
    %9867 = vmatprep.mubr.bf16.mxu0 %v4713
    %9868 = vmatmul.mubr.bf16.gmra.mxu0 %v4735
    %v9869 = vpop.f32.mrf.mxu0
    %v9870 = vadd.f32 %v9829, %v9869
    %v9871 = vpop.f32.mrf.mxu0
    %v9872 = vadd.f32 %v9831, %v9871
    %v9873 = vpop.f32.mrf.mxu0
    %v9874 = vpop.f32.mrf.mxu0
    %9875 = vdwg.mxu0
    %9876 = vmatprep.subr.bf16.mxu0 %v8543
    %9877 = vmatpush1.bf16.msra.mxu0 %v8542
    %9878 = vmatprep.subr.bf16.mxu0 %v8539
    %9879 = vmatpush1.bf16.msra.mxu0 %v8538
    %9880 = vmatprep.subr.bf16.mxu0 %v8535
    %9881 = vmatpush1.bf16.msra.mxu0 %v8534
    %9882 = vmatprep.subr.bf16.mxu0 %v8531
    %9883 = vmatpush1.bf16.msra.mxu0 %v8530
    %9884 = vmatprep.subr.bf16.mxu0 %v8527
    %9885 = vmatpush1.bf16.msra.mxu0 %v8526
    %9886 = vmatprep.subr.bf16.mxu0 %v8523
    %9887 = vmatpush1.bf16.msra.mxu0 %v8522
    %9888 = vmatprep.subr.bf16.mxu0 %v8519
    %9889 = vmatpush1.bf16.msra.mxu0 %v8518
    %9890 = vmatprep.subr.bf16.mxu0 %v8515
    %9891 = vmatpush1.bf16.msra.mxu0 %v8514
    %9892 = vmatprep.subr.bf16.mxu0 %v8575
    %9893 = vmatpush2.bf16.msra.mxu0 %v8574
    %9894 = vmatprep.subr.bf16.mxu0 %v8571
    %9895 = vmatpush2.bf16.msra.mxu0 %v8570
    %9896 = vmatprep.subr.bf16.mxu0 %v8567
    %9897 = vmatpush2.bf16.msra.mxu0 %v8566
    %9898 = vmatprep.subr.bf16.mxu0 %v8563
    %9899 = vmatpush2.bf16.msra.mxu0 %v8562
    %9900 = vmatprep.subr.bf16.mxu0 %v8559
    %9901 = vmatpush2.bf16.msra.mxu0 %v8558
    %9902 = vmatprep.subr.bf16.mxu0 %v8555
    %9903 = vmatpush2.bf16.msra.mxu0 %v8554
    %9904 = vmatprep.subr.bf16.mxu0 %v8551
    %9905 = vmatpush2.bf16.msra.mxu0 %v8550
    %9906 = vmatprep.subr.bf16.mxu0 %v8547
    %9907 = vmatpush2.bf16.msra.mxu0 %v8546
    %9908 = vmatprep.mubr.bf16.mxu0 %v4715
    %9909 = vmatmul.mubr.bf16.gmra.mxu0 %v4714
    %v9910 = vpop.f32.mrf.mxu0
    %v9911 = vadd.f32 %v9870, %v9910
    %v9912 = vpop.f32.mrf.mxu0
    %v9913 = vadd.f32 %v9872, %v9912
    %v9914 = vpop.f32.mrf.mxu0
    %v9915 = vpop.f32.mrf.mxu0
    %9916 = vdwg.mxu0
    %9917 = vmatprep.subr.bf16.mxu0 %v8607
    %9918 = vmatpush1.bf16.msra.mxu0 %v8606
    %9919 = vmatprep.subr.bf16.mxu0 %v8603
    %9920 = vmatpush1.bf16.msra.mxu0 %v8602
    %9921 = vmatprep.subr.bf16.mxu0 %v8599
    %9922 = vmatpush1.bf16.msra.mxu0 %v8598
    %9923 = vmatprep.subr.bf16.mxu0 %v8595
    %9924 = vmatpush1.bf16.msra.mxu0 %v8594
    %9925 = vmatprep.subr.bf16.mxu0 %v8591
    %9926 = vmatpush1.bf16.msra.mxu0 %v8590
    %9927 = vmatprep.subr.bf16.mxu0 %v8587
    %9928 = vmatpush1.bf16.msra.mxu0 %v8586
    %9929 = vmatprep.subr.bf16.mxu0 %v8583
    %9930 = vmatpush1.bf16.msra.mxu0 %v8582
    %9931 = vmatprep.subr.bf16.mxu0 %v8579
    %9932 = vmatpush1.bf16.msra.mxu0 %v8578
    %9933 = vmatprep.subr.bf16.mxu0 %v8639
    %9934 = vmatpush2.bf16.msra.mxu0 %v8638
    %9935 = vmatprep.subr.bf16.mxu0 %v8635
    %9936 = vmatpush2.bf16.msra.mxu0 %v8634
    %9937 = vmatprep.subr.bf16.mxu0 %v8631
    %9938 = vmatpush2.bf16.msra.mxu0 %v8630
    %9939 = vmatprep.subr.bf16.mxu0 %v8627
    %9940 = vmatpush2.bf16.msra.mxu0 %v8626
    %9941 = vmatprep.subr.bf16.mxu0 %v8623
    %9942 = vmatpush2.bf16.msra.mxu0 %v8622
    %9943 = vmatprep.subr.bf16.mxu0 %v8619
    %9944 = vmatpush2.bf16.msra.mxu0 %v8618
    %9945 = vmatprep.subr.bf16.mxu0 %v8615
    %9946 = vmatpush2.bf16.msra.mxu0 %v8614
    %9947 = vmatprep.subr.bf16.mxu0 %v8611
    %9948 = vmatpush2.bf16.msra.mxu0 %v8610
    %9949 = vmatprep.mubr.bf16.mxu0 %v4717
    %9950 = vmatmul.mubr.bf16.gmra.mxu0 %v4716
    %v9951 = vpop.f32.mrf.mxu0
    %v9952 = vadd.f32 %v9911, %v9951
    %v9953 = vpop.f32.mrf.mxu0
    %v9954 = vadd.f32 %v9913, %v9953
    %v9955 = vpop.f32.mrf.mxu0
    %v9956 = vpop.f32.mrf.mxu0
    %9957 = vdwg.mxu0
    %9958 = vmatprep.subr.bf16.mxu0 0
    %9959 = vmatpush1.bf16.msra.mxu0 0
    %9960 = vmatprep.subr.bf16.mxu0 0
    %9961 = vmatpush1.bf16.msra.mxu0 0
    %9962 = vmatprep.subr.bf16.mxu0 0
    %9963 = vmatpush1.bf16.msra.mxu0 0
    %9964 = vmatprep.subr.bf16.mxu0 0
    %9965 = vmatpush1.bf16.msra.mxu0 0
    %9966 = vmatprep.subr.bf16.mxu0 %v8655
    %9967 = vmatpush1.bf16.msra.mxu0 %v8654
    %9968 = vmatprep.subr.bf16.mxu0 %v8651
    %9969 = vmatpush1.bf16.msra.mxu0 %v8650
    %9970 = vmatprep.subr.bf16.mxu0 %v8647
    %9971 = vmatpush1.bf16.msra.mxu0 %v8646
    %9972 = vmatprep.subr.bf16.mxu0 %v8643
    %9973 = vmatpush1.bf16.msra.mxu0 %v8642
    %9974 = vmatprep.subr.bf16.mxu0 0
    %9975 = vmatpush2.bf16.msra.mxu0 0
    %9976 = vmatprep.subr.bf16.mxu0 0
    %9977 = vmatpush2.bf16.msra.mxu0 0
    %9978 = vmatprep.subr.bf16.mxu0 0
    %9979 = vmatpush2.bf16.msra.mxu0 0
    %9980 = vmatprep.subr.bf16.mxu0 0
    %9981 = vmatpush2.bf16.msra.mxu0 0
    %9982 = vmatprep.subr.bf16.mxu0 0
    %9983 = vmatpush2.bf16.msra.mxu0 0
    %9984 = vmatprep.subr.bf16.mxu0 0
    %9985 = vmatpush2.bf16.msra.mxu0 0
    %9986 = vmatprep.subr.bf16.mxu0 0
    %9987 = vmatpush2.bf16.msra.mxu0 0
    %9988 = vmatprep.subr.bf16.mxu0 0
    %9989 = vmatpush2.bf16.msra.mxu0 0
    %9990 = vmatprep.mubr.bf16.mxu0 0
    %9991 = vmatmul.mubr.bf16.gmra.mxu0 %v9464
    %v9992 = vpop.f32.mrf.mxu0
    %v9993 = vadd.f32 %v9952, %v9992
    %v9994 = vpop.f32.mrf.mxu0
    %v9995 = vadd.f32 %v9954, %v9994
    %v9996 = vpop.f32.mrf.mxu0
    %v9997 = vpop.f32.mrf.mxu0
    %9998 = vdwg.mxu0
    %9999 = vmatprep.subr.bf16.mxu0 %v7905
    %10000 = vmatpush1.bf16.msra.mxu0 %v7904
    %10001 = vmatprep.subr.bf16.mxu0 %v7901
    %10002 = vmatpush1.bf16.msra.mxu0 %v7900
    %10003 = vmatprep.subr.bf16.mxu0 %v7897
    %10004 = vmatpush1.bf16.msra.mxu0 %v7896
    %10005 = vmatprep.subr.bf16.mxu0 %v7893
    %10006 = vmatpush1.bf16.msra.mxu0 %v7892
    %10007 = vmatprep.subr.bf16.mxu0 %v7889
    %10008 = vmatpush1.bf16.msra.mxu0 %v7888
    %10009 = vmatprep.subr.bf16.mxu0 %v7885
    %10010 = vmatpush1.bf16.msra.mxu0 %v7884
    %10011 = vmatprep.subr.bf16.mxu0 %v7881
    %10012 = vmatpush1.bf16.msra.mxu0 %v7880
    %10013 = vmatprep.subr.bf16.mxu0 %v7877
    %10014 = vmatpush1.bf16.msra.mxu0 %v7876
    %10015 = vmatprep.subr.bf16.mxu0 %v7937
    %10016 = vmatpush2.bf16.msra.mxu0 %v7936
    %10017 = vmatprep.subr.bf16.mxu0 %v7933
    %10018 = vmatpush2.bf16.msra.mxu0 %v7932
    %10019 = vmatprep.subr.bf16.mxu0 %v7929
    %10020 = vmatpush2.bf16.msra.mxu0 %v7928
    %10021 = vmatprep.subr.bf16.mxu0 %v7925
    %10022 = vmatpush2.bf16.msra.mxu0 %v7924
    %10023 = vmatprep.subr.bf16.mxu0 %v7921
    %10024 = vmatpush2.bf16.msra.mxu0 %v7920
    %10025 = vmatprep.subr.bf16.mxu0 %v7917
    %10026 = vmatpush2.bf16.msra.mxu0 %v7916
    %10027 = vmatprep.subr.bf16.mxu0 %v7913
    %10028 = vmatpush2.bf16.msra.mxu0 %v7912
    %10029 = vmatprep.subr.bf16.mxu0 %v7909
    %10030 = vmatpush2.bf16.msra.mxu0 %v7908
    %10031 = vmatprep.mubr.bf16.mxu0 %v4361
    %10032 = vmatmul.mubr.bf16.gmra.mxu0 %v4351
    %v10033 = vpop.f32.mrf.mxu0
    %v10034 = vadd.f32 %v9454, %v10033
    %v10035 = vpop.f32.mrf.mxu0
    %v10036 = vadd.f32 %v9458, %v10035
    %v10037 = vpop.f32.mrf.mxu0
    %v10038 = vpop.f32.mrf.mxu0
    %10039 = vdwg.mxu0
    %10040 = vmatprep.subr.bf16.mxu0 %v7969
    %10041 = vmatpush1.bf16.msra.mxu0 %v7968
    %10042 = vmatprep.subr.bf16.mxu0 %v7965
    %10043 = vmatpush1.bf16.msra.mxu0 %v7964
    %10044 = vmatprep.subr.bf16.mxu0 %v7961
    %10045 = vmatpush1.bf16.msra.mxu0 %v7960
    %10046 = vmatprep.subr.bf16.mxu0 %v7957
    %10047 = vmatpush1.bf16.msra.mxu0 %v7956
    %10048 = vmatprep.subr.bf16.mxu0 %v7953
    %10049 = vmatpush1.bf16.msra.mxu0 %v7952
    %10050 = vmatprep.subr.bf16.mxu0 %v7949
    %10051 = vmatpush1.bf16.msra.mxu0 %v7948
    %10052 = vmatprep.subr.bf16.mxu0 %v7945
    %10053 = vmatpush1.bf16.msra.mxu0 %v7944
    %10054 = vmatprep.subr.bf16.mxu0 %v7941
    %10055 = vmatpush1.bf16.msra.mxu0 %v7940
    %10056 = vmatprep.subr.bf16.mxu0 %v8001
    %10057 = vmatpush2.bf16.msra.mxu0 %v8000
    %10058 = vmatprep.subr.bf16.mxu0 %v7997
    %10059 = vmatpush2.bf16.msra.mxu0 %v7996
    %10060 = vmatprep.subr.bf16.mxu0 %v7993
    %10061 = vmatpush2.bf16.msra.mxu0 %v7992
    %10062 = vmatprep.subr.bf16.mxu0 %v7989
    %10063 = vmatpush2.bf16.msra.mxu0 %v7988
    %10064 = vmatprep.subr.bf16.mxu0 %v7985
    %10065 = vmatpush2.bf16.msra.mxu0 %v7984
    %10066 = vmatprep.subr.bf16.mxu0 %v7981
    %10067 = vmatpush2.bf16.msra.mxu0 %v7980
    %10068 = vmatprep.subr.bf16.mxu0 %v7977
    %10069 = vmatpush2.bf16.msra.mxu0 %v7976
    %10070 = vmatprep.subr.bf16.mxu0 %v7973
    %10071 = vmatpush2.bf16.msra.mxu0 %v7972
    %10072 = vmatprep.mubr.bf16.mxu0 %v4378
    %10073 = vmatmul.mubr.bf16.gmra.mxu0 %v4368
    %v10074 = vpop.f32.mrf.mxu0
    %v10075 = vadd.f32 %v10034, %v10074
    %v10076 = vpop.f32.mrf.mxu0
    %v10077 = vadd.f32 %v10036, %v10076
    %v10078 = vpop.f32.mrf.mxu0
    %v10079 = vpop.f32.mrf.mxu0
    %10080 = vdwg.mxu0
    %10081 = vmatprep.subr.bf16.mxu0 %v8033
    %10082 = vmatpush1.bf16.msra.mxu0 %v8032
    %10083 = vmatprep.subr.bf16.mxu0 %v8029
    %10084 = vmatpush1.bf16.msra.mxu0 %v8028
    %10085 = vmatprep.subr.bf16.mxu0 %v8025
    %10086 = vmatpush1.bf16.msra.mxu0 %v8024
    %10087 = vmatprep.subr.bf16.mxu0 %v8021
    %10088 = vmatpush1.bf16.msra.mxu0 %v8020
    %10089 = vmatprep.subr.bf16.mxu0 %v8017
    %10090 = vmatpush1.bf16.msra.mxu0 %v8016
    %10091 = vmatprep.subr.bf16.mxu0 %v8013
    %10092 = vmatpush1.bf16.msra.mxu0 %v8012
    %10093 = vmatprep.subr.bf16.mxu0 %v8009
    %10094 = vmatpush1.bf16.msra.mxu0 %v8008
    %10095 = vmatprep.subr.bf16.mxu0 %v8005
    %10096 = vmatpush1.bf16.msra.mxu0 %v8004
    %10097 = vmatprep.subr.bf16.mxu0 %v8065
    %10098 = vmatpush2.bf16.msra.mxu0 %v8064
    %10099 = vmatprep.subr.bf16.mxu0 %v8061
    %10100 = vmatpush2.bf16.msra.mxu0 %v8060
    %10101 = vmatprep.subr.bf16.mxu0 %v8057
    %10102 = vmatpush2.bf16.msra.mxu0 %v8056
    %10103 = vmatprep.subr.bf16.mxu0 %v8053
    %10104 = vmatpush2.bf16.msra.mxu0 %v8052
    %10105 = vmatprep.subr.bf16.mxu0 %v8049
    %10106 = vmatpush2.bf16.msra.mxu0 %v8048
    %10107 = vmatprep.subr.bf16.mxu0 %v8045
    %10108 = vmatpush2.bf16.msra.mxu0 %v8044
    %10109 = vmatprep.subr.bf16.mxu0 %v8041
    %10110 = vmatpush2.bf16.msra.mxu0 %v8040
    %10111 = vmatprep.subr.bf16.mxu0 %v8037
    %10112 = vmatpush2.bf16.msra.mxu0 %v8036
    %10113 = vmatprep.mubr.bf16.mxu0 %v4395
    %10114 = vmatmul.mubr.bf16.gmra.mxu0 %v4388
    %v10115 = vpop.f32.mrf.mxu0
    %v10116 = vadd.f32 %v10075, %v10115
    %v10117 = vpop.f32.mrf.mxu0
    %v10118 = vadd.f32 %v10077, %v10117
    %v10119 = vpop.f32.mrf.mxu0
    %v10120 = vpop.f32.mrf.mxu0
    %10121 = vdwg.mxu0
    %10122 = vmatprep.subr.bf16.mxu0 %v8097
    %10123 = vmatpush1.bf16.msra.mxu0 %v8096
    %10124 = vmatprep.subr.bf16.mxu0 %v8093
    %10125 = vmatpush1.bf16.msra.mxu0 %v8092
    %10126 = vmatprep.subr.bf16.mxu0 %v8089
    %10127 = vmatpush1.bf16.msra.mxu0 %v8088
    %10128 = vmatprep.subr.bf16.mxu0 %v8085
    %10129 = vmatpush1.bf16.msra.mxu0 %v8084
    %10130 = vmatprep.subr.bf16.mxu0 %v8081
    %10131 = vmatpush1.bf16.msra.mxu0 %v8080
    %10132 = vmatprep.subr.bf16.mxu0 %v8077
    %10133 = vmatpush1.bf16.msra.mxu0 %v8076
    %10134 = vmatprep.subr.bf16.mxu0 %v8073
    %10135 = vmatpush1.bf16.msra.mxu0 %v8072
    %10136 = vmatprep.subr.bf16.mxu0 %v8069
    %10137 = vmatpush1.bf16.msra.mxu0 %v8068
    %10138 = vmatprep.subr.bf16.mxu0 %v8129
    %10139 = vmatpush2.bf16.msra.mxu0 %v8128
    %10140 = vmatprep.subr.bf16.mxu0 %v8125
    %10141 = vmatpush2.bf16.msra.mxu0 %v8124
    %10142 = vmatprep.subr.bf16.mxu0 %v8121
    %10143 = vmatpush2.bf16.msra.mxu0 %v8120
    %10144 = vmatprep.subr.bf16.mxu0 %v8117
    %10145 = vmatpush2.bf16.msra.mxu0 %v8116
    %10146 = vmatprep.subr.bf16.mxu0 %v8113
    %10147 = vmatpush2.bf16.msra.mxu0 %v8112
    %10148 = vmatprep.subr.bf16.mxu0 %v8109
    %10149 = vmatpush2.bf16.msra.mxu0 %v8108
    %10150 = vmatprep.subr.bf16.mxu0 %v8105
    %10151 = vmatpush2.bf16.msra.mxu0 %v8104
    %10152 = vmatprep.subr.bf16.mxu0 %v8101
    %10153 = vmatpush2.bf16.msra.mxu0 %v8100
    %10154 = vmatprep.mubr.bf16.mxu0 %v4649
    %10155 = vmatmul.mubr.bf16.gmra.mxu0 %v4726
    %v10156 = vpop.f32.mrf.mxu0
    %v10157 = vadd.f32 %v10116, %v10156
    %v10158 = vpop.f32.mrf.mxu0
    %v10159 = vadd.f32 %v10118, %v10158
    %v10160 = vpop.f32.mrf.mxu0
    %v10161 = vpop.f32.mrf.mxu0
    %10162 = vdwg.mxu0
    %10163 = vmatprep.subr.bf16.mxu0 %v8161
    %10164 = vmatpush1.bf16.msra.mxu0 %v8160
    %10165 = vmatprep.subr.bf16.mxu0 %v8157
    %10166 = vmatpush1.bf16.msra.mxu0 %v8156
    %10167 = vmatprep.subr.bf16.mxu0 %v8153
    %10168 = vmatpush1.bf16.msra.mxu0 %v8152
    %10169 = vmatprep.subr.bf16.mxu0 %v8149
    %10170 = vmatpush1.bf16.msra.mxu0 %v8148
    %10171 = vmatprep.subr.bf16.mxu0 %v8145
    %10172 = vmatpush1.bf16.msra.mxu0 %v8144
    %10173 = vmatprep.subr.bf16.mxu0 %v8141
    %10174 = vmatpush1.bf16.msra.mxu0 %v8140
    %10175 = vmatprep.subr.bf16.mxu0 %v8137
    %10176 = vmatpush1.bf16.msra.mxu0 %v8136
    %10177 = vmatprep.subr.bf16.mxu0 %v8133
    %10178 = vmatpush1.bf16.msra.mxu0 %v8132
    %10179 = vmatprep.subr.bf16.mxu0 %v8193
    %10180 = vmatpush2.bf16.msra.mxu0 %v8192
    %10181 = vmatprep.subr.bf16.mxu0 %v8189
    %10182 = vmatpush2.bf16.msra.mxu0 %v8188
    %10183 = vmatprep.subr.bf16.mxu0 %v8185
    %10184 = vmatpush2.bf16.msra.mxu0 %v8184
    %10185 = vmatprep.subr.bf16.mxu0 %v8181
    %10186 = vmatpush2.bf16.msra.mxu0 %v8180
    %10187 = vmatprep.subr.bf16.mxu0 %v8177
    %10188 = vmatpush2.bf16.msra.mxu0 %v8176
    %10189 = vmatprep.subr.bf16.mxu0 %v8173
    %10190 = vmatpush2.bf16.msra.mxu0 %v8172
    %10191 = vmatprep.subr.bf16.mxu0 %v8169
    %10192 = vmatpush2.bf16.msra.mxu0 %v8168
    %10193 = vmatprep.subr.bf16.mxu0 %v8165
    %10194 = vmatpush2.bf16.msra.mxu0 %v8164
    %10195 = vmatprep.mubr.bf16.mxu0 %v4651
    %10196 = vmatmul.mubr.bf16.gmra.mxu0 %v4650
    %v10197 = vpop.f32.mrf.mxu0
    %v10198 = vadd.f32 %v10157, %v10197
    %v10199 = vpop.f32.mrf.mxu0
    %v10200 = vadd.f32 %v10159, %v10199
    %v10201 = vpop.f32.mrf.mxu0
    %v10202 = vpop.f32.mrf.mxu0
    %10203 = vdwg.mxu0
    %10204 = vmatprep.subr.bf16.mxu0 %v8225
    %10205 = vmatpush1.bf16.msra.mxu0 %v8224
    %10206 = vmatprep.subr.bf16.mxu0 %v8221
    %10207 = vmatpush1.bf16.msra.mxu0 %v8220
    %10208 = vmatprep.subr.bf16.mxu0 %v8217
    %10209 = vmatpush1.bf16.msra.mxu0 %v8216
    %10210 = vmatprep.subr.bf16.mxu0 %v8213
    %10211 = vmatpush1.bf16.msra.mxu0 %v8212
    %10212 = vmatprep.subr.bf16.mxu0 %v8209
    %10213 = vmatpush1.bf16.msra.mxu0 %v8208
    %10214 = vmatprep.subr.bf16.mxu0 %v8205
    %10215 = vmatpush1.bf16.msra.mxu0 %v8204
    %10216 = vmatprep.subr.bf16.mxu0 %v8201
    %10217 = vmatpush1.bf16.msra.mxu0 %v8200
    %10218 = vmatprep.subr.bf16.mxu0 %v8197
    %10219 = vmatpush1.bf16.msra.mxu0 %v8196
    %10220 = vmatprep.subr.bf16.mxu0 %v8257
    %10221 = vmatpush2.bf16.msra.mxu0 %v8256
    %10222 = vmatprep.subr.bf16.mxu0 %v8253
    %10223 = vmatpush2.bf16.msra.mxu0 %v8252
    %10224 = vmatprep.subr.bf16.mxu0 %v8249
    %10225 = vmatpush2.bf16.msra.mxu0 %v8248
    %10226 = vmatprep.subr.bf16.mxu0 %v8245
    %10227 = vmatpush2.bf16.msra.mxu0 %v8244
    %10228 = vmatprep.subr.bf16.mxu0 %v8241
    %10229 = vmatpush2.bf16.msra.mxu0 %v8240
    %10230 = vmatprep.subr.bf16.mxu0 %v8237
    %10231 = vmatpush2.bf16.msra.mxu0 %v8236
    %10232 = vmatprep.subr.bf16.mxu0 %v8233
    %10233 = vmatpush2.bf16.msra.mxu0 %v8232
    %10234 = vmatprep.subr.bf16.mxu0 %v8229
    %10235 = vmatpush2.bf16.msra.mxu0 %v8228
    %10236 = vmatprep.mubr.bf16.mxu0 %v4653
    %10237 = vmatmul.mubr.bf16.gmra.mxu0 %v4652
    %v10238 = vpop.f32.mrf.mxu0
    %v10239 = vadd.f32 %v10198, %v10238
    %v10240 = vpop.f32.mrf.mxu0
    %v10241 = vadd.f32 %v10200, %v10240
    %v10242 = vpop.f32.mrf.mxu0
    %v10243 = vpop.f32.mrf.mxu0
    %10244 = vdwg.mxu0
    %10245 = vmatprep.subr.bf16.mxu0 %v8289
    %10246 = vmatpush1.bf16.msra.mxu0 %v8288
    %10247 = vmatprep.subr.bf16.mxu0 %v8285
    %10248 = vmatpush1.bf16.msra.mxu0 %v8284
    %10249 = vmatprep.subr.bf16.mxu0 %v8281
    %10250 = vmatpush1.bf16.msra.mxu0 %v8280
    %10251 = vmatprep.subr.bf16.mxu0 %v8277
    %10252 = vmatpush1.bf16.msra.mxu0 %v8276
    %10253 = vmatprep.subr.bf16.mxu0 %v8273
    %10254 = vmatpush1.bf16.msra.mxu0 %v8272
    %10255 = vmatprep.subr.bf16.mxu0 %v8269
    %10256 = vmatpush1.bf16.msra.mxu0 %v8268
    %10257 = vmatprep.subr.bf16.mxu0 %v8265
    %10258 = vmatpush1.bf16.msra.mxu0 %v8264
    %10259 = vmatprep.subr.bf16.mxu0 %v8261
    %10260 = vmatpush1.bf16.msra.mxu0 %v8260
    %10261 = vmatprep.subr.bf16.mxu0 %v8321
    %10262 = vmatpush2.bf16.msra.mxu0 %v8320
    %10263 = vmatprep.subr.bf16.mxu0 %v8317
    %10264 = vmatpush2.bf16.msra.mxu0 %v8316
    %10265 = vmatprep.subr.bf16.mxu0 %v8313
    %10266 = vmatpush2.bf16.msra.mxu0 %v8312
    %10267 = vmatprep.subr.bf16.mxu0 %v8309
    %10268 = vmatpush2.bf16.msra.mxu0 %v8308
    %10269 = vmatprep.subr.bf16.mxu0 %v8305
    %10270 = vmatpush2.bf16.msra.mxu0 %v8304
    %10271 = vmatprep.subr.bf16.mxu0 %v8301
    %10272 = vmatpush2.bf16.msra.mxu0 %v8300
    %10273 = vmatprep.subr.bf16.mxu0 %v8297
    %10274 = vmatpush2.bf16.msra.mxu0 %v8296
    %10275 = vmatprep.subr.bf16.mxu0 %v8293
    %10276 = vmatpush2.bf16.msra.mxu0 %v8292
    %10277 = vmatprep.mubr.bf16.mxu0 %v4681
    %10278 = vmatmul.mubr.bf16.gmra.mxu0 %v4730
    %v10279 = vpop.f32.mrf.mxu0
    %v10280 = vadd.f32 %v10239, %v10279
    %v10281 = vpop.f32.mrf.mxu0
    %v10282 = vadd.f32 %v10241, %v10281
    %v10283 = vpop.f32.mrf.mxu0
    %v10284 = vpop.f32.mrf.mxu0
    %10285 = vdwg.mxu0
    %10286 = vmatprep.subr.bf16.mxu0 %v8353
    %10287 = vmatpush1.bf16.msra.mxu0 %v8352
    %10288 = vmatprep.subr.bf16.mxu0 %v8349
    %10289 = vmatpush1.bf16.msra.mxu0 %v8348
    %10290 = vmatprep.subr.bf16.mxu0 %v8345
    %10291 = vmatpush1.bf16.msra.mxu0 %v8344
    %10292 = vmatprep.subr.bf16.mxu0 %v8341
    %10293 = vmatpush1.bf16.msra.mxu0 %v8340
    %10294 = vmatprep.subr.bf16.mxu0 %v8337
    %10295 = vmatpush1.bf16.msra.mxu0 %v8336
    %10296 = vmatprep.subr.bf16.mxu0 %v8333
    %10297 = vmatpush1.bf16.msra.mxu0 %v8332
    %10298 = vmatprep.subr.bf16.mxu0 %v8329
    %10299 = vmatpush1.bf16.msra.mxu0 %v8328
    %10300 = vmatprep.subr.bf16.mxu0 %v8325
    %10301 = vmatpush1.bf16.msra.mxu0 %v8324
    %10302 = vmatprep.subr.bf16.mxu0 %v8385
    %10303 = vmatpush2.bf16.msra.mxu0 %v8384
    %10304 = vmatprep.subr.bf16.mxu0 %v8381
    %10305 = vmatpush2.bf16.msra.mxu0 %v8380
    %10306 = vmatprep.subr.bf16.mxu0 %v8377
    %10307 = vmatpush2.bf16.msra.mxu0 %v8376
    %10308 = vmatprep.subr.bf16.mxu0 %v8373
    %10309 = vmatpush2.bf16.msra.mxu0 %v8372
    %10310 = vmatprep.subr.bf16.mxu0 %v8369
    %10311 = vmatpush2.bf16.msra.mxu0 %v8368
    %10312 = vmatprep.subr.bf16.mxu0 %v8365
    %10313 = vmatpush2.bf16.msra.mxu0 %v8364
    %10314 = vmatprep.subr.bf16.mxu0 %v8361
    %10315 = vmatpush2.bf16.msra.mxu0 %v8360
    %10316 = vmatprep.subr.bf16.mxu0 %v8357
    %10317 = vmatpush2.bf16.msra.mxu0 %v8356
    %10318 = vmatprep.mubr.bf16.mxu0 %v4683
    %10319 = vmatmul.mubr.bf16.gmra.mxu0 %v4682
    %v10320 = vpop.f32.mrf.mxu0
    %v10321 = vadd.f32 %v10280, %v10320
    %v10322 = vpop.f32.mrf.mxu0
    %v10323 = vadd.f32 %v10282, %v10322
    %v10324 = vpop.f32.mrf.mxu0
    %v10325 = vpop.f32.mrf.mxu0
    %10326 = vdwg.mxu0
    %10327 = vmatprep.subr.bf16.mxu0 %v8417
    %10328 = vmatpush1.bf16.msra.mxu0 %v8416
    %10329 = vmatprep.subr.bf16.mxu0 %v8413
    %10330 = vmatpush1.bf16.msra.mxu0 %v8412
    %10331 = vmatprep.subr.bf16.mxu0 %v8409
    %10332 = vmatpush1.bf16.msra.mxu0 %v8408
    %10333 = vmatprep.subr.bf16.mxu0 %v8405
    %10334 = vmatpush1.bf16.msra.mxu0 %v8404
    %10335 = vmatprep.subr.bf16.mxu0 %v8401
    %10336 = vmatpush1.bf16.msra.mxu0 %v8400
    %10337 = vmatprep.subr.bf16.mxu0 %v8397
    %10338 = vmatpush1.bf16.msra.mxu0 %v8396
    %10339 = vmatprep.subr.bf16.mxu0 %v8393
    %10340 = vmatpush1.bf16.msra.mxu0 %v8392
    %10341 = vmatprep.subr.bf16.mxu0 %v8389
    %10342 = vmatpush1.bf16.msra.mxu0 %v8388
    %10343 = vmatprep.subr.bf16.mxu0 %v8449
    %10344 = vmatpush2.bf16.msra.mxu0 %v8448
    %10345 = vmatprep.subr.bf16.mxu0 %v8445
    %10346 = vmatpush2.bf16.msra.mxu0 %v8444
    %10347 = vmatprep.subr.bf16.mxu0 %v8441
    %10348 = vmatpush2.bf16.msra.mxu0 %v8440
    %10349 = vmatprep.subr.bf16.mxu0 %v8437
    %10350 = vmatpush2.bf16.msra.mxu0 %v8436
    %10351 = vmatprep.subr.bf16.mxu0 %v8433
    %10352 = vmatpush2.bf16.msra.mxu0 %v8432
    %10353 = vmatprep.subr.bf16.mxu0 %v8429
    %10354 = vmatpush2.bf16.msra.mxu0 %v8428
    %10355 = vmatprep.subr.bf16.mxu0 %v8425
    %10356 = vmatpush2.bf16.msra.mxu0 %v8424
    %10357 = vmatprep.subr.bf16.mxu0 %v8421
    %10358 = vmatpush2.bf16.msra.mxu0 %v8420
    %10359 = vmatprep.mubr.bf16.mxu0 %v4685
    %10360 = vmatmul.mubr.bf16.gmra.mxu0 %v4684
    %v10361 = vpop.f32.mrf.mxu0
    %v10362 = vadd.f32 %v10321, %v10361
    %v10363 = vpop.f32.mrf.mxu0
    %v10364 = vadd.f32 %v10323, %v10363
    %v10365 = vpop.f32.mrf.mxu0
    %v10366 = vpop.f32.mrf.mxu0
    %10367 = vdwg.mxu0
    %10368 = vmatprep.subr.bf16.mxu0 %v8481
    %10369 = vmatpush1.bf16.msra.mxu0 %v8480
    %10370 = vmatprep.subr.bf16.mxu0 %v8477
    %10371 = vmatpush1.bf16.msra.mxu0 %v8476
    %10372 = vmatprep.subr.bf16.mxu0 %v8473
    %10373 = vmatpush1.bf16.msra.mxu0 %v8472
    %10374 = vmatprep.subr.bf16.mxu0 %v8469
    %10375 = vmatpush1.bf16.msra.mxu0 %v8468
    %10376 = vmatprep.subr.bf16.mxu0 %v8465
    %10377 = vmatpush1.bf16.msra.mxu0 %v8464
    %10378 = vmatprep.subr.bf16.mxu0 %v8461
    %10379 = vmatpush1.bf16.msra.mxu0 %v8460
    %10380 = vmatprep.subr.bf16.mxu0 %v8457
    %10381 = vmatpush1.bf16.msra.mxu0 %v8456
    %10382 = vmatprep.subr.bf16.mxu0 %v8453
    %10383 = vmatpush1.bf16.msra.mxu0 %v8452
    %10384 = vmatprep.subr.bf16.mxu0 %v8513
    %10385 = vmatpush2.bf16.msra.mxu0 %v8512
    %10386 = vmatprep.subr.bf16.mxu0 %v8509
    %10387 = vmatpush2.bf16.msra.mxu0 %v8508
    %10388 = vmatprep.subr.bf16.mxu0 %v8505
    %10389 = vmatpush2.bf16.msra.mxu0 %v8504
    %10390 = vmatprep.subr.bf16.mxu0 %v8501
    %10391 = vmatpush2.bf16.msra.mxu0 %v8500
    %10392 = vmatprep.subr.bf16.mxu0 %v8497
    %10393 = vmatpush2.bf16.msra.mxu0 %v8496
    %10394 = vmatprep.subr.bf16.mxu0 %v8493
    %10395 = vmatpush2.bf16.msra.mxu0 %v8492
    %10396 = vmatprep.subr.bf16.mxu0 %v8489
    %10397 = vmatpush2.bf16.msra.mxu0 %v8488
    %10398 = vmatprep.subr.bf16.mxu0 %v8485
    %10399 = vmatpush2.bf16.msra.mxu0 %v8484
    %10400 = vmatprep.mubr.bf16.mxu0 %v4713
    %10401 = vmatmul.mubr.bf16.gmra.mxu0 %v4735
    %v10402 = vpop.f32.mrf.mxu0
    %v10403 = vadd.f32 %v10362, %v10402
    %v10404 = vpop.f32.mrf.mxu0
    %v10405 = vadd.f32 %v10364, %v10404
    %v10406 = vpop.f32.mrf.mxu0
    %v10407 = vpop.f32.mrf.mxu0
    %10408 = vdwg.mxu0
    %10409 = vmatprep.subr.bf16.mxu0 %v8545
    %10410 = vmatpush1.bf16.msra.mxu0 %v8544
    %10411 = vmatprep.subr.bf16.mxu0 %v8541
    %10412 = vmatpush1.bf16.msra.mxu0 %v8540
    %10413 = vmatprep.subr.bf16.mxu0 %v8537
    %10414 = vmatpush1.bf16.msra.mxu0 %v8536
    %10415 = vmatprep.subr.bf16.mxu0 %v8533
    %10416 = vmatpush1.bf16.msra.mxu0 %v8532
    %10417 = vmatprep.subr.bf16.mxu0 %v8529
    %10418 = vmatpush1.bf16.msra.mxu0 %v8528
    %10419 = vmatprep.subr.bf16.mxu0 %v8525
    %10420 = vmatpush1.bf16.msra.mxu0 %v8524
    %10421 = vmatprep.subr.bf16.mxu0 %v8521
    %10422 = vmatpush1.bf16.msra.mxu0 %v8520
    %10423 = vmatprep.subr.bf16.mxu0 %v8517
    %10424 = vmatpush1.bf16.msra.mxu0 %v8516
    %10425 = vmatprep.subr.bf16.mxu0 %v8577
    %10426 = vmatpush2.bf16.msra.mxu0 %v8576
    %10427 = vmatprep.subr.bf16.mxu0 %v8573
    %10428 = vmatpush2.bf16.msra.mxu0 %v8572
    %10429 = vmatprep.subr.bf16.mxu0 %v8569
    %10430 = vmatpush2.bf16.msra.mxu0 %v8568
    %10431 = vmatprep.subr.bf16.mxu0 %v8565
    %10432 = vmatpush2.bf16.msra.mxu0 %v8564
    %10433 = vmatprep.subr.bf16.mxu0 %v8561
    %10434 = vmatpush2.bf16.msra.mxu0 %v8560
    %10435 = vmatprep.subr.bf16.mxu0 %v8557
    %10436 = vmatpush2.bf16.msra.mxu0 %v8556
    %10437 = vmatprep.subr.bf16.mxu0 %v8553
    %10438 = vmatpush2.bf16.msra.mxu0 %v8552
    %10439 = vmatprep.subr.bf16.mxu0 %v8549
    %10440 = vmatpush2.bf16.msra.mxu0 %v8548
    %10441 = vmatprep.mubr.bf16.mxu0 %v4715
    %10442 = vmatmul.mubr.bf16.gmra.mxu0 %v4714
    %v10443 = vpop.f32.mrf.mxu0
    %v10444 = vadd.f32 %v10403, %v10443
    %v10445 = vpop.f32.mrf.mxu0
    %v10446 = vadd.f32 %v10405, %v10445
    %v10447 = vpop.f32.mrf.mxu0
    %v10448 = vpop.f32.mrf.mxu0
    %10449 = vdwg.mxu0
    %10450 = vmatprep.subr.bf16.mxu0 %v8609
    %10451 = vmatpush1.bf16.msra.mxu0 %v8608
    %10452 = vmatprep.subr.bf16.mxu0 %v8605
    %10453 = vmatpush1.bf16.msra.mxu0 %v8604
    %10454 = vmatprep.subr.bf16.mxu0 %v8601
    %10455 = vmatpush1.bf16.msra.mxu0 %v8600
    %10456 = vmatprep.subr.bf16.mxu0 %v8597
    %10457 = vmatpush1.bf16.msra.mxu0 %v8596
    %10458 = vmatprep.subr.bf16.mxu0 %v8593
    %10459 = vmatpush1.bf16.msra.mxu0 %v8592
    %10460 = vmatprep.subr.bf16.mxu0 %v8589
    %10461 = vmatpush1.bf16.msra.mxu0 %v8588
    %10462 = vmatprep.subr.bf16.mxu0 %v8585
    %10463 = vmatpush1.bf16.msra.mxu0 %v8584
    %10464 = vmatprep.subr.bf16.mxu0 %v8581
    %10465 = vmatpush1.bf16.msra.mxu0 %v8580
    %10466 = vmatprep.subr.bf16.mxu0 %v8641
    %10467 = vmatpush2.bf16.msra.mxu0 %v8640
    %10468 = vmatprep.subr.bf16.mxu0 %v8637
    %10469 = vmatpush2.bf16.msra.mxu0 %v8636
    %10470 = vmatprep.subr.bf16.mxu0 %v8633
    %10471 = vmatpush2.bf16.msra.mxu0 %v8632
    %10472 = vmatprep.subr.bf16.mxu0 %v8629
    %10473 = vmatpush2.bf16.msra.mxu0 %v8628
    %10474 = vmatprep.subr.bf16.mxu0 %v8625
    %10475 = vmatpush2.bf16.msra.mxu0 %v8624
    %10476 = vmatprep.subr.bf16.mxu0 %v8621
    %10477 = vmatpush2.bf16.msra.mxu0 %v8620
    %10478 = vmatprep.subr.bf16.mxu0 %v8617
    %10479 = vmatpush2.bf16.msra.mxu0 %v8616
    %10480 = vmatprep.subr.bf16.mxu0 %v8613
    %10481 = vmatpush2.bf16.msra.mxu0 %v8612
    %10482 = vmatprep.mubr.bf16.mxu0 %v4717
    %10483 = vmatmul.mubr.bf16.gmra.mxu0 %v4716
    %v10484 = vpop.f32.mrf.mxu0
    %v10485 = vadd.f32 %v10444, %v10484
    %v10486 = vpop.f32.mrf.mxu0
    %v10487 = vadd.f32 %v10446, %v10486
    %v10488 = vpop.f32.mrf.mxu0
    %v10489 = vpop.f32.mrf.mxu0
    %10490 = vdwg.mxu0
    %10491 = vmatprep.subr.bf16.mxu0 0
    %10492 = vmatpush1.bf16.msra.mxu0 0
    %10493 = vmatprep.subr.bf16.mxu0 0
    %10494 = vmatpush1.bf16.msra.mxu0 0
    %10495 = vmatprep.subr.bf16.mxu0 0
    %10496 = vmatpush1.bf16.msra.mxu0 0
    %10497 = vmatprep.subr.bf16.mxu0 0
    %10498 = vmatpush1.bf16.msra.mxu0 0
    %10499 = vmatprep.subr.bf16.mxu0 %v8657
    %10500 = vmatpush1.bf16.msra.mxu0 %v8656
    %10501 = vmatprep.subr.bf16.mxu0 %v8653
    %10502 = vmatpush1.bf16.msra.mxu0 %v8652
    %10503 = vmatprep.subr.bf16.mxu0 %v8649
    %10504 = vmatpush1.bf16.msra.mxu0 %v8648
    %10505 = vmatprep.subr.bf16.mxu0 %v8645
    %10506 = vmatpush1.bf16.msra.mxu0 %v8644
    %10507 = vmatprep.subr.bf16.mxu0 0
    %10508 = vmatpush2.bf16.msra.mxu0 0
    %10509 = vmatprep.subr.bf16.mxu0 0
    %10510 = vmatpush2.bf16.msra.mxu0 0
    %10511 = vmatprep.subr.bf16.mxu0 0
    %10512 = vmatpush2.bf16.msra.mxu0 0
    %10513 = vmatprep.subr.bf16.mxu0 0
    %10514 = vmatpush2.bf16.msra.mxu0 0
    %10515 = vmatprep.subr.bf16.mxu0 0
    %10516 = vmatpush2.bf16.msra.mxu0 0
    %10517 = vmatprep.subr.bf16.mxu0 0
    %10518 = vmatpush2.bf16.msra.mxu0 0
    %10519 = vmatprep.subr.bf16.mxu0 0
    %10520 = vmatpush2.bf16.msra.mxu0 0
    %10521 = vmatprep.subr.bf16.mxu0 0
    %10522 = vmatpush2.bf16.msra.mxu0 0
    %10523 = vmatprep.mubr.bf16.mxu0 0
    %10524 = vmatmul.mubr.bf16.gmra.mxu0 %v9464
    %v10525 = vpop.f32.mrf.mxu0
    %v10526 = vadd.f32 %v10485, %v10525
    %v10527 = vpop.f32.mrf.mxu0
    %v10528 = vadd.f32 %v10487, %v10527
    %v10529 = vpop.f32.mrf.mxu0
    %v10530 = vpop.f32.mrf.mxu0
    %10531 = vdwg.mxu0
    %v10532 = vmax.f32 %v9993, 0.0
    %v10533 = vmax.f32 %v9995, 0.0
    %v10534 = vmax.f32 %v10526, 0.0
    %v10535 = vmax.f32 %v10528, 0.0
    %v10536 = vpack.c.bf16 %v10532, %v10532
    %v10537 = vpack.c.bf16 %v10533, %v10533
    %v10538 = vpack.c.bf16 %v10534, %v10534
    %v10539 = vpack.c.bf16 %v10535, %v10535
    %v10540 = vld [vmem:[%s9] sm:$0xf]
    %v10541 = vld [vmem:[%s9 + $0x4] sm:$0xf]
    %v10542 = vld [vmem:[%s9 + $0x8] sm:$0xf]
    %v10543 = vld [vmem:[%s9 + $0xc] sm:$0xf]
    %v10544 = vld [vmem:[%s9 + $0x10] sm:$0xf]
    %v10545 = vld [vmem:[%s9 + $0x14] sm:$0xf]
    %v10546 = vld [vmem:[%s9 + $0x18] sm:$0xf]
    %v10547 = vld [vmem:[%s9 + $0x1c] sm:$0xf]
    %v10548 = vld [vmem:[%s9 + $0x20] sm:$0xf]
    %v10549 = vld [vmem:[%s9 + $0x24] sm:$0xf]
    %v10550 = vld [vmem:[%s9 + $0x28] sm:$0xf]
    %v10551 = vld [vmem:[%s9 + $0x2c] sm:$0xf]
    %v10552 = vld [vmem:[%s9 + $0x30] sm:$0xf]
    %v10553 = vld [vmem:[%s9 + $0x34] sm:$0xf]
    %v10554 = vld [vmem:[%s9 + $0x38] sm:$0xf]
    %v10555 = vld [vmem:[%s9 + $0x3c] sm:$0xf]
    %v10556 = vld [vmem:[%s9 + $0x40] sm:$0xf]
    %v10557 = vld [vmem:[%s9 + $0x44] sm:$0xf]
    %v10558 = vld [vmem:[%s9 + $0x48] sm:$0xf]
    %v10559 = vld [vmem:[%s9 + $0x4c] sm:$0xf]
    %v10560 = vld [vmem:[%s9 + $0x50] sm:$0xf]
    %v10561 = vld [vmem:[%s9 + $0x54] sm:$0xf]
    %v10562 = vld [vmem:[%s9 + $0x58] sm:$0xf]
    %v10563 = vld [vmem:[%s9 + $0x5c] sm:$0xf]
    %v10564 = vld [vmem:[%s9 + $0x60] sm:$0xf]
    %v10565 = vld [vmem:[%s9 + $0x64] sm:$0xf]
    %v10566 = vld [vmem:[%s9 + $0x68] sm:$0xf]
    %v10567 = vld [vmem:[%s9 + $0x6c] sm:$0xf]
    %v10568 = vld [vmem:[%s9 + $0x70] sm:$0xf]
    %v10569 = vld [vmem:[%s9 + $0x74] sm:$0xf]
    %v10570 = vld [vmem:[%s9 + $0x78] sm:$0xf]
    %v10571 = vld [vmem:[%s9 + $0x7c] sm:$0xf]
    %v10572 = vld [vmem:[%s9 + $0x80] sm:$0xf]
    %v10573 = vld [vmem:[%s9 + $0x84] sm:$0xf]
    %v10574 = vld [vmem:[%s9 + $0x88] sm:$0xf]
    %v10575 = vld [vmem:[%s9 + $0x8c] sm:$0xf]
    %v10576 = vld [vmem:[%s9 + $0x90] sm:$0xf]
    %v10577 = vld [vmem:[%s9 + $0x94] sm:$0xf]
    %v10578 = vld [vmem:[%s9 + $0x98] sm:$0xf]
    %v10579 = vld [vmem:[%s9 + $0x9c] sm:$0xf]
    %v10580 = vld [vmem:[%s9 + $0xa0] sm:$0xf]
    %v10581 = vld [vmem:[%s9 + $0xa4] sm:$0xf]
    %v10582 = vld [vmem:[%s9 + $0xa8] sm:$0xf]
    %v10583 = vld [vmem:[%s9 + $0xac] sm:$0xf]
    %v10584 = vld [vmem:[%s9 + $0xb0] sm:$0xf]
    %v10585 = vld [vmem:[%s9 + $0xb4] sm:$0xf]
    %v10586 = vld [vmem:[%s9 + $0xb8] sm:$0xf]
    %v10587 = vld [vmem:[%s9 + $0xbc] sm:$0xf]
    %v10588 = vld [vmem:[%s9 + $0xc0] sm:$0xf]
    %v10589 = vld [vmem:[%s9 + $0xc4] sm:$0xf]
    %v10590 = vld [vmem:[%s9 + $0xc8] sm:$0xf]
    %v10591 = vld [vmem:[%s9 + $0xcc] sm:$0xf]
    %v10592 = vld [vmem:[%s9 + $0xd0] sm:$0xf]
    %v10593 = vld [vmem:[%s9 + $0xd4] sm:$0xf]
    %v10594 = vld [vmem:[%s9 + $0xd8] sm:$0xf]
    %v10595 = vld [vmem:[%s9 + $0xdc] sm:$0xf]
    %v10596 = vld [vmem:[%s9 + $0xe0] sm:$0xf]
    %v10597 = vld [vmem:[%s9 + $0xe4] sm:$0xf]
    %v10598 = vld [vmem:[%s9 + $0xe8] sm:$0xf]
    %v10599 = vld [vmem:[%s9 + $0xec] sm:$0xf]
    %v10600 = vld [vmem:[%s9 + $0xf0] sm:$0xf]
    %v10601 = vld [vmem:[%s9 + $0xf4] sm:$0xf]
    %v10602 = vld [vmem:[%s9 + $0xf8] sm:$0xf]
    %v10603 = vld [vmem:[%s9 + $0xfc] sm:$0xf]
    %v10604 = vld [vmem:[%s10] sm:$0x1]
    %v10669 = vunpack.c.l.b16 %v10540
    %v10670 = vunpack.c.l.b16 %v10541
    %v10671 = vunpack.c.l.b16 %v10542
    %v10672 = vunpack.c.l.b16 %v10543
    %v10673 = vunpack.c.l.b16 %v10544
    %v10674 = vunpack.c.l.b16 %v10545
    %v10675 = vunpack.c.l.b16 %v10546
    %v10676 = vunpack.c.l.b16 %v10547
    %v10677 = vunpack.c.l.b16 %v10548
    %v10678 = vunpack.c.l.b16 %v10549
    %v10679 = vunpack.c.l.b16 %v10550
    %v10680 = vunpack.c.l.b16 %v10551
    %v10681 = vunpack.c.l.b16 %v10552
    %v10682 = vunpack.c.l.b16 %v10553
    %v10683 = vunpack.c.l.b16 %v10554
    %v10684 = vunpack.c.l.b16 %v10555
    %v10685 = vunpack.c.l.b16 %v10556
    %v10686 = vunpack.c.l.b16 %v10557
    %v10687 = vunpack.c.l.b16 %v10558
    %v10688 = vunpack.c.l.b16 %v10559
    %v10689 = vunpack.c.l.b16 %v10560
    %v10690 = vunpack.c.l.b16 %v10561
    %v10691 = vunpack.c.l.b16 %v10562
    %v10692 = vunpack.c.l.b16 %v10563
    %v10693 = vunpack.c.l.b16 %v10564
    %v10694 = vunpack.c.l.b16 %v10565
    %v10695 = vunpack.c.l.b16 %v10566
    %v10696 = vunpack.c.l.b16 %v10567
    %v10697 = vunpack.c.l.b16 %v10568
    %v10698 = vunpack.c.l.b16 %v10569
    %v10699 = vunpack.c.l.b16 %v10570
    %v10700 = vunpack.c.l.b16 %v10571
    %v10701 = vunpack.c.l.b16 %v10572
    %v10702 = vunpack.c.l.b16 %v10573
    %v10703 = vunpack.c.l.b16 %v10574
    %v10704 = vunpack.c.l.b16 %v10575
    %v10705 = vunpack.c.l.b16 %v10576
    %v10706 = vunpack.c.l.b16 %v10577
    %v10707 = vunpack.c.l.b16 %v10578
    %v10708 = vunpack.c.l.b16 %v10579
    %v10709 = vunpack.c.l.b16 %v10580
    %v10710 = vunpack.c.l.b16 %v10581
    %v10711 = vunpack.c.l.b16 %v10582
    %v10712 = vunpack.c.l.b16 %v10583
    %v10713 = vunpack.c.l.b16 %v10584
    %v10714 = vunpack.c.l.b16 %v10585
    %v10715 = vunpack.c.l.b16 %v10586
    %v10716 = vunpack.c.l.b16 %v10587
    %v10717 = vunpack.c.l.b16 %v10588
    %v10718 = vunpack.c.l.b16 %v10589
    %v10719 = vunpack.c.l.b16 %v10590
    %v10720 = vunpack.c.l.b16 %v10591
    %v10721 = vunpack.c.l.b16 %v10592
    %v10722 = vunpack.c.l.b16 %v10593
    %v10723 = vunpack.c.l.b16 %v10594
    %v10724 = vunpack.c.l.b16 %v10595
    %v10725 = vunpack.c.l.b16 %v10596
    %v10726 = vunpack.c.l.b16 %v10597
    %v10727 = vunpack.c.l.b16 %v10598
    %v10728 = vunpack.c.l.b16 %v10599
    %v10729 = vunpack.c.l.b16 %v10600
    %v10730 = vunpack.c.l.b16 %v10601
    %v10731 = vunpack.c.l.b16 %v10602
    %v10732 = vunpack.c.l.b16 %v10603
    %v10733 = vpack.c.b16 %v10670, %v10669
    %v10734 = vpack.c.b16 %v10672, %v10671
    %v10735 = vpack.c.b16 %v10674, %v10673
    %v10736 = vpack.c.b16 %v10676, %v10675
    %v10737 = vpack.c.b16 %v10678, %v10677
    %v10738 = vpack.c.b16 %v10680, %v10679
    %v10739 = vpack.c.b16 %v10682, %v10681
    %v10740 = vpack.c.b16 %v10684, %v10683
    %v10741 = vpack.c.b16 %v10686, %v10685
    %v10742 = vpack.c.b16 %v10688, %v10687
    %v10743 = vpack.c.b16 %v10690, %v10689
    %v10744 = vpack.c.b16 %v10692, %v10691
    %v10745 = vpack.c.b16 %v10694, %v10693
    %v10746 = vpack.c.b16 %v10696, %v10695
    %v10747 = vpack.c.b16 %v10698, %v10697
    %v10748 = vpack.c.b16 %v10700, %v10699
    %v10749 = vpack.c.b16 %v10702, %v10701
    %v10750 = vpack.c.b16 %v10704, %v10703
    %v10751 = vpack.c.b16 %v10706, %v10705
    %v10752 = vpack.c.b16 %v10708, %v10707
    %v10753 = vpack.c.b16 %v10710, %v10709
    %v10754 = vpack.c.b16 %v10712, %v10711
    %v10755 = vpack.c.b16 %v10714, %v10713
    %v10756 = vpack.c.b16 %v10716, %v10715
    %v10757 = vpack.c.b16 %v10718, %v10717
    %v10758 = vpack.c.b16 %v10720, %v10719
    %v10759 = vpack.c.b16 %v10722, %v10721
    %v10760 = vpack.c.b16 %v10724, %v10723
    %v10761 = vpack.c.b16 %v10726, %v10725
    %v10762 = vpack.c.b16 %v10728, %v10727
    %v10763 = vpack.c.b16 %v10730, %v10729
    %v10764 = vpack.c.b16 %v10732, %v10731
    %10797 = vmatprep.subr.bf16.mxu0 0
    %10798 = vmatpush1.bf16.msra.mxu0 %v10740
    %10799 = vmatprep.subr.bf16.mxu0 0
    %10800 = vmatpush1.bf16.msra.mxu0 %v10739
    %10801 = vmatprep.subr.bf16.mxu0 0
    %10802 = vmatpush1.bf16.msra.mxu0 %v10738
    %10803 = vmatprep.subr.bf16.mxu0 0
    %10804 = vmatpush1.bf16.msra.mxu0 %v10737
    %10805 = vmatprep.subr.bf16.mxu0 0
    %10806 = vmatpush1.bf16.msra.mxu0 %v10736
    %10807 = vmatprep.subr.bf16.mxu0 0
    %10808 = vmatpush1.bf16.msra.mxu0 %v10735
    %10809 = vmatprep.subr.bf16.mxu0 0
    %10810 = vmatpush1.bf16.msra.mxu0 %v10734
    %10811 = vmatprep.subr.bf16.mxu0 0
    %10812 = vmatpush1.bf16.msra.mxu0 %v10733
    %10813 = vmatprep.subr.bf16.mxu0 0
    %10814 = vmatpush2.bf16.msra.mxu0 %v10748
    %10815 = vmatprep.subr.bf16.mxu0 0
    %10816 = vmatpush2.bf16.msra.mxu0 %v10747
    %10817 = vmatprep.subr.bf16.mxu0 0
    %10818 = vmatpush2.bf16.msra.mxu0 %v10746
    %10819 = vmatprep.subr.bf16.mxu0 0
    %10820 = vmatpush2.bf16.msra.mxu0 %v10745
    %10821 = vmatprep.subr.bf16.mxu0 0
    %10822 = vmatpush2.bf16.msra.mxu0 %v10744
    %10823 = vmatprep.subr.bf16.mxu0 0
    %10824 = vmatpush2.bf16.msra.mxu0 %v10743
    %10825 = vmatprep.subr.bf16.mxu0 0
    %10826 = vmatpush2.bf16.msra.mxu0 %v10742
    %10827 = vmatprep.subr.bf16.mxu0 0
    %10828 = vmatpush2.bf16.msra.mxu0 %v10741
    %10829 = vmatprep.mubr.bf16.mxu0 %v10537
    %10830 = vmatmul.mubr.bf16.gmra.mxu0 %v10536
    %v10831 = vpop.f32.mrf.mxu0
    %v10832 = vadd.f32 %v10604, %v10831
    %v10833 = vpop.f32.mrf.mxu0
    %v10834 = vpop.f32.mrf.mxu0
    %v10835 = vpop.f32.mrf.mxu0
    %10836 = vdwg.mxu0
    %10837 = vmatprep.subr.bf16.mxu0 0
    %10838 = vmatpush1.bf16.msra.mxu0 %v10756
    %10839 = vmatprep.subr.bf16.mxu0 0
    %10840 = vmatpush1.bf16.msra.mxu0 %v10755
    %10841 = vmatprep.subr.bf16.mxu0 0
    %10842 = vmatpush1.bf16.msra.mxu0 %v10754
    %10843 = vmatprep.subr.bf16.mxu0 0
    %10844 = vmatpush1.bf16.msra.mxu0 %v10753
    %10845 = vmatprep.subr.bf16.mxu0 0
    %10846 = vmatpush1.bf16.msra.mxu0 %v10752
    %10847 = vmatprep.subr.bf16.mxu0 0
    %10848 = vmatpush1.bf16.msra.mxu0 %v10751
    %10849 = vmatprep.subr.bf16.mxu0 0
    %10850 = vmatpush1.bf16.msra.mxu0 %v10750
    %10851 = vmatprep.subr.bf16.mxu0 0
    %10852 = vmatpush1.bf16.msra.mxu0 %v10749
    %10853 = vmatprep.subr.bf16.mxu0 0
    %10854 = vmatpush2.bf16.msra.mxu0 %v10764
    %10855 = vmatprep.subr.bf16.mxu0 0
    %10856 = vmatpush2.bf16.msra.mxu0 %v10763
    %10857 = vmatprep.subr.bf16.mxu0 0
    %10858 = vmatpush2.bf16.msra.mxu0 %v10762
    %10859 = vmatprep.subr.bf16.mxu0 0
    %10860 = vmatpush2.bf16.msra.mxu0 %v10761
    %10861 = vmatprep.subr.bf16.mxu0 0
    %10862 = vmatpush2.bf16.msra.mxu0 %v10760
    %10863 = vmatprep.subr.bf16.mxu0 0
    %10864 = vmatpush2.bf16.msra.mxu0 %v10759
    %10865 = vmatprep.subr.bf16.mxu0 0
    %10866 = vmatpush2.bf16.msra.mxu0 %v10758
    %10867 = vmatprep.subr.bf16.mxu0 0
    %10868 = vmatpush2.bf16.msra.mxu0 %v10757
    %10869 = vmatprep.mubr.bf16.mxu0 %v10539
    %10870 = vmatmul.mubr.bf16.gmra.mxu0 %v10538
    %v10871 = vpop.f32.mrf.mxu0
    %v10872 = vadd.f32 %v10832, %v10871
    %v10873 = vpop.f32.mrf.mxu0
    %v10874 = vpop.f32.mrf.mxu0
    %v10875 = vpop.f32.mrf.mxu0
    %10876 = vdwg.mxu0
    %10877 = vst [vmem:[#allocation4] sm:$0x1] %v10872
    // Predicated region
    $region46: #{convnet1_forward.1} parent=1 // pred_check
      _
    $region47: #{convnet1_forward.1} parent=1 // pred_check_branch
      %10879 = sbr.rel (0) target = $region49
    $region48: #{convnet1_forward.1} parent=1 // pred_region
      %s10881 = ssub.s32 16, 16
      %10882 = vsyncadd [#allocation5], %s10881
      %s10884 = sshll.u32 [#allocation4], 4
      %s10885 = int_to_ptr.vmem [resolvable:$true] %s10884
      %10887 = dma.vmem_to_hbm [thread:$0]  %s10885, 16, %s11, [#allocation5]
    $region49: #{convnet1_forward.1} parent=1 // pred_fallthru
      _
    // Predicated region
    $region50: #{convnet1_forward.1} parent=1 // pred_check
      _
    $region51: #{convnet1_forward.1} parent=1 // pred_check_branch
      %10889 = sbr.rel (0) target = $region53
    $region52: #{convnet1_forward.1} parent=1 // pred_region
      %10890 = dma.done [#allocation5], 16
    $region53: #{convnet1_forward.1} parent=1 // pred_fallthru
      _
    %10891 = vsyncpa [#allocation5], 1

</llo_original>
